<compile_context>
chip_gen: v7x
topology: tpu7x:2x2x1
jax: 0.10.0
libtpu: 0.0.40
codegen_flags: <defaults>
</compile_context>

<pallas_src>
import functools
import math

import jax
import jax.numpy as jnp
from jax import lax
from jax.experimental import pallas as pl
from jax.experimental.pallas import tpu as pltpu

NUM_CLASSES = 2
_ATT1 = 48   # layer-attention hidden width
_ATT2 = 64   # step-attention hidden width


# ------------------------------ activations ---------------------------------
def _sigmoid(x):
    # 0.5*(tanh(x/2)+1): one EUP tanh instead of exp + divide.
    return 0.5 * jnp.tanh(0.5 * x) + 0.5


def _mish(x):
    # x * tanh(softplus(x)), numerically stable softplus.
    sp = jnp.maximum(x, 0.0) + jnp.log(1.0 + jnp.exp(-jnp.abs(x)))
    return x * jnp.tanh(sp)


def _gelu(x):
    # tanh approximation of GELU (PyTorch nn.GELU uses exact erf; diff < 1e-3).
    c = math.sqrt(2.0 / math.pi)
    return 0.5 * x * (1.0 + jnp.tanh(c * (x + 0.044715 * x * x * x)))


def _silu(x):
    return x * _sigmoid(x)


# --------------------------- packed-vector layout ----------------------------
def _round128(n):
    return ((n + 127) // 128) * 128


def _vec_layout(*, input_size, seq_len, hidden, num_layers):
    """Static (offset, total) layout of the single packed bias/vector array.

    Every segment start is aligned to 128 lanes so in-kernel unpacking slices
    never straddle lane tiles at odd offsets."""
    H, L = hidden, num_layers
    sizes = (
        ("benc", input_size * seq_len),
        ("bih", L * 6 * H),
        ("bhh", L * 6 * H),
        ("bl1", L * _ATT1),
        ("wl2", L * _ATT1),
        ("bl2", L),
        ("bs1", _ATT2),
        ("ws2", _ATT2),
        ("bs2", 1),
        ("gln", 2 * H),
        ("bln", 2 * H),
        ("bfc", NUM_CLASSES),
    )
    off, p = {}, 0
    for name, sz in sizes:
        p = _round128(p)
        off[name] = p
        p += sz
    return off, _round128(p)


# --------------------------------- kernel ------------------------------------
def _gru_classifier_kernel(
    x_ref, wenc_ref, wih_ref, whh_ref, wl1_ref, ws1_ref, wfc_ref, vec_ref,
    out_ref, *, input_size, seq_len, hidden, num_layers, vec_off):
    f32 = jnp.float32
    B = x_ref.shape[0]
    H, L, T = hidden, num_layers, seq_len
    H2, G6 = 2 * H, 6 * H
    dot = functools.partial(jnp.dot, preferred_element_type=f32)

    def vseg(name, start, size):
        # static slice of the packed bias/vector ref (free at point of use)
        o = vec_off[name] + start
        return vec_ref[:, o:o + size]

    # ---- 1. seq_encoder: Linear(64 -> T*input_size) + Mish (+Dropout = id) --
    enc = _mish(dot(x_ref[...], wenc_ref[...]) + vseg("benc", 0, T * input_size))

    # ---- hoisted bias broadcasts (traced once, reused for all T steps) ------
    bih_b = [jnp.broadcast_to(vseg("bih", l * G6, G6), (B, G6)) for l in range(L)]
    bhh_b = [jnp.broadcast_to(vseg("bhh", l * G6, G6), (B, G6)) for l in range(L)]
    bl1_b = jnp.broadcast_to(vseg("bl1", 0, L * _ATT1), (B, L * _ATT1))
    wl2_b = jnp.broadcast_to(vseg("wl2", 0, L * _ATT1), (B, L * _ATT1))
    bl2_b = [jnp.broadcast_to(vseg("bl2", l, 1), (B, 1)) for l in range(L)]
    bs1_b = jnp.broadcast_to(vseg("bs1", 0, _ATT2), (B, _ATT2))
    ws2_b = jnp.broadcast_to(vseg("ws2", 0, _ATT2), (B, _ATT2))
    bs2_b = jnp.broadcast_to(vseg("bs2", 0, 1), (B, 1))

    # Per-layer hidden state, kept directly in concat([h_fwd, h_bwd]) layout.
    h = [jnp.zeros((B, H2), f32) for _ in range(L)]

    m = denom = ctx = None
    for t in range(T):
        x_t = enc[:, t * input_size:(t + 1) * input_size]              # (B, in)

        # ---- 2. one timestep of the stacked bidirectional GRU ---------------
        # Gate columns interleaved [r_f|r_b|z_f|z_b|n_f|n_b]: one fused ih
        # matmul + one block-diagonal hh matmul per layer give a plain GRU-cell
        # update on 2H-wide tensors; new state is already h_cat.
        for l in range(L):
            if l == 0:
                gx = dot(x_t, wih_ref[0, :input_size, :]) + bih_b[0]
            else:
                gx = dot(h[l - 1], wih_ref[l, :H2, :]) + bih_b[l]
            gh = dot(h[l], whh_ref[l]) + bhh_b[l]
            r = _sigmoid(gx[:, :H2] + gh[:, :H2])
            z = _sigmoid(gx[:, H2:2 * H2] + gh[:, H2:2 * H2])
            n = jnp.tanh(gx[:, 2 * H2:] + r * gh[:, 2 * H2:])
            h[l] = (1.0 - z) * n + z * h[l]
        # GRU inter-layer Dropout(0.25): inference no-op.

        # ---- 3. per-layer attention gates, batched over layers --------------
        # wl1 is block-diagonal (L*2H, L*48): one matmul computes all L heads.
        hs = h[0] if L == 1 else jnp.concatenate(h, axis=-1)           # (B, L*2H)
        g = _gelu(dot(hs, wl1_ref[...]) + bl1_b)                       # (B, L*48)
        gw = g * wl2_b
        attn = _sigmoid(jnp.sum(gw[:, :_ATT1], axis=-1, keepdims=True) + bl2_b[0])
        for l in range(1, L):
            attn = attn + _sigmoid(
                jnp.sum(gw[:, l * _ATT1:(l + 1) * _ATT1], axis=-1, keepdims=True)
                + bl2_b[l])
        w_out = attn * h[L - 1]                                        # (B, 2H)

        # ---- 4. step-attention logit + ONLINE softmax over time -------------
        s = _silu(dot(w_out, ws1_ref[...]) + bs1_b)                    # (B, 64)
        score = jnp.sum(s * ws2_b, axis=-1, keepdims=True) + bs2_b     # (B, 1)
        if t == 0:
            m, denom, ctx = score, jnp.ones_like(score), w_out
        else:
            m_new = jnp.maximum(m, score)
            alpha = jnp.exp(m - m_new)
            p = jnp.exp(score - m_new)
            denom = alpha * denom + p
            ctx = alpha * ctx + p * w_out
            m = m_new

    ctx = ctx * pl.reciprocal(denom, approx=True)                      # (B, 2H)

    # ---- 5. LayerNorm(2H) + Linear(2H -> NUM_CLASSES) -----------------------
    mean = jnp.sum(ctx, axis=-1, keepdims=True) * (1.0 / H2)
    d = ctx - mean
    var = jnp.sum(d * d, axis=-1, keepdims=True) * (1.0 / H2)
    nrm = d * lax.rsqrt(var + 1e-5) * vseg("gln", 0, H2) + vseg("bln", 0, H2)
    logits = dot(nrm, wfc_ref[...]) + vseg("bfc", 0, NUM_CLASSES)
    out_ref[...] = logits.astype(out_ref.dtype)


# -------------------------------- wrapper ------------------------------------
def gru_classifier_forward(x, kparams, *, input_size, seq_len, hidden,
                           num_layers, batch_block=None):
    """Fused GRUClassifier forward.

    batch_block=None -> single grid-less call (v5e/v6e, small batch).
    batch_block=k    -> 1-D parallel grid over batch (engages both v7x TCs)."""
    batch = x.shape[0]
    vec_off, _ = _vec_layout(input_size=input_size, seq_len=seq_len,
                             hidden=hidden, num_layers=num_layers)
    kernel = functools.partial(
        _gru_classifier_kernel, input_size=input_size, seq_len=seq_len,
        hidden=hidden, num_layers=num_layers, vec_off=vec_off)
    args = (x, kparams["wenc"], kparams["wih"], kparams["whh"],
            kparams["wl1"], kparams["ws1"], kparams["wfc"], kparams["vec"])
    out_shape = jax.ShapeDtypeStruct((batch, NUM_CLASSES), jnp.float32)

    if batch_block is None or batch_block >= batch:
        vmem = pl.BlockSpec(memory_space=pltpu.MemorySpace.VMEM)
        return pl.pallas_call(kernel, out_shape=out_shape,
                              in_specs=[vmem] * len(args),
                              out_specs=vmem)(*args)

    assert batch % batch_block == 0, "batch must be divisible by batch_block"

    def whole(a):
        zero = (0,) * a.ndim
        return pl.BlockSpec(a.shape, lambda i, _z=zero: _z)

    in_specs = [pl.BlockSpec((batch_block, x.shape[1]), lambda i: (i, 0))]
    in_specs += [whole(a) for a in args[1:]]
    out_specs = pl.BlockSpec((batch_block, NUM_CLASSES), lambda i: (i, 0))
    return pl.pallas_call(
        kernel, out_shape=out_shape, grid=(batch // batch_block,),
        in_specs=in_specs, out_specs=out_specs,
        compiler_params=pltpu.CompilerParams(dimension_semantics=("parallel",)),
    )(*args)


# ----------------------- logical params + kernel packing ---------------------
def init_logical_params(key, *, input_size, seq_len, hidden, num_layers):
    """PyTorch-like parameters (already transposed to (in_features, out))."""
    H, L = hidden, num_layers
    ks = iter(jax.random.split(key, 12 * num_layers + 16))

    def u(shape, fan_in):
        s = 1.0 / math.sqrt(fan_in)
        return jax.random.uniform(next(ks), shape, jnp.float32, -s, s)

    lp = dict(
        enc_w=u((64, input_size * seq_len), 64),
        enc_b=u((input_size * seq_len,), 64),
        w_ih=[], w_hh=[], b_ih=[], b_hh=[],
        a1_w=[], a1_b=[], a2_w=[], a2_b=[],
        s1_w=u((2 * H, _ATT2), 2 * H),
        s1_b=u((_ATT2,), 2 * H),
        s2_w=u((_ATT2,), _ATT2),
        s2_b=u((), _ATT2),
        ln_g=jnp.ones((2 * H,), jnp.float32),
        ln_b=jnp.zeros((2 * H,), jnp.float32),
        fc_w=u((2 * H, NUM_CLASSES), 2 * H),
        fc_b=u((NUM_CLASSES,), 2 * H),
    )
    for l in range(L):
        in_dim = input_size if l == 0 else 2 * H
        lp["w_ih"].append([u((in_dim, 3 * H), H), u((in_dim, 3 * H), H)])
        lp["w_hh"].append([u((H, 3 * H), H), u((H, 3 * H), H)])
        lp["b_ih"].append([u((3 * H,), H), u((3 * H,), H)])
        lp["b_hh"].append([u((3 * H,), H), u((3 * H,), H)])
        lp["a1_w"].append(u((2 * H, _ATT1), 2 * H))
        lp["a1_b"].append(u((_ATT1,), 2 * H))
        lp["a2_w"].append(u((_ATT1,), _ATT1))
        lp["a2_b"].append(u((), _ATT1))
    return lp


def pack_params(lp, *, input_size, seq_len, hidden, num_layers):
    """Build kernel-layout weights (fused/interleaved/block-diag) + packed vec."""
    H, L = hidden, num_layers
    H2, G6 = 2 * H, 6 * H
    f32 = jnp.float32
    max_in = max(input_size, H2)

    def icols(wf, wb):   # (K,3H)x2 -> (K,6H) with [r_f|r_b|z_f|z_b|n_f|n_b]
        return jnp.concatenate(
            [wf[:, :H], wb[:, :H], wf[:, H:2 * H], wb[:, H:2 * H],
             wf[:, 2 * H:], wb[:, 2 * H:]], axis=-1)

    def ivec(bf, bb):    # (3H,)x2 -> (6H,)
        return jnp.concatenate(
            [bf[:H], bb[:H], bf[H:2 * H], bb[H:2 * H], bf[2 * H:], bb[2 * H:]])

    wih = []
    for l in range(L):
        w = icols(lp["w_ih"][l][0], lp["w_ih"][l][1])
        if w.shape[0] < max_in:
            w = jnp.concatenate(
                [w, jnp.zeros((max_in - w.shape[0], G6), f32)], axis=0)
        wih.append(w)
    wih = jnp.stack(wih)                                     # (L, max_in, 6H)

    zH = jnp.zeros((H, H), f32)
    whh = []
    for l in range(L):
        wf, wb = lp["w_hh"][l]
        top = jnp.concatenate([wf[:, :H], zH, wf[:, H:2 * H], zH, wf[:, 2 * H:], zH], -1)
        bot = jnp.concatenate([zH, wb[:, :H], zH, wb[:, H:2 * H], zH, wb[:, 2 * H:]], -1)
        whh.append(jnp.concatenate([top, bot], axis=0))
    whh = jnp.stack(whh)                                     # (L, 2H, 6H) block-diag

    wl1 = jnp.zeros((L * H2, L * _ATT1), f32)                # block-diag layer attn
    for l in range(L):
        wl1 = wl1.at[l * H2:(l + 1) * H2, l * _ATT1:(l + 1) * _ATT1].set(lp["a1_w"][l])

    off, total = _vec_layout(input_size=input_size, seq_len=seq_len,
                             hidden=hidden, num_layers=num_layers)
    segs = {
        "benc": lp["enc_b"],
        "bih": jnp.concatenate([ivec(lp["b_ih"][l][0], lp["b_ih"][l][1]) for l in range(L)]),
        "bhh": jnp.concatenate([ivec(lp["b_hh"][l][0], lp["b_hh"][l][1]) for l in range(L)]),
        "bl1": jnp.concatenate([lp["a1_b"][l] for l in range(L)]),
        "wl2": jnp.concatenate([lp["a2_w"][l] for l in range(L)]),
        "bl2": jnp.stack([lp["a2_b"][l] for l in range(L)]),
        "bs1": lp["s1_b"],
        "ws2": lp["s2_w"],
        "bs2": lp["s2_b"][None],
        "gln": lp["ln_g"],
        "bln": lp["ln_b"],
        "bfc": lp["fc_b"],
    }
    vec = jnp.zeros((1, total), f32)
    for name, val in segs.items():
        vec = vec.at[0, off[name]:off[name] + val.shape[0]].set(val.astype(f32))

    return dict(wenc=lp["enc_w"], wih=wih, whh=whh, wl1=wl1,
                ws1=lp["s1_w"], wfc=lp["fc_w"], vec=vec)


# --------------------------- pure-JAX reference ------------------------------
def gru_classifier_reference(x, lp, *, input_size, seq_len, hidden, num_layers):
    H, L = hidden, num_layers
    B = x.shape[0]
    enc = _mish(x @ lp["enc_w"] + lp["enc_b"])
    seq = enc.reshape(B, seq_len, input_size)
    h = [[jnp.zeros((B, H), jnp.float32) for _ in range(2)] for _ in range(L)]
    outs = []
    for t in range(seq_len):
        layer_in = seq[:, t, :]
        for l in range(L):
            pair = []
            for d in range(2):
                gx = layer_in @ lp["w_ih"][l][d] + lp["b_ih"][l][d]
                gh = h[l][d] @ lp["w_hh"][l][d] + lp["b_hh"][l][d]
                r = _sigmoid(gx[:, :H] + gh[:, :H])
                z = _sigmoid(gx[:, H:2 * H] + gh[:, H:2 * H])
                n = jnp.tanh(gx[:, 2 * H:] + r * gh[:, 2 * H:])
                pair.append((1.0 - z) * n + z * h[l][d])
            h[l] = pair
            layer_in = jnp.concatenate(pair, axis=-1)
        out_t = layer_in                                             # (B, 2H)
        attn = jnp.zeros((B, 1), jnp.float32)
        for l in range(L):
            lh = jnp.concatenate(h[l], axis=-1)
            g = _gelu(lh @ lp["a1_w"][l] + lp["a1_b"][l])
            attn = attn + _sigmoid(g @ lp["a2_w"][l][:, None] + lp["a2_b"][l])
        outs.append(attn * out_t)
    all_out = jnp.stack(outs, axis=1)                                # (B, T, 2H)
    s = _silu(all_out @ lp["s1_w"] + lp["s1_b"])
    scores = jnp.einsum("btk,k->bt", s, lp["s2_w"]) + lp["s2_b"]
    w = jax.nn.softmax(scores, axis=1)[:, :, None]
    ctx = jnp.sum(all_out * w, axis=1)
    mean = jnp.mean(ctx, axis=-1, keepdims=True)
    var = jnp.mean((ctx - mean) ** 2, axis=-1, keepdims=True)
    nrm = (ctx - mean) * lax.rsqrt(var + 1e-5) * lp["ln_g"] + lp["ln_b"]
    return nrm @ lp["fc_w"] + lp["fc_b"]


if __name__ == "__main__":
    B = 8             # batch
    INPUT_SIZE = 16   # per-timestep feature width fed to the GRU
    SEQ_LEN = 8       # timesteps (encoder emits INPUT_SIZE*SEQ_LEN = 128 feats)
    HIDDEN = 32       # GRU hidden size per direction
    NUM_LAYERS = 2    # stacked bidirectional GRU layers
    dims = dict(input_size=INPUT_SIZE, seq_len=SEQ_LEN,
                hidden=HIDDEN, num_layers=NUM_LAYERS)

    root = jax.random.PRNGKey(0)
    k_x, k_p, k_x2 = jax.random.split(root, 3)
    x = jax.random.normal(k_x, (B, 64), dtype=jnp.float32)
    logical = init_logical_params(k_p, **dims)
    packed = pack_params(logical, **dims)

    # -- grid-less path (one TensorCore; v5e/v6e and small batch) -------------
    fwd = jax.jit(functools.partial(gru_classifier_forward, **dims))
    logits = jax.block_until_ready(fwd(x, packed))
    assert logits.shape == (B, NUM_CLASSES) and logits.dtype == jnp.float32
    assert bool(jnp.all(jnp.isfinite(logits)))

    with jax.default_matmul_precision("highest"):
        ref = gru_classifier_reference(x, logical, **dims)
    ref = jax.block_until_ready(ref)
    assert bool(jnp.allclose(logits, ref, atol=3e-2, rtol=3e-2)), (
        float(jnp.max(jnp.abs(logits - ref))))

    # -- v7x megacore path: 1-D parallel grid over batch ----------------------
    B2 = 32
    x2 = jax.random.normal(k_x2, (B2, 64), dtype=jnp.float32)
    fwd2 = jax.jit(functools.partial(gru_classifier_forward, batch_block=16, **dims))
    logits2 = jax.block_until_ready(fwd2(x2, packed))
    with jax.default_matmul_precision("highest"):
        ref2 = gru_classifier_reference(x2, logical, **dims)
    ref2 = jax.block_until_ready(ref2)
    assert logits2.shape == (B2, NUM_CLASSES)
    assert bool(jnp.allclose(logits2, ref2, atol=3e-2, rtol=3e-2)), (
        float(jnp.max(jnp.abs(logits2 - ref2))))

    print("KERNEL_OK")
</pallas_src>

<mosaic_0001>
module attributes {stable_mosaic.version = 11 : i64} {
  func.func @_gru_classifier_kernel(%arg0: memref<8x64xf32, #tpu.memory_space<vmem>>, %arg1: memref<64x128xf32, #tpu.memory_space<vmem>>, %arg2: memref<2x64x192xf32, #tpu.memory_space<vmem>>, %arg3: memref<2x64x192xf32, #tpu.memory_space<vmem>>, %arg4: memref<128x96xf32, #tpu.memory_space<vmem>>, %arg5: memref<64x64xf32, #tpu.memory_space<vmem>>, %arg6: memref<64x2xf32, #tpu.memory_space<vmem>>, %arg7: memref<1x2048xf32, #tpu.memory_space<vmem>>, %arg8: memref<8x2xf32, #tpu.memory_space<vmem>>) attributes {dimension_semantics = [], scalar_prefetch = 0 : i64, scratch_operands = 0 : i64, tpu.core_type = #tpu.core_type<tc>} {
    %c0 = arith.constant 0 : index
    %c0_0 = arith.constant 0 : index
    %0 = vector.load %arg0[%c0, %c0_0] : memref<8x64xf32, #tpu.memory_space<vmem>>, vector<8x64xf32>
    %c0_1 = arith.constant 0 : index
    %c0_2 = arith.constant 0 : index
    %1 = vector.load %arg1[%c0_1, %c0_2] : memref<64x128xf32, #tpu.memory_space<vmem>>, vector<64x128xf32>
    %cst = arith.constant dense<0.000000e+00> : vector<8x128xf32>
    %2 = tpu.matmul %0, %1, %cst {dimension_numbers = #tpu.dot_dimension_numbers<[1], [0], [0], [1], [0, 0, 1, 1], [], []>} : vector<8x64xf32>, vector<64x128xf32>, vector<8x128xf32> -> vector<8x128xf32>
    %c0_3 = arith.constant 0 : index
    %c0_4 = arith.constant 0 : index
    %3 = vector.load %arg7[%c0_3, %c0_4] : memref<1x2048xf32, #tpu.memory_space<vmem>>, vector<1x128xf32>
    %4 = vector.broadcast %3 : vector<1x128xf32> to vector<8x128xf32>
    %5 = arith.addf %2, %4 : vector<8x128xf32>
    %cst_5 = arith.constant 0.000000e+00 : f32
    %6 = vector.broadcast %cst_5 : f32 to vector<8x128xf32>
    %7 = arith.maximumf %5, %6 : vector<8x128xf32>
    %8 = math.absf %5 : vector<8x128xf32>
    %cst_6 = arith.constant 0.000000e+00 : f32
    %9 = vector.broadcast %cst_6 : f32 to vector<8x128xf32>
    %10 = arith.subf %9, %8 : vector<8x128xf32>
    %11 = math.exp %10 : vector<8x128xf32>
    %cst_7 = arith.constant 1.000000e+00 : f32
    %12 = vector.broadcast %cst_7 : f32 to vector<8x128xf32>
    %13 = arith.addf %12, %11 : vector<8x128xf32>
    %14 = math.log %13 : vector<8x128xf32>
    %15 = arith.addf %7, %14 : vector<8x128xf32>
    %16 = math.tanh %15 : vector<8x128xf32>
    %17 = arith.mulf %5, %16 : vector<8x128xf32>
    %c0_8 = arith.constant 0 : index
    %c128 = arith.constant 128 : index
    %18 = vector.load %arg7[%c0_8, %c128] : memref<1x2048xf32, #tpu.memory_space<vmem>>, vector<1x192xf32>
    %19 = vector.shape_cast %18 : vector<1x192xf32> to vector<1x192xf32>
    %20 = vector.broadcast %19 : vector<1x192xf32> to vector<8x192xf32>
    %c0_9 = arith.constant 0 : index
    %c320 = arith.constant 320 : index
    %21 = vector.load %arg7[%c0_9, %c320] : memref<1x2048xf32, #tpu.memory_space<vmem>>, vector<1x192xf32>
    %22 = vector.shape_cast %21 : vector<1x192xf32> to vector<1x192xf32>
    %23 = vector.broadcast %22 : vector<1x192xf32> to vector<8x192xf32>
    %c0_10 = arith.constant 0 : index
    %c512 = arith.constant 512 : index
    %24 = vector.load %arg7[%c0_10, %c512] : memref<1x2048xf32, #tpu.memory_space<vmem>>, vector<1x192xf32>
    %25 = vector.shape_cast %24 : vector<1x192xf32> to vector<1x192xf32>
    %26 = vector.broadcast %25 : vector<1x192xf32> to vector<8x192xf32>
    %c0_11 = arith.constant 0 : index
    %c704 = arith.constant 704 : index
    %27 = vector.load %arg7[%c0_11, %c704] : memref<1x2048xf32, #tpu.memory_space<vmem>>, vector<1x192xf32>
    %28 = vector.shape_cast %27 : vector<1x192xf32> to vector<1x192xf32>
    %29 = vector.broadcast %28 : vector<1x192xf32> to vector<8x192xf32>
    %c0_12 = arith.constant 0 : index
    %c896 = arith.constant 896 : index
    %30 = vector.load %arg7[%c0_12, %c896] : memref<1x2048xf32, #tpu.memory_space<vmem>>, vector<1x96xf32>
    %31 = vector.shape_cast %30 : vector<1x96xf32> to vector<1x96xf32>
    %32 = vector.broadcast %31 : vector<1x96xf32> to vector<8x96xf32>
    %c0_13 = arith.constant 0 : index
    %c1024 = arith.constant 1024 : index
    %33 = vector.load %arg7[%c0_13, %c1024] : memref<1x2048xf32, #tpu.memory_space<vmem>>, vector<1x96xf32>
    %34 = vector.shape_cast %33 : vector<1x96xf32> to vector<1x96xf32>
    %35 = vector.broadcast %34 : vector<1x96xf32> to vector<8x96xf32>
    %c0_14 = arith.constant 0 : index
    %c1152 = arith.constant 1152 : index
    %36 = vector.load %arg7[%c0_14, %c1152] : memref<1x2048xf32, #tpu.memory_space<vmem>>, vector<1x1xf32>
    %37 = vector.shape_cast %36 : vector<1x1xf32> to vector<1x1xf32>
    %38 = vector.broadcast %37 : vector<1x1xf32> to vector<8x1xf32>
    %c0_15 = arith.constant 0 : index
    %c1153 = arith.constant 1153 : index
    %39 = vector.load %arg7[%c0_15, %c1153] : memref<1x2048xf32, #tpu.memory_space<vmem>>, vector<1x1xf32>
    %40 = vector.shape_cast %39 : vector<1x1xf32> to vector<1x1xf32>
    %41 = vector.broadcast %40 : vector<1x1xf32> to vector<8x1xf32>
    %c0_16 = arith.constant 0 : index
    %c1280 = arith.constant 1280 : index
    %42 = vector.load %arg7[%c0_16, %c1280] : memref<1x2048xf32, #tpu.memory_space<vmem>>, vector<1x64xf32>
    %43 = vector.shape_cast %42 : vector<1x64xf32> to vector<1x64xf32>
    %44 = vector.broadcast %43 : vector<1x64xf32> to vector<8x64xf32>
    %c0_17 = arith.constant 0 : index
    %c1408 = arith.constant 1408 : index
    %45 = vector.load %arg7[%c0_17, %c1408] : memref<1x2048xf32, #tpu.memory_space<vmem>>, vector<1x64xf32>
    %46 = vector.shape_cast %45 : vector<1x64xf32> to vector<1x64xf32>
    %47 = vector.broadcast %46 : vector<1x64xf32> to vector<8x64xf32>
    %c0_18 = arith.constant 0 : index
    %c1536 = arith.constant 1536 : index
    %48 = vector.load %arg7[%c0_18, %c1536] : memref<1x2048xf32, #tpu.memory_space<vmem>>, vector<1x1xf32>
    %49 = vector.shape_cast %48 : vector<1x1xf32> to vector<1x1xf32>
    %50 = vector.broadcast %49 : vector<1x1xf32> to vector<8x1xf32>
    %cst_19 = arith.constant 0.000000e+00 : f32
    %51 = vector.broadcast %cst_19 : f32 to vector<8x64xf32>
    %cst_20 = arith.constant 0.000000e+00 : f32
    %52 = vector.broadcast %cst_20 : f32 to vector<8x64xf32>
    %53 = vector.extract_strided_slice %17 {offsets = [0, 0], sizes = [8, 16], strides = [1, 1]} : vector<8x128xf32> to vector<8x16xf32>
    %c0_21 = arith.constant 0 : index
    %c0_22 = arith.constant 0 : index
    %c0_23 = arith.constant 0 : index
    %54 = vector.load %arg2[%c0_21, %c0_22, %c0_23] : memref<2x64x192xf32, #tpu.memory_space<vmem>>, vector<1x16x192xf32>
    %55 = vector.shape_cast %54 : vector<1x16x192xf32> to vector<16x192xf32>
    %cst_24 = arith.constant dense<0.000000e+00> : vector<8x192xf32>
    %56 = tpu.matmul %53, %55, %cst_24 {dimension_numbers = #tpu.dot_dimension_numbers<[1], [0], [0], [1], [0, 0, 1, 1], [], []>} : vector<8x16xf32>, vector<16x192xf32>, vector<8x192xf32> -> vector<8x192xf32>
    %57 = arith.addf %56, %20 : vector<8x192xf32>
    %c0_25 = arith.constant 0 : index
    %c0_26 = arith.constant 0 : index
    %c0_27 = arith.constant 0 : index
    %58 = vector.load %arg3[%c0_25, %c0_26, %c0_27] : memref<2x64x192xf32, #tpu.memory_space<vmem>>, vector<1x64x192xf32>
    %59 = vector.shape_cast %58 : vector<1x64x192xf32> to vector<64x192xf32>
    %cst_28 = arith.constant dense<0.000000e+00> : vector<8x192xf32>
    %60 = tpu.matmul %51, %59, %cst_28 {dimension_numbers = #tpu.dot_dimension_numbers<[1], [0], [0], [1], [0, 0, 1, 1], [], []>} : vector<8x64xf32>, vector<64x192xf32>, vector<8x192xf32> -> vector<8x192xf32>
    %61 = arith.addf %60, %26 : vector<8x192xf32>
    %62 = vector.extract_strided_slice %57 {offsets = [0, 0], sizes = [8, 64], strides = [1, 1]} : vector<8x192xf32> to vector<8x64xf32>
    %63 = vector.extract_strided_slice %61 {offsets = [0, 0], sizes = [8, 64], strides = [1, 1]} : vector<8x192xf32> to vector<8x64xf32>
    %64 = arith.addf %62, %63 : vector<8x64xf32>
    %cst_29 = arith.constant 5.000000e-01 : f32
    %65 = vector.broadcast %cst_29 : f32 to vector<8x64xf32>
    %66 = arith.mulf %65, %64 : vector<8x64xf32>
    %67 = math.tanh %66 : vector<8x64xf32>
    %cst_30 = arith.constant 5.000000e-01 : f32
    %68 = vector.broadcast %cst_30 : f32 to vector<8x64xf32>
    %69 = arith.mulf %68, %67 : vector<8x64xf32>
    %cst_31 = arith.constant 5.000000e-01 : f32
    %70 = vector.broadcast %cst_31 : f32 to vector<8x64xf32>
    %71 = arith.addf %69, %70 : vector<8x64xf32>
    %72 = vector.extract_strided_slice %57 {offsets = [0, 64], sizes = [8, 64], strides = [1, 1]} : vector<8x192xf32> to vector<8x64xf32>
    %73 = vector.extract_strided_slice %61 {offsets = [0, 64], sizes = [8, 64], strides = [1, 1]} : vector<8x192xf32> to vector<8x64xf32>
    %74 = arith.addf %72, %73 : vector<8x64xf32>
    %cst_32 = arith.constant 5.000000e-01 : f32
    %75 = vector.broadcast %cst_32 : f32 to vector<8x64xf32>
    %76 = arith.mulf %75, %74 : vector<8x64xf32>
    %77 = math.tanh %76 : vector<8x64xf32>
    %cst_33 = arith.constant 5.000000e-01 : f32
    %78 = vector.broadcast %cst_33 : f32 to vector<8x64xf32>
    %79 = arith.mulf %78, %77 : vector<8x64xf32>
    %cst_34 = arith.constant 5.000000e-01 : f32
    %80 = vector.broadcast %cst_34 : f32 to vector<8x64xf32>
    %81 = arith.addf %79, %80 : vector<8x64xf32>
    %82 = vector.extract_strided_slice %57 {offsets = [0, 128], sizes = [8, 64], strides = [1, 1]} : vector<8x192xf32> to vector<8x64xf32>
    %83 = vector.extract_strided_slice %61 {offsets = [0, 128], sizes = [8, 64], strides = [1, 1]} : vector<8x192xf32> to vector<8x64xf32>
    %84 = arith.mulf %71, %83 : vector<8x64xf32>
    %85 = arith.addf %82, %84 : vector<8x64xf32>
    %86 = math.tanh %85 : vector<8x64xf32>
    %cst_35 = arith.constant 1.000000e+00 : f32
    %87 = vector.broadcast %cst_35 : f32 to vector<8x64xf32>
    %88 = arith.subf %87, %81 : vector<8x64xf32>
    %89 = arith.mulf %88, %86 : vector<8x64xf32>
    %90 = arith.mulf %81, %51 : vector<8x64xf32>
    %91 = arith.addf %89, %90 : vector<8x64xf32>
    %c1 = arith.constant 1 : index
    %c0_36 = arith.constant 0 : index
    %c0_37 = arith.constant 0 : index
    %92 = vector.load %arg2[%c1, %c0_36, %c0_37] : memref<2x64x192xf32, #tpu.memory_space<vmem>>, vector<1x64x192xf32>
    %93 = vector.shape_cast %92 : vector<1x64x192xf32> to vector<64x192xf32>
    %cst_38 = arith.constant dense<0.000000e+00> : vector<8x192xf32>
    %94 = tpu.matmul %91, %93, %cst_38 {dimension_numbers = #tpu.dot_dimension_numbers<[1], [0], [0], [1], [0, 0, 1, 1], [], []>} : vector<8x64xf32>, vector<64x192xf32>, vector<8x192xf32> -> vector<8x192xf32>
    %95 = arith.addf %94, %23 : vector<8x192xf32>
    %c1_39 = arith.constant 1 : index
    %c0_40 = arith.constant 0 : index
    %c0_41 = arith.constant 0 : index
    %96 = vector.load %arg3[%c1_39, %c0_40, %c0_41] : memref<2x64x192xf32, #tpu.memory_space<vmem>>, vector<1x64x192xf32>
    %97 = vector.shape_cast %96 : vector<1x64x192xf32> to vector<64x192xf32>
    %cst_42 = arith.constant dense<0.000000e+00> : vector<8x192xf32>
    %98 = tpu.matmul %52, %97, %cst_42 {dimension_numbers = #tpu.dot_dimension_numbers<[1], [0], [0], [1], [0, 0, 1, 1], [], []>} : vector<8x64xf32>, vector<64x192xf32>, vector<8x192xf32> -> vector<8x192xf32>
    %99 = arith.addf %98, %29 : vector<8x192xf32>
    %100 = vector.extract_strided_slice %95 {offsets = [0, 0], sizes = [8, 64], strides = [1, 1]} : vector<8x192xf32> to vector<8x64xf32>
    %101 = vector.extract_strided_slice %99 {offsets = [0, 0], sizes = [8, 64], strides = [1, 1]} : vector<8x192xf32> to vector<8x64xf32>
    %102 = arith.addf %100, %101 : vector<8x64xf32>
    %cst_43 = arith.constant 5.000000e-01 : f32
    %103 = vector.broadcast %cst_43 : f32 to vector<8x64xf32>
    %104 = arith.mulf %103, %102 : vector<8x64xf32>
    %105 = math.tanh %104 : vector<8x64xf32>
    %cst_44 = arith.constant 5.000000e-01 : f32
    %106 = vector.broadcast %cst_44 : f32 to vector<8x64xf32>
    %107 = arith.mulf %106, %105 : vector<8x64xf32>
    %cst_45 = arith.constant 5.000000e-01 : f32
    %108 = vector.broadcast %cst_45 : f32 to vector<8x64xf32>
    %109 = arith.addf %107, %108 : vector<8x64xf32>
    %110 = vector.extract_strided_slice %95 {offsets = [0, 64], sizes = [8, 64], strides = [1, 1]} : vector<8x192xf32> to vector<8x64xf32>
    %111 = vector.extract_strided_slice %99 {offsets = [0, 64], sizes = [8, 64], strides = [1, 1]} : vector<8x192xf32> to vector<8x64xf32>
    %112 = arith.addf %110, %111 : vector<8x64xf32>
    %cst_46 = arith.constant 5.000000e-01 : f32
    %113 = vector.broadcast %cst_46 : f32 to vector<8x64xf32>
    %114 = arith.mulf %113, %112 : vector<8x64xf32>
    %115 = math.tanh %114 : vector<8x64xf32>
    %cst_47 = arith.constant 5.000000e-01 : f32
    %116 = vector.broadcast %cst_47 : f32 to vector<8x64xf32>
    %117 = arith.mulf %116, %115 : vector<8x64xf32>
    %cst_48 = arith.constant 5.000000e-01 : f32
    %118 = vector.broadcast %cst_48 : f32 to vector<8x64xf32>
    %119 = arith.addf %117, %118 : vector<8x64xf32>
    %120 = vector.extract_strided_slice %95 {offsets = [0, 128], sizes = [8, 64], strides = [1, 1]} : vector<8x192xf32> to vector<8x64xf32>
    %121 = vector.extract_strided_slice %99 {offsets = [0, 128], sizes = [8, 64], strides = [1, 1]} : vector<8x192xf32> to vector<8x64xf32>
    %122 = arith.mulf %109, %121 : vector<8x64xf32>
    %123 = arith.addf %120, %122 : vector<8x64xf32>
    %124 = math.tanh %123 : vector<8x64xf32>
    %cst_49 = arith.constant 1.000000e+00 : f32
    %125 = vector.broadcast %cst_49 : f32 to vector<8x64xf32>
    %126 = arith.subf %125, %119 : vector<8x64xf32>
    %127 = arith.mulf %126, %124 : vector<8x64xf32>
    %128 = arith.mulf %119, %52 : vector<8x64xf32>
    %129 = arith.addf %127, %128 : vector<8x64xf32>
    %130 = tpu.concatenate %91, %129 in 1 : vector<8x64xf32>, vector<8x64xf32> -> vector<8x128xf32>
    %c0_50 = arith.constant 0 : index
    %c0_51 = arith.constant 0 : index
    %131 = vector.load %arg4[%c0_50, %c0_51] : memref<128x96xf32, #tpu.memory_space<vmem>>, vector<128x96xf32>
    %cst_52 = arith.constant dense<0.000000e+00> : vector<8x96xf32>
    %132 = tpu.matmul %130, %131, %cst_52 {dimension_numbers = #tpu.dot_dimension_numbers<[1], [0], [0], [1], [0, 0, 1, 1], [], []>} : vector<8x128xf32>, vector<128x96xf32>, vector<8x96xf32> -> vector<8x96xf32>
    %133 = arith.addf %132, %32 : vector<8x96xf32>
    %cst_53 = arith.constant 5.000000e-01 : f32
    %134 = vector.broadcast %cst_53 : f32 to vector<8x96xf32>
    %135 = arith.mulf %134, %133 : vector<8x96xf32>
    %cst_54 = arith.constant 4.471500e-02 : f32
    %136 = vector.broadcast %cst_54 : f32 to vector<8x96xf32>
    %137 = arith.mulf %136, %133 : vector<8x96xf32>
    %138 = arith.mulf %137, %133 : vector<8x96xf32>
    %139 = arith.mulf %138, %133 : vector<8x96xf32>
    %140 = arith.addf %133, %139 : vector<8x96xf32>
    %cst_55 = arith.constant 0.797884583 : f32
    %141 = vector.broadcast %cst_55 : f32 to vector<8x96xf32>
    %142 = arith.mulf %141, %140 : vector<8x96xf32>
    %143 = math.tanh %142 : vector<8x96xf32>
    %cst_56 = arith.constant 1.000000e+00 : f32
    %144 = vector.broadcast %cst_56 : f32 to vector<8x96xf32>
    %145 = arith.addf %144, %143 : vector<8x96xf32>
    %146 = arith.mulf %135, %145 : vector<8x96xf32>
    %147 = arith.mulf %146, %35 : vector<8x96xf32>
    %148 = vector.extract_strided_slice %147 {offsets = [0, 0], sizes = [8, 48], strides = [1, 1]} : vector<8x96xf32> to vector<8x48xf32>
    %cst_57 = arith.constant dense<0.000000e+00> : vector<8xf32>
    %149 = vector.multi_reduction <add>, %148, %cst_57 [1] : vector<8x48xf32> to vector<8xf32>
    %150 = vector.shape_cast %149 : vector<8xf32> to vector<8x1xf32>
    %151 = arith.addf %150, %38 : vector<8x1xf32>
    %cst_58 = arith.constant 5.000000e-01 : f32
    %152 = vector.broadcast %cst_58 : f32 to vector<8x1xf32>
    %153 = arith.mulf %152, %151 : vector<8x1xf32>
    %154 = math.tanh %153 : vector<8x1xf32>
    %cst_59 = arith.constant 5.000000e-01 : f32
    %155 = vector.broadcast %cst_59 : f32 to vector<8x1xf32>
    %156 = arith.mulf %155, %154 : vector<8x1xf32>
    %cst_60 = arith.constant 5.000000e-01 : f32
    %157 = vector.broadcast %cst_60 : f32 to vector<8x1xf32>
    %158 = arith.addf %156, %157 : vector<8x1xf32>
    %159 = vector.extract_strided_slice %147 {offsets = [0, 48], sizes = [8, 48], strides = [1, 1]} : vector<8x96xf32> to vector<8x48xf32>
    %cst_61 = arith.constant dense<0.000000e+00> : vector<8xf32>
    %160 = vector.multi_reduction <add>, %159, %cst_61 [1] : vector<8x48xf32> to vector<8xf32>
    %161 = vector.shape_cast %160 : vector<8xf32> to vector<8x1xf32>
    %162 = arith.addf %161, %41 : vector<8x1xf32>
    %cst_62 = arith.constant 5.000000e-01 : f32
    %163 = vector.broadcast %cst_62 : f32 to vector<8x1xf32>
    %164 = arith.mulf %163, %162 : vector<8x1xf32>
    %165 = math.tanh %164 : vector<8x1xf32>
    %cst_63 = arith.constant 5.000000e-01 : f32
    %166 = vector.broadcast %cst_63 : f32 to vector<8x1xf32>
    %167 = arith.mulf %166, %165 : vector<8x1xf32>
    %cst_64 = arith.constant 5.000000e-01 : f32
    %168 = vector.broadcast %cst_64 : f32 to vector<8x1xf32>
    %169 = arith.addf %167, %168 : vector<8x1xf32>
    %170 = arith.addf %158, %169 : vector<8x1xf32>
    %171 = vector.broadcast %170 : vector<8x1xf32> to vector<8x64xf32>
    %172 = arith.mulf %171, %129 : vector<8x64xf32>
    %c0_65 = arith.constant 0 : index
    %c0_66 = arith.constant 0 : index
    %173 = vector.load %arg5[%c0_65, %c0_66] : memref<64x64xf32, #tpu.memory_space<vmem>>, vector<64x64xf32>
    %cst_67 = arith.constant dense<0.000000e+00> : vector<8x64xf32>
    %174 = tpu.matmul %172, %173, %cst_67 {dimension_numbers = #tpu.dot_dimension_numbers<[1], [0], [0], [1], [0, 0, 1, 1], [], []>} : vector<8x64xf32>, vector<64x64xf32>, vector<8x64xf32> -> vector<8x64xf32>
    %175 = arith.addf %174, %44 : vector<8x64xf32>
    %cst_68 = arith.constant 5.000000e-01 : f32
    %176 = vector.broadcast %cst_68 : f32 to vector<8x64xf32>
    %177 = arith.mulf %176, %175 : vector<8x64xf32>
    %178 = math.tanh %177 : vector<8x64xf32>
    %cst_69 = arith.constant 5.000000e-01 : f32
    %179 = vector.broadcast %cst_69 : f32 to vector<8x64xf32>
    %180 = arith.mulf %179, %178 : vector<8x64xf32>
    %cst_70 = arith.constant 5.000000e-01 : f32
    %181 = vector.broadcast %cst_70 : f32 to vector<8x64xf32>
    %182 = arith.addf %180, %181 : vector<8x64xf32>
    %183 = arith.mulf %175, %182 : vector<8x64xf32>
    %184 = arith.mulf %183, %47 : vector<8x64xf32>
    %cst_71 = arith.constant dense<0.000000e+00> : vector<8xf32>
    %185 = vector.multi_reduction <add>, %184, %cst_71 [1] : vector<8x64xf32> to vector<8xf32>
    %186 = vector.shape_cast %185 : vector<8xf32> to vector<8x1xf32>
    %187 = arith.addf %186, %50 : vector<8x1xf32>
    %cst_72 = arith.constant 1.000000e+00 : f32
    %188 = vector.broadcast %cst_72 : f32 to vector<8x1xf32>
    %189 = vector.extract_strided_slice %17 {offsets = [0, 16], sizes = [8, 16], strides = [1, 1]} : vector<8x128xf32> to vector<8x16xf32>
    %c0_73 = arith.constant 0 : index
    %c0_74 = arith.constant 0 : index
    %c0_75 = arith.constant 0 : index
    %190 = vector.load %arg2[%c0_73, %c0_74, %c0_75] : memref<2x64x192xf32, #tpu.memory_space<vmem>>, vector<1x16x192xf32>
    %191 = vector.shape_cast %190 : vector<1x16x192xf32> to vector<16x192xf32>
    %cst_76 = arith.constant dense<0.000000e+00> : vector<8x192xf32>
    %192 = tpu.matmul %189, %191, %cst_76 {dimension_numbers = #tpu.dot_dimension_numbers<[1], [0], [0], [1], [0, 0, 1, 1], [], []>} : vector<8x16xf32>, vector<16x192xf32>, vector<8x192xf32> -> vector<8x192xf32>
    %193 = arith.addf %192, %20 : vector<8x192xf32>
    %c0_77 = arith.constant 0 : index
    %c0_78 = arith.constant 0 : index
    %c0_79 = arith.constant 0 : index
    %194 = vector.load %arg3[%c0_77, %c0_78, %c0_79] : memref<2x64x192xf32, #tpu.memory_space<vmem>>, vector<1x64x192xf32>
    %195 = vector.shape_cast %194 : vector<1x64x192xf32> to vector<64x192xf32>
    %cst_80 = arith.constant dense<0.000000e+00> : vector<8x192xf32>
    %196 = tpu.matmul %91, %195, %cst_80 {dimension_numbers = #tpu.dot_dimension_numbers<[1], [0], [0], [1], [0, 0, 1, 1], [], []>} : vector<8x64xf32>, vector<64x192xf32>, vector<8x192xf32> -> vector<8x192xf32>
    %197 = arith.addf %196, %26 : vector<8x192xf32>
    %198 = vector.extract_strided_slice %193 {offsets = [0, 0], sizes = [8, 64], strides = [1, 1]} : vector<8x192xf32> to vector<8x64xf32>
    %199 = vector.extract_strided_slice %197 {offsets = [0, 0], sizes = [8, 64], strides = [1, 1]} : vector<8x192xf32> to vector<8x64xf32>
    %200 = arith.addf %198, %199 : vector<8x64xf32>
    %cst_81 = arith.constant 5.000000e-01 : f32
    %201 = vector.broadcast %cst_81 : f32 to vector<8x64xf32>
    %202 = arith.mulf %201, %200 : vector<8x64xf32>
    %203 = math.tanh %202 : vector<8x64xf32>
    %cst_82 = arith.constant 5.000000e-01 : f32
    %204 = vector.broadcast %cst_82 : f32 to vector<8x64xf32>
    %205 = arith.mulf %204, %203 : vector<8x64xf32>
    %cst_83 = arith.constant 5.000000e-01 : f32
    %206 = vector.broadcast %cst_83 : f32 to vector<8x64xf32>
    %207 = arith.addf %205, %206 : vector<8x64xf32>
    %208 = vector.extract_strided_slice %193 {offsets = [0, 64], sizes = [8, 64], strides = [1, 1]} : vector<8x192xf32> to vector<8x64xf32>
    %209 = vector.extract_strided_slice %197 {offsets = [0, 64], sizes = [8, 64], strides = [1, 1]} : vector<8x192xf32> to vector<8x64xf32>
    %210 = arith.addf %208, %209 : vector<8x64xf32>
    %cst_84 = arith.constant 5.000000e-01 : f32
    %211 = vector.broadcast %cst_84 : f32 to vector<8x64xf32>
    %212 = arith.mulf %211, %210 : vector<8x64xf32>
    %213 = math.tanh %212 : vector<8x64xf32>
    %cst_85 = arith.constant 5.000000e-01 : f32
    %214 = vector.broadcast %cst_85 : f32 to vector<8x64xf32>
    %215 = arith.mulf %214, %213 : vector<8x64xf32>
    %cst_86 = arith.constant 5.000000e-01 : f32
    %216 = vector.broadcast %cst_86 : f32 to vector<8x64xf32>
    %217 = arith.addf %215, %216 : vector<8x64xf32>
    %218 = vector.extract_strided_slice %193 {offsets = [0, 128], sizes = [8, 64], strides = [1, 1]} : vector<8x192xf32> to vector<8x64xf32>
    %219 = vector.extract_strided_slice %197 {offsets = [0, 128], sizes = [8, 64], strides = [1, 1]} : vector<8x192xf32> to vector<8x64xf32>
    %220 = arith.mulf %207, %219 : vector<8x64xf32>
    %221 = arith.addf %218, %220 : vector<8x64xf32>
    %222 = math.tanh %221 : vector<8x64xf32>
    %cst_87 = arith.constant 1.000000e+00 : f32
    %223 = vector.broadcast %cst_87 : f32 to vector<8x64xf32>
    %224 = arith.subf %223, %217 : vector<8x64xf32>
    %225 = arith.mulf %224, %222 : vector<8x64xf32>
    %226 = arith.mulf %217, %91 : vector<8x64xf32>
    %227 = arith.addf %225, %226 : vector<8x64xf32>
    %c1_88 = arith.constant 1 : index
    %c0_89 = arith.constant 0 : index
    %c0_90 = arith.constant 0 : index
    %228 = vector.load %arg2[%c1_88, %c0_89, %c0_90] : memref<2x64x192xf32, #tpu.memory_space<vmem>>, vector<1x64x192xf32>
    %229 = vector.shape_cast %228 : vector<1x64x192xf32> to vector<64x192xf32>
    %cst_91 = arith.constant dense<0.000000e+00> : vector<8x192xf32>
    %230 = tpu.matmul %227, %229, %cst_91 {dimension_numbers = #tpu.dot_dimension_numbers<[1], [0], [0], [1], [0, 0, 1, 1], [], []>} : vector<8x64xf32>, vector<64x192xf32>, vector<8x192xf32> -> vector<8x192xf32>
    %231 = arith.addf %230, %23 : vector<8x192xf32>
    %c1_92 = arith.constant 1 : index
    %c0_93 = arith.constant 0 : index
    %c0_94 = arith.constant 0 : index
    %232 = vector.load %arg3[%c1_92, %c0_93, %c0_94] : memref<2x64x192xf32, #tpu.memory_space<vmem>>, vector<1x64x192xf32>
    %233 = vector.shape_cast %232 : vector<1x64x192xf32> to vector<64x192xf32>
    %cst_95 = arith.constant dense<0.000000e+00> : vector<8x192xf32>
    %234 = tpu.matmul %129, %233, %cst_95 {dimension_numbers = #tpu.dot_dimension_numbers<[1], [0], [0], [1], [0, 0, 1, 1], [], []>} : vector<8x64xf32>, vector<64x192xf32>, vector<8x192xf32> -> vector<8x192xf32>
    %235 = arith.addf %234, %29 : vector<8x192xf32>
    %236 = vector.extract_strided_slice %231 {offsets = [0, 0], sizes = [8, 64], strides = [1, 1]} : vector<8x192xf32> to vector<8x64xf32>
    %237 = vector.extract_strided_slice %235 {offsets = [0, 0], sizes = [8, 64], strides = [1, 1]} : vector<8x192xf32> to vector<8x64xf32>
    %238 = arith.addf %236, %237 : vector<8x64xf32>
    %cst_96 = arith.constant 5.000000e-01 : f32
    %239 = vector.broadcast %cst_96 : f32 to vector<8x64xf32>
    %240 = arith.mulf %239, %238 : vector<8x64xf32>
    %241 = math.tanh %240 : vector<8x64xf32>
    %cst_97 = arith.constant 5.000000e-01 : f32
    %242 = vector.broadcast %cst_97 : f32 to vector<8x64xf32>
    %243 = arith.mulf %242, %241 : vector<8x64xf32>
    %cst_98 = arith.constant 5.000000e-01 : f32
    %244 = vector.broadcast %cst_98 : f32 to vector<8x64xf32>
    %245 = arith.addf %243, %244 : vector<8x64xf32>
    %246 = vector.extract_strided_slice %231 {offsets = [0, 64], sizes = [8, 64], strides = [1, 1]} : vector<8x192xf32> to vector<8x64xf32>
    %247 = vector.extract_strided_slice %235 {offsets = [0, 64], sizes = [8, 64], strides = [1, 1]} : vector<8x192xf32> to vector<8x64xf32>
    %248 = arith.addf %246, %247 : vector<8x64xf32>
    %cst_99 = arith.constant 5.000000e-01 : f32
    %249 = vector.broadcast %cst_99 : f32 to vector<8x64xf32>
    %250 = arith.mulf %249, %248 : vector<8x64xf32>
    %251 = math.tanh %250 : vector<8x64xf32>
    %cst_100 = arith.constant 5.000000e-01 : f32
    %252 = vector.broadcast %cst_100 : f32 to vector<8x64xf32>
    %253 = arith.mulf %252, %251 : vector<8x64xf32>
    %cst_101 = arith.constant 5.000000e-01 : f32
    %254 = vector.broadcast %cst_101 : f32 to vector<8x64xf32>
    %255 = arith.addf %253, %254 : vector<8x64xf32>
    %256 = vector.extract_strided_slice %231 {offsets = [0, 128], sizes = [8, 64], strides = [1, 1]} : vector<8x192xf32> to vector<8x64xf32>
    %257 = vector.extract_strided_slice %235 {offsets = [0, 128], sizes = [8, 64], strides = [1, 1]} : vector<8x192xf32> to vector<8x64xf32>
    %258 = arith.mulf %245, %257 : vector<8x64xf32>
    %259 = arith.addf %256, %258 : vector<8x64xf32>
    %260 = math.tanh %259 : vector<8x64xf32>
    %cst_102 = arith.constant 1.000000e+00 : f32
    %261 = vector.broadcast %cst_102 : f32 to vector<8x64xf32>
    %262 = arith.subf %261, %255 : vector<8x64xf32>
    %263 = arith.mulf %262, %260 : vector<8x64xf32>
    %264 = arith.mulf %255, %129 : vector<8x64xf32>
    %265 = arith.addf %263, %264 : vector<8x64xf32>
    %266 = tpu.concatenate %227, %265 in 1 : vector<8x64xf32>, vector<8x64xf32> -> vector<8x128xf32>
    %c0_103 = arith.constant 0 : index
    %c0_104 = arith.constant 0 : index
    %267 = vector.load %arg4[%c0_103, %c0_104] : memref<128x96xf32, #tpu.memory_space<vmem>>, vector<128x96xf32>
    %cst_105 = arith.constant dense<0.000000e+00> : vector<8x96xf32>
    %268 = tpu.matmul %266, %267, %cst_105 {dimension_numbers = #tpu.dot_dimension_numbers<[1], [0], [0], [1], [0, 0, 1, 1], [], []>} : vector<8x128xf32>, vector<128x96xf32>, vector<8x96xf32> -> vector<8x96xf32>
    %269 = arith.addf %268, %32 : vector<8x96xf32>
    %cst_106 = arith.constant 5.000000e-01 : f32
    %270 = vector.broadcast %cst_106 : f32 to vector<8x96xf32>
    %271 = arith.mulf %270, %269 : vector<8x96xf32>
    %cst_107 = arith.constant 4.471500e-02 : f32
    %272 = vector.broadcast %cst_107 : f32 to vector<8x96xf32>
    %273 = arith.mulf %272, %269 : vector<8x96xf32>
    %274 = arith.mulf %273, %269 : vector<8x96xf32>
    %275 = arith.mulf %274, %269 : vector<8x96xf32>
    %276 = arith.addf %269, %275 : vector<8x96xf32>
    %cst_108 = arith.constant 0.797884583 : f32
    %277 = vector.broadcast %cst_108 : f32 to vector<8x96xf32>
    %278 = arith.mulf %277, %276 : vector<8x96xf32>
    %279 = math.tanh %278 : vector<8x96xf32>
    %cst_109 = arith.constant 1.000000e+00 : f32
    %280 = vector.broadcast %cst_109 : f32 to vector<8x96xf32>
    %281 = arith.addf %280, %279 : vector<8x96xf32>
    %282 = arith.mulf %271, %281 : vector<8x96xf32>
    %283 = arith.mulf %282, %35 : vector<8x96xf32>
    %284 = vector.extract_strided_slice %283 {offsets = [0, 0], sizes = [8, 48], strides = [1, 1]} : vector<8x96xf32> to vector<8x48xf32>
    %cst_110 = arith.constant dense<0.000000e+00> : vector<8xf32>
    %285 = vector.multi_reduction <add>, %284, %cst_110 [1] : vector<8x48xf32> to vector<8xf32>
    %286 = vector.shape_cast %285 : vector<8xf32> to vector<8x1xf32>
    %287 = arith.addf %286, %38 : vector<8x1xf32>
    %cst_111 = arith.constant 5.000000e-01 : f32
    %288 = vector.broadcast %cst_111 : f32 to vector<8x1xf32>
    %289 = arith.mulf %288, %287 : vector<8x1xf32>
    %290 = math.tanh %289 : vector<8x1xf32>
    %cst_112 = arith.constant 5.000000e-01 : f32
    %291 = vector.broadcast %cst_112 : f32 to vector<8x1xf32>
    %292 = arith.mulf %291, %290 : vector<8x1xf32>
    %cst_113 = arith.constant 5.000000e-01 : f32
    %293 = vector.broadcast %cst_113 : f32 to vector<8x1xf32>
    %294 = arith.addf %292, %293 : vector<8x1xf32>
    %295 = vector.extract_strided_slice %283 {offsets = [0, 48], sizes = [8, 48], strides = [1, 1]} : vector<8x96xf32> to vector<8x48xf32>
    %cst_114 = arith.constant dense<0.000000e+00> : vector<8xf32>
    %296 = vector.multi_reduction <add>, %295, %cst_114 [1] : vector<8x48xf32> to vector<8xf32>
    %297 = vector.shape_cast %296 : vector<8xf32> to vector<8x1xf32>
    %298 = arith.addf %297, %41 : vector<8x1xf32>
    %cst_115 = arith.constant 5.000000e-01 : f32
    %299 = vector.broadcast %cst_115 : f32 to vector<8x1xf32>
    %300 = arith.mulf %299, %298 : vector<8x1xf32>
    %301 = math.tanh %300 : vector<8x1xf32>
    %cst_116 = arith.constant 5.000000e-01 : f32
    %302 = vector.broadcast %cst_116 : f32 to vector<8x1xf32>
    %303 = arith.mulf %302, %301 : vector<8x1xf32>
    %cst_117 = arith.constant 5.000000e-01 : f32
    %304 = vector.broadcast %cst_117 : f32 to vector<8x1xf32>
    %305 = arith.addf %303, %304 : vector<8x1xf32>
    %306 = arith.addf %294, %305 : vector<8x1xf32>
    %307 = vector.broadcast %306 : vector<8x1xf32> to vector<8x64xf32>
    %308 = arith.mulf %307, %265 : vector<8x64xf32>
    %c0_118 = arith.constant 0 : index
    %c0_119 = arith.constant 0 : index
    %309 = vector.load %arg5[%c0_118, %c0_119] : memref<64x64xf32, #tpu.memory_space<vmem>>, vector<64x64xf32>
    %cst_120 = arith.constant dense<0.000000e+00> : vector<8x64xf32>
    %310 = tpu.matmul %308, %309, %cst_120 {dimension_numbers = #tpu.dot_dimension_numbers<[1], [0], [0], [1], [0, 0, 1, 1], [], []>} : vector<8x64xf32>, vector<64x64xf32>, vector<8x64xf32> -> vector<8x64xf32>
    %311 = arith.addf %310, %44 : vector<8x64xf32>
    %cst_121 = arith.constant 5.000000e-01 : f32
    %312 = vector.broadcast %cst_121 : f32 to vector<8x64xf32>
    %313 = arith.mulf %312, %311 : vector<8x64xf32>
    %314 = math.tanh %313 : vector<8x64xf32>
    %cst_122 = arith.constant 5.000000e-01 : f32
    %315 = vector.broadcast %cst_122 : f32 to vector<8x64xf32>
    %316 = arith.mulf %315, %314 : vector<8x64xf32>
    %cst_123 = arith.constant 5.000000e-01 : f32
    %317 = vector.broadcast %cst_123 : f32 to vector<8x64xf32>
    %318 = arith.addf %316, %317 : vector<8x64xf32>
    %319 = arith.mulf %311, %318 : vector<8x64xf32>
    %320 = arith.mulf %319, %47 : vector<8x64xf32>
    %cst_124 = arith.constant dense<0.000000e+00> : vector<8xf32>
    %321 = vector.multi_reduction <add>, %320, %cst_124 [1] : vector<8x64xf32> to vector<8xf32>
    %322 = vector.shape_cast %321 : vector<8xf32> to vector<8x1xf32>
    %323 = arith.addf %322, %50 : vector<8x1xf32>
    %324 = arith.maximumf %187, %323 : vector<8x1xf32>
    %325 = arith.subf %187, %324 : vector<8x1xf32>
    %326 = math.exp %325 : vector<8x1xf32>
    %327 = arith.subf %323, %324 : vector<8x1xf32>
    %328 = math.exp %327 : vector<8x1xf32>
    %329 = arith.mulf %326, %188 : vector<8x1xf32>
    %330 = arith.addf %329, %328 : vector<8x1xf32>
    %331 = vector.broadcast %326 : vector<8x1xf32> to vector<8x64xf32>
    %332 = arith.mulf %331, %172 : vector<8x64xf32>
    %333 = vector.broadcast %328 : vector<8x1xf32> to vector<8x64xf32>
    %334 = arith.mulf %333, %308 : vector<8x64xf32>
    %335 = arith.addf %332, %334 : vector<8x64xf32>
    %336 = vector.extract_strided_slice %17 {offsets = [0, 32], sizes = [8, 16], strides = [1, 1]} : vector<8x128xf32> to vector<8x16xf32>
    %c0_125 = arith.constant 0 : index
    %c0_126 = arith.constant 0 : index
    %c0_127 = arith.constant 0 : index
    %337 = vector.load %arg2[%c0_125, %c0_126, %c0_127] : memref<2x64x192xf32, #tpu.memory_space<vmem>>, vector<1x16x192xf32>
    %338 = vector.shape_cast %337 : vector<1x16x192xf32> to vector<16x192xf32>
    %cst_128 = arith.constant dense<0.000000e+00> : vector<8x192xf32>
    %339 = tpu.matmul %336, %338, %cst_128 {dimension_numbers = #tpu.dot_dimension_numbers<[1], [0], [0], [1], [0, 0, 1, 1], [], []>} : vector<8x16xf32>, vector<16x192xf32>, vector<8x192xf32> -> vector<8x192xf32>
    %340 = arith.addf %339, %20 : vector<8x192xf32>
    %c0_129 = arith.constant 0 : index
    %c0_130 = arith.constant 0 : index
    %c0_131 = arith.constant 0 : index
    %341 = vector.load %arg3[%c0_129, %c0_130, %c0_131] : memref<2x64x192xf32, #tpu.memory_space<vmem>>, vector<1x64x192xf32>
    %342 = vector.shape_cast %341 : vector<1x64x192xf32> to vector<64x192xf32>
    %cst_132 = arith.constant dense<0.000000e+00> : vector<8x192xf32>
    %343 = tpu.matmul %227, %342, %cst_132 {dimension_numbers = #tpu.dot_dimension_numbers<[1], [0], [0], [1], [0, 0, 1, 1], [], []>} : vector<8x64xf32>, vector<64x192xf32>, vector<8x192xf32> -> vector<8x192xf32>
    %344 = arith.addf %343, %26 : vector<8x192xf32>
    %345 = vector.extract_strided_slice %340 {offsets = [0, 0], sizes = [8, 64], strides = [1, 1]} : vector<8x192xf32> to vector<8x64xf32>
    %346 = vector.extract_strided_slice %344 {offsets = [0, 0], sizes = [8, 64], strides = [1, 1]} : vector<8x192xf32> to vector<8x64xf32>
    %347 = arith.addf %345, %346 : vector<8x64xf32>
    %cst_133 = arith.constant 5.000000e-01 : f32
    %348 = vector.broadcast %cst_133 : f32 to vector<8x64xf32>
    %349 = arith.mulf %348, %347 : vector<8x64xf32>
    %350 = math.tanh %349 : vector<8x64xf32>
    %cst_134 = arith.constant 5.000000e-01 : f32
    %351 = vector.broadcast %cst_134 : f32 to vector<8x64xf32>
    %352 = arith.mulf %351, %350 : vector<8x64xf32>
    %cst_135 = arith.constant 5.000000e-01 : f32
    %353 = vector.broadcast %cst_135 : f32 to vector<8x64xf32>
    %354 = arith.addf %352, %353 : vector<8x64xf32>
    %355 = vector.extract_strided_slice %340 {offsets = [0, 64], sizes = [8, 64], strides = [1, 1]} : vector<8x192xf32> to vector<8x64xf32>
    %356 = vector.extract_strided_slice %344 {offsets = [0, 64], sizes = [8, 64], strides = [1, 1]} : vector<8x192xf32> to vector<8x64xf32>
    %357 = arith.addf %355, %356 : vector<8x64xf32>
    %cst_136 = arith.constant 5.000000e-01 : f32
    %358 = vector.broadcast %cst_136 : f32 to vector<8x64xf32>
    %359 = arith.mulf %358, %357 : vector<8x64xf32>
    %360 = math.tanh %359 : vector<8x64xf32>
    %cst_137 = arith.constant 5.000000e-01 : f32
    %361 = vector.broadcast %cst_137 : f32 to vector<8x64xf32>
    %362 = arith.mulf %361, %360 : vector<8x64xf32>
    %cst_138 = arith.constant 5.000000e-01 : f32
    %363 = vector.broadcast %cst_138 : f32 to vector<8x64xf32>
    %364 = arith.addf %362, %363 : vector<8x64xf32>
    %365 = vector.extract_strided_slice %340 {offsets = [0, 128], sizes = [8, 64], strides = [1, 1]} : vector<8x192xf32> to vector<8x64xf32>
    %366 = vector.extract_strided_slice %344 {offsets = [0, 128], sizes = [8, 64], strides = [1, 1]} : vector<8x192xf32> to vector<8x64xf32>
    %367 = arith.mulf %354, %366 : vector<8x64xf32>
    %368 = arith.addf %365, %367 : vector<8x64xf32>
    %369 = math.tanh %368 : vector<8x64xf32>
    %cst_139 = arith.constant 1.000000e+00 : f32
    %370 = vector.broadcast %cst_139 : f32 to vector<8x64xf32>
    %371 = arith.subf %370, %364 : vector<8x64xf32>
    %372 = arith.mulf %371, %369 : vector<8x64xf32>
    %373 = arith.mulf %364, %227 : vector<8x64xf32>
    %374 = arith.addf %372, %373 : vector<8x64xf32>
    %c1_140 = arith.constant 1 : index
    %c0_141 = arith.constant 0 : index
    %c0_142 = arith.constant 0 : index
    %375 = vector.load %arg2[%c1_140, %c0_141, %c0_142] : memref<2x64x192xf32, #tpu.memory_space<vmem>>, vector<1x64x192xf32>
    %376 = vector.shape_cast %375 : vector<1x64x192xf32> to vector<64x192xf32>
    %cst_143 = arith.constant dense<0.000000e+00> : vector<8x192xf32>
    %377 = tpu.matmul %374, %376, %cst_143 {dimension_numbers = #tpu.dot_dimension_numbers<[1], [0], [0], [1], [0, 0, 1, 1], [], []>} : vector<8x64xf32>, vector<64x192xf32>, vector<8x192xf32> -> vector<8x192xf32>
    %378 = arith.addf %377, %23 : vector<8x192xf32>
    %c1_144 = arith.constant 1 : index
    %c0_145 = arith.constant 0 : index
    %c0_146 = arith.constant 0 : index
    %379 = vector.load %arg3[%c1_144, %c0_145, %c0_146] : memref<2x64x192xf32, #tpu.memory_space<vmem>>, vector<1x64x192xf32>
    %380 = vector.shape_cast %379 : vector<1x64x192xf32> to vector<64x192xf32>
    %cst_147 = arith.constant dense<0.000000e+00> : vector<8x192xf32>
    %381 = tpu.matmul %265, %380, %cst_147 {dimension_numbers = #tpu.dot_dimension_numbers<[1], [0], [0], [1], [0, 0, 1, 1], [], []>} : vector<8x64xf32>, vector<64x192xf32>, vector<8x192xf32> -> vector<8x192xf32>
    %382 = arith.addf %381, %29 : vector<8x192xf32>
    %383 = vector.extract_strided_slice %378 {offsets = [0, 0], sizes = [8, 64], strides = [1, 1]} : vector<8x192xf32> to vector<8x64xf32>
    %384 = vector.extract_strided_slice %382 {offsets = [0, 0], sizes = [8, 64], strides = [1, 1]} : vector<8x192xf32> to vector<8x64xf32>
    %385 = arith.addf %383, %384 : vector<8x64xf32>
    %cst_148 = arith.constant 5.000000e-01 : f32
    %386 = vector.broadcast %cst_148 : f32 to vector<8x64xf32>
    %387 = arith.mulf %386, %385 : vector<8x64xf32>
    %388 = math.tanh %387 : vector<8x64xf32>
    %cst_149 = arith.constant 5.000000e-01 : f32
    %389 = vector.broadcast %cst_149 : f32 to vector<8x64xf32>
    %390 = arith.mulf %389, %388 : vector<8x64xf32>
    %cst_150 = arith.constant 5.000000e-01 : f32
    %391 = vector.broadcast %cst_150 : f32 to vector<8x64xf32>
    %392 = arith.addf %390, %391 : vector<8x64xf32>
    %393 = vector.extract_strided_slice %378 {offsets = [0, 64], sizes = [8, 64], strides = [1, 1]} : vector<8x192xf32> to vector<8x64xf32>
    %394 = vector.extract_strided_slice %382 {offsets = [0, 64], sizes = [8, 64], strides = [1, 1]} : vector<8x192xf32> to vector<8x64xf32>
    %395 = arith.addf %393, %394 : vector<8x64xf32>
    %cst_151 = arith.constant 5.000000e-01 : f32
    %396 = vector.broadcast %cst_151 : f32 to vector<8x64xf32>
    %397 = arith.mulf %396, %395 : vector<8x64xf32>
    %398 = math.tanh %397 : vector<8x64xf32>
    %cst_152 = arith.constant 5.000000e-01 : f32
    %399 = vector.broadcast %cst_152 : f32 to vector<8x64xf32>
    %400 = arith.mulf %399, %398 : vector<8x64xf32>
    %cst_153 = arith.constant 5.000000e-01 : f32
    %401 = vector.broadcast %cst_153 : f32 to vector<8x64xf32>
    %402 = arith.addf %400, %401 : vector<8x64xf32>
    %403 = vector.extract_strided_slice %378 {offsets = [0, 128], sizes = [8, 64], strides = [1, 1]} : vector<8x192xf32> to vector<8x64xf32>
    %404 = vector.extract_strided_slice %382 {offsets = [0, 128], sizes = [8, 64], strides = [1, 1]} : vector<8x192xf32> to vector<8x64xf32>
    %405 = arith.mulf %392, %404 : vector<8x64xf32>
    %406 = arith.addf %403, %405 : vector<8x64xf32>
    %407 = math.tanh %406 : vector<8x64xf32>
    %cst_154 = arith.constant 1.000000e+00 : f32
    %408 = vector.broadcast %cst_154 : f32 to vector<8x64xf32>
    %409 = arith.subf %408, %402 : vector<8x64xf32>
    %410 = arith.mulf %409, %407 : vector<8x64xf32>
    %411 = arith.mulf %402, %265 : vector<8x64xf32>
    %412 = arith.addf %410, %411 : vector<8x64xf32>
    %413 = tpu.concatenate %374, %412 in 1 : vector<8x64xf32>, vector<8x64xf32> -> vector<8x128xf32>
    %c0_155 = arith.constant 0 : index
    %c0_156 = arith.constant 0 : index
    %414 = vector.load %arg4[%c0_155, %c0_156] : memref<128x96xf32, #tpu.memory_space<vmem>>, vector<128x96xf32>
    %cst_157 = arith.constant dense<0.000000e+00> : vector<8x96xf32>
    %415 = tpu.matmul %413, %414, %cst_157 {dimension_numbers = #tpu.dot_dimension_numbers<[1], [0], [0], [1], [0, 0, 1, 1], [], []>} : vector<8x128xf32>, vector<128x96xf32>, vector<8x96xf32> -> vector<8x96xf32>
    %416 = arith.addf %415, %32 : vector<8x96xf32>
    %cst_158 = arith.constant 5.000000e-01 : f32
    %417 = vector.broadcast %cst_158 : f32 to vector<8x96xf32>
    %418 = arith.mulf %417, %416 : vector<8x96xf32>
    %cst_159 = arith.constant 4.471500e-02 : f32
    %419 = vector.broadcast %cst_159 : f32 to vector<8x96xf32>
    %420 = arith.mulf %419, %416 : vector<8x96xf32>
    %421 = arith.mulf %420, %416 : vector<8x96xf32>
    %422 = arith.mulf %421, %416 : vector<8x96xf32>
    %423 = arith.addf %416, %422 : vector<8x96xf32>
    %cst_160 = arith.constant 0.797884583 : f32
    %424 = vector.broadcast %cst_160 : f32 to vector<8x96xf32>
    %425 = arith.mulf %424, %423 : vector<8x96xf32>
    %426 = math.tanh %425 : vector<8x96xf32>
    %cst_161 = arith.constant 1.000000e+00 : f32
    %427 = vector.broadcast %cst_161 : f32 to vector<8x96xf32>
    %428 = arith.addf %427, %426 : vector<8x96xf32>
    %429 = arith.mulf %418, %428 : vector<8x96xf32>
    %430 = arith.mulf %429, %35 : vector<8x96xf32>
    %431 = vector.extract_strided_slice %430 {offsets = [0, 0], sizes = [8, 48], strides = [1, 1]} : vector<8x96xf32> to vector<8x48xf32>
    %cst_162 = arith.constant dense<0.000000e+00> : vector<8xf32>
    %432 = vector.multi_reduction <add>, %431, %cst_162 [1] : vector<8x48xf32> to vector<8xf32>
    %433 = vector.shape_cast %432 : vector<8xf32> to vector<8x1xf32>
    %434 = arith.addf %433, %38 : vector<8x1xf32>
    %cst_163 = arith.constant 5.000000e-01 : f32
    %435 = vector.broadcast %cst_163 : f32 to vector<8x1xf32>
    %436 = arith.mulf %435, %434 : vector<8x1xf32>
    %437 = math.tanh %436 : vector<8x1xf32>
    %cst_164 = arith.constant 5.000000e-01 : f32
    %438 = vector.broadcast %cst_164 : f32 to vector<8x1xf32>
    %439 = arith.mulf %438, %437 : vector<8x1xf32>
    %cst_165 = arith.constant 5.000000e-01 : f32
    %440 = vector.broadcast %cst_165 : f32 to vector<8x1xf32>
    %441 = arith.addf %439, %440 : vector<8x1xf32>
    %442 = vector.extract_strided_slice %430 {offsets = [0, 48], sizes = [8, 48], strides = [1, 1]} : vector<8x96xf32> to vector<8x48xf32>
    %cst_166 = arith.constant dense<0.000000e+00> : vector<8xf32>
    %443 = vector.multi_reduction <add>, %442, %cst_166 [1] : vector<8x48xf32> to vector<8xf32>
    %444 = vector.shape_cast %443 : vector<8xf32> to vector<8x1xf32>
    %445 = arith.addf %444, %41 : vector<8x1xf32>
    %cst_167 = arith.constant 5.000000e-01 : f32
    %446 = vector.broadcast %cst_167 : f32 to vector<8x1xf32>
    %447 = arith.mulf %446, %445 : vector<8x1xf32>
    %448 = math.tanh %447 : vector<8x1xf32>
    %cst_168 = arith.constant 5.000000e-01 : f32
    %449 = vector.broadcast %cst_168 : f32 to vector<8x1xf32>
    %450 = arith.mulf %449, %448 : vector<8x1xf32>
    %cst_169 = arith.constant 5.000000e-01 : f32
    %451 = vector.broadcast %cst_169 : f32 to vector<8x1xf32>
    %452 = arith.addf %450, %451 : vector<8x1xf32>
    %453 = arith.addf %441, %452 : vector<8x1xf32>
    %454 = vector.broadcast %453 : vector<8x1xf32> to vector<8x64xf32>
    %455 = arith.mulf %454, %412 : vector<8x64xf32>
    %c0_170 = arith.constant 0 : index
    %c0_171 = arith.constant 0 : index
    %456 = vector.load %arg5[%c0_170, %c0_171] : memref<64x64xf32, #tpu.memory_space<vmem>>, vector<64x64xf32>
    %cst_172 = arith.constant dense<0.000000e+00> : vector<8x64xf32>
    %457 = tpu.matmul %455, %456, %cst_172 {dimension_numbers = #tpu.dot_dimension_numbers<[1], [0], [0], [1], [0, 0, 1, 1], [], []>} : vector<8x64xf32>, vector<64x64xf32>, vector<8x64xf32> -> vector<8x64xf32>
    %458 = arith.addf %457, %44 : vector<8x64xf32>
    %cst_173 = arith.constant 5.000000e-01 : f32
    %459 = vector.broadcast %cst_173 : f32 to vector<8x64xf32>
    %460 = arith.mulf %459, %458 : vector<8x64xf32>
    %461 = math.tanh %460 : vector<8x64xf32>
    %cst_174 = arith.constant 5.000000e-01 : f32
    %462 = vector.broadcast %cst_174 : f32 to vector<8x64xf32>
    %463 = arith.mulf %462, %461 : vector<8x64xf32>
    %cst_175 = arith.constant 5.000000e-01 : f32
    %464 = vector.broadcast %cst_175 : f32 to vector<8x64xf32>
    %465 = arith.addf %463, %464 : vector<8x64xf32>
    %466 = arith.mulf %458, %465 : vector<8x64xf32>
    %467 = arith.mulf %466, %47 : vector<8x64xf32>
    %cst_176 = arith.constant dense<0.000000e+00> : vector<8xf32>
    %468 = vector.multi_reduction <add>, %467, %cst_176 [1] : vector<8x64xf32> to vector<8xf32>
    %469 = vector.shape_cast %468 : vector<8xf32> to vector<8x1xf32>
    %470 = arith.addf %469, %50 : vector<8x1xf32>
    %471 = arith.maximumf %324, %470 : vector<8x1xf32>
    %472 = arith.subf %324, %471 : vector<8x1xf32>
    %473 = math.exp %472 : vector<8x1xf32>
    %474 = arith.subf %470, %471 : vector<8x1xf32>
    %475 = math.exp %474 : vector<8x1xf32>
    %476 = arith.mulf %473, %330 : vector<8x1xf32>
    %477 = arith.addf %476, %475 : vector<8x1xf32>
    %478 = vector.broadcast %473 : vector<8x1xf32> to vector<8x64xf32>
    %479 = arith.mulf %478, %335 : vector<8x64xf32>
    %480 = vector.broadcast %475 : vector<8x1xf32> to vector<8x64xf32>
    %481 = arith.mulf %480, %455 : vector<8x64xf32>
    %482 = arith.addf %479, %481 : vector<8x64xf32>
    %483 = vector.extract_strided_slice %17 {offsets = [0, 48], sizes = [8, 16], strides = [1, 1]} : vector<8x128xf32> to vector<8x16xf32>
    %c0_177 = arith.constant 0 : index
    %c0_178 = arith.constant 0 : index
    %c0_179 = arith.constant 0 : index
    %484 = vector.load %arg2[%c0_177, %c0_178, %c0_179] : memref<2x64x192xf32, #tpu.memory_space<vmem>>, vector<1x16x192xf32>
    %485 = vector.shape_cast %484 : vector<1x16x192xf32> to vector<16x192xf32>
    %cst_180 = arith.constant dense<0.000000e+00> : vector<8x192xf32>
    %486 = tpu.matmul %483, %485, %cst_180 {dimension_numbers = #tpu.dot_dimension_numbers<[1], [0], [0], [1], [0, 0, 1, 1], [], []>} : vector<8x16xf32>, vector<16x192xf32>, vector<8x192xf32> -> vector<8x192xf32>
    %487 = arith.addf %486, %20 : vector<8x192xf32>
    %c0_181 = arith.constant 0 : index
    %c0_182 = arith.constant 0 : index
    %c0_183 = arith.constant 0 : index
    %488 = vector.load %arg3[%c0_181, %c0_182, %c0_183] : memref<2x64x192xf32, #tpu.memory_space<vmem>>, vector<1x64x192xf32>
    %489 = vector.shape_cast %488 : vector<1x64x192xf32> to vector<64x192xf32>
    %cst_184 = arith.constant dense<0.000000e+00> : vector<8x192xf32>
    %490 = tpu.matmul %374, %489, %cst_184 {dimension_numbers = #tpu.dot_dimension_numbers<[1], [0], [0], [1], [0, 0, 1, 1], [], []>} : vector<8x64xf32>, vector<64x192xf32>, vector<8x192xf32> -> vector<8x192xf32>
    %491 = arith.addf %490, %26 : vector<8x192xf32>
    %492 = vector.extract_strided_slice %487 {offsets = [0, 0], sizes = [8, 64], strides = [1, 1]} : vector<8x192xf32> to vector<8x64xf32>
    %493 = vector.extract_strided_slice %491 {offsets = [0, 0], sizes = [8, 64], strides = [1, 1]} : vector<8x192xf32> to vector<8x64xf32>
    %494 = arith.addf %492, %493 : vector<8x64xf32>
    %cst_185 = arith.constant 5.000000e-01 : f32
    %495 = vector.broadcast %cst_185 : f32 to vector<8x64xf32>
    %496 = arith.mulf %495, %494 : vector<8x64xf32>
    %497 = math.tanh %496 : vector<8x64xf32>
    %cst_186 = arith.constant 5.000000e-01 : f32
    %498 = vector.broadcast %cst_186 : f32 to vector<8x64xf32>
    %499 = arith.mulf %498, %497 : vector<8x64xf32>
    %cst_187 = arith.constant 5.000000e-01 : f32
    %500 = vector.broadcast %cst_187 : f32 to vector<8x64xf32>
    %501 = arith.addf %499, %500 : vector<8x64xf32>
    %502 = vector.extract_strided_slice %487 {offsets = [0, 64], sizes = [8, 64], strides = [1, 1]} : vector<8x192xf32> to vector<8x64xf32>
    %503 = vector.extract_strided_slice %491 {offsets = [0, 64], sizes = [8, 64], strides = [1, 1]} : vector<8x192xf32> to vector<8x64xf32>
    %504 = arith.addf %502, %503 : vector<8x64xf32>
    %cst_188 = arith.constant 5.000000e-01 : f32
    %505 = vector.broadcast %cst_188 : f32 to vector<8x64xf32>
    %506 = arith.mulf %505, %504 : vector<8x64xf32>
    %507 = math.tanh %506 : vector<8x64xf32>
    %cst_189 = arith.constant 5.000000e-01 : f32
    %508 = vector.broadcast %cst_189 : f32 to vector<8x64xf32>
    %509 = arith.mulf %508, %507 : vector<8x64xf32>
    %cst_190 = arith.constant 5.000000e-01 : f32
    %510 = vector.broadcast %cst_190 : f32 to vector<8x64xf32>
    %511 = arith.addf %509, %510 : vector<8x64xf32>
    %512 = vector.extract_strided_slice %487 {offsets = [0, 128], sizes = [8, 64], strides = [1, 1]} : vector<8x192xf32> to vector<8x64xf32>
    %513 = vector.extract_strided_slice %491 {offsets = [0, 128], sizes = [8, 64], strides = [1, 1]} : vector<8x192xf32> to vector<8x64xf32>
    %514 = arith.mulf %501, %513 : vector<8x64xf32>
    %515 = arith.addf %512, %514 : vector<8x64xf32>
    %516 = math.tanh %515 : vector<8x64xf32>
    %cst_191 = arith.constant 1.000000e+00 : f32
    %517 = vector.broadcast %cst_191 : f32 to vector<8x64xf32>
    %518 = arith.subf %517, %511 : vector<8x64xf32>
    %519 = arith.mulf %518, %516 : vector<8x64xf32>
    %520 = arith.mulf %511, %374 : vector<8x64xf32>
    %521 = arith.addf %519, %520 : vector<8x64xf32>
    %c1_192 = arith.constant 1 : index
    %c0_193 = arith.constant 0 : index
    %c0_194 = arith.constant 0 : index
    %522 = vector.load %arg2[%c1_192, %c0_193, %c0_194] : memref<2x64x192xf32, #tpu.memory_space<vmem>>, vector<1x64x192xf32>
    %523 = vector.shape_cast %522 : vector<1x64x192xf32> to vector<64x192xf32>
    %cst_195 = arith.constant dense<0.000000e+00> : vector<8x192xf32>
    %524 = tpu.matmul %521, %523, %cst_195 {dimension_numbers = #tpu.dot_dimension_numbers<[1], [0], [0], [1], [0, 0, 1, 1], [], []>} : vector<8x64xf32>, vector<64x192xf32>, vector<8x192xf32> -> vector<8x192xf32>
    %525 = arith.addf %524, %23 : vector<8x192xf32>
    %c1_196 = arith.constant 1 : index
    %c0_197 = arith.constant 0 : index
    %c0_198 = arith.constant 0 : index
    %526 = vector.load %arg3[%c1_196, %c0_197, %c0_198] : memref<2x64x192xf32, #tpu.memory_space<vmem>>, vector<1x64x192xf32>
    %527 = vector.shape_cast %526 : vector<1x64x192xf32> to vector<64x192xf32>
    %cst_199 = arith.constant dense<0.000000e+00> : vector<8x192xf32>
    %528 = tpu.matmul %412, %527, %cst_199 {dimension_numbers = #tpu.dot_dimension_numbers<[1], [0], [0], [1], [0, 0, 1, 1], [], []>} : vector<8x64xf32>, vector<64x192xf32>, vector<8x192xf32> -> vector<8x192xf32>
    %529 = arith.addf %528, %29 : vector<8x192xf32>
    %530 = vector.extract_strided_slice %525 {offsets = [0, 0], sizes = [8, 64], strides = [1, 1]} : vector<8x192xf32> to vector<8x64xf32>
    %531 = vector.extract_strided_slice %529 {offsets = [0, 0], sizes = [8, 64], strides = [1, 1]} : vector<8x192xf32> to vector<8x64xf32>
    %532 = arith.addf %530, %531 : vector<8x64xf32>
    %cst_200 = arith.constant 5.000000e-01 : f32
    %533 = vector.broadcast %cst_200 : f32 to vector<8x64xf32>
    %534 = arith.mulf %533, %532 : vector<8x64xf32>
    %535 = math.tanh %534 : vector<8x64xf32>
    %cst_201 = arith.constant 5.000000e-01 : f32
    %536 = vector.broadcast %cst_201 : f32 to vector<8x64xf32>
    %537 = arith.mulf %536, %535 : vector<8x64xf32>
    %cst_202 = arith.constant 5.000000e-01 : f32
    %538 = vector.broadcast %cst_202 : f32 to vector<8x64xf32>
    %539 = arith.addf %537, %538 : vector<8x64xf32>
    %540 = vector.extract_strided_slice %525 {offsets = [0, 64], sizes = [8, 64], strides = [1, 1]} : vector<8x192xf32> to vector<8x64xf32>
    %541 = vector.extract_strided_slice %529 {offsets = [0, 64], sizes = [8, 64], strides = [1, 1]} : vector<8x192xf32> to vector<8x64xf32>
    %542 = arith.addf %540, %541 : vector<8x64xf32>
    %cst_203 = arith.constant 5.000000e-01 : f32
    %543 = vector.broadcast %cst_203 : f32 to vector<8x64xf32>
    %544 = arith.mulf %543, %542 : vector<8x64xf32>
    %545 = math.tanh %544 : vector<8x64xf32>
    %cst_204 = arith.constant 5.000000e-01 : f32
    %546 = vector.broadcast %cst_204 : f32 to vector<8x64xf32>
    %547 = arith.mulf %546, %545 : vector<8x64xf32>
    %cst_205 = arith.constant 5.000000e-01 : f32
    %548 = vector.broadcast %cst_205 : f32 to vector<8x64xf32>
    %549 = arith.addf %547, %548 : vector<8x64xf32>
    %550 = vector.extract_strided_slice %525 {offsets = [0, 128], sizes = [8, 64], strides = [1, 1]} : vector<8x192xf32> to vector<8x64xf32>
    %551 = vector.extract_strided_slice %529 {offsets = [0, 128], sizes = [8, 64], strides = [1, 1]} : vector<8x192xf32> to vector<8x64xf32>
    %552 = arith.mulf %539, %551 : vector<8x64xf32>
    %553 = arith.addf %550, %552 : vector<8x64xf32>
    %554 = math.tanh %553 : vector<8x64xf32>
    %cst_206 = arith.constant 1.000000e+00 : f32
    %555 = vector.broadcast %cst_206 : f32 to vector<8x64xf32>
    %556 = arith.subf %555, %549 : vector<8x64xf32>
    %557 = arith.mulf %556, %554 : vector<8x64xf32>
    %558 = arith.mulf %549, %412 : vector<8x64xf32>
    %559 = arith.addf %557, %558 : vector<8x64xf32>
    %560 = tpu.concatenate %521, %559 in 1 : vector<8x64xf32>, vector<8x64xf32> -> vector<8x128xf32>
    %c0_207 = arith.constant 0 : index
    %c0_208 = arith.constant 0 : index
    %561 = vector.load %arg4[%c0_207, %c0_208] : memref<128x96xf32, #tpu.memory_space<vmem>>, vector<128x96xf32>
    %cst_209 = arith.constant dense<0.000000e+00> : vector<8x96xf32>
    %562 = tpu.matmul %560, %561, %cst_209 {dimension_numbers = #tpu.dot_dimension_numbers<[1], [0], [0], [1], [0, 0, 1, 1], [], []>} : vector<8x128xf32>, vector<128x96xf32>, vector<8x96xf32> -> vector<8x96xf32>
    %563 = arith.addf %562, %32 : vector<8x96xf32>
    %cst_210 = arith.constant 5.000000e-01 : f32
    %564 = vector.broadcast %cst_210 : f32 to vector<8x96xf32>
    %565 = arith.mulf %564, %563 : vector<8x96xf32>
    %cst_211 = arith.constant 4.471500e-02 : f32
    %566 = vector.broadcast %cst_211 : f32 to vector<8x96xf32>
    %567 = arith.mulf %566, %563 : vector<8x96xf32>
    %568 = arith.mulf %567, %563 : vector<8x96xf32>
    %569 = arith.mulf %568, %563 : vector<8x96xf32>
    %570 = arith.addf %563, %569 : vector<8x96xf32>
    %cst_212 = arith.constant 0.797884583 : f32
    %571 = vector.broadcast %cst_212 : f32 to vector<8x96xf32>
    %572 = arith.mulf %571, %570 : vector<8x96xf32>
    %573 = math.tanh %572 : vector<8x96xf32>
    %cst_213 = arith.constant 1.000000e+00 : f32
    %574 = vector.broadcast %cst_213 : f32 to vector<8x96xf32>
    %575 = arith.addf %574, %573 : vector<8x96xf32>
    %576 = arith.mulf %565, %575 : vector<8x96xf32>
    %577 = arith.mulf %576, %35 : vector<8x96xf32>
    %578 = vector.extract_strided_slice %577 {offsets = [0, 0], sizes = [8, 48], strides = [1, 1]} : vector<8x96xf32> to vector<8x48xf32>
    %cst_214 = arith.constant dense<0.000000e+00> : vector<8xf32>
    %579 = vector.multi_reduction <add>, %578, %cst_214 [1] : vector<8x48xf32> to vector<8xf32>
    %580 = vector.shape_cast %579 : vector<8xf32> to vector<8x1xf32>
    %581 = arith.addf %580, %38 : vector<8x1xf32>
    %cst_215 = arith.constant 5.000000e-01 : f32
    %582 = vector.broadcast %cst_215 : f32 to vector<8x1xf32>
    %583 = arith.mulf %582, %581 : vector<8x1xf32>
    %584 = math.tanh %583 : vector<8x1xf32>
    %cst_216 = arith.constant 5.000000e-01 : f32
    %585 = vector.broadcast %cst_216 : f32 to vector<8x1xf32>
    %586 = arith.mulf %585, %584 : vector<8x1xf32>
    %cst_217 = arith.constant 5.000000e-01 : f32
    %587 = vector.broadcast %cst_217 : f32 to vector<8x1xf32>
    %588 = arith.addf %586, %587 : vector<8x1xf32>
    %589 = vector.extract_strided_slice %577 {offsets = [0, 48], sizes = [8, 48], strides = [1, 1]} : vector<8x96xf32> to vector<8x48xf32>
    %cst_218 = arith.constant dense<0.000000e+00> : vector<8xf32>
    %590 = vector.multi_reduction <add>, %589, %cst_218 [1] : vector<8x48xf32> to vector<8xf32>
    %591 = vector.shape_cast %590 : vector<8xf32> to vector<8x1xf32>
    %592 = arith.addf %591, %41 : vector<8x1xf32>
    %cst_219 = arith.constant 5.000000e-01 : f32
    %593 = vector.broadcast %cst_219 : f32 to vector<8x1xf32>
    %594 = arith.mulf %593, %592 : vector<8x1xf32>
    %595 = math.tanh %594 : vector<8x1xf32>
    %cst_220 = arith.constant 5.000000e-01 : f32
    %596 = vector.broadcast %cst_220 : f32 to vector<8x1xf32>
    %597 = arith.mulf %596, %595 : vector<8x1xf32>
    %cst_221 = arith.constant 5.000000e-01 : f32
    %598 = vector.broadcast %cst_221 : f32 to vector<8x1xf32>
    %599 = arith.addf %597, %598 : vector<8x1xf32>
    %600 = arith.addf %588, %599 : vector<8x1xf32>
    %601 = vector.broadcast %600 : vector<8x1xf32> to vector<8x64xf32>
    %602 = arith.mulf %601, %559 : vector<8x64xf32>
    %c0_222 = arith.constant 0 : index
    %c0_223 = arith.constant 0 : index
    %603 = vector.load %arg5[%c0_222, %c0_223] : memref<64x64xf32, #tpu.memory_space<vmem>>, vector<64x64xf32>
    %cst_224 = arith.constant dense<0.000000e+00> : vector<8x64xf32>
    %604 = tpu.matmul %602, %603, %cst_224 {dimension_numbers = #tpu.dot_dimension_numbers<[1], [0], [0], [1], [0, 0, 1, 1], [], []>} : vector<8x64xf32>, vector<64x64xf32>, vector<8x64xf32> -> vector<8x64xf32>
    %605 = arith.addf %604, %44 : vector<8x64xf32>
    %cst_225 = arith.constant 5.000000e-01 : f32
    %606 = vector.broadcast %cst_225 : f32 to vector<8x64xf32>
    %607 = arith.mulf %606, %605 : vector<8x64xf32>
    %608 = math.tanh %607 : vector<8x64xf32>
    %cst_226 = arith.constant 5.000000e-01 : f32
    %609 = vector.broadcast %cst_226 : f32 to vector<8x64xf32>
    %610 = arith.mulf %609, %608 : vector<8x64xf32>
    %cst_227 = arith.constant 5.000000e-01 : f32
    %611 = vector.broadcast %cst_227 : f32 to vector<8x64xf32>
    %612 = arith.addf %610, %611 : vector<8x64xf32>
    %613 = arith.mulf %605, %612 : vector<8x64xf32>
    %614 = arith.mulf %613, %47 : vector<8x64xf32>
    %cst_228 = arith.constant dense<0.000000e+00> : vector<8xf32>
    %615 = vector.multi_reduction <add>, %614, %cst_228 [1] : vector<8x64xf32> to vector<8xf32>
    %616 = vector.shape_cast %615 : vector<8xf32> to vector<8x1xf32>
    %617 = arith.addf %616, %50 : vector<8x1xf32>
    %618 = arith.maximumf %471, %617 : vector<8x1xf32>
    %619 = arith.subf %471, %618 : vector<8x1xf32>
    %620 = math.exp %619 : vector<8x1xf32>
    %621 = arith.subf %617, %618 : vector<8x1xf32>
    %622 = math.exp %621 : vector<8x1xf32>
    %623 = arith.mulf %620, %477 : vector<8x1xf32>
    %624 = arith.addf %623, %622 : vector<8x1xf32>
    %625 = vector.broadcast %620 : vector<8x1xf32> to vector<8x64xf32>
    %626 = arith.mulf %625, %482 : vector<8x64xf32>
    %627 = vector.broadcast %622 : vector<8x1xf32> to vector<8x64xf32>
    %628 = arith.mulf %627, %602 : vector<8x64xf32>
    %629 = arith.addf %626, %628 : vector<8x64xf32>
    %630 = vector.extract_strided_slice %17 {offsets = [0, 64], sizes = [8, 16], strides = [1, 1]} : vector<8x128xf32> to vector<8x16xf32>
    %c0_229 = arith.constant 0 : index
    %c0_230 = arith.constant 0 : index
    %c0_231 = arith.constant 0 : index
    %631 = vector.load %arg2[%c0_229, %c0_230, %c0_231] : memref<2x64x192xf32, #tpu.memory_space<vmem>>, vector<1x16x192xf32>
    %632 = vector.shape_cast %631 : vector<1x16x192xf32> to vector<16x192xf32>
    %cst_232 = arith.constant dense<0.000000e+00> : vector<8x192xf32>
    %633 = tpu.matmul %630, %632, %cst_232 {dimension_numbers = #tpu.dot_dimension_numbers<[1], [0], [0], [1], [0, 0, 1, 1], [], []>} : vector<8x16xf32>, vector<16x192xf32>, vector<8x192xf32> -> vector<8x192xf32>
    %634 = arith.addf %633, %20 : vector<8x192xf32>
    %c0_233 = arith.constant 0 : index
    %c0_234 = arith.constant 0 : index
    %c0_235 = arith.constant 0 : index
    %635 = vector.load %arg3[%c0_233, %c0_234, %c0_235] : memref<2x64x192xf32, #tpu.memory_space<vmem>>, vector<1x64x192xf32>
    %636 = vector.shape_cast %635 : vector<1x64x192xf32> to vector<64x192xf32>
    %cst_236 = arith.constant dense<0.000000e+00> : vector<8x192xf32>
    %637 = tpu.matmul %521, %636, %cst_236 {dimension_numbers = #tpu.dot_dimension_numbers<[1], [0], [0], [1], [0, 0, 1, 1], [], []>} : vector<8x64xf32>, vector<64x192xf32>, vector<8x192xf32> -> vector<8x192xf32>
    %638 = arith.addf %637, %26 : vector<8x192xf32>
    %639 = vector.extract_strided_slice %634 {offsets = [0, 0], sizes = [8, 64], strides = [1, 1]} : vector<8x192xf32> to vector<8x64xf32>
    %640 = vector.extract_strided_slice %638 {offsets = [0, 0], sizes = [8, 64], strides = [1, 1]} : vector<8x192xf32> to vector<8x64xf32>
    %641 = arith.addf %639, %640 : vector<8x64xf32>
    %cst_237 = arith.constant 5.000000e-01 : f32
    %642 = vector.broadcast %cst_237 : f32 to vector<8x64xf32>
    %643 = arith.mulf %642, %641 : vector<8x64xf32>
    %644 = math.tanh %643 : vector<8x64xf32>
    %cst_238 = arith.constant 5.000000e-01 : f32
    %645 = vector.broadcast %cst_238 : f32 to vector<8x64xf32>
    %646 = arith.mulf %645, %644 : vector<8x64xf32>
    %cst_239 = arith.constant 5.000000e-01 : f32
    %647 = vector.broadcast %cst_239 : f32 to vector<8x64xf32>
    %648 = arith.addf %646, %647 : vector<8x64xf32>
    %649 = vector.extract_strided_slice %634 {offsets = [0, 64], sizes = [8, 64], strides = [1, 1]} : vector<8x192xf32> to vector<8x64xf32>
    %650 = vector.extract_strided_slice %638 {offsets = [0, 64], sizes = [8, 64], strides = [1, 1]} : vector<8x192xf32> to vector<8x64xf32>
    %651 = arith.addf %649, %650 : vector<8x64xf32>
    %cst_240 = arith.constant 5.000000e-01 : f32
    %652 = vector.broadcast %cst_240 : f32 to vector<8x64xf32>
    %653 = arith.mulf %652, %651 : vector<8x64xf32>
    %654 = math.tanh %653 : vector<8x64xf32>
    %cst_241 = arith.constant 5.000000e-01 : f32
    %655 = vector.broadcast %cst_241 : f32 to vector<8x64xf32>
    %656 = arith.mulf %655, %654 : vector<8x64xf32>
    %cst_242 = arith.constant 5.000000e-01 : f32
    %657 = vector.broadcast %cst_242 : f32 to vector<8x64xf32>
    %658 = arith.addf %656, %657 : vector<8x64xf32>
    %659 = vector.extract_strided_slice %634 {offsets = [0, 128], sizes = [8, 64], strides = [1, 1]} : vector<8x192xf32> to vector<8x64xf32>
    %660 = vector.extract_strided_slice %638 {offsets = [0, 128], sizes = [8, 64], strides = [1, 1]} : vector<8x192xf32> to vector<8x64xf32>
    %661 = arith.mulf %648, %660 : vector<8x64xf32>
    %662 = arith.addf %659, %661 : vector<8x64xf32>
    %663 = math.tanh %662 : vector<8x64xf32>
    %cst_243 = arith.constant 1.000000e+00 : f32
    %664 = vector.broadcast %cst_243 : f32 to vector<8x64xf32>
    %665 = arith.subf %664, %658 : vector<8x64xf32>
    %666 = arith.mulf %665, %663 : vector<8x64xf32>
    %667 = arith.mulf %658, %521 : vector<8x64xf32>
    %668 = arith.addf %666, %667 : vector<8x64xf32>
    %c1_244 = arith.constant 1 : index
    %c0_245 = arith.constant 0 : index
    %c0_246 = arith.constant 0 : index
    %669 = vector.load %arg2[%c1_244, %c0_245, %c0_246] : memref<2x64x192xf32, #tpu.memory_space<vmem>>, vector<1x64x192xf32>
    %670 = vector.shape_cast %669 : vector<1x64x192xf32> to vector<64x192xf32>
    %cst_247 = arith.constant dense<0.000000e+00> : vector<8x192xf32>
    %671 = tpu.matmul %668, %670, %cst_247 {dimension_numbers = #tpu.dot_dimension_numbers<[1], [0], [0], [1], [0, 0, 1, 1], [], []>} : vector<8x64xf32>, vector<64x192xf32>, vector<8x192xf32> -> vector<8x192xf32>
    %672 = arith.addf %671, %23 : vector<8x192xf32>
    %c1_248 = arith.constant 1 : index
    %c0_249 = arith.constant 0 : index
    %c0_250 = arith.constant 0 : index
    %673 = vector.load %arg3[%c1_248, %c0_249, %c0_250] : memref<2x64x192xf32, #tpu.memory_space<vmem>>, vector<1x64x192xf32>
    %674 = vector.shape_cast %673 : vector<1x64x192xf32> to vector<64x192xf32>
    %cst_251 = arith.constant dense<0.000000e+00> : vector<8x192xf32>
    %675 = tpu.matmul %559, %674, %cst_251 {dimension_numbers = #tpu.dot_dimension_numbers<[1], [0], [0], [1], [0, 0, 1, 1], [], []>} : vector<8x64xf32>, vector<64x192xf32>, vector<8x192xf32> -> vector<8x192xf32>
    %676 = arith.addf %675, %29 : vector<8x192xf32>
    %677 = vector.extract_strided_slice %672 {offsets = [0, 0], sizes = [8, 64], strides = [1, 1]} : vector<8x192xf32> to vector<8x64xf32>
    %678 = vector.extract_strided_slice %676 {offsets = [0, 0], sizes = [8, 64], strides = [1, 1]} : vector<8x192xf32> to vector<8x64xf32>
    %679 = arith.addf %677, %678 : vector<8x64xf32>
    %cst_252 = arith.constant 5.000000e-01 : f32
    %680 = vector.broadcast %cst_252 : f32 to vector<8x64xf32>
    %681 = arith.mulf %680, %679 : vector<8x64xf32>
    %682 = math.tanh %681 : vector<8x64xf32>
    %cst_253 = arith.constant 5.000000e-01 : f32
    %683 = vector.broadcast %cst_253 : f32 to vector<8x64xf32>
    %684 = arith.mulf %683, %682 : vector<8x64xf32>
    %cst_254 = arith.constant 5.000000e-01 : f32
    %685 = vector.broadcast %cst_254 : f32 to vector<8x64xf32>
    %686 = arith.addf %684, %685 : vector<8x64xf32>
    %687 = vector.extract_strided_slice %672 {offsets = [0, 64], sizes = [8, 64], strides = [1, 1]} : vector<8x192xf32> to vector<8x64xf32>
    %688 = vector.extract_strided_slice %676 {offsets = [0, 64], sizes = [8, 64], strides = [1, 1]} : vector<8x192xf32> to vector<8x64xf32>
    %689 = arith.addf %687, %688 : vector<8x64xf32>
    %cst_255 = arith.constant 5.000000e-01 : f32
    %690 = vector.broadcast %cst_255 : f32 to vector<8x64xf32>
    %691 = arith.mulf %690, %689 : vector<8x64xf32>
    %692 = math.tanh %691 : vector<8x64xf32>
    %cst_256 = arith.constant 5.000000e-01 : f32
    %693 = vector.broadcast %cst_256 : f32 to vector<8x64xf32>
    %694 = arith.mulf %693, %692 : vector<8x64xf32>
    %cst_257 = arith.constant 5.000000e-01 : f32
    %695 = vector.broadcast %cst_257 : f32 to vector<8x64xf32>
    %696 = arith.addf %694, %695 : vector<8x64xf32>
    %697 = vector.extract_strided_slice %672 {offsets = [0, 128], sizes = [8, 64], strides = [1, 1]} : vector<8x192xf32> to vector<8x64xf32>
    %698 = vector.extract_strided_slice %676 {offsets = [0, 128], sizes = [8, 64], strides = [1, 1]} : vector<8x192xf32> to vector<8x64xf32>
    %699 = arith.mulf %686, %698 : vector<8x64xf32>
    %700 = arith.addf %697, %699 : vector<8x64xf32>
    %701 = math.tanh %700 : vector<8x64xf32>
    %cst_258 = arith.constant 1.000000e+00 : f32
    %702 = vector.broadcast %cst_258 : f32 to vector<8x64xf32>
    %703 = arith.subf %702, %696 : vector<8x64xf32>
    %704 = arith.mulf %703, %701 : vector<8x64xf32>
    %705 = arith.mulf %696, %559 : vector<8x64xf32>
    %706 = arith.addf %704, %705 : vector<8x64xf32>
    %707 = tpu.concatenate %668, %706 in 1 : vector<8x64xf32>, vector<8x64xf32> -> vector<8x128xf32>
    %c0_259 = arith.constant 0 : index
    %c0_260 = arith.constant 0 : index
    %708 = vector.load %arg4[%c0_259, %c0_260] : memref<128x96xf32, #tpu.memory_space<vmem>>, vector<128x96xf32>
    %cst_261 = arith.constant dense<0.000000e+00> : vector<8x96xf32>
    %709 = tpu.matmul %707, %708, %cst_261 {dimension_numbers = #tpu.dot_dimension_numbers<[1], [0], [0], [1], [0, 0, 1, 1], [], []>} : vector<8x128xf32>, vector<128x96xf32>, vector<8x96xf32> -> vector<8x96xf32>
    %710 = arith.addf %709, %32 : vector<8x96xf32>
    %cst_262 = arith.constant 5.000000e-01 : f32
    %711 = vector.broadcast %cst_262 : f32 to vector<8x96xf32>
    %712 = arith.mulf %711, %710 : vector<8x96xf32>
    %cst_263 = arith.constant 4.471500e-02 : f32
    %713 = vector.broadcast %cst_263 : f32 to vector<8x96xf32>
    %714 = arith.mulf %713, %710 : vector<8x96xf32>
    %715 = arith.mulf %714, %710 : vector<8x96xf32>
    %716 = arith.mulf %715, %710 : vector<8x96xf32>
    %717 = arith.addf %710, %716 : vector<8x96xf32>
    %cst_264 = arith.constant 0.797884583 : f32
    %718 = vector.broadcast %cst_264 : f32 to vector<8x96xf32>
    %719 = arith.mulf %718, %717 : vector<8x96xf32>
    %720 = math.tanh %719 : vector<8x96xf32>
    %cst_265 = arith.constant 1.000000e+00 : f32
    %721 = vector.broadcast %cst_265 : f32 to vector<8x96xf32>
    %722 = arith.addf %721, %720 : vector<8x96xf32>
    %723 = arith.mulf %712, %722 : vector<8x96xf32>
    %724 = arith.mulf %723, %35 : vector<8x96xf32>
    %725 = vector.extract_strided_slice %724 {offsets = [0, 0], sizes = [8, 48], strides = [1, 1]} : vector<8x96xf32> to vector<8x48xf32>
    %cst_266 = arith.constant dense<0.000000e+00> : vector<8xf32>
    %726 = vector.multi_reduction <add>, %725, %cst_266 [1] : vector<8x48xf32> to vector<8xf32>
    %727 = vector.shape_cast %726 : vector<8xf32> to vector<8x1xf32>
    %728 = arith.addf %727, %38 : vector<8x1xf32>
    %cst_267 = arith.constant 5.000000e-01 : f32
    %729 = vector.broadcast %cst_267 : f32 to vector<8x1xf32>
    %730 = arith.mulf %729, %728 : vector<8x1xf32>
    %731 = math.tanh %730 : vector<8x1xf32>
    %cst_268 = arith.constant 5.000000e-01 : f32
    %732 = vector.broadcast %cst_268 : f32 to vector<8x1xf32>
    %733 = arith.mulf %732, %731 : vector<8x1xf32>
    %cst_269 = arith.constant 5.000000e-01 : f32
    %734 = vector.broadcast %cst_269 : f32 to vector<8x1xf32>
    %735 = arith.addf %733, %734 : vector<8x1xf32>
    %736 = vector.extract_strided_slice %724 {offsets = [0, 48], sizes = [8, 48], strides = [1, 1]} : vector<8x96xf32> to vector<8x48xf32>
    %cst_270 = arith.constant dense<0.000000e+00> : vector<8xf32>
    %737 = vector.multi_reduction <add>, %736, %cst_270 [1] : vector<8x48xf32> to vector<8xf32>
    %738 = vector.shape_cast %737 : vector<8xf32> to vector<8x1xf32>
    %739 = arith.addf %738, %41 : vector<8x1xf32>
    %cst_271 = arith.constant 5.000000e-01 : f32
    %740 = vector.broadcast %cst_271 : f32 to vector<8x1xf32>
    %741 = arith.mulf %740, %739 : vector<8x1xf32>
    %742 = math.tanh %741 : vector<8x1xf32>
    %cst_272 = arith.constant 5.000000e-01 : f32
    %743 = vector.broadcast %cst_272 : f32 to vector<8x1xf32>
    %744 = arith.mulf %743, %742 : vector<8x1xf32>
    %cst_273 = arith.constant 5.000000e-01 : f32
    %745 = vector.broadcast %cst_273 : f32 to vector<8x1xf32>
    %746 = arith.addf %744, %745 : vector<8x1xf32>
    %747 = arith.addf %735, %746 : vector<8x1xf32>
    %748 = vector.broadcast %747 : vector<8x1xf32> to vector<8x64xf32>
    %749 = arith.mulf %748, %706 : vector<8x64xf32>
    %c0_274 = arith.constant 0 : index
    %c0_275 = arith.constant 0 : index
    %750 = vector.load %arg5[%c0_274, %c0_275] : memref<64x64xf32, #tpu.memory_space<vmem>>, vector<64x64xf32>
    %cst_276 = arith.constant dense<0.000000e+00> : vector<8x64xf32>
    %751 = tpu.matmul %749, %750, %cst_276 {dimension_numbers = #tpu.dot_dimension_numbers<[1], [0], [0], [1], [0, 0, 1, 1], [], []>} : vector<8x64xf32>, vector<64x64xf32>, vector<8x64xf32> -> vector<8x64xf32>
    %752 = arith.addf %751, %44 : vector<8x64xf32>
    %cst_277 = arith.constant 5.000000e-01 : f32
    %753 = vector.broadcast %cst_277 : f32 to vector<8x64xf32>
    %754 = arith.mulf %753, %752 : vector<8x64xf32>
    %755 = math.tanh %754 : vector<8x64xf32>
    %cst_278 = arith.constant 5.000000e-01 : f32
    %756 = vector.broadcast %cst_278 : f32 to vector<8x64xf32>
    %757 = arith.mulf %756, %755 : vector<8x64xf32>
    %cst_279 = arith.constant 5.000000e-01 : f32
    %758 = vector.broadcast %cst_279 : f32 to vector<8x64xf32>
    %759 = arith.addf %757, %758 : vector<8x64xf32>
    %760 = arith.mulf %752, %759 : vector<8x64xf32>
    %761 = arith.mulf %760, %47 : vector<8x64xf32>
    %cst_280 = arith.constant dense<0.000000e+00> : vector<8xf32>
    %762 = vector.multi_reduction <add>, %761, %cst_280 [1] : vector<8x64xf32> to vector<8xf32>
    %763 = vector.shape_cast %762 : vector<8xf32> to vector<8x1xf32>
    %764 = arith.addf %763, %50 : vector<8x1xf32>
    %765 = arith.maximumf %618, %764 : vector<8x1xf32>
    %766 = arith.subf %618, %765 : vector<8x1xf32>
    %767 = math.exp %766 : vector<8x1xf32>
    %768 = arith.subf %764, %765 : vector<8x1xf32>
    %769 = math.exp %768 : vector<8x1xf32>
    %770 = arith.mulf %767, %624 : vector<8x1xf32>
    %771 = arith.addf %770, %769 : vector<8x1xf32>
    %772 = vector.broadcast %767 : vector<8x1xf32> to vector<8x64xf32>
    %773 = arith.mulf %772, %629 : vector<8x64xf32>
    %774 = vector.broadcast %769 : vector<8x1xf32> to vector<8x64xf32>
    %775 = arith.mulf %774, %749 : vector<8x64xf32>
    %776 = arith.addf %773, %775 : vector<8x64xf32>
    %777 = vector.extract_strided_slice %17 {offsets = [0, 80], sizes = [8, 16], strides = [1, 1]} : vector<8x128xf32> to vector<8x16xf32>
    %c0_281 = arith.constant 0 : index
    %c0_282 = arith.constant 0 : index
    %c0_283 = arith.constant 0 : index
    %778 = vector.load %arg2[%c0_281, %c0_282, %c0_283] : memref<2x64x192xf32, #tpu.memory_space<vmem>>, vector<1x16x192xf32>
    %779 = vector.shape_cast %778 : vector<1x16x192xf32> to vector<16x192xf32>
    %cst_284 = arith.constant dense<0.000000e+00> : vector<8x192xf32>
    %780 = tpu.matmul %777, %779, %cst_284 {dimension_numbers = #tpu.dot_dimension_numbers<[1], [0], [0], [1], [0, 0, 1, 1], [], []>} : vector<8x16xf32>, vector<16x192xf32>, vector<8x192xf32> -> vector<8x192xf32>
    %781 = arith.addf %780, %20 : vector<8x192xf32>
    %c0_285 = arith.constant 0 : index
    %c0_286 = arith.constant 0 : index
    %c0_287 = arith.constant 0 : index
    %782 = vector.load %arg3[%c0_285, %c0_286, %c0_287] : memref<2x64x192xf32, #tpu.memory_space<vmem>>, vector<1x64x192xf32>
    %783 = vector.shape_cast %782 : vector<1x64x192xf32> to vector<64x192xf32>
    %cst_288 = arith.constant dense<0.000000e+00> : vector<8x192xf32>
    %784 = tpu.matmul %668, %783, %cst_288 {dimension_numbers = #tpu.dot_dimension_numbers<[1], [0], [0], [1], [0, 0, 1, 1], [], []>} : vector<8x64xf32>, vector<64x192xf32>, vector<8x192xf32> -> vector<8x192xf32>
    %785 = arith.addf %784, %26 : vector<8x192xf32>
    %786 = vector.extract_strided_slice %781 {offsets = [0, 0], sizes = [8, 64], strides = [1, 1]} : vector<8x192xf32> to vector<8x64xf32>
    %787 = vector.extract_strided_slice %785 {offsets = [0, 0], sizes = [8, 64], strides = [1, 1]} : vector<8x192xf32> to vector<8x64xf32>
    %788 = arith.addf %786, %787 : vector<8x64xf32>
    %cst_289 = arith.constant 5.000000e-01 : f32
    %789 = vector.broadcast %cst_289 : f32 to vector<8x64xf32>
    %790 = arith.mulf %789, %788 : vector<8x64xf32>
    %791 = math.tanh %790 : vector<8x64xf32>
    %cst_290 = arith.constant 5.000000e-01 : f32
    %792 = vector.broadcast %cst_290 : f32 to vector<8x64xf32>
    %793 = arith.mulf %792, %791 : vector<8x64xf32>
    %cst_291 = arith.constant 5.000000e-01 : f32
    %794 = vector.broadcast %cst_291 : f32 to vector<8x64xf32>
    %795 = arith.addf %793, %794 : vector<8x64xf32>
    %796 = vector.extract_strided_slice %781 {offsets = [0, 64], sizes = [8, 64], strides = [1, 1]} : vector<8x192xf32> to vector<8x64xf32>
    %797 = vector.extract_strided_slice %785 {offsets = [0, 64], sizes = [8, 64], strides = [1, 1]} : vector<8x192xf32> to vector<8x64xf32>
    %798 = arith.addf %796, %797 : vector<8x64xf32>
    %cst_292 = arith.constant 5.000000e-01 : f32
    %799 = vector.broadcast %cst_292 : f32 to vector<8x64xf32>
    %800 = arith.mulf %799, %798 : vector<8x64xf32>
    %801 = math.tanh %800 : vector<8x64xf32>
    %cst_293 = arith.constant 5.000000e-01 : f32
    %802 = vector.broadcast %cst_293 : f32 to vector<8x64xf32>
    %803 = arith.mulf %802, %801 : vector<8x64xf32>
    %cst_294 = arith.constant 5.000000e-01 : f32
    %804 = vector.broadcast %cst_294 : f32 to vector<8x64xf32>
    %805 = arith.addf %803, %804 : vector<8x64xf32>
    %806 = vector.extract_strided_slice %781 {offsets = [0, 128], sizes = [8, 64], strides = [1, 1]} : vector<8x192xf32> to vector<8x64xf32>
    %807 = vector.extract_strided_slice %785 {offsets = [0, 128], sizes = [8, 64], strides = [1, 1]} : vector<8x192xf32> to vector<8x64xf32>
    %808 = arith.mulf %795, %807 : vector<8x64xf32>
    %809 = arith.addf %806, %808 : vector<8x64xf32>
    %810 = math.tanh %809 : vector<8x64xf32>
    %cst_295 = arith.constant 1.000000e+00 : f32
    %811 = vector.broadcast %cst_295 : f32 to vector<8x64xf32>
    %812 = arith.subf %811, %805 : vector<8x64xf32>
    %813 = arith.mulf %812, %810 : vector<8x64xf32>
    %814 = arith.mulf %805, %668 : vector<8x64xf32>
    %815 = arith.addf %813, %814 : vector<8x64xf32>
    %c1_296 = arith.constant 1 : index
    %c0_297 = arith.constant 0 : index
    %c0_298 = arith.constant 0 : index
    %816 = vector.load %arg2[%c1_296, %c0_297, %c0_298] : memref<2x64x192xf32, #tpu.memory_space<vmem>>, vector<1x64x192xf32>
    %817 = vector.shape_cast %816 : vector<1x64x192xf32> to vector<64x192xf32>
    %cst_299 = arith.constant dense<0.000000e+00> : vector<8x192xf32>
    %818 = tpu.matmul %815, %817, %cst_299 {dimension_numbers = #tpu.dot_dimension_numbers<[1], [0], [0], [1], [0, 0, 1, 1], [], []>} : vector<8x64xf32>, vector<64x192xf32>, vector<8x192xf32> -> vector<8x192xf32>
    %819 = arith.addf %818, %23 : vector<8x192xf32>
    %c1_300 = arith.constant 1 : index
    %c0_301 = arith.constant 0 : index
    %c0_302 = arith.constant 0 : index
    %820 = vector.load %arg3[%c1_300, %c0_301, %c0_302] : memref<2x64x192xf32, #tpu.memory_space<vmem>>, vector<1x64x192xf32>
    %821 = vector.shape_cast %820 : vector<1x64x192xf32> to vector<64x192xf32>
    %cst_303 = arith.constant dense<0.000000e+00> : vector<8x192xf32>
    %822 = tpu.matmul %706, %821, %cst_303 {dimension_numbers = #tpu.dot_dimension_numbers<[1], [0], [0], [1], [0, 0, 1, 1], [], []>} : vector<8x64xf32>, vector<64x192xf32>, vector<8x192xf32> -> vector<8x192xf32>
    %823 = arith.addf %822, %29 : vector<8x192xf32>
    %824 = vector.extract_strided_slice %819 {offsets = [0, 0], sizes = [8, 64], strides = [1, 1]} : vector<8x192xf32> to vector<8x64xf32>
    %825 = vector.extract_strided_slice %823 {offsets = [0, 0], sizes = [8, 64], strides = [1, 1]} : vector<8x192xf32> to vector<8x64xf32>
    %826 = arith.addf %824, %825 : vector<8x64xf32>
    %cst_304 = arith.constant 5.000000e-01 : f32
    %827 = vector.broadcast %cst_304 : f32 to vector<8x64xf32>
    %828 = arith.mulf %827, %826 : vector<8x64xf32>
    %829 = math.tanh %828 : vector<8x64xf32>
    %cst_305 = arith.constant 5.000000e-01 : f32
    %830 = vector.broadcast %cst_305 : f32 to vector<8x64xf32>
    %831 = arith.mulf %830, %829 : vector<8x64xf32>
    %cst_306 = arith.constant 5.000000e-01 : f32
    %832 = vector.broadcast %cst_306 : f32 to vector<8x64xf32>
    %833 = arith.addf %831, %832 : vector<8x64xf32>
    %834 = vector.extract_strided_slice %819 {offsets = [0, 64], sizes = [8, 64], strides = [1, 1]} : vector<8x192xf32> to vector<8x64xf32>
    %835 = vector.extract_strided_slice %823 {offsets = [0, 64], sizes = [8, 64], strides = [1, 1]} : vector<8x192xf32> to vector<8x64xf32>
    %836 = arith.addf %834, %835 : vector<8x64xf32>
    %cst_307 = arith.constant 5.000000e-01 : f32
    %837 = vector.broadcast %cst_307 : f32 to vector<8x64xf32>
    %838 = arith.mulf %837, %836 : vector<8x64xf32>
    %839 = math.tanh %838 : vector<8x64xf32>
    %cst_308 = arith.constant 5.000000e-01 : f32
    %840 = vector.broadcast %cst_308 : f32 to vector<8x64xf32>
    %841 = arith.mulf %840, %839 : vector<8x64xf32>
    %cst_309 = arith.constant 5.000000e-01 : f32
    %842 = vector.broadcast %cst_309 : f32 to vector<8x64xf32>
    %843 = arith.addf %841, %842 : vector<8x64xf32>
    %844 = vector.extract_strided_slice %819 {offsets = [0, 128], sizes = [8, 64], strides = [1, 1]} : vector<8x192xf32> to vector<8x64xf32>
    %845 = vector.extract_strided_slice %823 {offsets = [0, 128], sizes = [8, 64], strides = [1, 1]} : vector<8x192xf32> to vector<8x64xf32>
    %846 = arith.mulf %833, %845 : vector<8x64xf32>
    %847 = arith.addf %844, %846 : vector<8x64xf32>
    %848 = math.tanh %847 : vector<8x64xf32>
    %cst_310 = arith.constant 1.000000e+00 : f32
    %849 = vector.broadcast %cst_310 : f32 to vector<8x64xf32>
    %850 = arith.subf %849, %843 : vector<8x64xf32>
    %851 = arith.mulf %850, %848 : vector<8x64xf32>
    %852 = arith.mulf %843, %706 : vector<8x64xf32>
    %853 = arith.addf %851, %852 : vector<8x64xf32>
    %854 = tpu.concatenate %815, %853 in 1 : vector<8x64xf32>, vector<8x64xf32> -> vector<8x128xf32>
    %c0_311 = arith.constant 0 : index
    %c0_312 = arith.constant 0 : index
    %855 = vector.load %arg4[%c0_311, %c0_312] : memref<128x96xf32, #tpu.memory_space<vmem>>, vector<128x96xf32>
    %cst_313 = arith.constant dense<0.000000e+00> : vector<8x96xf32>
    %856 = tpu.matmul %854, %855, %cst_313 {dimension_numbers = #tpu.dot_dimension_numbers<[1], [0], [0], [1], [0, 0, 1, 1], [], []>} : vector<8x128xf32>, vector<128x96xf32>, vector<8x96xf32> -> vector<8x96xf32>
    %857 = arith.addf %856, %32 : vector<8x96xf32>
    %cst_314 = arith.constant 5.000000e-01 : f32
    %858 = vector.broadcast %cst_314 : f32 to vector<8x96xf32>
    %859 = arith.mulf %858, %857 : vector<8x96xf32>
    %cst_315 = arith.constant 4.471500e-02 : f32
    %860 = vector.broadcast %cst_315 : f32 to vector<8x96xf32>
    %861 = arith.mulf %860, %857 : vector<8x96xf32>
    %862 = arith.mulf %861, %857 : vector<8x96xf32>
    %863 = arith.mulf %862, %857 : vector<8x96xf32>
    %864 = arith.addf %857, %863 : vector<8x96xf32>
    %cst_316 = arith.constant 0.797884583 : f32
    %865 = vector.broadcast %cst_316 : f32 to vector<8x96xf32>
    %866 = arith.mulf %865, %864 : vector<8x96xf32>
    %867 = math.tanh %866 : vector<8x96xf32>
    %cst_317 = arith.constant 1.000000e+00 : f32
    %868 = vector.broadcast %cst_317 : f32 to vector<8x96xf32>
    %869 = arith.addf %868, %867 : vector<8x96xf32>
    %870 = arith.mulf %859, %869 : vector<8x96xf32>
    %871 = arith.mulf %870, %35 : vector<8x96xf32>
    %872 = vector.extract_strided_slice %871 {offsets = [0, 0], sizes = [8, 48], strides = [1, 1]} : vector<8x96xf32> to vector<8x48xf32>
    %cst_318 = arith.constant dense<0.000000e+00> : vector<8xf32>
    %873 = vector.multi_reduction <add>, %872, %cst_318 [1] : vector<8x48xf32> to vector<8xf32>
    %874 = vector.shape_cast %873 : vector<8xf32> to vector<8x1xf32>
    %875 = arith.addf %874, %38 : vector<8x1xf32>
    %cst_319 = arith.constant 5.000000e-01 : f32
    %876 = vector.broadcast %cst_319 : f32 to vector<8x1xf32>
    %877 = arith.mulf %876, %875 : vector<8x1xf32>
    %878 = math.tanh %877 : vector<8x1xf32>
    %cst_320 = arith.constant 5.000000e-01 : f32
    %879 = vector.broadcast %cst_320 : f32 to vector<8x1xf32>
    %880 = arith.mulf %879, %878 : vector<8x1xf32>
    %cst_321 = arith.constant 5.000000e-01 : f32
    %881 = vector.broadcast %cst_321 : f32 to vector<8x1xf32>
    %882 = arith.addf %880, %881 : vector<8x1xf32>
    %883 = vector.extract_strided_slice %871 {offsets = [0, 48], sizes = [8, 48], strides = [1, 1]} : vector<8x96xf32> to vector<8x48xf32>
    %cst_322 = arith.constant dense<0.000000e+00> : vector<8xf32>
    %884 = vector.multi_reduction <add>, %883, %cst_322 [1] : vector<8x48xf32> to vector<8xf32>
    %885 = vector.shape_cast %884 : vector<8xf32> to vector<8x1xf32>
    %886 = arith.addf %885, %41 : vector<8x1xf32>
    %cst_323 = arith.constant 5.000000e-01 : f32
    %887 = vector.broadcast %cst_323 : f32 to vector<8x1xf32>
    %888 = arith.mulf %887, %886 : vector<8x1xf32>
    %889 = math.tanh %888 : vector<8x1xf32>
    %cst_324 = arith.constant 5.000000e-01 : f32
    %890 = vector.broadcast %cst_324 : f32 to vector<8x1xf32>
    %891 = arith.mulf %890, %889 : vector<8x1xf32>
    %cst_325 = arith.constant 5.000000e-01 : f32
    %892 = vector.broadcast %cst_325 : f32 to vector<8x1xf32>
    %893 = arith.addf %891, %892 : vector<8x1xf32>
    %894 = arith.addf %882, %893 : vector<8x1xf32>
    %895 = vector.broadcast %894 : vector<8x1xf32> to vector<8x64xf32>
    %896 = arith.mulf %895, %853 : vector<8x64xf32>
    %c0_326 = arith.constant 0 : index
    %c0_327 = arith.constant 0 : index
    %897 = vector.load %arg5[%c0_326, %c0_327] : memref<64x64xf32, #tpu.memory_space<vmem>>, vector<64x64xf32>
    %cst_328 = arith.constant dense<0.000000e+00> : vector<8x64xf32>
    %898 = tpu.matmul %896, %897, %cst_328 {dimension_numbers = #tpu.dot_dimension_numbers<[1], [0], [0], [1], [0, 0, 1, 1], [], []>} : vector<8x64xf32>, vector<64x64xf32>, vector<8x64xf32> -> vector<8x64xf32>
    %899 = arith.addf %898, %44 : vector<8x64xf32>
    %cst_329 = arith.constant 5.000000e-01 : f32
    %900 = vector.broadcast %cst_329 : f32 to vector<8x64xf32>
    %901 = arith.mulf %900, %899 : vector<8x64xf32>
    %902 = math.tanh %901 : vector<8x64xf32>
    %cst_330 = arith.constant 5.000000e-01 : f32
    %903 = vector.broadcast %cst_330 : f32 to vector<8x64xf32>
    %904 = arith.mulf %903, %902 : vector<8x64xf32>
    %cst_331 = arith.constant 5.000000e-01 : f32
    %905 = vector.broadcast %cst_331 : f32 to vector<8x64xf32>
    %906 = arith.addf %904, %905 : vector<8x64xf32>
    %907 = arith.mulf %899, %906 : vector<8x64xf32>
    %908 = arith.mulf %907, %47 : vector<8x64xf32>
    %cst_332 = arith.constant dense<0.000000e+00> : vector<8xf32>
    %909 = vector.multi_reduction <add>, %908, %cst_332 [1] : vector<8x64xf32> to vector<8xf32>
    %910 = vector.shape_cast %909 : vector<8xf32> to vector<8x1xf32>
    %911 = arith.addf %910, %50 : vector<8x1xf32>
    %912 = arith.maximumf %765, %911 : vector<8x1xf32>
    %913 = arith.subf %765, %912 : vector<8x1xf32>
    %914 = math.exp %913 : vector<8x1xf32>
    %915 = arith.subf %911, %912 : vector<8x1xf32>
    %916 = math.exp %915 : vector<8x1xf32>
    %917 = arith.mulf %914, %771 : vector<8x1xf32>
    %918 = arith.addf %917, %916 : vector<8x1xf32>
    %919 = vector.broadcast %914 : vector<8x1xf32> to vector<8x64xf32>
    %920 = arith.mulf %919, %776 : vector<8x64xf32>
    %921 = vector.broadcast %916 : vector<8x1xf32> to vector<8x64xf32>
    %922 = arith.mulf %921, %896 : vector<8x64xf32>
    %923 = arith.addf %920, %922 : vector<8x64xf32>
    %924 = vector.extract_strided_slice %17 {offsets = [0, 96], sizes = [8, 16], strides = [1, 1]} : vector<8x128xf32> to vector<8x16xf32>
    %c0_333 = arith.constant 0 : index
    %c0_334 = arith.constant 0 : index
    %c0_335 = arith.constant 0 : index
    %925 = vector.load %arg2[%c0_333, %c0_334, %c0_335] : memref<2x64x192xf32, #tpu.memory_space<vmem>>, vector<1x16x192xf32>
    %926 = vector.shape_cast %925 : vector<1x16x192xf32> to vector<16x192xf32>
    %cst_336 = arith.constant dense<0.000000e+00> : vector<8x192xf32>
    %927 = tpu.matmul %924, %926, %cst_336 {dimension_numbers = #tpu.dot_dimension_numbers<[1], [0], [0], [1], [0, 0, 1, 1], [], []>} : vector<8x16xf32>, vector<16x192xf32>, vector<8x192xf32> -> vector<8x192xf32>
    %928 = arith.addf %927, %20 : vector<8x192xf32>
    %c0_337 = arith.constant 0 : index
    %c0_338 = arith.constant 0 : index
    %c0_339 = arith.constant 0 : index
    %929 = vector.load %arg3[%c0_337, %c0_338, %c0_339] : memref<2x64x192xf32, #tpu.memory_space<vmem>>, vector<1x64x192xf32>
    %930 = vector.shape_cast %929 : vector<1x64x192xf32> to vector<64x192xf32>
    %cst_340 = arith.constant dense<0.000000e+00> : vector<8x192xf32>
    %931 = tpu.matmul %815, %930, %cst_340 {dimension_numbers = #tpu.dot_dimension_numbers<[1], [0], [0], [1], [0, 0, 1, 1], [], []>} : vector<8x64xf32>, vector<64x192xf32>, vector<8x192xf32> -> vector<8x192xf32>
    %932 = arith.addf %931, %26 : vector<8x192xf32>
    %933 = vector.extract_strided_slice %928 {offsets = [0, 0], sizes = [8, 64], strides = [1, 1]} : vector<8x192xf32> to vector<8x64xf32>
    %934 = vector.extract_strided_slice %932 {offsets = [0, 0], sizes = [8, 64], strides = [1, 1]} : vector<8x192xf32> to vector<8x64xf32>
    %935 = arith.addf %933, %934 : vector<8x64xf32>
    %cst_341 = arith.constant 5.000000e-01 : f32
    %936 = vector.broadcast %cst_341 : f32 to vector<8x64xf32>
    %937 = arith.mulf %936, %935 : vector<8x64xf32>
    %938 = math.tanh %937 : vector<8x64xf32>
    %cst_342 = arith.constant 5.000000e-01 : f32
    %939 = vector.broadcast %cst_342 : f32 to vector<8x64xf32>
    %940 = arith.mulf %939, %938 : vector<8x64xf32>
    %cst_343 = arith.constant 5.000000e-01 : f32
    %941 = vector.broadcast %cst_343 : f32 to vector<8x64xf32>
    %942 = arith.addf %940, %941 : vector<8x64xf32>
    %943 = vector.extract_strided_slice %928 {offsets = [0, 64], sizes = [8, 64], strides = [1, 1]} : vector<8x192xf32> to vector<8x64xf32>
    %944 = vector.extract_strided_slice %932 {offsets = [0, 64], sizes = [8, 64], strides = [1, 1]} : vector<8x192xf32> to vector<8x64xf32>
    %945 = arith.addf %943, %944 : vector<8x64xf32>
    %cst_344 = arith.constant 5.000000e-01 : f32
    %946 = vector.broadcast %cst_344 : f32 to vector<8x64xf32>
    %947 = arith.mulf %946, %945 : vector<8x64xf32>
    %948 = math.tanh %947 : vector<8x64xf32>
    %cst_345 = arith.constant 5.000000e-01 : f32
    %949 = vector.broadcast %cst_345 : f32 to vector<8x64xf32>
    %950 = arith.mulf %949, %948 : vector<8x64xf32>
    %cst_346 = arith.constant 5.000000e-01 : f32
    %951 = vector.broadcast %cst_346 : f32 to vector<8x64xf32>
    %952 = arith.addf %950, %951 : vector<8x64xf32>
    %953 = vector.extract_strided_slice %928 {offsets = [0, 128], sizes = [8, 64], strides = [1, 1]} : vector<8x192xf32> to vector<8x64xf32>
    %954 = vector.extract_strided_slice %932 {offsets = [0, 128], sizes = [8, 64], strides = [1, 1]} : vector<8x192xf32> to vector<8x64xf32>
    %955 = arith.mulf %942, %954 : vector<8x64xf32>
    %956 = arith.addf %953, %955 : vector<8x64xf32>
    %957 = math.tanh %956 : vector<8x64xf32>
    %cst_347 = arith.constant 1.000000e+00 : f32
    %958 = vector.broadcast %cst_347 : f32 to vector<8x64xf32>
    %959 = arith.subf %958, %952 : vector<8x64xf32>
    %960 = arith.mulf %959, %957 : vector<8x64xf32>
    %961 = arith.mulf %952, %815 : vector<8x64xf32>
    %962 = arith.addf %960, %961 : vector<8x64xf32>
    %c1_348 = arith.constant 1 : index
    %c0_349 = arith.constant 0 : index
    %c0_350 = arith.constant 0 : index
    %963 = vector.load %arg2[%c1_348, %c0_349, %c0_350] : memref<2x64x192xf32, #tpu.memory_space<vmem>>, vector<1x64x192xf32>
    %964 = vector.shape_cast %963 : vector<1x64x192xf32> to vector<64x192xf32>
    %cst_351 = arith.constant dense<0.000000e+00> : vector<8x192xf32>
    %965 = tpu.matmul %962, %964, %cst_351 {dimension_numbers = #tpu.dot_dimension_numbers<[1], [0], [0], [1], [0, 0, 1, 1], [], []>} : vector<8x64xf32>, vector<64x192xf32>, vector<8x192xf32> -> vector<8x192xf32>
    %966 = arith.addf %965, %23 : vector<8x192xf32>
    %c1_352 = arith.constant 1 : index
    %c0_353 = arith.constant 0 : index
    %c0_354 = arith.constant 0 : index
    %967 = vector.load %arg3[%c1_352, %c0_353, %c0_354] : memref<2x64x192xf32, #tpu.memory_space<vmem>>, vector<1x64x192xf32>
    %968 = vector.shape_cast %967 : vector<1x64x192xf32> to vector<64x192xf32>
    %cst_355 = arith.constant dense<0.000000e+00> : vector<8x192xf32>
    %969 = tpu.matmul %853, %968, %cst_355 {dimension_numbers = #tpu.dot_dimension_numbers<[1], [0], [0], [1], [0, 0, 1, 1], [], []>} : vector<8x64xf32>, vector<64x192xf32>, vector<8x192xf32> -> vector<8x192xf32>
    %970 = arith.addf %969, %29 : vector<8x192xf32>
    %971 = vector.extract_strided_slice %966 {offsets = [0, 0], sizes = [8, 64], strides = [1, 1]} : vector<8x192xf32> to vector<8x64xf32>
    %972 = vector.extract_strided_slice %970 {offsets = [0, 0], sizes = [8, 64], strides = [1, 1]} : vector<8x192xf32> to vector<8x64xf32>
    %973 = arith.addf %971, %972 : vector<8x64xf32>
    %cst_356 = arith.constant 5.000000e-01 : f32
    %974 = vector.broadcast %cst_356 : f32 to vector<8x64xf32>
    %975 = arith.mulf %974, %973 : vector<8x64xf32>
    %976 = math.tanh %975 : vector<8x64xf32>
    %cst_357 = arith.constant 5.000000e-01 : f32
    %977 = vector.broadcast %cst_357 : f32 to vector<8x64xf32>
    %978 = arith.mulf %977, %976 : vector<8x64xf32>
    %cst_358 = arith.constant 5.000000e-01 : f32
    %979 = vector.broadcast %cst_358 : f32 to vector<8x64xf32>
    %980 = arith.addf %978, %979 : vector<8x64xf32>
    %981 = vector.extract_strided_slice %966 {offsets = [0, 64], sizes = [8, 64], strides = [1, 1]} : vector<8x192xf32> to vector<8x64xf32>
    %982 = vector.extract_strided_slice %970 {offsets = [0, 64], sizes = [8, 64], strides = [1, 1]} : vector<8x192xf32> to vector<8x64xf32>
    %983 = arith.addf %981, %982 : vector<8x64xf32>
    %cst_359 = arith.constant 5.000000e-01 : f32
    %984 = vector.broadcast %cst_359 : f32 to vector<8x64xf32>
    %985 = arith.mulf %984, %983 : vector<8x64xf32>
    %986 = math.tanh %985 : vector<8x64xf32>
    %cst_360 = arith.constant 5.000000e-01 : f32
    %987 = vector.broadcast %cst_360 : f32 to vector<8x64xf32>
    %988 = arith.mulf %987, %986 : vector<8x64xf32>
    %cst_361 = arith.constant 5.000000e-01 : f32
    %989 = vector.broadcast %cst_361 : f32 to vector<8x64xf32>
    %990 = arith.addf %988, %989 : vector<8x64xf32>
    %991 = vector.extract_strided_slice %966 {offsets = [0, 128], sizes = [8, 64], strides = [1, 1]} : vector<8x192xf32> to vector<8x64xf32>
    %992 = vector.extract_strided_slice %970 {offsets = [0, 128], sizes = [8, 64], strides = [1, 1]} : vector<8x192xf32> to vector<8x64xf32>
    %993 = arith.mulf %980, %992 : vector<8x64xf32>
    %994 = arith.addf %991, %993 : vector<8x64xf32>
    %995 = math.tanh %994 : vector<8x64xf32>
    %cst_362 = arith.constant 1.000000e+00 : f32
    %996 = vector.broadcast %cst_362 : f32 to vector<8x64xf32>
    %997 = arith.subf %996, %990 : vector<8x64xf32>
    %998 = arith.mulf %997, %995 : vector<8x64xf32>
    %999 = arith.mulf %990, %853 : vector<8x64xf32>
    %1000 = arith.addf %998, %999 : vector<8x64xf32>
    %1001 = tpu.concatenate %962, %1000 in 1 : vector<8x64xf32>, vector<8x64xf32> -> vector<8x128xf32>
    %c0_363 = arith.constant 0 : index
    %c0_364 = arith.constant 0 : index
    %1002 = vector.load %arg4[%c0_363, %c0_364] : memref<128x96xf32, #tpu.memory_space<vmem>>, vector<128x96xf32>
    %cst_365 = arith.constant dense<0.000000e+00> : vector<8x96xf32>
    %1003 = tpu.matmul %1001, %1002, %cst_365 {dimension_numbers = #tpu.dot_dimension_numbers<[1], [0], [0], [1], [0, 0, 1, 1], [], []>} : vector<8x128xf32>, vector<128x96xf32>, vector<8x96xf32> -> vector<8x96xf32>
    %1004 = arith.addf %1003, %32 : vector<8x96xf32>
    %cst_366 = arith.constant 5.000000e-01 : f32
    %1005 = vector.broadcast %cst_366 : f32 to vector<8x96xf32>
    %1006 = arith.mulf %1005, %1004 : vector<8x96xf32>
    %cst_367 = arith.constant 4.471500e-02 : f32
    %1007 = vector.broadcast %cst_367 : f32 to vector<8x96xf32>
    %1008 = arith.mulf %1007, %1004 : vector<8x96xf32>
    %1009 = arith.mulf %1008, %1004 : vector<8x96xf32>
    %1010 = arith.mulf %1009, %1004 : vector<8x96xf32>
    %1011 = arith.addf %1004, %1010 : vector<8x96xf32>
    %cst_368 = arith.constant 0.797884583 : f32
    %1012 = vector.broadcast %cst_368 : f32 to vector<8x96xf32>
    %1013 = arith.mulf %1012, %1011 : vector<8x96xf32>
    %1014 = math.tanh %1013 : vector<8x96xf32>
    %cst_369 = arith.constant 1.000000e+00 : f32
    %1015 = vector.broadcast %cst_369 : f32 to vector<8x96xf32>
    %1016 = arith.addf %1015, %1014 : vector<8x96xf32>
    %1017 = arith.mulf %1006, %1016 : vector<8x96xf32>
    %1018 = arith.mulf %1017, %35 : vector<8x96xf32>
    %1019 = vector.extract_strided_slice %1018 {offsets = [0, 0], sizes = [8, 48], strides = [1, 1]} : vector<8x96xf32> to vector<8x48xf32>
    %cst_370 = arith.constant dense<0.000000e+00> : vector<8xf32>
    %1020 = vector.multi_reduction <add>, %1019, %cst_370 [1] : vector<8x48xf32> to vector<8xf32>
    %1021 = vector.shape_cast %1020 : vector<8xf32> to vector<8x1xf32>
    %1022 = arith.addf %1021, %38 : vector<8x1xf32>
    %cst_371 = arith.constant 5.000000e-01 : f32
    %1023 = vector.broadcast %cst_371 : f32 to vector<8x1xf32>
    %1024 = arith.mulf %1023, %1022 : vector<8x1xf32>
    %1025 = math.tanh %1024 : vector<8x1xf32>
    %cst_372 = arith.constant 5.000000e-01 : f32
    %1026 = vector.broadcast %cst_372 : f32 to vector<8x1xf32>
    %1027 = arith.mulf %1026, %1025 : vector<8x1xf32>
    %cst_373 = arith.constant 5.000000e-01 : f32
    %1028 = vector.broadcast %cst_373 : f32 to vector<8x1xf32>
    %1029 = arith.addf %1027, %1028 : vector<8x1xf32>
    %1030 = vector.extract_strided_slice %1018 {offsets = [0, 48], sizes = [8, 48], strides = [1, 1]} : vector<8x96xf32> to vector<8x48xf32>
    %cst_374 = arith.constant dense<0.000000e+00> : vector<8xf32>
    %1031 = vector.multi_reduction <add>, %1030, %cst_374 [1] : vector<8x48xf32> to vector<8xf32>
    %1032 = vector.shape_cast %1031 : vector<8xf32> to vector<8x1xf32>
    %1033 = arith.addf %1032, %41 : vector<8x1xf32>
    %cst_375 = arith.constant 5.000000e-01 : f32
    %1034 = vector.broadcast %cst_375 : f32 to vector<8x1xf32>
    %1035 = arith.mulf %1034, %1033 : vector<8x1xf32>
    %1036 = math.tanh %1035 : vector<8x1xf32>
    %cst_376 = arith.constant 5.000000e-01 : f32
    %1037 = vector.broadcast %cst_376 : f32 to vector<8x1xf32>
    %1038 = arith.mulf %1037, %1036 : vector<8x1xf32>
    %cst_377 = arith.constant 5.000000e-01 : f32
    %1039 = vector.broadcast %cst_377 : f32 to vector<8x1xf32>
    %1040 = arith.addf %1038, %1039 : vector<8x1xf32>
    %1041 = arith.addf %1029, %1040 : vector<8x1xf32>
    %1042 = vector.broadcast %1041 : vector<8x1xf32> to vector<8x64xf32>
    %1043 = arith.mulf %1042, %1000 : vector<8x64xf32>
    %c0_378 = arith.constant 0 : index
    %c0_379 = arith.constant 0 : index
    %1044 = vector.load %arg5[%c0_378, %c0_379] : memref<64x64xf32, #tpu.memory_space<vmem>>, vector<64x64xf32>
    %cst_380 = arith.constant dense<0.000000e+00> : vector<8x64xf32>
    %1045 = tpu.matmul %1043, %1044, %cst_380 {dimension_numbers = #tpu.dot_dimension_numbers<[1], [0], [0], [1], [0, 0, 1, 1], [], []>} : vector<8x64xf32>, vector<64x64xf32>, vector<8x64xf32> -> vector<8x64xf32>
    %1046 = arith.addf %1045, %44 : vector<8x64xf32>
    %cst_381 = arith.constant 5.000000e-01 : f32
    %1047 = vector.broadcast %cst_381 : f32 to vector<8x64xf32>
    %1048 = arith.mulf %1047, %1046 : vector<8x64xf32>
    %1049 = math.tanh %1048 : vector<8x64xf32>
    %cst_382 = arith.constant 5.000000e-01 : f32
    %1050 = vector.broadcast %cst_382 : f32 to vector<8x64xf32>
    %1051 = arith.mulf %1050, %1049 : vector<8x64xf32>
    %cst_383 = arith.constant 5.000000e-01 : f32
    %1052 = vector.broadcast %cst_383 : f32 to vector<8x64xf32>
    %1053 = arith.addf %1051, %1052 : vector<8x64xf32>
    %1054 = arith.mulf %1046, %1053 : vector<8x64xf32>
    %1055 = arith.mulf %1054, %47 : vector<8x64xf32>
    %cst_384 = arith.constant dense<0.000000e+00> : vector<8xf32>
    %1056 = vector.multi_reduction <add>, %1055, %cst_384 [1] : vector<8x64xf32> to vector<8xf32>
    %1057 = vector.shape_cast %1056 : vector<8xf32> to vector<8x1xf32>
    %1058 = arith.addf %1057, %50 : vector<8x1xf32>
    %1059 = arith.maximumf %912, %1058 : vector<8x1xf32>
    %1060 = arith.subf %912, %1059 : vector<8x1xf32>
    %1061 = math.exp %1060 : vector<8x1xf32>
    %1062 = arith.subf %1058, %1059 : vector<8x1xf32>
    %1063 = math.exp %1062 : vector<8x1xf32>
    %1064 = arith.mulf %1061, %918 : vector<8x1xf32>
    %1065 = arith.addf %1064, %1063 : vector<8x1xf32>
    %1066 = vector.broadcast %1061 : vector<8x1xf32> to vector<8x64xf32>
    %1067 = arith.mulf %1066, %923 : vector<8x64xf32>
    %1068 = vector.broadcast %1063 : vector<8x1xf32> to vector<8x64xf32>
    %1069 = arith.mulf %1068, %1043 : vector<8x64xf32>
    %1070 = arith.addf %1067, %1069 : vector<8x64xf32>
    %1071 = vector.extract_strided_slice %17 {offsets = [0, 112], sizes = [8, 16], strides = [1, 1]} : vector<8x128xf32> to vector<8x16xf32>
    %c0_385 = arith.constant 0 : index
    %c0_386 = arith.constant 0 : index
    %c0_387 = arith.constant 0 : index
    %1072 = vector.load %arg2[%c0_385, %c0_386, %c0_387] : memref<2x64x192xf32, #tpu.memory_space<vmem>>, vector<1x16x192xf32>
    %1073 = vector.shape_cast %1072 : vector<1x16x192xf32> to vector<16x192xf32>
    %cst_388 = arith.constant dense<0.000000e+00> : vector<8x192xf32>
    %1074 = tpu.matmul %1071, %1073, %cst_388 {dimension_numbers = #tpu.dot_dimension_numbers<[1], [0], [0], [1], [0, 0, 1, 1], [], []>} : vector<8x16xf32>, vector<16x192xf32>, vector<8x192xf32> -> vector<8x192xf32>
    %1075 = arith.addf %1074, %20 : vector<8x192xf32>
    %c0_389 = arith.constant 0 : index
    %c0_390 = arith.constant 0 : index
    %c0_391 = arith.constant 0 : index
    %1076 = vector.load %arg3[%c0_389, %c0_390, %c0_391] : memref<2x64x192xf32, #tpu.memory_space<vmem>>, vector<1x64x192xf32>
    %1077 = vector.shape_cast %1076 : vector<1x64x192xf32> to vector<64x192xf32>
    %cst_392 = arith.constant dense<0.000000e+00> : vector<8x192xf32>
    %1078 = tpu.matmul %962, %1077, %cst_392 {dimension_numbers = #tpu.dot_dimension_numbers<[1], [0], [0], [1], [0, 0, 1, 1], [], []>} : vector<8x64xf32>, vector<64x192xf32>, vector<8x192xf32> -> vector<8x192xf32>
    %1079 = arith.addf %1078, %26 : vector<8x192xf32>
    %1080 = vector.extract_strided_slice %1075 {offsets = [0, 0], sizes = [8, 64], strides = [1, 1]} : vector<8x192xf32> to vector<8x64xf32>
    %1081 = vector.extract_strided_slice %1079 {offsets = [0, 0], sizes = [8, 64], strides = [1, 1]} : vector<8x192xf32> to vector<8x64xf32>
    %1082 = arith.addf %1080, %1081 : vector<8x64xf32>
    %cst_393 = arith.constant 5.000000e-01 : f32
    %1083 = vector.broadcast %cst_393 : f32 to vector<8x64xf32>
    %1084 = arith.mulf %1083, %1082 : vector<8x64xf32>
    %1085 = math.tanh %1084 : vector<8x64xf32>
    %cst_394 = arith.constant 5.000000e-01 : f32
    %1086 = vector.broadcast %cst_394 : f32 to vector<8x64xf32>
    %1087 = arith.mulf %1086, %1085 : vector<8x64xf32>
    %cst_395 = arith.constant 5.000000e-01 : f32
    %1088 = vector.broadcast %cst_395 : f32 to vector<8x64xf32>
    %1089 = arith.addf %1087, %1088 : vector<8x64xf32>
    %1090 = vector.extract_strided_slice %1075 {offsets = [0, 64], sizes = [8, 64], strides = [1, 1]} : vector<8x192xf32> to vector<8x64xf32>
    %1091 = vector.extract_strided_slice %1079 {offsets = [0, 64], sizes = [8, 64], strides = [1, 1]} : vector<8x192xf32> to vector<8x64xf32>
    %1092 = arith.addf %1090, %1091 : vector<8x64xf32>
    %cst_396 = arith.constant 5.000000e-01 : f32
    %1093 = vector.broadcast %cst_396 : f32 to vector<8x64xf32>
    %1094 = arith.mulf %1093, %1092 : vector<8x64xf32>
    %1095 = math.tanh %1094 : vector<8x64xf32>
    %cst_397 = arith.constant 5.000000e-01 : f32
    %1096 = vector.broadcast %cst_397 : f32 to vector<8x64xf32>
    %1097 = arith.mulf %1096, %1095 : vector<8x64xf32>
    %cst_398 = arith.constant 5.000000e-01 : f32
    %1098 = vector.broadcast %cst_398 : f32 to vector<8x64xf32>
    %1099 = arith.addf %1097, %1098 : vector<8x64xf32>
    %1100 = vector.extract_strided_slice %1075 {offsets = [0, 128], sizes = [8, 64], strides = [1, 1]} : vector<8x192xf32> to vector<8x64xf32>
    %1101 = vector.extract_strided_slice %1079 {offsets = [0, 128], sizes = [8, 64], strides = [1, 1]} : vector<8x192xf32> to vector<8x64xf32>
    %1102 = arith.mulf %1089, %1101 : vector<8x64xf32>
    %1103 = arith.addf %1100, %1102 : vector<8x64xf32>
    %1104 = math.tanh %1103 : vector<8x64xf32>
    %cst_399 = arith.constant 1.000000e+00 : f32
    %1105 = vector.broadcast %cst_399 : f32 to vector<8x64xf32>
    %1106 = arith.subf %1105, %1099 : vector<8x64xf32>
    %1107 = arith.mulf %1106, %1104 : vector<8x64xf32>
    %1108 = arith.mulf %1099, %962 : vector<8x64xf32>
    %1109 = arith.addf %1107, %1108 : vector<8x64xf32>
    %c1_400 = arith.constant 1 : index
    %c0_401 = arith.constant 0 : index
    %c0_402 = arith.constant 0 : index
    %1110 = vector.load %arg2[%c1_400, %c0_401, %c0_402] : memref<2x64x192xf32, #tpu.memory_space<vmem>>, vector<1x64x192xf32>
    %1111 = vector.shape_cast %1110 : vector<1x64x192xf32> to vector<64x192xf32>
    %cst_403 = arith.constant dense<0.000000e+00> : vector<8x192xf32>
    %1112 = tpu.matmul %1109, %1111, %cst_403 {dimension_numbers = #tpu.dot_dimension_numbers<[1], [0], [0], [1], [0, 0, 1, 1], [], []>} : vector<8x64xf32>, vector<64x192xf32>, vector<8x192xf32> -> vector<8x192xf32>
    %1113 = arith.addf %1112, %23 : vector<8x192xf32>
    %c1_404 = arith.constant 1 : index
    %c0_405 = arith.constant 0 : index
    %c0_406 = arith.constant 0 : index
    %1114 = vector.load %arg3[%c1_404, %c0_405, %c0_406] : memref<2x64x192xf32, #tpu.memory_space<vmem>>, vector<1x64x192xf32>
    %1115 = vector.shape_cast %1114 : vector<1x64x192xf32> to vector<64x192xf32>
    %cst_407 = arith.constant dense<0.000000e+00> : vector<8x192xf32>
    %1116 = tpu.matmul %1000, %1115, %cst_407 {dimension_numbers = #tpu.dot_dimension_numbers<[1], [0], [0], [1], [0, 0, 1, 1], [], []>} : vector<8x64xf32>, vector<64x192xf32>, vector<8x192xf32> -> vector<8x192xf32>
    %1117 = arith.addf %1116, %29 : vector<8x192xf32>
    %1118 = vector.extract_strided_slice %1113 {offsets = [0, 0], sizes = [8, 64], strides = [1, 1]} : vector<8x192xf32> to vector<8x64xf32>
    %1119 = vector.extract_strided_slice %1117 {offsets = [0, 0], sizes = [8, 64], strides = [1, 1]} : vector<8x192xf32> to vector<8x64xf32>
    %1120 = arith.addf %1118, %1119 : vector<8x64xf32>
    %cst_408 = arith.constant 5.000000e-01 : f32
    %1121 = vector.broadcast %cst_408 : f32 to vector<8x64xf32>
    %1122 = arith.mulf %1121, %1120 : vector<8x64xf32>
    %1123 = math.tanh %1122 : vector<8x64xf32>
    %cst_409 = arith.constant 5.000000e-01 : f32
    %1124 = vector.broadcast %cst_409 : f32 to vector<8x64xf32>
    %1125 = arith.mulf %1124, %1123 : vector<8x64xf32>
    %cst_410 = arith.constant 5.000000e-01 : f32
    %1126 = vector.broadcast %cst_410 : f32 to vector<8x64xf32>
    %1127 = arith.addf %1125, %1126 : vector<8x64xf32>
    %1128 = vector.extract_strided_slice %1113 {offsets = [0, 64], sizes = [8, 64], strides = [1, 1]} : vector<8x192xf32> to vector<8x64xf32>
    %1129 = vector.extract_strided_slice %1117 {offsets = [0, 64], sizes = [8, 64], strides = [1, 1]} : vector<8x192xf32> to vector<8x64xf32>
    %1130 = arith.addf %1128, %1129 : vector<8x64xf32>
    %cst_411 = arith.constant 5.000000e-01 : f32
    %1131 = vector.broadcast %cst_411 : f32 to vector<8x64xf32>
    %1132 = arith.mulf %1131, %1130 : vector<8x64xf32>
    %1133 = math.tanh %1132 : vector<8x64xf32>
    %cst_412 = arith.constant 5.000000e-01 : f32
    %1134 = vector.broadcast %cst_412 : f32 to vector<8x64xf32>
    %1135 = arith.mulf %1134, %1133 : vector<8x64xf32>
    %cst_413 = arith.constant 5.000000e-01 : f32
    %1136 = vector.broadcast %cst_413 : f32 to vector<8x64xf32>
    %1137 = arith.addf %1135, %1136 : vector<8x64xf32>
    %1138 = vector.extract_strided_slice %1113 {offsets = [0, 128], sizes = [8, 64], strides = [1, 1]} : vector<8x192xf32> to vector<8x64xf32>
    %1139 = vector.extract_strided_slice %1117 {offsets = [0, 128], sizes = [8, 64], strides = [1, 1]} : vector<8x192xf32> to vector<8x64xf32>
    %1140 = arith.mulf %1127, %1139 : vector<8x64xf32>
    %1141 = arith.addf %1138, %1140 : vector<8x64xf32>
    %1142 = math.tanh %1141 : vector<8x64xf32>
    %cst_414 = arith.constant 1.000000e+00 : f32
    %1143 = vector.broadcast %cst_414 : f32 to vector<8x64xf32>
    %1144 = arith.subf %1143, %1137 : vector<8x64xf32>
    %1145 = arith.mulf %1144, %1142 : vector<8x64xf32>
    %1146 = arith.mulf %1137, %1000 : vector<8x64xf32>
    %1147 = arith.addf %1145, %1146 : vector<8x64xf32>
    %1148 = tpu.concatenate %1109, %1147 in 1 : vector<8x64xf32>, vector<8x64xf32> -> vector<8x128xf32>
    %c0_415 = arith.constant 0 : index
    %c0_416 = arith.constant 0 : index
    %1149 = vector.load %arg4[%c0_415, %c0_416] : memref<128x96xf32, #tpu.memory_space<vmem>>, vector<128x96xf32>
    %cst_417 = arith.constant dense<0.000000e+00> : vector<8x96xf32>
    %1150 = tpu.matmul %1148, %1149, %cst_417 {dimension_numbers = #tpu.dot_dimension_numbers<[1], [0], [0], [1], [0, 0, 1, 1], [], []>} : vector<8x128xf32>, vector<128x96xf32>, vector<8x96xf32> -> vector<8x96xf32>
    %1151 = arith.addf %1150, %32 : vector<8x96xf32>
    %cst_418 = arith.constant 5.000000e-01 : f32
    %1152 = vector.broadcast %cst_418 : f32 to vector<8x96xf32>
    %1153 = arith.mulf %1152, %1151 : vector<8x96xf32>
    %cst_419 = arith.constant 4.471500e-02 : f32
    %1154 = vector.broadcast %cst_419 : f32 to vector<8x96xf32>
    %1155 = arith.mulf %1154, %1151 : vector<8x96xf32>
    %1156 = arith.mulf %1155, %1151 : vector<8x96xf32>
    %1157 = arith.mulf %1156, %1151 : vector<8x96xf32>
    %1158 = arith.addf %1151, %1157 : vector<8x96xf32>
    %cst_420 = arith.constant 0.797884583 : f32
    %1159 = vector.broadcast %cst_420 : f32 to vector<8x96xf32>
    %1160 = arith.mulf %1159, %1158 : vector<8x96xf32>
    %1161 = math.tanh %1160 : vector<8x96xf32>
    %cst_421 = arith.constant 1.000000e+00 : f32
    %1162 = vector.broadcast %cst_421 : f32 to vector<8x96xf32>
    %1163 = arith.addf %1162, %1161 : vector<8x96xf32>
    %1164 = arith.mulf %1153, %1163 : vector<8x96xf32>
    %1165 = arith.mulf %1164, %35 : vector<8x96xf32>
    %1166 = vector.extract_strided_slice %1165 {offsets = [0, 0], sizes = [8, 48], strides = [1, 1]} : vector<8x96xf32> to vector<8x48xf32>
    %cst_422 = arith.constant dense<0.000000e+00> : vector<8xf32>
    %1167 = vector.multi_reduction <add>, %1166, %cst_422 [1] : vector<8x48xf32> to vector<8xf32>
    %1168 = vector.shape_cast %1167 : vector<8xf32> to vector<8x1xf32>
    %1169 = arith.addf %1168, %38 : vector<8x1xf32>
    %cst_423 = arith.constant 5.000000e-01 : f32
    %1170 = vector.broadcast %cst_423 : f32 to vector<8x1xf32>
    %1171 = arith.mulf %1170, %1169 : vector<8x1xf32>
    %1172 = math.tanh %1171 : vector<8x1xf32>
    %cst_424 = arith.constant 5.000000e-01 : f32
    %1173 = vector.broadcast %cst_424 : f32 to vector<8x1xf32>
    %1174 = arith.mulf %1173, %1172 : vector<8x1xf32>
    %cst_425 = arith.constant 5.000000e-01 : f32
    %1175 = vector.broadcast %cst_425 : f32 to vector<8x1xf32>
    %1176 = arith.addf %1174, %1175 : vector<8x1xf32>
    %1177 = vector.extract_strided_slice %1165 {offsets = [0, 48], sizes = [8, 48], strides = [1, 1]} : vector<8x96xf32> to vector<8x48xf32>
    %cst_426 = arith.constant dense<0.000000e+00> : vector<8xf32>
    %1178 = vector.multi_reduction <add>, %1177, %cst_426 [1] : vector<8x48xf32> to vector<8xf32>
    %1179 = vector.shape_cast %1178 : vector<8xf32> to vector<8x1xf32>
    %1180 = arith.addf %1179, %41 : vector<8x1xf32>
    %cst_427 = arith.constant 5.000000e-01 : f32
    %1181 = vector.broadcast %cst_427 : f32 to vector<8x1xf32>
    %1182 = arith.mulf %1181, %1180 : vector<8x1xf32>
    %1183 = math.tanh %1182 : vector<8x1xf32>
    %cst_428 = arith.constant 5.000000e-01 : f32
    %1184 = vector.broadcast %cst_428 : f32 to vector<8x1xf32>
    %1185 = arith.mulf %1184, %1183 : vector<8x1xf32>
    %cst_429 = arith.constant 5.000000e-01 : f32
    %1186 = vector.broadcast %cst_429 : f32 to vector<8x1xf32>
    %1187 = arith.addf %1185, %1186 : vector<8x1xf32>
    %1188 = arith.addf %1176, %1187 : vector<8x1xf32>
    %1189 = vector.broadcast %1188 : vector<8x1xf32> to vector<8x64xf32>
    %1190 = arith.mulf %1189, %1147 : vector<8x64xf32>
    %c0_430 = arith.constant 0 : index
    %c0_431 = arith.constant 0 : index
    %1191 = vector.load %arg5[%c0_430, %c0_431] : memref<64x64xf32, #tpu.memory_space<vmem>>, vector<64x64xf32>
    %cst_432 = arith.constant dense<0.000000e+00> : vector<8x64xf32>
    %1192 = tpu.matmul %1190, %1191, %cst_432 {dimension_numbers = #tpu.dot_dimension_numbers<[1], [0], [0], [1], [0, 0, 1, 1], [], []>} : vector<8x64xf32>, vector<64x64xf32>, vector<8x64xf32> -> vector<8x64xf32>
    %1193 = arith.addf %1192, %44 : vector<8x64xf32>
    %cst_433 = arith.constant 5.000000e-01 : f32
    %1194 = vector.broadcast %cst_433 : f32 to vector<8x64xf32>
    %1195 = arith.mulf %1194, %1193 : vector<8x64xf32>
    %1196 = math.tanh %1195 : vector<8x64xf32>
    %cst_434 = arith.constant 5.000000e-01 : f32
    %1197 = vector.broadcast %cst_434 : f32 to vector<8x64xf32>
    %1198 = arith.mulf %1197, %1196 : vector<8x64xf32>
    %cst_435 = arith.constant 5.000000e-01 : f32
    %1199 = vector.broadcast %cst_435 : f32 to vector<8x64xf32>
    %1200 = arith.addf %1198, %1199 : vector<8x64xf32>
    %1201 = arith.mulf %1193, %1200 : vector<8x64xf32>
    %1202 = arith.mulf %1201, %47 : vector<8x64xf32>
    %cst_436 = arith.constant dense<0.000000e+00> : vector<8xf32>
    %1203 = vector.multi_reduction <add>, %1202, %cst_436 [1] : vector<8x64xf32> to vector<8xf32>
    %1204 = vector.shape_cast %1203 : vector<8xf32> to vector<8x1xf32>
    %1205 = arith.addf %1204, %50 : vector<8x1xf32>
    %1206 = arith.maximumf %1059, %1205 : vector<8x1xf32>
    %1207 = arith.subf %1059, %1206 : vector<8x1xf32>
    %1208 = math.exp %1207 : vector<8x1xf32>
    %1209 = arith.subf %1205, %1206 : vector<8x1xf32>
    %1210 = math.exp %1209 : vector<8x1xf32>
    %1211 = arith.mulf %1208, %1065 : vector<8x1xf32>
    %1212 = arith.addf %1211, %1210 : vector<8x1xf32>
    %1213 = vector.broadcast %1208 : vector<8x1xf32> to vector<8x64xf32>
    %1214 = arith.mulf %1213, %1070 : vector<8x64xf32>
    %1215 = vector.broadcast %1210 : vector<8x1xf32> to vector<8x64xf32>
    %1216 = arith.mulf %1215, %1190 : vector<8x64xf32>
    %1217 = arith.addf %1214, %1216 : vector<8x64xf32>
    %1218 = tpu.reciprocal %1212 {approx = true} : vector<8x1xf32> -> vector<8x1xf32>
    %1219 = vector.broadcast %1218 : vector<8x1xf32> to vector<8x64xf32>
    %1220 = arith.mulf %1217, %1219 : vector<8x64xf32>
    %cst_437 = arith.constant dense<0.000000e+00> : vector<8xf32>
    %1221 = vector.multi_reduction <add>, %1220, %cst_437 [1] : vector<8x64xf32> to vector<8xf32>
    %1222 = vector.shape_cast %1221 : vector<8xf32> to vector<8x1xf32>
    %cst_438 = arith.constant 1.562500e-02 : f32
    %1223 = vector.broadcast %cst_438 : f32 to vector<8x1xf32>
    %1224 = arith.mulf %1222, %1223 : vector<8x1xf32>
    %1225 = vector.broadcast %1224 : vector<8x1xf32> to vector<8x64xf32>
    %1226 = arith.subf %1220, %1225 : vector<8x64xf32>
    %1227 = arith.mulf %1226, %1226 : vector<8x64xf32>
    %cst_439 = arith.constant dense<0.000000e+00> : vector<8xf32>
    %1228 = vector.multi_reduction <add>, %1227, %cst_439 [1] : vector<8x64xf32> to vector<8xf32>
    %1229 = vector.shape_cast %1228 : vector<8xf32> to vector<8x1xf32>
    %cst_440 = arith.constant 1.562500e-02 : f32
    %1230 = vector.broadcast %cst_440 : f32 to vector<8x1xf32>
    %1231 = arith.mulf %1229, %1230 : vector<8x1xf32>
    %cst_441 = arith.constant 9.99999974E-6 : f32
    %1232 = vector.broadcast %cst_441 : f32 to vector<8x1xf32>
    %1233 = arith.addf %1231, %1232 : vector<8x1xf32>
    %1234 = math.rsqrt %1233 : vector<8x1xf32>
    %1235 = vector.broadcast %1234 : vector<8x1xf32> to vector<8x64xf32>
    %1236 = arith.mulf %1226, %1235 : vector<8x64xf32>
    %c0_442 = arith.constant 0 : index
    %c1664 = arith.constant 1664 : index
    %1237 = vector.load %arg7[%c0_442, %c1664] : memref<1x2048xf32, #tpu.memory_space<vmem>>, vector<1x64xf32>
    %1238 = vector.broadcast %1237 : vector<1x64xf32> to vector<8x64xf32>
    %1239 = arith.mulf %1236, %1238 : vector<8x64xf32>
    %c0_443 = arith.constant 0 : index
    %c1792 = arith.constant 1792 : index
    %1240 = vector.load %arg7[%c0_443, %c1792] : memref<1x2048xf32, #tpu.memory_space<vmem>>, vector<1x64xf32>
    %1241 = vector.broadcast %1240 : vector<1x64xf32> to vector<8x64xf32>
    %1242 = arith.addf %1239, %1241 : vector<8x64xf32>
    %c0_444 = arith.constant 0 : index
    %c0_445 = arith.constant 0 : index
    %1243 = vector.load %arg6[%c0_444, %c0_445] : memref<64x2xf32, #tpu.memory_space<vmem>>, vector<64x2xf32>
    %cst_446 = arith.constant dense<0.000000e+00> : vector<8x2xf32>
    %1244 = tpu.matmul %1242, %1243, %cst_446 {dimension_numbers = #tpu.dot_dimension_numbers<[1], [0], [0], [1], [0, 0, 1, 1], [], []>} : vector<8x64xf32>, vector<64x2xf32>, vector<8x2xf32> -> vector<8x2xf32>
    %c0_447 = arith.constant 0 : index
    %c1920 = arith.constant 1920 : index
    %1245 = vector.load %arg7[%c0_447, %c1920] : memref<1x2048xf32, #tpu.memory_space<vmem>>, vector<1x2xf32>
    %1246 = vector.broadcast %1245 : vector<1x2xf32> to vector<8x2xf32>
    %1247 = arith.addf %1244, %1246 : vector<8x2xf32>
    %c0_448 = arith.constant 0 : index
    %c0_449 = arith.constant 0 : index
    %1248 = vector.load %arg8[%c0_448, %c0_449] : memref<8x2xf32, #tpu.memory_space<vmem>>, vector<8x2xf32>
    tpu.vector_store %arg8[%c0_448, %c0_449], %1247 {strides = array<i32>} : memref<8x2xf32, #tpu.memory_space<vmem>>, vector<8x2xf32>,
    return
  }
}

</mosaic_0001>

<llo_original>
// kernel: gru_classifier_forward.1
$region0: #{gru_classifier_forward.1}
  #allocation0 [shape = 'u32[]', space=smem, size = 0x4, offset = 0x4, fixed_abs, tag = 'smem constant byte address 0x4 - core index']
  #allocation1 [shape = 'u32[144,128]{1,0:T(1,128)}', space=vmem, size = 0x12000, scoped, tag = 'internal scratch']
  %s0 = inlined_call_operand.vmem [shape: f32[8,64], index: 0, kind: input, shape index: {}]
  %s1 = inlined_call_operand.hbm [shape: f32[64,128], index: 1, kind: input, shape index: {}]
  %s2 = inlined_call_operand.vmem [shape: f32[2,64,192], index: 2, kind: input, shape index: {}]
  %s3 = inlined_call_operand.hbm [shape: f32[2,64,192], index: 3, kind: input, shape index: {}]
  %s4 = inlined_call_operand.vmem [shape: f32[128,96], index: 4, kind: input, shape index: {}]
  %s5 = inlined_call_operand.hbm [shape: f32[64,64], index: 5, kind: input, shape index: {}]
  %s6 = inlined_call_operand.vmem [shape: f32[64,2], index: 6, kind: input, shape index: {}]
  %s7 = inlined_call_operand.vmem [shape: f32[1,2048], index: 7, kind: input, shape index: {}]
  %s8 = inlined_call_operand.vmem [shape: f32[8,2], index: 8, kind: output, shape index: {}]
  %s9 = sld [smem:[#allocation0]]
  $region54: #{gru_classifier_forward.1} parent=0
    _
  %s11 = ssub.s32 1, %s9
  %s12 = scalar_select 0, %s11, %s9
  $region1: #{gru_classifier_forward.1} parent=0
    #allocation2 [shape = 'u8[32768]{0}', space=vmem, size = 0x8000, scoped, tag = 'input window, operand 1, single buffered']
    #allocation3 [shape = 's32[1]{0}', space=sflag, size = 0x4, scoped, tag = 'scoped memory for gru_classifier_forward.1']
    #allocation4 [shape = 'u8[131072]{0}', space=vmem, size = 0x20000, scoped, tag = 'input window, operand 3, single buffered']
    #allocation5 [shape = 's32[1]{0}', space=sflag, size = 0x4, scoped, tag = 'scoped memory for gru_classifier_forward.1']
    #allocation6 [shape = 'u8[32768]{0}', space=vmem, size = 0x8000, scoped, tag = 'input window, operand 5, single buffered']
    %13 = vsyncpa [#allocation3], 0
    %14 = vsyncpa [#allocation5], 0
    // Predicated region
    $region2: #{gru_classifier_forward.1} parent=1 // pred_check
      _
    $region3: #{gru_classifier_forward.1} parent=1 // pred_check_branch
      %16 = sbr.rel (0) target = $region5
    $region4: #{gru_classifier_forward.1} parent=1 // pred_region
      _
    $region5: #{gru_classifier_forward.1} parent=1 // pred_fallthru
      _
    // Predicated region
    $region6: #{gru_classifier_forward.1} parent=1 // pred_check
      _
    $region7: #{gru_classifier_forward.1} parent=1 // pred_check_branch
      %18 = sbr.rel (0) target = $region9
    $region8: #{gru_classifier_forward.1} parent=1 // pred_region
      %s20 = ssub.s32 1024, 1024
      %21 = vsyncadd [#allocation3], %s20
      %s22 = sshll.u32 [#allocation2], 4
      %s23 = int_to_ptr.vmem [resolvable:$true] %s22
      %28 = dma.hbm_to_vmem [thread:$0]  %s1, 1024, %s23, [#allocation3], 128, 128, 8
    $region9: #{gru_classifier_forward.1} parent=1 // pred_fallthru
      _
    // Predicated region
    $region10: #{gru_classifier_forward.1} parent=1 // pred_check
      _
    $region11: #{gru_classifier_forward.1} parent=1 // pred_check_branch
      %30 = sbr.rel (0) target = $region13
    $region12: #{gru_classifier_forward.1} parent=1 // pred_region
      _
    $region13: #{gru_classifier_forward.1} parent=1 // pred_fallthru
      _
    // Predicated region
    $region14: #{gru_classifier_forward.1} parent=1 // pred_check
      _
    $region15: #{gru_classifier_forward.1} parent=1 // pred_check_branch
      %32 = sbr.rel (0) target = $region17
    $region16: #{gru_classifier_forward.1} parent=1 // pred_region
      %s34 = ssub.s32 4096, 4096
      %35 = vsyncadd [#allocation5], %s34
      %s36 = sshll.u32 [#allocation4], 4
      %s37 = int_to_ptr.vmem [resolvable:$true] %s36
      %42 = dma.hbm_to_vmem [thread:$0]  %s3, 4096, %s37, [#allocation5], 256, 256, 16
    $region17: #{gru_classifier_forward.1} parent=1 // pred_fallthru
      _
    // Predicated region
    $region18: #{gru_classifier_forward.1} parent=1 // pred_check
      _
    $region19: #{gru_classifier_forward.1} parent=1 // pred_check_branch
      %44 = sbr.rel (0) target = $region21
    $region20: #{gru_classifier_forward.1} parent=1 // pred_region
      _
    $region21: #{gru_classifier_forward.1} parent=1 // pred_fallthru
      _
    // Predicated region
    $region22: #{gru_classifier_forward.1} parent=1 // pred_check
      _
    $region23: #{gru_classifier_forward.1} parent=1 // pred_check_branch
      %46 = sbr.rel (0) target = $region25
    $region24: #{gru_classifier_forward.1} parent=1 // pred_region
      %s48 = ssub.s32 1024, 1024
      %49 = vsyncadd [#allocation5], %s48
      %s50 = sshll.u32 [#allocation6], 4
      %s51 = int_to_ptr.vmem [resolvable:$true] %s50
      %56 = dma.hbm_to_vmem [thread:$0]  %s5, 1024, %s51, [#allocation5], 128, 128, 8
    $region25: #{gru_classifier_forward.1} parent=1 // pred_fallthru
      _
    // Predicated region
    $region26: #{gru_classifier_forward.1} parent=1 // pred_check
      _
    $region27: #{gru_classifier_forward.1} parent=1 // pred_check_branch
      %58 = sbr.rel (0) target = $region29
    $region28: #{gru_classifier_forward.1} parent=1 // pred_region
      _
    $region29: #{gru_classifier_forward.1} parent=1 // pred_fallthru
      _
    // Predicated region
    $region30: #{gru_classifier_forward.1} parent=1 // pred_check
      _
    $region31: #{gru_classifier_forward.1} parent=1 // pred_check_branch
      %60 = sbr.rel (0) target = $region33
    $region32: #{gru_classifier_forward.1} parent=1 // pred_region
      _
    $region33: #{gru_classifier_forward.1} parent=1 // pred_fallthru
      _
    // Predicated region
    $region34: #{gru_classifier_forward.1} parent=1 // pred_check
      _
    $region35: #{gru_classifier_forward.1} parent=1 // pred_check_branch
      %62 = sbr.rel (0) target = $region37
    $region36: #{gru_classifier_forward.1} parent=1 // pred_region
      %63 = dma.done [#allocation3], 1024
    $region37: #{gru_classifier_forward.1} parent=1 // pred_fallthru
      _
    // Predicated region
    $region38: #{gru_classifier_forward.1} parent=1 // pred_check
      _
    $region39: #{gru_classifier_forward.1} parent=1 // pred_check_branch
      %65 = sbr.rel (0) target = $region41
    $region40: #{gru_classifier_forward.1} parent=1 // pred_region
      %66 = dma.done [#allocation5], 4096
    $region41: #{gru_classifier_forward.1} parent=1 // pred_fallthru
      _
    // Predicated region
    $region42: #{gru_classifier_forward.1} parent=1 // pred_check
      _
    $region43: #{gru_classifier_forward.1} parent=1 // pred_check_branch
      %68 = sbr.rel (0) target = $region45
    $region44: #{gru_classifier_forward.1} parent=1 // pred_region
      %69 = dma.done [#allocation5], 1024
    $region45: #{gru_classifier_forward.1} parent=1 // pred_fallthru
      _
    %v70 = vld [vmem:[%s0] sm:$0xff]
    %v71 = vld [vmem:[#allocation2] sm:$0xff]
    %v72 = vld [vmem:[#allocation2 + $0x8] sm:$0xff]
    %v73 = vld [vmem:[#allocation2 + $0x10] sm:$0xff]
    %v74 = vld [vmem:[#allocation2 + $0x18] sm:$0xff]
    %v75 = vld [vmem:[#allocation2 + $0x20] sm:$0xff]
    %v76 = vld [vmem:[#allocation2 + $0x28] sm:$0xff]
    %v77 = vld [vmem:[#allocation2 + $0x30] sm:$0xff]
    %v78 = vld [vmem:[#allocation2 + $0x38] sm:$0xff]
    %v79 = vld [vmem:[%s7] sm:$0x1]
    %v81 = vlaneseq
    %v82 = vshrl.u32 %v81, 7
    %v83 = vsub.s32 0, %v82
    %v84 = vrot.slane %v79, %v83
    %vm86 = vcmask 523264
    %v88 = vsel %vm86, %v70, 0
    %90 = vmatprep.subr.mxu0 0.0
    %91 = vmatpush1.msra.mxu0 %v71
    %92 = vmatprep.subr.mxu0 0.0
    %93 = vmatpush1.msra.mxu0 %v72
    %94 = vmatprep.subr.mxu0 0.0
    %95 = vmatpush1.msra.mxu0 %v73
    %96 = vmatprep.subr.mxu0 0.0
    %97 = vmatpush1.msra.mxu0 %v74
    %98 = vmatprep.subr.mxu0 0.0
    %99 = vmatpush1.msra.mxu0 %v75
    %100 = vmatprep.subr.mxu0 0.0
    %101 = vmatpush1.msra.mxu0 %v76
    %102 = vmatprep.subr.mxu0 0.0
    %103 = vmatpush1.msra.mxu0 %v77
    %104 = vmatprep.subr.mxu0 0.0
    %105 = vmatpush1.msra.mxu0 %v78
    %106 = vmatprep.subr.mxu0 0.0
    %107 = vmatpush1.msra.mxu0 0.0
    %108 = vmatprep.subr.mxu0 0.0
    %109 = vmatpush1.msra.mxu0 0.0
    %110 = vmatprep.subr.mxu0 0.0
    %111 = vmatpush1.msra.mxu0 0.0
    %112 = vmatprep.subr.mxu0 0.0
    %113 = vmatpush1.msra.mxu0 0.0
    %114 = vmatprep.subr.mxu0 0.0
    %115 = vmatpush1.msra.mxu0 0.0
    %116 = vmatprep.subr.mxu0 0.0
    %117 = vmatpush1.msra.mxu0 0.0
    %118 = vmatprep.subr.mxu0 0.0
    %119 = vmatpush1.msra.mxu0 0.0
    %120 = vmatprep.subr.mxu0 0.0
    %121 = vmatpush1.msra.mxu0 0.0
    %122 = vmatprep.subr.mxu0 0.0
    %123 = vmatpush1.msra.mxu0 0.0
    %124 = vmatprep.subr.mxu0 0.0
    %125 = vmatpush1.msra.mxu0 0.0
    %126 = vmatprep.subr.mxu0 0.0
    %127 = vmatpush1.msra.mxu0 0.0
    %128 = vmatprep.subr.mxu0 0.0
    %129 = vmatpush1.msra.mxu0 0.0
    %130 = vmatprep.subr.mxu0 0.0
    %131 = vmatpush1.msra.mxu0 0.0
    %132 = vmatprep.subr.mxu0 0.0
    %133 = vmatpush1.msra.mxu0 0.0
    %134 = vmatprep.subr.mxu0 0.0
    %135 = vmatpush1.msra.mxu0 0.0
    %136 = vmatprep.subr.mxu0 0.0
    %137 = vmatpush1.msra.mxu0 0.0
    %138 = vmatprep.subr.mxu0 0.0
    %139 = vmatpush1.msra.mxu0 0.0
    %140 = vmatprep.subr.mxu0 0.0
    %141 = vmatpush1.msra.mxu0 0.0
    %142 = vmatprep.subr.mxu0 0.0
    %143 = vmatpush1.msra.mxu0 0.0
    %144 = vmatprep.subr.mxu0 0.0
    %145 = vmatpush1.msra.mxu0 0.0
    %146 = vmatprep.subr.mxu0 0.0
    %147 = vmatpush1.msra.mxu0 0.0
    %148 = vmatprep.subr.mxu0 0.0
    %149 = vmatpush1.msra.mxu0 0.0
    %150 = vmatprep.subr.mxu0 0.0
    %151 = vmatpush1.msra.mxu0 0.0
    %152 = vmatprep.subr.mxu0 0.0
    %153 = vmatpush1.msra.mxu0 0.0
    %154 = vmatprep.mubr.f32.mxu0 0.0
    %155 = vmatmul.mubr.f32.gmra.mrb[0].mxu0 %v88
    %v156 = vpop.f32.mrb[0].mxu0
    %v157 = vadd.f32 %v84, %v156
    %v158 = vpop.f32.mrb[0].mxu0
    %159 = vdwg.mxu0
    %v160 = vmax.f32 %v157, 0.0
    %v161 = vand.u32 2147483647, %v157
    %v162 = vsub.f32 0.0, %v161
    %v163 = vmul.f32 %v162, 1.442695
    %v164 = vpow.pop %v163
    %v165 = vadd.f32 %v164, 1.0
    %v166 = vlog2.pop %v165
    %v167 = vmul.f32 %v166, 0.6931472
    %v168 = vadd.f32 %v160, %v167
    %v169 = vtanh.pop %v168
    %v170 = vmul.f32 %v157, %v169
    %v171 = vld [vmem:[%s7 + $0x1] sm:$0x3]
    %v173 = vlaneseq
    %v174 = vshrl.u32 %v173, 7
    %v175 = vsub.s32 0, %v174
    %v176 = vrot.slane %v171, %v175
    %v177 = vlaneseq
    %v178 = vshrl.u32 %v177, 7
    %v179 = vsub.s32 1, %v178
    %v180 = vrot.slane %v171, %v179
    %v183 = vld [vmem:[%s7 + $0x2] sm:$0x3]
    %v185 = vlaneseq
    %v186 = vshrl.u32 %v185, 7
    %v187 = vsub.s32 0, %v186
    %v188 = vrot.slane %v183, %v187
    %v189 = vlaneseq
    %v190 = vshrl.u32 %v189, 7
    %v191 = vsub.s32 1, %v190
    %v192 = vrot.slane %v183, %v191
    %v193 = vld [vmem:[%s7 + $0x4] sm:$0x3]
    %v195 = vlaneseq
    %v196 = vshrl.u32 %v195, 7
    %v197 = vsub.s32 0, %v196
    %v198 = vrot.slane %v193, %v197
    %v199 = vlaneseq
    %v200 = vshrl.u32 %v199, 7
    %v201 = vsub.s32 1, %v200
    %v202 = vrot.slane %v193, %v201
    %v205 = vld [vmem:[%s7 + $0x5] sm:$0x3]
    %v207 = vlaneseq
    %v208 = vshrl.u32 %v207, 7
    %v209 = vsub.s32 0, %v208
    %v210 = vrot.slane %v205, %v209
    %v211 = vlaneseq
    %v212 = vshrl.u32 %v211, 7
    %v213 = vsub.s32 1, %v212
    %v214 = vrot.slane %v205, %v213
    %v215 = vld [vmem:[%s7 + $0x7] sm:$0x1]
    %v217 = vlaneseq
    %v218 = vshrl.u32 %v217, 7
    %v219 = vsub.s32 0, %v218
    %v220 = vrot.slane %v215, %v219
    %v222 = vld [vmem:[%s7 + $0x8] sm:$0x1]
    %v224 = vlaneseq
    %v225 = vshrl.u32 %v224, 7
    %v226 = vsub.s32 0, %v225
    %v227 = vrot.slane %v222, %v226
    %v229 = vld [vmem:[%s7 + $0x9] sm:$0x1]
    %v231 = vlaneseq
    %v232 = vshrl.u32 %v231, 7
    %v233 = vsub.s32 0, %v232
    %v234 = vrot.slane %v229, %v233
    %v236 = vld [vmem:[%s7 + $0xa] sm:$0x1]
    %v238 = vlaneseq
    %v239 = vshrl.u32 %v238, 7
    %v240 = vsub.s32 0, %v239
    %v241 = vrot.slane %v236, %v240
    %v243 = vld [vmem:[%s7 + $0xb] sm:$0x1]
    %v245 = vlaneseq
    %v246 = vshrl.u32 %v245, 7
    %v247 = vsub.s32 0, %v246
    %v248 = vrot.slane %v243, %v247
    %v250 = vld [vmem:[%s7 + $0xc] sm:$0x1]
    %v252 = vlaneseq
    %v253 = vshrl.u32 %v252, 7
    %v254 = vsub.s32 0, %v253
    %v255 = vrot.slane %v250, %v254
    %v257 = vld [vmem:[%s2] sm:$0xff]
    %v258 = vld [vmem:[%s2 + $0x8] sm:$0xff]
    %v259 = vld [vmem:[%s2 + $0x10] sm:$0xff]
    %v260 = vld [vmem:[%s2 + $0x18] sm:$0xff]
    %vm261 = vcmask 130048
    %v263 = vsel %vm261, %v170, 0
    %265 = vmatprep.subr.mxu0 %v258
    %266 = vmatpush1.msra.mxu0 %v257
    %267 = vmatprep.subr.mxu0 %v260
    %268 = vmatpush1.msra.mxu0 %v259
    %269 = vmatprep.subr.mxu0 0.0
    %270 = vmatpush1.msra.mxu0 0.0
    %271 = vmatprep.subr.mxu0 0.0
    %272 = vmatpush1.msra.mxu0 0.0
    %273 = vmatprep.subr.mxu0 0.0
    %274 = vmatpush1.msra.mxu0 0.0
    %275 = vmatprep.subr.mxu0 0.0
    %276 = vmatpush1.msra.mxu0 0.0
    %277 = vmatprep.subr.mxu0 0.0
    %278 = vmatpush1.msra.mxu0 0.0
    %279 = vmatprep.subr.mxu0 0.0
    %280 = vmatpush1.msra.mxu0 0.0
    %281 = vmatprep.subr.mxu0 0.0
    %282 = vmatpush1.msra.mxu0 0.0
    %283 = vmatprep.subr.mxu0 0.0
    %284 = vmatpush1.msra.mxu0 0.0
    %285 = vmatprep.subr.mxu0 0.0
    %286 = vmatpush1.msra.mxu0 0.0
    %287 = vmatprep.subr.mxu0 0.0
    %288 = vmatpush1.msra.mxu0 0.0
    %289 = vmatprep.subr.mxu0 0.0
    %290 = vmatpush1.msra.mxu0 0.0
    %291 = vmatprep.subr.mxu0 0.0
    %292 = vmatpush1.msra.mxu0 0.0
    %293 = vmatprep.subr.mxu0 0.0
    %294 = vmatpush1.msra.mxu0 0.0
    %295 = vmatprep.subr.mxu0 0.0
    %296 = vmatpush1.msra.mxu0 0.0
    %297 = vmatprep.subr.mxu0 0.0
    %298 = vmatpush1.msra.mxu0 0.0
    %299 = vmatprep.subr.mxu0 0.0
    %300 = vmatpush1.msra.mxu0 0.0
    %301 = vmatprep.subr.mxu0 0.0
    %302 = vmatpush1.msra.mxu0 0.0
    %303 = vmatprep.subr.mxu0 0.0
    %304 = vmatpush1.msra.mxu0 0.0
    %305 = vmatprep.subr.mxu0 0.0
    %306 = vmatpush1.msra.mxu0 0.0
    %307 = vmatprep.subr.mxu0 0.0
    %308 = vmatpush1.msra.mxu0 0.0
    %309 = vmatprep.subr.mxu0 0.0
    %310 = vmatpush1.msra.mxu0 0.0
    %311 = vmatprep.subr.mxu0 0.0
    %312 = vmatpush1.msra.mxu0 0.0
    %313 = vmatprep.subr.mxu0 0.0
    %314 = vmatpush1.msra.mxu0 0.0
    %315 = vmatprep.subr.mxu0 0.0
    %316 = vmatpush1.msra.mxu0 0.0
    %317 = vmatprep.subr.mxu0 0.0
    %318 = vmatpush1.msra.mxu0 0.0
    %319 = vmatprep.subr.mxu0 0.0
    %320 = vmatpush1.msra.mxu0 0.0
    %321 = vmatprep.subr.mxu0 0.0
    %322 = vmatpush1.msra.mxu0 0.0
    %323 = vmatprep.subr.mxu0 0.0
    %324 = vmatpush1.msra.mxu0 0.0
    %325 = vmatprep.subr.mxu0 0.0
    %326 = vmatpush1.msra.mxu0 0.0
    %327 = vmatprep.subr.mxu0 0.0
    %328 = vmatpush1.msra.mxu0 0.0
    %329 = vmatprep.mubr.f32.mxu0 0.0
    %330 = vmatmul.mubr.f32.gmra.mrb[0].mxu0 %v263
    %v331 = vpop.f32.mrb[0].mxu0
    %v332 = vadd.f32 %v176, %v331
    %v333 = vpop.f32.mrb[0].mxu0
    %v334 = vadd.f32 %v180, %v333
    %335 = vdwg.mxu0
    %v336 = vld [vmem:[#allocation4] sm:$0xff]
    %v337 = vld [vmem:[#allocation4 + $0x8] sm:$0xff]
    %v338 = vld [vmem:[#allocation4 + $0x10] sm:$0xff]
    %v339 = vld [vmem:[#allocation4 + $0x18] sm:$0xff]
    %v340 = vld [vmem:[#allocation4 + $0x20] sm:$0xff]
    %v341 = vld [vmem:[#allocation4 + $0x28] sm:$0xff]
    %v342 = vld [vmem:[#allocation4 + $0x30] sm:$0xff]
    %v343 = vld [vmem:[#allocation4 + $0x38] sm:$0xff]
    %v344 = vld [vmem:[#allocation4 + $0x40] sm:$0xff]
    %v345 = vld [vmem:[#allocation4 + $0x48] sm:$0xff]
    %v346 = vld [vmem:[#allocation4 + $0x50] sm:$0xff]
    %v347 = vld [vmem:[#allocation4 + $0x58] sm:$0xff]
    %v348 = vld [vmem:[#allocation4 + $0x60] sm:$0xff]
    %v349 = vld [vmem:[#allocation4 + $0x68] sm:$0xff]
    %v350 = vld [vmem:[#allocation4 + $0x70] sm:$0xff]
    %v351 = vld [vmem:[#allocation4 + $0x78] sm:$0xff]
    %v353 = vsel %vm86, 0.0, 0
    %355 = vmatprep.subr.mxu0 %v337
    %356 = vmatpush1.msra.mxu0 %v336
    %357 = vmatprep.subr.mxu0 %v339
    %358 = vmatpush1.msra.mxu0 %v338
    %359 = vmatprep.subr.mxu0 %v341
    %360 = vmatpush1.msra.mxu0 %v340
    %361 = vmatprep.subr.mxu0 %v343
    %362 = vmatpush1.msra.mxu0 %v342
    %363 = vmatprep.subr.mxu0 %v345
    %364 = vmatpush1.msra.mxu0 %v344
    %365 = vmatprep.subr.mxu0 %v347
    %366 = vmatpush1.msra.mxu0 %v346
    %367 = vmatprep.subr.mxu0 %v349
    %368 = vmatpush1.msra.mxu0 %v348
    %369 = vmatprep.subr.mxu0 %v351
    %370 = vmatpush1.msra.mxu0 %v350
    %371 = vmatprep.subr.mxu0 0.0
    %372 = vmatpush1.msra.mxu0 0.0
    %373 = vmatprep.subr.mxu0 0.0
    %374 = vmatpush1.msra.mxu0 0.0
    %375 = vmatprep.subr.mxu0 0.0
    %376 = vmatpush1.msra.mxu0 0.0
    %377 = vmatprep.subr.mxu0 0.0
    %378 = vmatpush1.msra.mxu0 0.0
    %379 = vmatprep.subr.mxu0 0.0
    %380 = vmatpush1.msra.mxu0 0.0
    %381 = vmatprep.subr.mxu0 0.0
    %382 = vmatpush1.msra.mxu0 0.0
    %383 = vmatprep.subr.mxu0 0.0
    %384 = vmatpush1.msra.mxu0 0.0
    %385 = vmatprep.subr.mxu0 0.0
    %386 = vmatpush1.msra.mxu0 0.0
    %387 = vmatprep.subr.mxu0 0.0
    %388 = vmatpush1.msra.mxu0 0.0
    %389 = vmatprep.subr.mxu0 0.0
    %390 = vmatpush1.msra.mxu0 0.0
    %391 = vmatprep.subr.mxu0 0.0
    %392 = vmatpush1.msra.mxu0 0.0
    %393 = vmatprep.subr.mxu0 0.0
    %394 = vmatpush1.msra.mxu0 0.0
    %395 = vmatprep.subr.mxu0 0.0
    %396 = vmatpush1.msra.mxu0 0.0
    %397 = vmatprep.subr.mxu0 0.0
    %398 = vmatpush1.msra.mxu0 0.0
    %399 = vmatprep.subr.mxu0 0.0
    %400 = vmatpush1.msra.mxu0 0.0
    %401 = vmatprep.subr.mxu0 0.0
    %402 = vmatpush1.msra.mxu0 0.0
    %403 = vmatprep.subr.mxu0 0.0
    %404 = vmatpush1.msra.mxu0 0.0
    %405 = vmatprep.subr.mxu0 0.0
    %406 = vmatpush1.msra.mxu0 0.0
    %407 = vmatprep.subr.mxu0 0.0
    %408 = vmatpush1.msra.mxu0 0.0
    %409 = vmatprep.subr.mxu0 0.0
    %410 = vmatpush1.msra.mxu0 0.0
    %411 = vmatprep.subr.mxu0 0.0
    %412 = vmatpush1.msra.mxu0 0.0
    %413 = vmatprep.subr.mxu0 0.0
    %414 = vmatpush1.msra.mxu0 0.0
    %415 = vmatprep.subr.mxu0 0.0
    %416 = vmatpush1.msra.mxu0 0.0
    %417 = vmatprep.subr.mxu0 0.0
    %418 = vmatpush1.msra.mxu0 0.0
    %419 = vmatprep.mubr.f32.mxu0 0.0
    %420 = vmatmul.mubr.f32.gmra.mrb[0].mxu0 %v353
    %v421 = vpop.f32.mrb[0].mxu0
    %v422 = vadd.f32 %v198, %v421
    %v423 = vpop.f32.mrb[0].mxu0
    %v424 = vadd.f32 %v202, %v423
    %425 = vdwg.mxu0
    %v426 = vadd.f32 %v332, %v422
    %v427 = vmul.f32 %v426, 0.5
    %v428 = vtanh.pop %v427
    %v429 = vmul.f32 %v428, 0.5
    %v430 = vadd.f32 %v429, 0.5
    %v431 = vmul.f32 %v430, %v424
    %v432 = vadd.f32 %v334, %v431
    %v433 = vtanh.pop %v432
    %v434 = vsub.f32 1.0, %v430
    %436 = vrot.lane.b32.xlu0 %v433, 64
    %v437 = vpop.permute.xlu0 %436
    %v439 = vmul.f32 %v434, %v437
    %v440 = vmul.f32 %v430, 0.0
    %v441 = vadd.f32 %v439, %v440
    %s442 = scalar_lea.vmem %s2, 128
    %v443 = vld [vmem:[%s442] sm:$0xff]
    %v444 = vld [vmem:[%s442 + $0x8] sm:$0xff]
    %v445 = vld [vmem:[%s442 + $0x10] sm:$0xff]
    %v446 = vld [vmem:[%s442 + $0x18] sm:$0xff]
    %v447 = vld [vmem:[%s442 + $0x20] sm:$0xff]
    %v448 = vld [vmem:[%s442 + $0x28] sm:$0xff]
    %v449 = vld [vmem:[%s442 + $0x30] sm:$0xff]
    %v450 = vld [vmem:[%s442 + $0x38] sm:$0xff]
    %v451 = vld [vmem:[%s442 + $0x40] sm:$0xff]
    %v452 = vld [vmem:[%s442 + $0x48] sm:$0xff]
    %v453 = vld [vmem:[%s442 + $0x50] sm:$0xff]
    %v454 = vld [vmem:[%s442 + $0x58] sm:$0xff]
    %v455 = vld [vmem:[%s442 + $0x60] sm:$0xff]
    %v456 = vld [vmem:[%s442 + $0x68] sm:$0xff]
    %v457 = vld [vmem:[%s442 + $0x70] sm:$0xff]
    %v458 = vld [vmem:[%s442 + $0x78] sm:$0xff]
    %460 = vrot.lane.b32.xlu0 %v441, 64
    %v461 = vpop.permute.xlu0 %460
    %462 = vrot.lane.b32.xlu0 %v188, 64
    %v463 = vpop.permute.xlu0 %462
    %464 = vrot.lane.b32.xlu0 %v192, 64
    %v465 = vpop.permute.xlu0 %464
    %v466 = vsel %vm86, %v463, %v465
    %v469 = vsel %vm86, %v461, 0
    %471 = vmatprep.subr.mxu0 %v444
    %472 = vmatpush1.msra.mxu0 %v443
    %473 = vmatprep.subr.mxu0 %v446
    %474 = vmatpush1.msra.mxu0 %v445
    %475 = vmatprep.subr.mxu0 %v448
    %476 = vmatpush1.msra.mxu0 %v447
    %477 = vmatprep.subr.mxu0 %v450
    %478 = vmatpush1.msra.mxu0 %v449
    %479 = vmatprep.subr.mxu0 %v452
    %480 = vmatpush1.msra.mxu0 %v451
    %481 = vmatprep.subr.mxu0 %v454
    %482 = vmatpush1.msra.mxu0 %v453
    %483 = vmatprep.subr.mxu0 %v456
    %484 = vmatpush1.msra.mxu0 %v455
    %485 = vmatprep.subr.mxu0 %v458
    %486 = vmatpush1.msra.mxu0 %v457
    %487 = vmatprep.subr.mxu0 0.0
    %488 = vmatpush1.msra.mxu0 0.0
    %489 = vmatprep.subr.mxu0 0.0
    %490 = vmatpush1.msra.mxu0 0.0
    %491 = vmatprep.subr.mxu0 0.0
    %492 = vmatpush1.msra.mxu0 0.0
    %493 = vmatprep.subr.mxu0 0.0
    %494 = vmatpush1.msra.mxu0 0.0
    %495 = vmatprep.subr.mxu0 0.0
    %496 = vmatpush1.msra.mxu0 0.0
    %497 = vmatprep.subr.mxu0 0.0
    %498 = vmatpush1.msra.mxu0 0.0
    %499 = vmatprep.subr.mxu0 0.0
    %500 = vmatpush1.msra.mxu0 0.0
    %501 = vmatprep.subr.mxu0 0.0
    %502 = vmatpush1.msra.mxu0 0.0
    %503 = vmatprep.subr.mxu0 0.0
    %504 = vmatpush1.msra.mxu0 0.0
    %505 = vmatprep.subr.mxu0 0.0
    %506 = vmatpush1.msra.mxu0 0.0
    %507 = vmatprep.subr.mxu0 0.0
    %508 = vmatpush1.msra.mxu0 0.0
    %509 = vmatprep.subr.mxu0 0.0
    %510 = vmatpush1.msra.mxu0 0.0
    %511 = vmatprep.subr.mxu0 0.0
    %512 = vmatpush1.msra.mxu0 0.0
    %513 = vmatprep.subr.mxu0 0.0
    %514 = vmatpush1.msra.mxu0 0.0
    %515 = vmatprep.subr.mxu0 0.0
    %516 = vmatpush1.msra.mxu0 0.0
    %517 = vmatprep.subr.mxu0 0.0
    %518 = vmatpush1.msra.mxu0 0.0
    %519 = vmatprep.subr.mxu0 0.0
    %520 = vmatpush1.msra.mxu0 0.0
    %521 = vmatprep.subr.mxu0 0.0
    %522 = vmatpush1.msra.mxu0 0.0
    %523 = vmatprep.subr.mxu0 0.0
    %524 = vmatpush1.msra.mxu0 0.0
    %525 = vmatprep.subr.mxu0 0.0
    %526 = vmatpush1.msra.mxu0 0.0
    %527 = vmatprep.subr.mxu0 0.0
    %528 = vmatpush1.msra.mxu0 0.0
    %529 = vmatprep.subr.mxu0 0.0
    %530 = vmatpush1.msra.mxu0 0.0
    %531 = vmatprep.subr.mxu0 0.0
    %532 = vmatpush1.msra.mxu0 0.0
    %533 = vmatprep.subr.mxu0 0.0
    %534 = vmatpush1.msra.mxu0 0.0
    %535 = vmatprep.mubr.f32.mxu0 0.0
    %536 = vmatmul.mubr.f32.gmra.mrb[0].mxu0 %v469
    %v537 = vpop.f32.mrb[0].mxu0
    %v538 = vadd.f32 %v466, %v537
    %v539 = vpop.f32.mrb[0].mxu0
    %v540 = vadd.f32 %v465, %v539
    %541 = vdwg.mxu0
    %s542 = scalar_lea.vmem [#allocation4], 128
    %v543 = vld [vmem:[%s542] sm:$0xff]
    %v544 = vld [vmem:[%s542 + $0x8] sm:$0xff]
    %v545 = vld [vmem:[%s542 + $0x10] sm:$0xff]
    %v546 = vld [vmem:[%s542 + $0x18] sm:$0xff]
    %v547 = vld [vmem:[%s542 + $0x20] sm:$0xff]
    %v548 = vld [vmem:[%s542 + $0x28] sm:$0xff]
    %v549 = vld [vmem:[%s542 + $0x30] sm:$0xff]
    %v550 = vld [vmem:[%s542 + $0x38] sm:$0xff]
    %v551 = vld [vmem:[%s542 + $0x40] sm:$0xff]
    %v552 = vld [vmem:[%s542 + $0x48] sm:$0xff]
    %v553 = vld [vmem:[%s542 + $0x50] sm:$0xff]
    %v554 = vld [vmem:[%s542 + $0x58] sm:$0xff]
    %v555 = vld [vmem:[%s542 + $0x60] sm:$0xff]
    %v556 = vld [vmem:[%s542 + $0x68] sm:$0xff]
    %v557 = vld [vmem:[%s542 + $0x70] sm:$0xff]
    %v558 = vld [vmem:[%s542 + $0x78] sm:$0xff]
    %559 = vrot.lane.b32.xlu0 %v210, 64
    %v560 = vpop.permute.xlu0 %559
    %561 = vrot.lane.b32.xlu0 %v214, 64
    %v562 = vpop.permute.xlu0 %561
    %v563 = vsel %vm86, %v560, %v562
    %566 = vmatprep.subr.mxu0 %v544
    %567 = vmatpush1.msra.mxu0 %v543
    %568 = vmatprep.subr.mxu0 %v546
    %569 = vmatpush1.msra.mxu0 %v545
    %570 = vmatprep.subr.mxu0 %v548
    %571 = vmatpush1.msra.mxu0 %v547
    %572 = vmatprep.subr.mxu0 %v550
    %573 = vmatpush1.msra.mxu0 %v549
    %574 = vmatprep.subr.mxu0 %v552
    %575 = vmatpush1.msra.mxu0 %v551
    %576 = vmatprep.subr.mxu0 %v554
    %577 = vmatpush1.msra.mxu0 %v553
    %578 = vmatprep.subr.mxu0 %v556
    %579 = vmatpush1.msra.mxu0 %v555
    %580 = vmatprep.subr.mxu0 %v558
    %581 = vmatpush1.msra.mxu0 %v557
    %582 = vmatprep.subr.mxu0 0.0
    %583 = vmatpush1.msra.mxu0 0.0
    %584 = vmatprep.subr.mxu0 0.0
    %585 = vmatpush1.msra.mxu0 0.0
    %586 = vmatprep.subr.mxu0 0.0
    %587 = vmatpush1.msra.mxu0 0.0
    %588 = vmatprep.subr.mxu0 0.0
    %589 = vmatpush1.msra.mxu0 0.0
    %590 = vmatprep.subr.mxu0 0.0
    %591 = vmatpush1.msra.mxu0 0.0
    %592 = vmatprep.subr.mxu0 0.0
    %593 = vmatpush1.msra.mxu0 0.0
    %594 = vmatprep.subr.mxu0 0.0
    %595 = vmatpush1.msra.mxu0 0.0
    %596 = vmatprep.subr.mxu0 0.0
    %597 = vmatpush1.msra.mxu0 0.0
    %598 = vmatprep.subr.mxu0 0.0
    %599 = vmatpush1.msra.mxu0 0.0
    %600 = vmatprep.subr.mxu0 0.0
    %601 = vmatpush1.msra.mxu0 0.0
    %602 = vmatprep.subr.mxu0 0.0
    %603 = vmatpush1.msra.mxu0 0.0
    %604 = vmatprep.subr.mxu0 0.0
    %605 = vmatpush1.msra.mxu0 0.0
    %606 = vmatprep.subr.mxu0 0.0
    %607 = vmatpush1.msra.mxu0 0.0
    %608 = vmatprep.subr.mxu0 0.0
    %609 = vmatpush1.msra.mxu0 0.0
    %610 = vmatprep.subr.mxu0 0.0
    %611 = vmatpush1.msra.mxu0 0.0
    %612 = vmatprep.subr.mxu0 0.0
    %613 = vmatpush1.msra.mxu0 0.0
    %614 = vmatprep.subr.mxu0 0.0
    %615 = vmatpush1.msra.mxu0 0.0
    %616 = vmatprep.subr.mxu0 0.0
    %617 = vmatpush1.msra.mxu0 0.0
    %618 = vmatprep.subr.mxu0 0.0
    %619 = vmatpush1.msra.mxu0 0.0
    %620 = vmatprep.subr.mxu0 0.0
    %621 = vmatpush1.msra.mxu0 0.0
    %622 = vmatprep.subr.mxu0 0.0
    %623 = vmatpush1.msra.mxu0 0.0
    %624 = vmatprep.subr.mxu0 0.0
    %625 = vmatpush1.msra.mxu0 0.0
    %626 = vmatprep.subr.mxu0 0.0
    %627 = vmatpush1.msra.mxu0 0.0
    %628 = vmatprep.subr.mxu0 0.0
    %629 = vmatpush1.msra.mxu0 0.0
    %630 = vmatprep.mubr.f32.mxu0 0.0
    %631 = vmatmul.mubr.f32.gmra.mrb[0].mxu0 %v353
    %v632 = vpop.f32.mrb[0].mxu0
    %v633 = vadd.f32 %v563, %v632
    %v634 = vpop.f32.mrb[0].mxu0
    %v635 = vadd.f32 %v562, %v634
    %636 = vdwg.mxu0
    %v637 = vadd.f32 %v538, %v633
    %v638 = vmul.f32 %v637, 0.5
    %v639 = vtanh.pop %v638
    %v640 = vmul.f32 %v639, 0.5
    %v641 = vadd.f32 %v640, 0.5
    %v642 = vmul.f32 %v641, %v635
    %v643 = vadd.f32 %v540, %v642
    %v644 = vtanh.pop %v643
    %v645 = vsub.f32 1.0, %v641
    %647 = vrot.lane.b32.xlu0 %v644, 64
    %v648 = vpop.permute.xlu0 %647
    %v650 = vmul.f32 %v645, %v648
    %v651 = vmul.f32 %v641, 0.0
    %v652 = vadd.f32 %v650, %v651
    %v654 = vsel %vm86, %v461, %v652
    %v655 = vld [vmem:[%s4] sm:$0xff]
    %v656 = vld [vmem:[%s4 + $0x8] sm:$0xff]
    %v657 = vld [vmem:[%s4 + $0x10] sm:$0xff]
    %v658 = vld [vmem:[%s4 + $0x18] sm:$0xff]
    %v659 = vld [vmem:[%s4 + $0x20] sm:$0xff]
    %v660 = vld [vmem:[%s4 + $0x28] sm:$0xff]
    %v661 = vld [vmem:[%s4 + $0x30] sm:$0xff]
    %v662 = vld [vmem:[%s4 + $0x38] sm:$0xff]
    %v663 = vld [vmem:[%s4 + $0x40] sm:$0xff]
    %v664 = vld [vmem:[%s4 + $0x48] sm:$0xff]
    %v665 = vld [vmem:[%s4 + $0x50] sm:$0xff]
    %v666 = vld [vmem:[%s4 + $0x58] sm:$0xff]
    %v667 = vld [vmem:[%s4 + $0x60] sm:$0xff]
    %v668 = vld [vmem:[%s4 + $0x68] sm:$0xff]
    %v669 = vld [vmem:[%s4 + $0x70] sm:$0xff]
    %v670 = vld [vmem:[%s4 + $0x78] sm:$0xff]
    %671 = vmatprep.subr.mxu0 0.0
    %672 = vmatpush1.msra.mxu0 %v655
    %673 = vmatprep.subr.mxu0 0.0
    %674 = vmatpush1.msra.mxu0 %v656
    %675 = vmatprep.subr.mxu0 0.0
    %676 = vmatpush1.msra.mxu0 %v657
    %677 = vmatprep.subr.mxu0 0.0
    %678 = vmatpush1.msra.mxu0 %v658
    %679 = vmatprep.subr.mxu0 0.0
    %680 = vmatpush1.msra.mxu0 %v659
    %681 = vmatprep.subr.mxu0 0.0
    %682 = vmatpush1.msra.mxu0 %v660
    %683 = vmatprep.subr.mxu0 0.0
    %684 = vmatpush1.msra.mxu0 %v661
    %685 = vmatprep.subr.mxu0 0.0
    %686 = vmatpush1.msra.mxu0 %v662
    %687 = vmatprep.subr.mxu0 0.0
    %688 = vmatpush1.msra.mxu0 %v663
    %689 = vmatprep.subr.mxu0 0.0
    %690 = vmatpush1.msra.mxu0 %v664
    %691 = vmatprep.subr.mxu0 0.0
    %692 = vmatpush1.msra.mxu0 %v665
    %693 = vmatprep.subr.mxu0 0.0
    %694 = vmatpush1.msra.mxu0 %v666
    %695 = vmatprep.subr.mxu0 0.0
    %696 = vmatpush1.msra.mxu0 %v667
    %697 = vmatprep.subr.mxu0 0.0
    %698 = vmatpush1.msra.mxu0 %v668
    %699 = vmatprep.subr.mxu0 0.0
    %700 = vmatpush1.msra.mxu0 %v669
    %701 = vmatprep.subr.mxu0 0.0
    %702 = vmatpush1.msra.mxu0 %v670
    %703 = vmatprep.subr.mxu0 0.0
    %704 = vmatpush1.msra.mxu0 0.0
    %705 = vmatprep.subr.mxu0 0.0
    %706 = vmatpush1.msra.mxu0 0.0
    %707 = vmatprep.subr.mxu0 0.0
    %708 = vmatpush1.msra.mxu0 0.0
    %709 = vmatprep.subr.mxu0 0.0
    %710 = vmatpush1.msra.mxu0 0.0
    %711 = vmatprep.subr.mxu0 0.0
    %712 = vmatpush1.msra.mxu0 0.0
    %713 = vmatprep.subr.mxu0 0.0
    %714 = vmatpush1.msra.mxu0 0.0
    %715 = vmatprep.subr.mxu0 0.0
    %716 = vmatpush1.msra.mxu0 0.0
    %717 = vmatprep.subr.mxu0 0.0
    %718 = vmatpush1.msra.mxu0 0.0
    %719 = vmatprep.subr.mxu0 0.0
    %720 = vmatpush1.msra.mxu0 0.0
    %721 = vmatprep.subr.mxu0 0.0
    %722 = vmatpush1.msra.mxu0 0.0
    %723 = vmatprep.subr.mxu0 0.0
    %724 = vmatpush1.msra.mxu0 0.0
    %725 = vmatprep.subr.mxu0 0.0
    %726 = vmatpush1.msra.mxu0 0.0
    %727 = vmatprep.subr.mxu0 0.0
    %728 = vmatpush1.msra.mxu0 0.0
    %729 = vmatprep.subr.mxu0 0.0
    %730 = vmatpush1.msra.mxu0 0.0
    %731 = vmatprep.subr.mxu0 0.0
    %732 = vmatpush1.msra.mxu0 0.0
    %733 = vmatprep.subr.mxu0 0.0
    %734 = vmatpush1.msra.mxu0 0.0
    %735 = vmatprep.mubr.f32.mxu0 0.0
    %736 = vmatmul.mubr.f32.gmra.mrb[0].mxu0 %v654
    %v737 = vpop.f32.mrb[0].mxu0
    %v738 = vadd.f32 %v220, %v737
    %v739 = vpop.f32.mrb[0].mxu0
    %740 = vdwg.mxu0
    %v741 = vmul.f32 %v738, 0.5
    %v742 = vmul.f32 %v738, 0.044715
    %v743 = vmul.f32 %v742, %v738
    %v744 = vmul.f32 %v743, %v738
    %v745 = vadd.f32 %v738, %v744
    %v746 = vmul.f32 %v745, 0.7978846
    %v747 = vtanh.pop %v746
    %v748 = vadd.f32 %v747, 1.0
    %v749 = vmul.f32 %v741, %v748
    %v750 = vmul.f32 %v749, %v227
    %vm751 = vcmask 392192
    %v752 = vsel %vm751, %v750, 0.0
    %753 = vadd.xlane.f32.xlu0 %v752
    %v754 = vpop.xlane.xlu0 %753
    %v755 = vadd.f32 %v754, %v234
    %v756 = vmul.f32 %v755, 0.5
    %v757 = vtanh.pop %v756
    %v758 = vmul.f32 %v757, 0.5
    %v759 = vadd.f32 %v758, 0.5
    %761 = vrot.lane.b32.xlu0 %v750, 80
    %v762 = vpop.permute.xlu0 %761
    %v764 = vsel %vm751, %v762, 0.0
    %765 = vadd.xlane.f32.xlu0 %v764
    %v766 = vpop.xlane.xlu0 %765
    %v767 = vadd.f32 %v766, %v234
    %v768 = vmul.f32 %v767, 0.5
    %v769 = vtanh.pop %v768
    %v770 = vmul.f32 %v769, 0.5
    %v771 = vadd.f32 %v770, 0.5
    %773 = vrot.lane.b32.xlu0 %v771, 127
    %v774 = vpop.permute.xlu0 %773
    %v776 = vadd.f32 %v759, %v774
    %778 = vset.pattern.permute.xlu0 0
    %779 = vperm.xlu0 %778, %v776
    %v780 = vpop.permute.xlu0 %779
    %v782 = vmul.f32 %v780, %v652
    %v783 = vld [vmem:[#allocation6] sm:$0xff]
    %v784 = vld [vmem:[#allocation6 + $0x8] sm:$0xff]
    %v785 = vld [vmem:[#allocation6 + $0x10] sm:$0xff]
    %v786 = vld [vmem:[#allocation6 + $0x18] sm:$0xff]
    %v787 = vld [vmem:[#allocation6 + $0x20] sm:$0xff]
    %v788 = vld [vmem:[#allocation6 + $0x28] sm:$0xff]
    %v789 = vld [vmem:[#allocation6 + $0x30] sm:$0xff]
    %v790 = vld [vmem:[#allocation6 + $0x38] sm:$0xff]
    %792 = vrot.lane.b32.xlu0 %v782, 64
    %v793 = vpop.permute.xlu0 %792
    %v794 = vsel %vm86, %v793, 0
    %796 = vmatprep.subr.mxu0 0.0
    %797 = vmatpush1.msra.mxu0 %v783
    %798 = vmatprep.subr.mxu0 0.0
    %799 = vmatpush1.msra.mxu0 %v784
    %800 = vmatprep.subr.mxu0 0.0
    %801 = vmatpush1.msra.mxu0 %v785
    %802 = vmatprep.subr.mxu0 0.0
    %803 = vmatpush1.msra.mxu0 %v786
    %804 = vmatprep.subr.mxu0 0.0
    %805 = vmatpush1.msra.mxu0 %v787
    %806 = vmatprep.subr.mxu0 0.0
    %807 = vmatpush1.msra.mxu0 %v788
    %808 = vmatprep.subr.mxu0 0.0
    %809 = vmatpush1.msra.mxu0 %v789
    %810 = vmatprep.subr.mxu0 0.0
    %811 = vmatpush1.msra.mxu0 %v790
    %812 = vmatprep.subr.mxu0 0.0
    %813 = vmatpush1.msra.mxu0 0.0
    %814 = vmatprep.subr.mxu0 0.0
    %815 = vmatpush1.msra.mxu0 0.0
    %816 = vmatprep.subr.mxu0 0.0
    %817 = vmatpush1.msra.mxu0 0.0
    %818 = vmatprep.subr.mxu0 0.0
    %819 = vmatpush1.msra.mxu0 0.0
    %820 = vmatprep.subr.mxu0 0.0
    %821 = vmatpush1.msra.mxu0 0.0
    %822 = vmatprep.subr.mxu0 0.0
    %823 = vmatpush1.msra.mxu0 0.0
    %824 = vmatprep.subr.mxu0 0.0
    %825 = vmatpush1.msra.mxu0 0.0
    %826 = vmatprep.subr.mxu0 0.0
    %827 = vmatpush1.msra.mxu0 0.0
    %828 = vmatprep.subr.mxu0 0.0
    %829 = vmatpush1.msra.mxu0 0.0
    %830 = vmatprep.subr.mxu0 0.0
    %831 = vmatpush1.msra.mxu0 0.0
    %832 = vmatprep.subr.mxu0 0.0
    %833 = vmatpush1.msra.mxu0 0.0
    %834 = vmatprep.subr.mxu0 0.0
    %835 = vmatpush1.msra.mxu0 0.0
    %836 = vmatprep.subr.mxu0 0.0
    %837 = vmatpush1.msra.mxu0 0.0
    %838 = vmatprep.subr.mxu0 0.0
    %839 = vmatpush1.msra.mxu0 0.0
    %840 = vmatprep.subr.mxu0 0.0
    %841 = vmatpush1.msra.mxu0 0.0
    %842 = vmatprep.subr.mxu0 0.0
    %843 = vmatpush1.msra.mxu0 0.0
    %844 = vmatprep.subr.mxu0 0.0
    %845 = vmatpush1.msra.mxu0 0.0
    %846 = vmatprep.subr.mxu0 0.0
    %847 = vmatpush1.msra.mxu0 0.0
    %848 = vmatprep.subr.mxu0 0.0
    %849 = vmatpush1.msra.mxu0 0.0
    %850 = vmatprep.subr.mxu0 0.0
    %851 = vmatpush1.msra.mxu0 0.0
    %852 = vmatprep.subr.mxu0 0.0
    %853 = vmatpush1.msra.mxu0 0.0
    %854 = vmatprep.subr.mxu0 0.0
    %855 = vmatpush1.msra.mxu0 0.0
    %856 = vmatprep.subr.mxu0 0.0
    %857 = vmatpush1.msra.mxu0 0.0
    %858 = vmatprep.subr.mxu0 0.0
    %859 = vmatpush1.msra.mxu0 0.0
    %860 = vmatprep.mubr.f32.mxu0 0.0
    %861 = vmatmul.mubr.f32.gmra.mrb[0].mxu0 %v794
    %v862 = vpop.f32.mrb[0].mxu0
    %v863 = vadd.f32 %v241, %v862
    %v864 = vpop.f32.mrb[0].mxu0
    %865 = vdwg.mxu0
    %v866 = vmul.f32 %v863, 0.5
    %v867 = vtanh.pop %v866
    %v868 = vmul.f32 %v867, 0.5
    %v869 = vadd.f32 %v868, 0.5
    %v870 = vmul.f32 %v863, %v869
    %v871 = vmul.f32 %v870, %v248
    %v872 = vsel %vm86, %v871, 0.0
    %873 = vadd.xlane.f32.xlu0 %v872
    %v874 = vpop.xlane.xlu0 %873
    %v875 = vadd.f32 %v874, %v255
    %876 = vrot.lane.b32.xlu0 %v170, 112
    %v877 = vpop.permute.xlu0 %876
    %v878 = vsel %vm261, %v877, 0
    %880 = vmatprep.subr.mxu0 %v258
    %881 = vmatpush1.msra.mxu0 %v257
    %882 = vmatprep.subr.mxu0 %v260
    %883 = vmatpush1.msra.mxu0 %v259
    %884 = vmatprep.subr.mxu0 0.0
    %885 = vmatpush1.msra.mxu0 0.0
    %886 = vmatprep.subr.mxu0 0.0
    %887 = vmatpush1.msra.mxu0 0.0
    %888 = vmatprep.subr.mxu0 0.0
    %889 = vmatpush1.msra.mxu0 0.0
    %890 = vmatprep.subr.mxu0 0.0
    %891 = vmatpush1.msra.mxu0 0.0
    %892 = vmatprep.subr.mxu0 0.0
    %893 = vmatpush1.msra.mxu0 0.0
    %894 = vmatprep.subr.mxu0 0.0
    %895 = vmatpush1.msra.mxu0 0.0
    %896 = vmatprep.subr.mxu0 0.0
    %897 = vmatpush1.msra.mxu0 0.0
    %898 = vmatprep.subr.mxu0 0.0
    %899 = vmatpush1.msra.mxu0 0.0
    %900 = vmatprep.subr.mxu0 0.0
    %901 = vmatpush1.msra.mxu0 0.0
    %902 = vmatprep.subr.mxu0 0.0
    %903 = vmatpush1.msra.mxu0 0.0
    %904 = vmatprep.subr.mxu0 0.0
    %905 = vmatpush1.msra.mxu0 0.0
    %906 = vmatprep.subr.mxu0 0.0
    %907 = vmatpush1.msra.mxu0 0.0
    %908 = vmatprep.subr.mxu0 0.0
    %909 = vmatpush1.msra.mxu0 0.0
    %910 = vmatprep.subr.mxu0 0.0
    %911 = vmatpush1.msra.mxu0 0.0
    %912 = vmatprep.subr.mxu0 0.0
    %913 = vmatpush1.msra.mxu0 0.0
    %914 = vmatprep.subr.mxu0 0.0
    %915 = vmatpush1.msra.mxu0 0.0
    %916 = vmatprep.subr.mxu0 0.0
    %917 = vmatpush1.msra.mxu0 0.0
    %918 = vmatprep.subr.mxu0 0.0
    %919 = vmatpush1.msra.mxu0 0.0
    %920 = vmatprep.subr.mxu0 0.0
    %921 = vmatpush1.msra.mxu0 0.0
    %922 = vmatprep.subr.mxu0 0.0
    %923 = vmatpush1.msra.mxu0 0.0
    %924 = vmatprep.subr.mxu0 0.0
    %925 = vmatpush1.msra.mxu0 0.0
    %926 = vmatprep.subr.mxu0 0.0
    %927 = vmatpush1.msra.mxu0 0.0
    %928 = vmatprep.subr.mxu0 0.0
    %929 = vmatpush1.msra.mxu0 0.0
    %930 = vmatprep.subr.mxu0 0.0
    %931 = vmatpush1.msra.mxu0 0.0
    %932 = vmatprep.subr.mxu0 0.0
    %933 = vmatpush1.msra.mxu0 0.0
    %934 = vmatprep.subr.mxu0 0.0
    %935 = vmatpush1.msra.mxu0 0.0
    %936 = vmatprep.subr.mxu0 0.0
    %937 = vmatpush1.msra.mxu0 0.0
    %938 = vmatprep.subr.mxu0 0.0
    %939 = vmatpush1.msra.mxu0 0.0
    %940 = vmatprep.subr.mxu0 0.0
    %941 = vmatpush1.msra.mxu0 0.0
    %942 = vmatprep.subr.mxu0 0.0
    %943 = vmatpush1.msra.mxu0 0.0
    %944 = vmatprep.mubr.f32.mxu0 0.0
    %945 = vmatmul.mubr.f32.gmra.mrb[0].mxu0 %v878
    %v946 = vpop.f32.mrb[0].mxu0
    %v947 = vadd.f32 %v176, %v946
    %v948 = vpop.f32.mrb[0].mxu0
    %v949 = vadd.f32 %v180, %v948
    %950 = vdwg.mxu0
    %951 = vmatprep.subr.mxu0 %v337
    %952 = vmatpush1.msra.mxu0 %v336
    %953 = vmatprep.subr.mxu0 %v339
    %954 = vmatpush1.msra.mxu0 %v338
    %955 = vmatprep.subr.mxu0 %v341
    %956 = vmatpush1.msra.mxu0 %v340
    %957 = vmatprep.subr.mxu0 %v343
    %958 = vmatpush1.msra.mxu0 %v342
    %959 = vmatprep.subr.mxu0 %v345
    %960 = vmatpush1.msra.mxu0 %v344
    %961 = vmatprep.subr.mxu0 %v347
    %962 = vmatpush1.msra.mxu0 %v346
    %963 = vmatprep.subr.mxu0 %v349
    %964 = vmatpush1.msra.mxu0 %v348
    %965 = vmatprep.subr.mxu0 %v351
    %966 = vmatpush1.msra.mxu0 %v350
    %967 = vmatprep.subr.mxu0 0.0
    %968 = vmatpush1.msra.mxu0 0.0
    %969 = vmatprep.subr.mxu0 0.0
    %970 = vmatpush1.msra.mxu0 0.0
    %971 = vmatprep.subr.mxu0 0.0
    %972 = vmatpush1.msra.mxu0 0.0
    %973 = vmatprep.subr.mxu0 0.0
    %974 = vmatpush1.msra.mxu0 0.0
    %975 = vmatprep.subr.mxu0 0.0
    %976 = vmatpush1.msra.mxu0 0.0
    %977 = vmatprep.subr.mxu0 0.0
    %978 = vmatpush1.msra.mxu0 0.0
    %979 = vmatprep.subr.mxu0 0.0
    %980 = vmatpush1.msra.mxu0 0.0
    %981 = vmatprep.subr.mxu0 0.0
    %982 = vmatpush1.msra.mxu0 0.0
    %983 = vmatprep.subr.mxu0 0.0
    %984 = vmatpush1.msra.mxu0 0.0
    %985 = vmatprep.subr.mxu0 0.0
    %986 = vmatpush1.msra.mxu0 0.0
    %987 = vmatprep.subr.mxu0 0.0
    %988 = vmatpush1.msra.mxu0 0.0
    %989 = vmatprep.subr.mxu0 0.0
    %990 = vmatpush1.msra.mxu0 0.0
    %991 = vmatprep.subr.mxu0 0.0
    %992 = vmatpush1.msra.mxu0 0.0
    %993 = vmatprep.subr.mxu0 0.0
    %994 = vmatpush1.msra.mxu0 0.0
    %995 = vmatprep.subr.mxu0 0.0
    %996 = vmatpush1.msra.mxu0 0.0
    %997 = vmatprep.subr.mxu0 0.0
    %998 = vmatpush1.msra.mxu0 0.0
    %999 = vmatprep.subr.mxu0 0.0
    %1000 = vmatpush1.msra.mxu0 0.0
    %1001 = vmatprep.subr.mxu0 0.0
    %1002 = vmatpush1.msra.mxu0 0.0
    %1003 = vmatprep.subr.mxu0 0.0
    %1004 = vmatpush1.msra.mxu0 0.0
    %1005 = vmatprep.subr.mxu0 0.0
    %1006 = vmatpush1.msra.mxu0 0.0
    %1007 = vmatprep.subr.mxu0 0.0
    %1008 = vmatpush1.msra.mxu0 0.0
    %1009 = vmatprep.subr.mxu0 0.0
    %1010 = vmatpush1.msra.mxu0 0.0
    %1011 = vmatprep.subr.mxu0 0.0
    %1012 = vmatpush1.msra.mxu0 0.0
    %1013 = vmatprep.subr.mxu0 0.0
    %1014 = vmatpush1.msra.mxu0 0.0
    %1015 = vmatprep.mubr.f32.mxu0 0.0
    %1016 = vmatmul.mubr.f32.gmra.mrb[0].mxu0 %v469
    %v1017 = vpop.f32.mrb[0].mxu0
    %v1018 = vadd.f32 %v198, %v1017
    %v1019 = vpop.f32.mrb[0].mxu0
    %v1020 = vadd.f32 %v202, %v1019
    %1021 = vdwg.mxu0
    %v1022 = vadd.f32 %v947, %v1018
    %v1023 = vmul.f32 %v1022, 0.5
    %v1024 = vtanh.pop %v1023
    %v1025 = vmul.f32 %v1024, 0.5
    %v1026 = vadd.f32 %v1025, 0.5
    %v1027 = vmul.f32 %v1026, %v1020
    %v1028 = vadd.f32 %v949, %v1027
    %v1029 = vtanh.pop %v1028
    %v1030 = vsub.f32 1.0, %v1026
    %1032 = vrot.lane.b32.xlu0 %v1029, 64
    %v1033 = vpop.permute.xlu0 %1032
    %v1035 = vmul.f32 %v1030, %v1033
    %v1036 = vmul.f32 %v1026, %v441
    %v1037 = vadd.f32 %v1035, %v1036
    %1039 = vrot.lane.b32.xlu0 %v1037, 64
    %v1040 = vpop.permute.xlu0 %1039
    %v1041 = vsel %vm86, %v1040, 0
    %1043 = vmatprep.subr.mxu0 %v444
    %1044 = vmatpush1.msra.mxu0 %v443
    %1045 = vmatprep.subr.mxu0 %v446
    %1046 = vmatpush1.msra.mxu0 %v445
    %1047 = vmatprep.subr.mxu0 %v448
    %1048 = vmatpush1.msra.mxu0 %v447
    %1049 = vmatprep.subr.mxu0 %v450
    %1050 = vmatpush1.msra.mxu0 %v449
    %1051 = vmatprep.subr.mxu0 %v452
    %1052 = vmatpush1.msra.mxu0 %v451
    %1053 = vmatprep.subr.mxu0 %v454
    %1054 = vmatpush1.msra.mxu0 %v453
    %1055 = vmatprep.subr.mxu0 %v456
    %1056 = vmatpush1.msra.mxu0 %v455
    %1057 = vmatprep.subr.mxu0 %v458
    %1058 = vmatpush1.msra.mxu0 %v457
    %1059 = vmatprep.subr.mxu0 0.0
    %1060 = vmatpush1.msra.mxu0 0.0
    %1061 = vmatprep.subr.mxu0 0.0
    %1062 = vmatpush1.msra.mxu0 0.0
    %1063 = vmatprep.subr.mxu0 0.0
    %1064 = vmatpush1.msra.mxu0 0.0
    %1065 = vmatprep.subr.mxu0 0.0
    %1066 = vmatpush1.msra.mxu0 0.0
    %1067 = vmatprep.subr.mxu0 0.0
    %1068 = vmatpush1.msra.mxu0 0.0
    %1069 = vmatprep.subr.mxu0 0.0
    %1070 = vmatpush1.msra.mxu0 0.0
    %1071 = vmatprep.subr.mxu0 0.0
    %1072 = vmatpush1.msra.mxu0 0.0
    %1073 = vmatprep.subr.mxu0 0.0
    %1074 = vmatpush1.msra.mxu0 0.0
    %1075 = vmatprep.subr.mxu0 0.0
    %1076 = vmatpush1.msra.mxu0 0.0
    %1077 = vmatprep.subr.mxu0 0.0
    %1078 = vmatpush1.msra.mxu0 0.0
    %1079 = vmatprep.subr.mxu0 0.0
    %1080 = vmatpush1.msra.mxu0 0.0
    %1081 = vmatprep.subr.mxu0 0.0
    %1082 = vmatpush1.msra.mxu0 0.0
    %1083 = vmatprep.subr.mxu0 0.0
    %1084 = vmatpush1.msra.mxu0 0.0
    %1085 = vmatprep.subr.mxu0 0.0
    %1086 = vmatpush1.msra.mxu0 0.0
    %1087 = vmatprep.subr.mxu0 0.0
    %1088 = vmatpush1.msra.mxu0 0.0
    %1089 = vmatprep.subr.mxu0 0.0
    %1090 = vmatpush1.msra.mxu0 0.0
    %1091 = vmatprep.subr.mxu0 0.0
    %1092 = vmatpush1.msra.mxu0 0.0
    %1093 = vmatprep.subr.mxu0 0.0
    %1094 = vmatpush1.msra.mxu0 0.0
    %1095 = vmatprep.subr.mxu0 0.0
    %1096 = vmatpush1.msra.mxu0 0.0
    %1097 = vmatprep.subr.mxu0 0.0
    %1098 = vmatpush1.msra.mxu0 0.0
    %1099 = vmatprep.subr.mxu0 0.0
    %1100 = vmatpush1.msra.mxu0 0.0
    %1101 = vmatprep.subr.mxu0 0.0
    %1102 = vmatpush1.msra.mxu0 0.0
    %1103 = vmatprep.subr.mxu0 0.0
    %1104 = vmatpush1.msra.mxu0 0.0
    %1105 = vmatprep.subr.mxu0 0.0
    %1106 = vmatpush1.msra.mxu0 0.0
    %1107 = vmatprep.mubr.f32.mxu0 0.0
    %1108 = vmatmul.mubr.f32.gmra.mrb[0].mxu0 %v1041
    %v1109 = vpop.f32.mrb[0].mxu0
    %v1110 = vadd.f32 %v466, %v1109
    %v1111 = vpop.f32.mrb[0].mxu0
    %v1112 = vadd.f32 %v465, %v1111
    %1113 = vdwg.mxu0
    %1115 = vrot.lane.b32.xlu0 %v652, 64
    %v1116 = vpop.permute.xlu0 %1115
    %v1117 = vsel %vm86, %v1116, 0
    %1119 = vmatprep.subr.mxu0 %v544
    %1120 = vmatpush1.msra.mxu0 %v543
    %1121 = vmatprep.subr.mxu0 %v546
    %1122 = vmatpush1.msra.mxu0 %v545
    %1123 = vmatprep.subr.mxu0 %v548
    %1124 = vmatpush1.msra.mxu0 %v547
    %1125 = vmatprep.subr.mxu0 %v550
    %1126 = vmatpush1.msra.mxu0 %v549
    %1127 = vmatprep.subr.mxu0 %v552
    %1128 = vmatpush1.msra.mxu0 %v551
    %1129 = vmatprep.subr.mxu0 %v554
    %1130 = vmatpush1.msra.mxu0 %v553
    %1131 = vmatprep.subr.mxu0 %v556
    %1132 = vmatpush1.msra.mxu0 %v555
    %1133 = vmatprep.subr.mxu0 %v558
    %1134 = vmatpush1.msra.mxu0 %v557
    %1135 = vmatprep.subr.mxu0 0.0
    %1136 = vmatpush1.msra.mxu0 0.0
    %1137 = vmatprep.subr.mxu0 0.0
    %1138 = vmatpush1.msra.mxu0 0.0
    %1139 = vmatprep.subr.mxu0 0.0
    %1140 = vmatpush1.msra.mxu0 0.0
    %1141 = vmatprep.subr.mxu0 0.0
    %1142 = vmatpush1.msra.mxu0 0.0
    %1143 = vmatprep.subr.mxu0 0.0
    %1144 = vmatpush1.msra.mxu0 0.0
    %1145 = vmatprep.subr.mxu0 0.0
    %1146 = vmatpush1.msra.mxu0 0.0
    %1147 = vmatprep.subr.mxu0 0.0
    %1148 = vmatpush1.msra.mxu0 0.0
    %1149 = vmatprep.subr.mxu0 0.0
    %1150 = vmatpush1.msra.mxu0 0.0
    %1151 = vmatprep.subr.mxu0 0.0
    %1152 = vmatpush1.msra.mxu0 0.0
    %1153 = vmatprep.subr.mxu0 0.0
    %1154 = vmatpush1.msra.mxu0 0.0
    %1155 = vmatprep.subr.mxu0 0.0
    %1156 = vmatpush1.msra.mxu0 0.0
    %1157 = vmatprep.subr.mxu0 0.0
    %1158 = vmatpush1.msra.mxu0 0.0
    %1159 = vmatprep.subr.mxu0 0.0
    %1160 = vmatpush1.msra.mxu0 0.0
    %1161 = vmatprep.subr.mxu0 0.0
    %1162 = vmatpush1.msra.mxu0 0.0
    %1163 = vmatprep.subr.mxu0 0.0
    %1164 = vmatpush1.msra.mxu0 0.0
    %1165 = vmatprep.subr.mxu0 0.0
    %1166 = vmatpush1.msra.mxu0 0.0
    %1167 = vmatprep.subr.mxu0 0.0
    %1168 = vmatpush1.msra.mxu0 0.0
    %1169 = vmatprep.subr.mxu0 0.0
    %1170 = vmatpush1.msra.mxu0 0.0
    %1171 = vmatprep.subr.mxu0 0.0
    %1172 = vmatpush1.msra.mxu0 0.0
    %1173 = vmatprep.subr.mxu0 0.0
    %1174 = vmatpush1.msra.mxu0 0.0
    %1175 = vmatprep.subr.mxu0 0.0
    %1176 = vmatpush1.msra.mxu0 0.0
    %1177 = vmatprep.subr.mxu0 0.0
    %1178 = vmatpush1.msra.mxu0 0.0
    %1179 = vmatprep.subr.mxu0 0.0
    %1180 = vmatpush1.msra.mxu0 0.0
    %1181 = vmatprep.subr.mxu0 0.0
    %1182 = vmatpush1.msra.mxu0 0.0
    %1183 = vmatprep.mubr.f32.mxu0 0.0
    %1184 = vmatmul.mubr.f32.gmra.mrb[0].mxu0 %v1117
    %v1185 = vpop.f32.mrb[0].mxu0
    %v1186 = vadd.f32 %v563, %v1185
    %v1187 = vpop.f32.mrb[0].mxu0
    %v1188 = vadd.f32 %v562, %v1187
    %1189 = vdwg.mxu0
    %v1190 = vadd.f32 %v1110, %v1186
    %v1191 = vmul.f32 %v1190, 0.5
    %v1192 = vtanh.pop %v1191
    %v1193 = vmul.f32 %v1192, 0.5
    %v1194 = vadd.f32 %v1193, 0.5
    %v1195 = vmul.f32 %v1194, %v1188
    %v1196 = vadd.f32 %v1112, %v1195
    %v1197 = vtanh.pop %v1196
    %v1198 = vsub.f32 1.0, %v1194
    %1200 = vrot.lane.b32.xlu0 %v1197, 64
    %v1201 = vpop.permute.xlu0 %1200
    %v1203 = vmul.f32 %v1198, %v1201
    %v1204 = vmul.f32 %v1194, %v652
    %v1205 = vadd.f32 %v1203, %v1204
    %v1207 = vsel %vm86, %v1040, %v1205
    %1208 = vmatprep.subr.mxu0 0.0
    %1209 = vmatpush1.msra.mxu0 %v655
    %1210 = vmatprep.subr.mxu0 0.0
    %1211 = vmatpush1.msra.mxu0 %v656
    %1212 = vmatprep.subr.mxu0 0.0
    %1213 = vmatpush1.msra.mxu0 %v657
    %1214 = vmatprep.subr.mxu0 0.0
    %1215 = vmatpush1.msra.mxu0 %v658
    %1216 = vmatprep.subr.mxu0 0.0
    %1217 = vmatpush1.msra.mxu0 %v659
    %1218 = vmatprep.subr.mxu0 0.0
    %1219 = vmatpush1.msra.mxu0 %v660
    %1220 = vmatprep.subr.mxu0 0.0
    %1221 = vmatpush1.msra.mxu0 %v661
    %1222 = vmatprep.subr.mxu0 0.0
    %1223 = vmatpush1.msra.mxu0 %v662
    %1224 = vmatprep.subr.mxu0 0.0
    %1225 = vmatpush1.msra.mxu0 %v663
    %1226 = vmatprep.subr.mxu0 0.0
    %1227 = vmatpush1.msra.mxu0 %v664
    %1228 = vmatprep.subr.mxu0 0.0
    %1229 = vmatpush1.msra.mxu0 %v665
    %1230 = vmatprep.subr.mxu0 0.0
    %1231 = vmatpush1.msra.mxu0 %v666
    %1232 = vmatprep.subr.mxu0 0.0
    %1233 = vmatpush1.msra.mxu0 %v667
    %1234 = vmatprep.subr.mxu0 0.0
    %1235 = vmatpush1.msra.mxu0 %v668
    %1236 = vmatprep.subr.mxu0 0.0
    %1237 = vmatpush1.msra.mxu0 %v669
    %1238 = vmatprep.subr.mxu0 0.0
    %1239 = vmatpush1.msra.mxu0 %v670
    %1240 = vmatprep.subr.mxu0 0.0
    %1241 = vmatpush1.msra.mxu0 0.0
    %1242 = vmatprep.subr.mxu0 0.0
    %1243 = vmatpush1.msra.mxu0 0.0
    %1244 = vmatprep.subr.mxu0 0.0
    %1245 = vmatpush1.msra.mxu0 0.0
    %1246 = vmatprep.subr.mxu0 0.0
    %1247 = vmatpush1.msra.mxu0 0.0
    %1248 = vmatprep.subr.mxu0 0.0
    %1249 = vmatpush1.msra.mxu0 0.0
    %1250 = vmatprep.subr.mxu0 0.0
    %1251 = vmatpush1.msra.mxu0 0.0
    %1252 = vmatprep.subr.mxu0 0.0
    %1253 = vmatpush1.msra.mxu0 0.0
    %1254 = vmatprep.subr.mxu0 0.0
    %1255 = vmatpush1.msra.mxu0 0.0
    %1256 = vmatprep.subr.mxu0 0.0
    %1257 = vmatpush1.msra.mxu0 0.0
    %1258 = vmatprep.subr.mxu0 0.0
    %1259 = vmatpush1.msra.mxu0 0.0
    %1260 = vmatprep.subr.mxu0 0.0
    %1261 = vmatpush1.msra.mxu0 0.0
    %1262 = vmatprep.subr.mxu0 0.0
    %1263 = vmatpush1.msra.mxu0 0.0
    %1264 = vmatprep.subr.mxu0 0.0
    %1265 = vmatpush1.msra.mxu0 0.0
    %1266 = vmatprep.subr.mxu0 0.0
    %1267 = vmatpush1.msra.mxu0 0.0
    %1268 = vmatprep.subr.mxu0 0.0
    %1269 = vmatpush1.msra.mxu0 0.0
    %1270 = vmatprep.subr.mxu0 0.0
    %1271 = vmatpush1.msra.mxu0 0.0
    %1272 = vmatprep.mubr.f32.mxu0 0.0
    %1273 = vmatmul.mubr.f32.gmra.mrb[0].mxu0 %v1207
    %v1274 = vpop.f32.mrb[0].mxu0
    %v1275 = vadd.f32 %v220, %v1274
    %v1276 = vpop.f32.mrb[0].mxu0
    %1277 = vdwg.mxu0
    %v1278 = vmul.f32 %v1275, 0.5
    %v1279 = vmul.f32 %v1275, 0.044715
    %v1280 = vmul.f32 %v1279, %v1275
    %v1281 = vmul.f32 %v1280, %v1275
    %v1282 = vadd.f32 %v1275, %v1281
    %v1283 = vmul.f32 %v1282, 0.7978846
    %v1284 = vtanh.pop %v1283
    %v1285 = vadd.f32 %v1284, 1.0
    %v1286 = vmul.f32 %v1278, %v1285
    %v1287 = vmul.f32 %v1286, %v227
    %v1288 = vsel %vm751, %v1287, 0.0
    %1289 = vadd.xlane.f32.xlu0 %v1288
    %v1290 = vpop.xlane.xlu0 %1289
    %v1291 = vadd.f32 %v1290, %v234
    %v1292 = vmul.f32 %v1291, 0.5
    %v1293 = vtanh.pop %v1292
    %v1294 = vmul.f32 %v1293, 0.5
    %v1295 = vadd.f32 %v1294, 0.5
    %1297 = vrot.lane.b32.xlu0 %v1287, 80
    %v1298 = vpop.permute.xlu0 %1297
    %v1300 = vsel %vm751, %v1298, 0.0
    %1301 = vadd.xlane.f32.xlu0 %v1300
    %v1302 = vpop.xlane.xlu0 %1301
    %v1303 = vadd.f32 %v1302, %v234
    %v1304 = vmul.f32 %v1303, 0.5
    %v1305 = vtanh.pop %v1304
    %v1306 = vmul.f32 %v1305, 0.5
    %v1307 = vadd.f32 %v1306, 0.5
    %1309 = vrot.lane.b32.xlu0 %v1307, 127
    %v1310 = vpop.permute.xlu0 %1309
    %v1312 = vadd.f32 %v1295, %v1310
    %1314 = vset.pattern.permute.xlu0 0
    %1315 = vperm.xlu0 %1314, %v1312
    %v1316 = vpop.permute.xlu0 %1315
    %v1318 = vmul.f32 %v1316, %v1205
    %1320 = vrot.lane.b32.xlu0 %v1318, 64
    %v1321 = vpop.permute.xlu0 %1320
    %v1322 = vsel %vm86, %v1321, 0
    %1324 = vmatprep.subr.mxu0 0.0
    %1325 = vmatpush1.msra.mxu0 %v783
    %1326 = vmatprep.subr.mxu0 0.0
    %1327 = vmatpush1.msra.mxu0 %v784
    %1328 = vmatprep.subr.mxu0 0.0
    %1329 = vmatpush1.msra.mxu0 %v785
    %1330 = vmatprep.subr.mxu0 0.0
    %1331 = vmatpush1.msra.mxu0 %v786
    %1332 = vmatprep.subr.mxu0 0.0
    %1333 = vmatpush1.msra.mxu0 %v787
    %1334 = vmatprep.subr.mxu0 0.0
    %1335 = vmatpush1.msra.mxu0 %v788
    %1336 = vmatprep.subr.mxu0 0.0
    %1337 = vmatpush1.msra.mxu0 %v789
    %1338 = vmatprep.subr.mxu0 0.0
    %1339 = vmatpush1.msra.mxu0 %v790
    %1340 = vmatprep.subr.mxu0 0.0
    %1341 = vmatpush1.msra.mxu0 0.0
    %1342 = vmatprep.subr.mxu0 0.0
    %1343 = vmatpush1.msra.mxu0 0.0
    %1344 = vmatprep.subr.mxu0 0.0
    %1345 = vmatpush1.msra.mxu0 0.0
    %1346 = vmatprep.subr.mxu0 0.0
    %1347 = vmatpush1.msra.mxu0 0.0
    %1348 = vmatprep.subr.mxu0 0.0
    %1349 = vmatpush1.msra.mxu0 0.0
    %1350 = vmatprep.subr.mxu0 0.0
    %1351 = vmatpush1.msra.mxu0 0.0
    %1352 = vmatprep.subr.mxu0 0.0
    %1353 = vmatpush1.msra.mxu0 0.0
    %1354 = vmatprep.subr.mxu0 0.0
    %1355 = vmatpush1.msra.mxu0 0.0
    %1356 = vmatprep.subr.mxu0 0.0
    %1357 = vmatpush1.msra.mxu0 0.0
    %1358 = vmatprep.subr.mxu0 0.0
    %1359 = vmatpush1.msra.mxu0 0.0
    %1360 = vmatprep.subr.mxu0 0.0
    %1361 = vmatpush1.msra.mxu0 0.0
    %1362 = vmatprep.subr.mxu0 0.0
    %1363 = vmatpush1.msra.mxu0 0.0
    %1364 = vmatprep.subr.mxu0 0.0
    %1365 = vmatpush1.msra.mxu0 0.0
    %1366 = vmatprep.subr.mxu0 0.0
    %1367 = vmatpush1.msra.mxu0 0.0
    %1368 = vmatprep.subr.mxu0 0.0
    %1369 = vmatpush1.msra.mxu0 0.0
    %1370 = vmatprep.subr.mxu0 0.0
    %1371 = vmatpush1.msra.mxu0 0.0
    %1372 = vmatprep.subr.mxu0 0.0
    %1373 = vmatpush1.msra.mxu0 0.0
    %1374 = vmatprep.subr.mxu0 0.0
    %1375 = vmatpush1.msra.mxu0 0.0
    %1376 = vmatprep.subr.mxu0 0.0
    %1377 = vmatpush1.msra.mxu0 0.0
    %1378 = vmatprep.subr.mxu0 0.0
    %1379 = vmatpush1.msra.mxu0 0.0
    %1380 = vmatprep.subr.mxu0 0.0
    %1381 = vmatpush1.msra.mxu0 0.0
    %1382 = vmatprep.subr.mxu0 0.0
    %1383 = vmatpush1.msra.mxu0 0.0
    %1384 = vmatprep.subr.mxu0 0.0
    %1385 = vmatpush1.msra.mxu0 0.0
    %1386 = vmatprep.subr.mxu0 0.0
    %1387 = vmatpush1.msra.mxu0 0.0
    %1388 = vmatprep.mubr.f32.mxu0 0.0
    %1389 = vmatmul.mubr.f32.gmra.mrb[0].mxu0 %v1322
    %v1390 = vpop.f32.mrb[0].mxu0
    %v1391 = vadd.f32 %v241, %v1390
    %v1392 = vpop.f32.mrb[0].mxu0
    %1393 = vdwg.mxu0
    %v1394 = vmul.f32 %v1391, 0.5
    %v1395 = vtanh.pop %v1394
    %v1396 = vmul.f32 %v1395, 0.5
    %v1397 = vadd.f32 %v1396, 0.5
    %v1398 = vmul.f32 %v1391, %v1397
    %v1399 = vmul.f32 %v1398, %v248
    %v1400 = vsel %vm86, %v1399, 0.0
    %1401 = vadd.xlane.f32.xlu0 %v1400
    %v1402 = vpop.xlane.xlu0 %1401
    %v1403 = vadd.f32 %v1402, %v255
    %v1404 = vmax.f32 %v875, %v1403
    %v1405 = vsub.f32 %v875, %v1404
    %v1406 = vmul.f32 %v1405, 1.442695
    %v1407 = vpow.pop %v1406
    %v1408 = vsub.f32 %v1403, %v1404
    %v1409 = vmul.f32 %v1408, 1.442695
    %v1410 = vpow.pop %v1409
    %v1411 = vadd.f32 %v1407, %v1410
    %1413 = vset.pattern.permute.xlu0 0
    %1414 = vperm.xlu0 %1413, %v1407
    %v1415 = vpop.permute.xlu0 %1414
    %v1417 = vmul.f32 %v1415, %v782
    %1419 = vset.pattern.permute.xlu0 0
    %1420 = vperm.xlu0 %1419, %v1410
    %v1421 = vpop.permute.xlu0 %1420
    %v1423 = vmul.f32 %v1421, %v1318
    %v1424 = vadd.f32 %v1417, %v1423
    %1425 = vrot.lane.b32.xlu0 %v170, 96
    %v1426 = vpop.permute.xlu0 %1425
    %v1427 = vsel %vm261, %v1426, 0
    %1429 = vmatprep.subr.mxu0 %v258
    %1430 = vmatpush1.msra.mxu0 %v257
    %1431 = vmatprep.subr.mxu0 %v260
    %1432 = vmatpush1.msra.mxu0 %v259
    %1433 = vmatprep.subr.mxu0 0.0
    %1434 = vmatpush1.msra.mxu0 0.0
    %1435 = vmatprep.subr.mxu0 0.0
    %1436 = vmatpush1.msra.mxu0 0.0
    %1437 = vmatprep.subr.mxu0 0.0
    %1438 = vmatpush1.msra.mxu0 0.0
    %1439 = vmatprep.subr.mxu0 0.0
    %1440 = vmatpush1.msra.mxu0 0.0
    %1441 = vmatprep.subr.mxu0 0.0
    %1442 = vmatpush1.msra.mxu0 0.0
    %1443 = vmatprep.subr.mxu0 0.0
    %1444 = vmatpush1.msra.mxu0 0.0
    %1445 = vmatprep.subr.mxu0 0.0
    %1446 = vmatpush1.msra.mxu0 0.0
    %1447 = vmatprep.subr.mxu0 0.0
    %1448 = vmatpush1.msra.mxu0 0.0
    %1449 = vmatprep.subr.mxu0 0.0
    %1450 = vmatpush1.msra.mxu0 0.0
    %1451 = vmatprep.subr.mxu0 0.0
    %1452 = vmatpush1.msra.mxu0 0.0
    %1453 = vmatprep.subr.mxu0 0.0
    %1454 = vmatpush1.msra.mxu0 0.0
    %1455 = vmatprep.subr.mxu0 0.0
    %1456 = vmatpush1.msra.mxu0 0.0
    %1457 = vmatprep.subr.mxu0 0.0
    %1458 = vmatpush1.msra.mxu0 0.0
    %1459 = vmatprep.subr.mxu0 0.0
    %1460 = vmatpush1.msra.mxu0 0.0
    %1461 = vmatprep.subr.mxu0 0.0
    %1462 = vmatpush1.msra.mxu0 0.0
    %1463 = vmatprep.subr.mxu0 0.0
    %1464 = vmatpush1.msra.mxu0 0.0
    %1465 = vmatprep.subr.mxu0 0.0
    %1466 = vmatpush1.msra.mxu0 0.0
    %1467 = vmatprep.subr.mxu0 0.0
    %1468 = vmatpush1.msra.mxu0 0.0
    %1469 = vmatprep.subr.mxu0 0.0
    %1470 = vmatpush1.msra.mxu0 0.0
    %1471 = vmatprep.subr.mxu0 0.0
    %1472 = vmatpush1.msra.mxu0 0.0
    %1473 = vmatprep.subr.mxu0 0.0
    %1474 = vmatpush1.msra.mxu0 0.0
    %1475 = vmatprep.subr.mxu0 0.0
    %1476 = vmatpush1.msra.mxu0 0.0
    %1477 = vmatprep.subr.mxu0 0.0
    %1478 = vmatpush1.msra.mxu0 0.0
    %1479 = vmatprep.subr.mxu0 0.0
    %1480 = vmatpush1.msra.mxu0 0.0
    %1481 = vmatprep.subr.mxu0 0.0
    %1482 = vmatpush1.msra.mxu0 0.0
    %1483 = vmatprep.subr.mxu0 0.0
    %1484 = vmatpush1.msra.mxu0 0.0
    %1485 = vmatprep.subr.mxu0 0.0
    %1486 = vmatpush1.msra.mxu0 0.0
    %1487 = vmatprep.subr.mxu0 0.0
    %1488 = vmatpush1.msra.mxu0 0.0
    %1489 = vmatprep.subr.mxu0 0.0
    %1490 = vmatpush1.msra.mxu0 0.0
    %1491 = vmatprep.subr.mxu0 0.0
    %1492 = vmatpush1.msra.mxu0 0.0
    %1493 = vmatprep.mubr.f32.mxu0 0.0
    %1494 = vmatmul.mubr.f32.gmra.mrb[0].mxu0 %v1427
    %v1495 = vpop.f32.mrb[0].mxu0
    %v1496 = vadd.f32 %v176, %v1495
    %v1497 = vpop.f32.mrb[0].mxu0
    %v1498 = vadd.f32 %v180, %v1497
    %1499 = vdwg.mxu0
    %1500 = vmatprep.subr.mxu0 %v337
    %1501 = vmatpush1.msra.mxu0 %v336
    %1502 = vmatprep.subr.mxu0 %v339
    %1503 = vmatpush1.msra.mxu0 %v338
    %1504 = vmatprep.subr.mxu0 %v341
    %1505 = vmatpush1.msra.mxu0 %v340
    %1506 = vmatprep.subr.mxu0 %v343
    %1507 = vmatpush1.msra.mxu0 %v342
    %1508 = vmatprep.subr.mxu0 %v345
    %1509 = vmatpush1.msra.mxu0 %v344
    %1510 = vmatprep.subr.mxu0 %v347
    %1511 = vmatpush1.msra.mxu0 %v346
    %1512 = vmatprep.subr.mxu0 %v349
    %1513 = vmatpush1.msra.mxu0 %v348
    %1514 = vmatprep.subr.mxu0 %v351
    %1515 = vmatpush1.msra.mxu0 %v350
    %1516 = vmatprep.subr.mxu0 0.0
    %1517 = vmatpush1.msra.mxu0 0.0
    %1518 = vmatprep.subr.mxu0 0.0
    %1519 = vmatpush1.msra.mxu0 0.0
    %1520 = vmatprep.subr.mxu0 0.0
    %1521 = vmatpush1.msra.mxu0 0.0
    %1522 = vmatprep.subr.mxu0 0.0
    %1523 = vmatpush1.msra.mxu0 0.0
    %1524 = vmatprep.subr.mxu0 0.0
    %1525 = vmatpush1.msra.mxu0 0.0
    %1526 = vmatprep.subr.mxu0 0.0
    %1527 = vmatpush1.msra.mxu0 0.0
    %1528 = vmatprep.subr.mxu0 0.0
    %1529 = vmatpush1.msra.mxu0 0.0
    %1530 = vmatprep.subr.mxu0 0.0
    %1531 = vmatpush1.msra.mxu0 0.0
    %1532 = vmatprep.subr.mxu0 0.0
    %1533 = vmatpush1.msra.mxu0 0.0
    %1534 = vmatprep.subr.mxu0 0.0
    %1535 = vmatpush1.msra.mxu0 0.0
    %1536 = vmatprep.subr.mxu0 0.0
    %1537 = vmatpush1.msra.mxu0 0.0
    %1538 = vmatprep.subr.mxu0 0.0
    %1539 = vmatpush1.msra.mxu0 0.0
    %1540 = vmatprep.subr.mxu0 0.0
    %1541 = vmatpush1.msra.mxu0 0.0
    %1542 = vmatprep.subr.mxu0 0.0
    %1543 = vmatpush1.msra.mxu0 0.0
    %1544 = vmatprep.subr.mxu0 0.0
    %1545 = vmatpush1.msra.mxu0 0.0
    %1546 = vmatprep.subr.mxu0 0.0
    %1547 = vmatpush1.msra.mxu0 0.0
    %1548 = vmatprep.subr.mxu0 0.0
    %1549 = vmatpush1.msra.mxu0 0.0
    %1550 = vmatprep.subr.mxu0 0.0
    %1551 = vmatpush1.msra.mxu0 0.0
    %1552 = vmatprep.subr.mxu0 0.0
    %1553 = vmatpush1.msra.mxu0 0.0
    %1554 = vmatprep.subr.mxu0 0.0
    %1555 = vmatpush1.msra.mxu0 0.0
    %1556 = vmatprep.subr.mxu0 0.0
    %1557 = vmatpush1.msra.mxu0 0.0
    %1558 = vmatprep.subr.mxu0 0.0
    %1559 = vmatpush1.msra.mxu0 0.0
    %1560 = vmatprep.subr.mxu0 0.0
    %1561 = vmatpush1.msra.mxu0 0.0
    %1562 = vmatprep.subr.mxu0 0.0
    %1563 = vmatpush1.msra.mxu0 0.0
    %1564 = vmatprep.mubr.f32.mxu0 0.0
    %1565 = vmatmul.mubr.f32.gmra.mrb[0].mxu0 %v1041
    %v1566 = vpop.f32.mrb[0].mxu0
    %v1567 = vadd.f32 %v198, %v1566
    %v1568 = vpop.f32.mrb[0].mxu0
    %v1569 = vadd.f32 %v202, %v1568
    %1570 = vdwg.mxu0
    %v1571 = vadd.f32 %v1496, %v1567
    %v1572 = vmul.f32 %v1571, 0.5
    %v1573 = vtanh.pop %v1572
    %v1574 = vmul.f32 %v1573, 0.5
    %v1575 = vadd.f32 %v1574, 0.5
    %v1576 = vmul.f32 %v1575, %v1569
    %v1577 = vadd.f32 %v1498, %v1576
    %v1578 = vtanh.pop %v1577
    %v1579 = vsub.f32 1.0, %v1575
    %1581 = vrot.lane.b32.xlu0 %v1578, 64
    %v1582 = vpop.permute.xlu0 %1581
    %v1584 = vmul.f32 %v1579, %v1582
    %v1585 = vmul.f32 %v1575, %v1037
    %v1586 = vadd.f32 %v1584, %v1585
    %1588 = vrot.lane.b32.xlu0 %v1586, 64
    %v1589 = vpop.permute.xlu0 %1588
    %v1590 = vsel %vm86, %v1589, 0
    %1592 = vmatprep.subr.mxu0 %v444
    %1593 = vmatpush1.msra.mxu0 %v443
    %1594 = vmatprep.subr.mxu0 %v446
    %1595 = vmatpush1.msra.mxu0 %v445
    %1596 = vmatprep.subr.mxu0 %v448
    %1597 = vmatpush1.msra.mxu0 %v447
    %1598 = vmatprep.subr.mxu0 %v450
    %1599 = vmatpush1.msra.mxu0 %v449
    %1600 = vmatprep.subr.mxu0 %v452
    %1601 = vmatpush1.msra.mxu0 %v451
    %1602 = vmatprep.subr.mxu0 %v454
    %1603 = vmatpush1.msra.mxu0 %v453
    %1604 = vmatprep.subr.mxu0 %v456
    %1605 = vmatpush1.msra.mxu0 %v455
    %1606 = vmatprep.subr.mxu0 %v458
    %1607 = vmatpush1.msra.mxu0 %v457
    %1608 = vmatprep.subr.mxu0 0.0
    %1609 = vmatpush1.msra.mxu0 0.0
    %1610 = vmatprep.subr.mxu0 0.0
    %1611 = vmatpush1.msra.mxu0 0.0
    %1612 = vmatprep.subr.mxu0 0.0
    %1613 = vmatpush1.msra.mxu0 0.0
    %1614 = vmatprep.subr.mxu0 0.0
    %1615 = vmatpush1.msra.mxu0 0.0
    %1616 = vmatprep.subr.mxu0 0.0
    %1617 = vmatpush1.msra.mxu0 0.0
    %1618 = vmatprep.subr.mxu0 0.0
    %1619 = vmatpush1.msra.mxu0 0.0
    %1620 = vmatprep.subr.mxu0 0.0
    %1621 = vmatpush1.msra.mxu0 0.0
    %1622 = vmatprep.subr.mxu0 0.0
    %1623 = vmatpush1.msra.mxu0 0.0
    %1624 = vmatprep.subr.mxu0 0.0
    %1625 = vmatpush1.msra.mxu0 0.0
    %1626 = vmatprep.subr.mxu0 0.0
    %1627 = vmatpush1.msra.mxu0 0.0
    %1628 = vmatprep.subr.mxu0 0.0
    %1629 = vmatpush1.msra.mxu0 0.0
    %1630 = vmatprep.subr.mxu0 0.0
    %1631 = vmatpush1.msra.mxu0 0.0
    %1632 = vmatprep.subr.mxu0 0.0
    %1633 = vmatpush1.msra.mxu0 0.0
    %1634 = vmatprep.subr.mxu0 0.0
    %1635 = vmatpush1.msra.mxu0 0.0
    %1636 = vmatprep.subr.mxu0 0.0
    %1637 = vmatpush1.msra.mxu0 0.0
    %1638 = vmatprep.subr.mxu0 0.0
    %1639 = vmatpush1.msra.mxu0 0.0
    %1640 = vmatprep.subr.mxu0 0.0
    %1641 = vmatpush1.msra.mxu0 0.0
    %1642 = vmatprep.subr.mxu0 0.0
    %1643 = vmatpush1.msra.mxu0 0.0
    %1644 = vmatprep.subr.mxu0 0.0
    %1645 = vmatpush1.msra.mxu0 0.0
    %1646 = vmatprep.subr.mxu0 0.0
    %1647 = vmatpush1.msra.mxu0 0.0
    %1648 = vmatprep.subr.mxu0 0.0
    %1649 = vmatpush1.msra.mxu0 0.0
    %1650 = vmatprep.subr.mxu0 0.0
    %1651 = vmatpush1.msra.mxu0 0.0
    %1652 = vmatprep.subr.mxu0 0.0
    %1653 = vmatpush1.msra.mxu0 0.0
    %1654 = vmatprep.subr.mxu0 0.0
    %1655 = vmatpush1.msra.mxu0 0.0
    %1656 = vmatprep.mubr.f32.mxu0 0.0
    %1657 = vmatmul.mubr.f32.gmra.mrb[0].mxu0 %v1590
    %v1658 = vpop.f32.mrb[0].mxu0
    %v1659 = vadd.f32 %v466, %v1658
    %v1660 = vpop.f32.mrb[0].mxu0
    %v1661 = vadd.f32 %v465, %v1660
    %1662 = vdwg.mxu0
    %1664 = vrot.lane.b32.xlu0 %v1205, 64
    %v1665 = vpop.permute.xlu0 %1664
    %v1666 = vsel %vm86, %v1665, 0
    %1668 = vmatprep.subr.mxu0 %v544
    %1669 = vmatpush1.msra.mxu0 %v543
    %1670 = vmatprep.subr.mxu0 %v546
    %1671 = vmatpush1.msra.mxu0 %v545
    %1672 = vmatprep.subr.mxu0 %v548
    %1673 = vmatpush1.msra.mxu0 %v547
    %1674 = vmatprep.subr.mxu0 %v550
    %1675 = vmatpush1.msra.mxu0 %v549
    %1676 = vmatprep.subr.mxu0 %v552
    %1677 = vmatpush1.msra.mxu0 %v551
    %1678 = vmatprep.subr.mxu0 %v554
    %1679 = vmatpush1.msra.mxu0 %v553
    %1680 = vmatprep.subr.mxu0 %v556
    %1681 = vmatpush1.msra.mxu0 %v555
    %1682 = vmatprep.subr.mxu0 %v558
    %1683 = vmatpush1.msra.mxu0 %v557
    %1684 = vmatprep.subr.mxu0 0.0
    %1685 = vmatpush1.msra.mxu0 0.0
    %1686 = vmatprep.subr.mxu0 0.0
    %1687 = vmatpush1.msra.mxu0 0.0
    %1688 = vmatprep.subr.mxu0 0.0
    %1689 = vmatpush1.msra.mxu0 0.0
    %1690 = vmatprep.subr.mxu0 0.0
    %1691 = vmatpush1.msra.mxu0 0.0
    %1692 = vmatprep.subr.mxu0 0.0
    %1693 = vmatpush1.msra.mxu0 0.0
    %1694 = vmatprep.subr.mxu0 0.0
    %1695 = vmatpush1.msra.mxu0 0.0
    %1696 = vmatprep.subr.mxu0 0.0
    %1697 = vmatpush1.msra.mxu0 0.0
    %1698 = vmatprep.subr.mxu0 0.0
    %1699 = vmatpush1.msra.mxu0 0.0
    %1700 = vmatprep.subr.mxu0 0.0
    %1701 = vmatpush1.msra.mxu0 0.0
    %1702 = vmatprep.subr.mxu0 0.0
    %1703 = vmatpush1.msra.mxu0 0.0
    %1704 = vmatprep.subr.mxu0 0.0
    %1705 = vmatpush1.msra.mxu0 0.0
    %1706 = vmatprep.subr.mxu0 0.0
    %1707 = vmatpush1.msra.mxu0 0.0
    %1708 = vmatprep.subr.mxu0 0.0
    %1709 = vmatpush1.msra.mxu0 0.0
    %1710 = vmatprep.subr.mxu0 0.0
    %1711 = vmatpush1.msra.mxu0 0.0
    %1712 = vmatprep.subr.mxu0 0.0
    %1713 = vmatpush1.msra.mxu0 0.0
    %1714 = vmatprep.subr.mxu0 0.0
    %1715 = vmatpush1.msra.mxu0 0.0
    %1716 = vmatprep.subr.mxu0 0.0
    %1717 = vmatpush1.msra.mxu0 0.0
    %1718 = vmatprep.subr.mxu0 0.0
    %1719 = vmatpush1.msra.mxu0 0.0
    %1720 = vmatprep.subr.mxu0 0.0
    %1721 = vmatpush1.msra.mxu0 0.0
    %1722 = vmatprep.subr.mxu0 0.0
    %1723 = vmatpush1.msra.mxu0 0.0
    %1724 = vmatprep.subr.mxu0 0.0
    %1725 = vmatpush1.msra.mxu0 0.0
    %1726 = vmatprep.subr.mxu0 0.0
    %1727 = vmatpush1.msra.mxu0 0.0
    %1728 = vmatprep.subr.mxu0 0.0
    %1729 = vmatpush1.msra.mxu0 0.0
    %1730 = vmatprep.subr.mxu0 0.0
    %1731 = vmatpush1.msra.mxu0 0.0
    %1732 = vmatprep.mubr.f32.mxu0 0.0
    %1733 = vmatmul.mubr.f32.gmra.mrb[0].mxu0 %v1666
    %v1734 = vpop.f32.mrb[0].mxu0
    %v1735 = vadd.f32 %v563, %v1734
    %v1736 = vpop.f32.mrb[0].mxu0
    %v1737 = vadd.f32 %v562, %v1736
    %1738 = vdwg.mxu0
    %v1739 = vadd.f32 %v1659, %v1735
    %v1740 = vmul.f32 %v1739, 0.5
    %v1741 = vtanh.pop %v1740
    %v1742 = vmul.f32 %v1741, 0.5
    %v1743 = vadd.f32 %v1742, 0.5
    %v1744 = vmul.f32 %v1743, %v1737
    %v1745 = vadd.f32 %v1661, %v1744
    %v1746 = vtanh.pop %v1745
    %v1747 = vsub.f32 1.0, %v1743
    %1749 = vrot.lane.b32.xlu0 %v1746, 64
    %v1750 = vpop.permute.xlu0 %1749
    %v1752 = vmul.f32 %v1747, %v1750
    %v1753 = vmul.f32 %v1743, %v1205
    %v1754 = vadd.f32 %v1752, %v1753
    %v1756 = vsel %vm86, %v1589, %v1754
    %1757 = vmatprep.subr.mxu0 0.0
    %1758 = vmatpush1.msra.mxu0 %v655
    %1759 = vmatprep.subr.mxu0 0.0
    %1760 = vmatpush1.msra.mxu0 %v656
    %1761 = vmatprep.subr.mxu0 0.0
    %1762 = vmatpush1.msra.mxu0 %v657
    %1763 = vmatprep.subr.mxu0 0.0
    %1764 = vmatpush1.msra.mxu0 %v658
    %1765 = vmatprep.subr.mxu0 0.0
    %1766 = vmatpush1.msra.mxu0 %v659
    %1767 = vmatprep.subr.mxu0 0.0
    %1768 = vmatpush1.msra.mxu0 %v660
    %1769 = vmatprep.subr.mxu0 0.0
    %1770 = vmatpush1.msra.mxu0 %v661
    %1771 = vmatprep.subr.mxu0 0.0
    %1772 = vmatpush1.msra.mxu0 %v662
    %1773 = vmatprep.subr.mxu0 0.0
    %1774 = vmatpush1.msra.mxu0 %v663
    %1775 = vmatprep.subr.mxu0 0.0
    %1776 = vmatpush1.msra.mxu0 %v664
    %1777 = vmatprep.subr.mxu0 0.0
    %1778 = vmatpush1.msra.mxu0 %v665
    %1779 = vmatprep.subr.mxu0 0.0
    %1780 = vmatpush1.msra.mxu0 %v666
    %1781 = vmatprep.subr.mxu0 0.0
    %1782 = vmatpush1.msra.mxu0 %v667
    %1783 = vmatprep.subr.mxu0 0.0
    %1784 = vmatpush1.msra.mxu0 %v668
    %1785 = vmatprep.subr.mxu0 0.0
    %1786 = vmatpush1.msra.mxu0 %v669
    %1787 = vmatprep.subr.mxu0 0.0
    %1788 = vmatpush1.msra.mxu0 %v670
    %1789 = vmatprep.subr.mxu0 0.0
    %1790 = vmatpush1.msra.mxu0 0.0
    %1791 = vmatprep.subr.mxu0 0.0
    %1792 = vmatpush1.msra.mxu0 0.0
    %1793 = vmatprep.subr.mxu0 0.0
    %1794 = vmatpush1.msra.mxu0 0.0
    %1795 = vmatprep.subr.mxu0 0.0
    %1796 = vmatpush1.msra.mxu0 0.0
    %1797 = vmatprep.subr.mxu0 0.0
    %1798 = vmatpush1.msra.mxu0 0.0
    %1799 = vmatprep.subr.mxu0 0.0
    %1800 = vmatpush1.msra.mxu0 0.0
    %1801 = vmatprep.subr.mxu0 0.0
    %1802 = vmatpush1.msra.mxu0 0.0
    %1803 = vmatprep.subr.mxu0 0.0
    %1804 = vmatpush1.msra.mxu0 0.0
    %1805 = vmatprep.subr.mxu0 0.0
    %1806 = vmatpush1.msra.mxu0 0.0
    %1807 = vmatprep.subr.mxu0 0.0
    %1808 = vmatpush1.msra.mxu0 0.0
    %1809 = vmatprep.subr.mxu0 0.0
    %1810 = vmatpush1.msra.mxu0 0.0
    %1811 = vmatprep.subr.mxu0 0.0
    %1812 = vmatpush1.msra.mxu0 0.0
    %1813 = vmatprep.subr.mxu0 0.0
    %1814 = vmatpush1.msra.mxu0 0.0
    %1815 = vmatprep.subr.mxu0 0.0
    %1816 = vmatpush1.msra.mxu0 0.0
    %1817 = vmatprep.subr.mxu0 0.0
    %1818 = vmatpush1.msra.mxu0 0.0
    %1819 = vmatprep.subr.mxu0 0.0
    %1820 = vmatpush1.msra.mxu0 0.0
    %1821 = vmatprep.mubr.f32.mxu0 0.0
    %1822 = vmatmul.mubr.f32.gmra.mrb[0].mxu0 %v1756
    %v1823 = vpop.f32.mrb[0].mxu0
    %v1824 = vadd.f32 %v220, %v1823
    %v1825 = vpop.f32.mrb[0].mxu0
    %1826 = vdwg.mxu0
    %v1827 = vmul.f32 %v1824, 0.5
    %v1828 = vmul.f32 %v1824, 0.044715
    %v1829 = vmul.f32 %v1828, %v1824
    %v1830 = vmul.f32 %v1829, %v1824
    %v1831 = vadd.f32 %v1824, %v1830
    %v1832 = vmul.f32 %v1831, 0.7978846
    %v1833 = vtanh.pop %v1832
    %v1834 = vadd.f32 %v1833, 1.0
    %v1835 = vmul.f32 %v1827, %v1834
    %v1836 = vmul.f32 %v1835, %v227
    %v1837 = vsel %vm751, %v1836, 0.0
    %1838 = vadd.xlane.f32.xlu0 %v1837
    %v1839 = vpop.xlane.xlu0 %1838
    %v1840 = vadd.f32 %v1839, %v234
    %v1841 = vmul.f32 %v1840, 0.5
    %v1842 = vtanh.pop %v1841
    %v1843 = vmul.f32 %v1842, 0.5
    %v1844 = vadd.f32 %v1843, 0.5
    %1846 = vrot.lane.b32.xlu0 %v1836, 80
    %v1847 = vpop.permute.xlu0 %1846
    %v1849 = vsel %vm751, %v1847, 0.0
    %1850 = vadd.xlane.f32.xlu0 %v1849
    %v1851 = vpop.xlane.xlu0 %1850
    %v1852 = vadd.f32 %v1851, %v234
    %v1853 = vmul.f32 %v1852, 0.5
    %v1854 = vtanh.pop %v1853
    %v1855 = vmul.f32 %v1854, 0.5
    %v1856 = vadd.f32 %v1855, 0.5
    %1858 = vrot.lane.b32.xlu0 %v1856, 127
    %v1859 = vpop.permute.xlu0 %1858
    %v1861 = vadd.f32 %v1844, %v1859
    %1863 = vset.pattern.permute.xlu0 0
    %1864 = vperm.xlu0 %1863, %v1861
    %v1865 = vpop.permute.xlu0 %1864
    %v1867 = vmul.f32 %v1865, %v1754
    %1869 = vrot.lane.b32.xlu0 %v1867, 64
    %v1870 = vpop.permute.xlu0 %1869
    %v1871 = vsel %vm86, %v1870, 0
    %1873 = vmatprep.subr.mxu0 0.0
    %1874 = vmatpush1.msra.mxu0 %v783
    %1875 = vmatprep.subr.mxu0 0.0
    %1876 = vmatpush1.msra.mxu0 %v784
    %1877 = vmatprep.subr.mxu0 0.0
    %1878 = vmatpush1.msra.mxu0 %v785
    %1879 = vmatprep.subr.mxu0 0.0
    %1880 = vmatpush1.msra.mxu0 %v786
    %1881 = vmatprep.subr.mxu0 0.0
    %1882 = vmatpush1.msra.mxu0 %v787
    %1883 = vmatprep.subr.mxu0 0.0
    %1884 = vmatpush1.msra.mxu0 %v788
    %1885 = vmatprep.subr.mxu0 0.0
    %1886 = vmatpush1.msra.mxu0 %v789
    %1887 = vmatprep.subr.mxu0 0.0
    %1888 = vmatpush1.msra.mxu0 %v790
    %1889 = vmatprep.subr.mxu0 0.0
    %1890 = vmatpush1.msra.mxu0 0.0
    %1891 = vmatprep.subr.mxu0 0.0
    %1892 = vmatpush1.msra.mxu0 0.0
    %1893 = vmatprep.subr.mxu0 0.0
    %1894 = vmatpush1.msra.mxu0 0.0
    %1895 = vmatprep.subr.mxu0 0.0
    %1896 = vmatpush1.msra.mxu0 0.0
    %1897 = vmatprep.subr.mxu0 0.0
    %1898 = vmatpush1.msra.mxu0 0.0
    %1899 = vmatprep.subr.mxu0 0.0
    %1900 = vmatpush1.msra.mxu0 0.0
    %1901 = vmatprep.subr.mxu0 0.0
    %1902 = vmatpush1.msra.mxu0 0.0
    %1903 = vmatprep.subr.mxu0 0.0
    %1904 = vmatpush1.msra.mxu0 0.0
    %1905 = vmatprep.subr.mxu0 0.0
    %1906 = vmatpush1.msra.mxu0 0.0
    %1907 = vmatprep.subr.mxu0 0.0
    %1908 = vmatpush1.msra.mxu0 0.0
    %1909 = vmatprep.subr.mxu0 0.0
    %1910 = vmatpush1.msra.mxu0 0.0
    %1911 = vmatprep.subr.mxu0 0.0
    %1912 = vmatpush1.msra.mxu0 0.0
    %1913 = vmatprep.subr.mxu0 0.0
    %1914 = vmatpush1.msra.mxu0 0.0
    %1915 = vmatprep.subr.mxu0 0.0
    %1916 = vmatpush1.msra.mxu0 0.0
    %1917 = vmatprep.subr.mxu0 0.0
    %1918 = vmatpush1.msra.mxu0 0.0
    %1919 = vmatprep.subr.mxu0 0.0
    %1920 = vmatpush1.msra.mxu0 0.0
    %1921 = vmatprep.subr.mxu0 0.0
    %1922 = vmatpush1.msra.mxu0 0.0
    %1923 = vmatprep.subr.mxu0 0.0
    %1924 = vmatpush1.msra.mxu0 0.0
    %1925 = vmatprep.subr.mxu0 0.0
    %1926 = vmatpush1.msra.mxu0 0.0
    %1927 = vmatprep.subr.mxu0 0.0
    %1928 = vmatpush1.msra.mxu0 0.0
    %1929 = vmatprep.subr.mxu0 0.0
    %1930 = vmatpush1.msra.mxu0 0.0
    %1931 = vmatprep.subr.mxu0 0.0
    %1932 = vmatpush1.msra.mxu0 0.0
    %1933 = vmatprep.subr.mxu0 0.0
    %1934 = vmatpush1.msra.mxu0 0.0
    %1935 = vmatprep.subr.mxu0 0.0
    %1936 = vmatpush1.msra.mxu0 0.0
    %1937 = vmatprep.mubr.f32.mxu0 0.0
    %1938 = vmatmul.mubr.f32.gmra.mrb[0].mxu0 %v1871
    %v1939 = vpop.f32.mrb[0].mxu0
    %v1940 = vadd.f32 %v241, %v1939
    %v1941 = vpop.f32.mrb[0].mxu0
    %1942 = vdwg.mxu0
    %v1943 = vmul.f32 %v1940, 0.5
    %v1944 = vtanh.pop %v1943
    %v1945 = vmul.f32 %v1944, 0.5
    %v1946 = vadd.f32 %v1945, 0.5
    %v1947 = vmul.f32 %v1940, %v1946
    %v1948 = vmul.f32 %v1947, %v248
    %v1949 = vsel %vm86, %v1948, 0.0
    %1950 = vadd.xlane.f32.xlu0 %v1949
    %v1951 = vpop.xlane.xlu0 %1950
    %v1952 = vadd.f32 %v1951, %v255
    %v1953 = vmax.f32 %v1404, %v1952
    %v1954 = vsub.f32 %v1404, %v1953
    %v1955 = vmul.f32 %v1954, 1.442695
    %v1956 = vpow.pop %v1955
    %v1957 = vsub.f32 %v1952, %v1953
    %v1958 = vmul.f32 %v1957, 1.442695
    %v1959 = vpow.pop %v1958
    %v1960 = vmul.f32 %v1956, %v1411
    %v1961 = vadd.f32 %v1960, %v1959
    %1963 = vset.pattern.permute.xlu0 0
    %1964 = vperm.xlu0 %1963, %v1956
    %v1965 = vpop.permute.xlu0 %1964
    %v1967 = vmul.f32 %v1965, %v1424
    %1969 = vset.pattern.permute.xlu0 0
    %1970 = vperm.xlu0 %1969, %v1959
    %v1971 = vpop.permute.xlu0 %1970
    %v1973 = vmul.f32 %v1971, %v1867
    %v1974 = vadd.f32 %v1967, %v1973
    %1975 = vrot.lane.b32.xlu0 %v170, 80
    %v1976 = vpop.permute.xlu0 %1975
    %v1977 = vsel %vm261, %v1976, 0
    %1979 = vmatprep.subr.mxu0 %v258
    %1980 = vmatpush1.msra.mxu0 %v257
    %1981 = vmatprep.subr.mxu0 %v260
    %1982 = vmatpush1.msra.mxu0 %v259
    %1983 = vmatprep.subr.mxu0 0.0
    %1984 = vmatpush1.msra.mxu0 0.0
    %1985 = vmatprep.subr.mxu0 0.0
    %1986 = vmatpush1.msra.mxu0 0.0
    %1987 = vmatprep.subr.mxu0 0.0
    %1988 = vmatpush1.msra.mxu0 0.0
    %1989 = vmatprep.subr.mxu0 0.0
    %1990 = vmatpush1.msra.mxu0 0.0
    %1991 = vmatprep.subr.mxu0 0.0
    %1992 = vmatpush1.msra.mxu0 0.0
    %1993 = vmatprep.subr.mxu0 0.0
    %1994 = vmatpush1.msra.mxu0 0.0
    %1995 = vmatprep.subr.mxu0 0.0
    %1996 = vmatpush1.msra.mxu0 0.0
    %1997 = vmatprep.subr.mxu0 0.0
    %1998 = vmatpush1.msra.mxu0 0.0
    %1999 = vmatprep.subr.mxu0 0.0
    %2000 = vmatpush1.msra.mxu0 0.0
    %2001 = vmatprep.subr.mxu0 0.0
    %2002 = vmatpush1.msra.mxu0 0.0
    %2003 = vmatprep.subr.mxu0 0.0
    %2004 = vmatpush1.msra.mxu0 0.0
    %2005 = vmatprep.subr.mxu0 0.0
    %2006 = vmatpush1.msra.mxu0 0.0
    %2007 = vmatprep.subr.mxu0 0.0
    %2008 = vmatpush1.msra.mxu0 0.0
    %2009 = vmatprep.subr.mxu0 0.0
    %2010 = vmatpush1.msra.mxu0 0.0
    %2011 = vmatprep.subr.mxu0 0.0
    %2012 = vmatpush1.msra.mxu0 0.0
    %2013 = vmatprep.subr.mxu0 0.0
    %2014 = vmatpush1.msra.mxu0 0.0
    %2015 = vmatprep.subr.mxu0 0.0
    %2016 = vmatpush1.msra.mxu0 0.0
    %2017 = vmatprep.subr.mxu0 0.0
    %2018 = vmatpush1.msra.mxu0 0.0
    %2019 = vmatprep.subr.mxu0 0.0
    %2020 = vmatpush1.msra.mxu0 0.0
    %2021 = vmatprep.subr.mxu0 0.0
    %2022 = vmatpush1.msra.mxu0 0.0
    %2023 = vmatprep.subr.mxu0 0.0
    %2024 = vmatpush1.msra.mxu0 0.0
    %2025 = vmatprep.subr.mxu0 0.0
    %2026 = vmatpush1.msra.mxu0 0.0
    %2027 = vmatprep.subr.mxu0 0.0
    %2028 = vmatpush1.msra.mxu0 0.0
    %2029 = vmatprep.subr.mxu0 0.0
    %2030 = vmatpush1.msra.mxu0 0.0
    %2031 = vmatprep.subr.mxu0 0.0
    %2032 = vmatpush1.msra.mxu0 0.0
    %2033 = vmatprep.subr.mxu0 0.0
    %2034 = vmatpush1.msra.mxu0 0.0
    %2035 = vmatprep.subr.mxu0 0.0
    %2036 = vmatpush1.msra.mxu0 0.0
    %2037 = vmatprep.subr.mxu0 0.0
    %2038 = vmatpush1.msra.mxu0 0.0
    %2039 = vmatprep.subr.mxu0 0.0
    %2040 = vmatpush1.msra.mxu0 0.0
    %2041 = vmatprep.subr.mxu0 0.0
    %2042 = vmatpush1.msra.mxu0 0.0
    %2043 = vmatprep.mubr.f32.mxu0 0.0
    %2044 = vmatmul.mubr.f32.gmra.mrb[0].mxu0 %v1977
    %v2045 = vpop.f32.mrb[0].mxu0
    %v2046 = vadd.f32 %v176, %v2045
    %v2047 = vpop.f32.mrb[0].mxu0
    %v2048 = vadd.f32 %v180, %v2047
    %2049 = vdwg.mxu0
    %2050 = vmatprep.subr.mxu0 %v337
    %2051 = vmatpush1.msra.mxu0 %v336
    %2052 = vmatprep.subr.mxu0 %v339
    %2053 = vmatpush1.msra.mxu0 %v338
    %2054 = vmatprep.subr.mxu0 %v341
    %2055 = vmatpush1.msra.mxu0 %v340
    %2056 = vmatprep.subr.mxu0 %v343
    %2057 = vmatpush1.msra.mxu0 %v342
    %2058 = vmatprep.subr.mxu0 %v345
    %2059 = vmatpush1.msra.mxu0 %v344
    %2060 = vmatprep.subr.mxu0 %v347
    %2061 = vmatpush1.msra.mxu0 %v346
    %2062 = vmatprep.subr.mxu0 %v349
    %2063 = vmatpush1.msra.mxu0 %v348
    %2064 = vmatprep.subr.mxu0 %v351
    %2065 = vmatpush1.msra.mxu0 %v350
    %2066 = vmatprep.subr.mxu0 0.0
    %2067 = vmatpush1.msra.mxu0 0.0
    %2068 = vmatprep.subr.mxu0 0.0
    %2069 = vmatpush1.msra.mxu0 0.0
    %2070 = vmatprep.subr.mxu0 0.0
    %2071 = vmatpush1.msra.mxu0 0.0
    %2072 = vmatprep.subr.mxu0 0.0
    %2073 = vmatpush1.msra.mxu0 0.0
    %2074 = vmatprep.subr.mxu0 0.0
    %2075 = vmatpush1.msra.mxu0 0.0
    %2076 = vmatprep.subr.mxu0 0.0
    %2077 = vmatpush1.msra.mxu0 0.0
    %2078 = vmatprep.subr.mxu0 0.0
    %2079 = vmatpush1.msra.mxu0 0.0
    %2080 = vmatprep.subr.mxu0 0.0
    %2081 = vmatpush1.msra.mxu0 0.0
    %2082 = vmatprep.subr.mxu0 0.0
    %2083 = vmatpush1.msra.mxu0 0.0
    %2084 = vmatprep.subr.mxu0 0.0
    %2085 = vmatpush1.msra.mxu0 0.0
    %2086 = vmatprep.subr.mxu0 0.0
    %2087 = vmatpush1.msra.mxu0 0.0
    %2088 = vmatprep.subr.mxu0 0.0
    %2089 = vmatpush1.msra.mxu0 0.0
    %2090 = vmatprep.subr.mxu0 0.0
    %2091 = vmatpush1.msra.mxu0 0.0
    %2092 = vmatprep.subr.mxu0 0.0
    %2093 = vmatpush1.msra.mxu0 0.0
    %2094 = vmatprep.subr.mxu0 0.0
    %2095 = vmatpush1.msra.mxu0 0.0
    %2096 = vmatprep.subr.mxu0 0.0
    %2097 = vmatpush1.msra.mxu0 0.0
    %2098 = vmatprep.subr.mxu0 0.0
    %2099 = vmatpush1.msra.mxu0 0.0
    %2100 = vmatprep.subr.mxu0 0.0
    %2101 = vmatpush1.msra.mxu0 0.0
    %2102 = vmatprep.subr.mxu0 0.0
    %2103 = vmatpush1.msra.mxu0 0.0
    %2104 = vmatprep.subr.mxu0 0.0
    %2105 = vmatpush1.msra.mxu0 0.0
    %2106 = vmatprep.subr.mxu0 0.0
    %2107 = vmatpush1.msra.mxu0 0.0
    %2108 = vmatprep.subr.mxu0 0.0
    %2109 = vmatpush1.msra.mxu0 0.0
    %2110 = vmatprep.subr.mxu0 0.0
    %2111 = vmatpush1.msra.mxu0 0.0
    %2112 = vmatprep.subr.mxu0 0.0
    %2113 = vmatpush1.msra.mxu0 0.0
    %2114 = vmatprep.mubr.f32.mxu0 0.0
    %2115 = vmatmul.mubr.f32.gmra.mrb[0].mxu0 %v1590
    %v2116 = vpop.f32.mrb[0].mxu0
    %v2117 = vadd.f32 %v198, %v2116
    %v2118 = vpop.f32.mrb[0].mxu0
    %v2119 = vadd.f32 %v202, %v2118
    %2120 = vdwg.mxu0
    %v2121 = vadd.f32 %v2046, %v2117
    %v2122 = vmul.f32 %v2121, 0.5
    %v2123 = vtanh.pop %v2122
    %v2124 = vmul.f32 %v2123, 0.5
    %v2125 = vadd.f32 %v2124, 0.5
    %v2126 = vmul.f32 %v2125, %v2119
    %v2127 = vadd.f32 %v2048, %v2126
    %v2128 = vtanh.pop %v2127
    %v2129 = vsub.f32 1.0, %v2125
    %2131 = vrot.lane.b32.xlu0 %v2128, 64
    %v2132 = vpop.permute.xlu0 %2131
    %v2134 = vmul.f32 %v2129, %v2132
    %v2135 = vmul.f32 %v2125, %v1586
    %v2136 = vadd.f32 %v2134, %v2135
    %2138 = vrot.lane.b32.xlu0 %v2136, 64
    %v2139 = vpop.permute.xlu0 %2138
    %v2140 = vsel %vm86, %v2139, 0
    %2142 = vmatprep.subr.mxu0 %v444
    %2143 = vmatpush1.msra.mxu0 %v443
    %2144 = vmatprep.subr.mxu0 %v446
    %2145 = vmatpush1.msra.mxu0 %v445
    %2146 = vmatprep.subr.mxu0 %v448
    %2147 = vmatpush1.msra.mxu0 %v447
    %2148 = vmatprep.subr.mxu0 %v450
    %2149 = vmatpush1.msra.mxu0 %v449
    %2150 = vmatprep.subr.mxu0 %v452
    %2151 = vmatpush1.msra.mxu0 %v451
    %2152 = vmatprep.subr.mxu0 %v454
    %2153 = vmatpush1.msra.mxu0 %v453
    %2154 = vmatprep.subr.mxu0 %v456
    %2155 = vmatpush1.msra.mxu0 %v455
    %2156 = vmatprep.subr.mxu0 %v458
    %2157 = vmatpush1.msra.mxu0 %v457
    %2158 = vmatprep.subr.mxu0 0.0
    %2159 = vmatpush1.msra.mxu0 0.0
    %2160 = vmatprep.subr.mxu0 0.0
    %2161 = vmatpush1.msra.mxu0 0.0
    %2162 = vmatprep.subr.mxu0 0.0
    %2163 = vmatpush1.msra.mxu0 0.0
    %2164 = vmatprep.subr.mxu0 0.0
    %2165 = vmatpush1.msra.mxu0 0.0
    %2166 = vmatprep.subr.mxu0 0.0
    %2167 = vmatpush1.msra.mxu0 0.0
    %2168 = vmatprep.subr.mxu0 0.0
    %2169 = vmatpush1.msra.mxu0 0.0
    %2170 = vmatprep.subr.mxu0 0.0
    %2171 = vmatpush1.msra.mxu0 0.0
    %2172 = vmatprep.subr.mxu0 0.0
    %2173 = vmatpush1.msra.mxu0 0.0
    %2174 = vmatprep.subr.mxu0 0.0
    %2175 = vmatpush1.msra.mxu0 0.0
    %2176 = vmatprep.subr.mxu0 0.0
    %2177 = vmatpush1.msra.mxu0 0.0
    %2178 = vmatprep.subr.mxu0 0.0
    %2179 = vmatpush1.msra.mxu0 0.0
    %2180 = vmatprep.subr.mxu0 0.0
    %2181 = vmatpush1.msra.mxu0 0.0
    %2182 = vmatprep.subr.mxu0 0.0
    %2183 = vmatpush1.msra.mxu0 0.0
    %2184 = vmatprep.subr.mxu0 0.0
    %2185 = vmatpush1.msra.mxu0 0.0
    %2186 = vmatprep.subr.mxu0 0.0
    %2187 = vmatpush1.msra.mxu0 0.0
    %2188 = vmatprep.subr.mxu0 0.0
    %2189 = vmatpush1.msra.mxu0 0.0
    %2190 = vmatprep.subr.mxu0 0.0
    %2191 = vmatpush1.msra.mxu0 0.0
    %2192 = vmatprep.subr.mxu0 0.0
    %2193 = vmatpush1.msra.mxu0 0.0
    %2194 = vmatprep.subr.mxu0 0.0
    %2195 = vmatpush1.msra.mxu0 0.0
    %2196 = vmatprep.subr.mxu0 0.0
    %2197 = vmatpush1.msra.mxu0 0.0
    %2198 = vmatprep.subr.mxu0 0.0
    %2199 = vmatpush1.msra.mxu0 0.0
    %2200 = vmatprep.subr.mxu0 0.0
    %2201 = vmatpush1.msra.mxu0 0.0
    %2202 = vmatprep.subr.mxu0 0.0
    %2203 = vmatpush1.msra.mxu0 0.0
    %2204 = vmatprep.subr.mxu0 0.0
    %2205 = vmatpush1.msra.mxu0 0.0
    %2206 = vmatprep.mubr.f32.mxu0 0.0
    %2207 = vmatmul.mubr.f32.gmra.mrb[0].mxu0 %v2140
    %v2208 = vpop.f32.mrb[0].mxu0
    %v2209 = vadd.f32 %v466, %v2208
    %v2210 = vpop.f32.mrb[0].mxu0
    %v2211 = vadd.f32 %v465, %v2210
    %2212 = vdwg.mxu0
    %2214 = vrot.lane.b32.xlu0 %v1754, 64
    %v2215 = vpop.permute.xlu0 %2214
    %v2216 = vsel %vm86, %v2215, 0
    %2218 = vmatprep.subr.mxu0 %v544
    %2219 = vmatpush1.msra.mxu0 %v543
    %2220 = vmatprep.subr.mxu0 %v546
    %2221 = vmatpush1.msra.mxu0 %v545
    %2222 = vmatprep.subr.mxu0 %v548
    %2223 = vmatpush1.msra.mxu0 %v547
    %2224 = vmatprep.subr.mxu0 %v550
    %2225 = vmatpush1.msra.mxu0 %v549
    %2226 = vmatprep.subr.mxu0 %v552
    %2227 = vmatpush1.msra.mxu0 %v551
    %2228 = vmatprep.subr.mxu0 %v554
    %2229 = vmatpush1.msra.mxu0 %v553
    %2230 = vmatprep.subr.mxu0 %v556
    %2231 = vmatpush1.msra.mxu0 %v555
    %2232 = vmatprep.subr.mxu0 %v558
    %2233 = vmatpush1.msra.mxu0 %v557
    %2234 = vmatprep.subr.mxu0 0.0
    %2235 = vmatpush1.msra.mxu0 0.0
    %2236 = vmatprep.subr.mxu0 0.0
    %2237 = vmatpush1.msra.mxu0 0.0
    %2238 = vmatprep.subr.mxu0 0.0
    %2239 = vmatpush1.msra.mxu0 0.0
    %2240 = vmatprep.subr.mxu0 0.0
    %2241 = vmatpush1.msra.mxu0 0.0
    %2242 = vmatprep.subr.mxu0 0.0
    %2243 = vmatpush1.msra.mxu0 0.0
    %2244 = vmatprep.subr.mxu0 0.0
    %2245 = vmatpush1.msra.mxu0 0.0
    %2246 = vmatprep.subr.mxu0 0.0
    %2247 = vmatpush1.msra.mxu0 0.0
    %2248 = vmatprep.subr.mxu0 0.0
    %2249 = vmatpush1.msra.mxu0 0.0
    %2250 = vmatprep.subr.mxu0 0.0
    %2251 = vmatpush1.msra.mxu0 0.0
    %2252 = vmatprep.subr.mxu0 0.0
    %2253 = vmatpush1.msra.mxu0 0.0
    %2254 = vmatprep.subr.mxu0 0.0
    %2255 = vmatpush1.msra.mxu0 0.0
    %2256 = vmatprep.subr.mxu0 0.0
    %2257 = vmatpush1.msra.mxu0 0.0
    %2258 = vmatprep.subr.mxu0 0.0
    %2259 = vmatpush1.msra.mxu0 0.0
    %2260 = vmatprep.subr.mxu0 0.0
    %2261 = vmatpush1.msra.mxu0 0.0
    %2262 = vmatprep.subr.mxu0 0.0
    %2263 = vmatpush1.msra.mxu0 0.0
    %2264 = vmatprep.subr.mxu0 0.0
    %2265 = vmatpush1.msra.mxu0 0.0
    %2266 = vmatprep.subr.mxu0 0.0
    %2267 = vmatpush1.msra.mxu0 0.0
    %2268 = vmatprep.subr.mxu0 0.0
    %2269 = vmatpush1.msra.mxu0 0.0
    %2270 = vmatprep.subr.mxu0 0.0
    %2271 = vmatpush1.msra.mxu0 0.0
    %2272 = vmatprep.subr.mxu0 0.0
    %2273 = vmatpush1.msra.mxu0 0.0
    %2274 = vmatprep.subr.mxu0 0.0
    %2275 = vmatpush1.msra.mxu0 0.0
    %2276 = vmatprep.subr.mxu0 0.0
    %2277 = vmatpush1.msra.mxu0 0.0
    %2278 = vmatprep.subr.mxu0 0.0
    %2279 = vmatpush1.msra.mxu0 0.0
    %2280 = vmatprep.subr.mxu0 0.0
    %2281 = vmatpush1.msra.mxu0 0.0
    %2282 = vmatprep.mubr.f32.mxu0 0.0
    %2283 = vmatmul.mubr.f32.gmra.mrb[0].mxu0 %v2216
    %v2284 = vpop.f32.mrb[0].mxu0
    %v2285 = vadd.f32 %v563, %v2284
    %v2286 = vpop.f32.mrb[0].mxu0
    %v2287 = vadd.f32 %v562, %v2286
    %2288 = vdwg.mxu0
    %v2289 = vadd.f32 %v2209, %v2285
    %v2290 = vmul.f32 %v2289, 0.5
    %v2291 = vtanh.pop %v2290
    %v2292 = vmul.f32 %v2291, 0.5
    %v2293 = vadd.f32 %v2292, 0.5
    %v2294 = vmul.f32 %v2293, %v2287
    %v2295 = vadd.f32 %v2211, %v2294
    %v2296 = vtanh.pop %v2295
    %v2297 = vsub.f32 1.0, %v2293
    %2299 = vrot.lane.b32.xlu0 %v2296, 64
    %v2300 = vpop.permute.xlu0 %2299
    %v2302 = vmul.f32 %v2297, %v2300
    %v2303 = vmul.f32 %v2293, %v1754
    %v2304 = vadd.f32 %v2302, %v2303
    %v2306 = vsel %vm86, %v2139, %v2304
    %2307 = vmatprep.subr.mxu0 0.0
    %2308 = vmatpush1.msra.mxu0 %v655
    %2309 = vmatprep.subr.mxu0 0.0
    %2310 = vmatpush1.msra.mxu0 %v656
    %2311 = vmatprep.subr.mxu0 0.0
    %2312 = vmatpush1.msra.mxu0 %v657
    %2313 = vmatprep.subr.mxu0 0.0
    %2314 = vmatpush1.msra.mxu0 %v658
    %2315 = vmatprep.subr.mxu0 0.0
    %2316 = vmatpush1.msra.mxu0 %v659
    %2317 = vmatprep.subr.mxu0 0.0
    %2318 = vmatpush1.msra.mxu0 %v660
    %2319 = vmatprep.subr.mxu0 0.0
    %2320 = vmatpush1.msra.mxu0 %v661
    %2321 = vmatprep.subr.mxu0 0.0
    %2322 = vmatpush1.msra.mxu0 %v662
    %2323 = vmatprep.subr.mxu0 0.0
    %2324 = vmatpush1.msra.mxu0 %v663
    %2325 = vmatprep.subr.mxu0 0.0
    %2326 = vmatpush1.msra.mxu0 %v664
    %2327 = vmatprep.subr.mxu0 0.0
    %2328 = vmatpush1.msra.mxu0 %v665
    %2329 = vmatprep.subr.mxu0 0.0
    %2330 = vmatpush1.msra.mxu0 %v666
    %2331 = vmatprep.subr.mxu0 0.0
    %2332 = vmatpush1.msra.mxu0 %v667
    %2333 = vmatprep.subr.mxu0 0.0
    %2334 = vmatpush1.msra.mxu0 %v668
    %2335 = vmatprep.subr.mxu0 0.0
    %2336 = vmatpush1.msra.mxu0 %v669
    %2337 = vmatprep.subr.mxu0 0.0
    %2338 = vmatpush1.msra.mxu0 %v670
    %2339 = vmatprep.subr.mxu0 0.0
    %2340 = vmatpush1.msra.mxu0 0.0
    %2341 = vmatprep.subr.mxu0 0.0
    %2342 = vmatpush1.msra.mxu0 0.0
    %2343 = vmatprep.subr.mxu0 0.0
    %2344 = vmatpush1.msra.mxu0 0.0
    %2345 = vmatprep.subr.mxu0 0.0
    %2346 = vmatpush1.msra.mxu0 0.0
    %2347 = vmatprep.subr.mxu0 0.0
    %2348 = vmatpush1.msra.mxu0 0.0
    %2349 = vmatprep.subr.mxu0 0.0
    %2350 = vmatpush1.msra.mxu0 0.0
    %2351 = vmatprep.subr.mxu0 0.0
    %2352 = vmatpush1.msra.mxu0 0.0
    %2353 = vmatprep.subr.mxu0 0.0
    %2354 = vmatpush1.msra.mxu0 0.0
    %2355 = vmatprep.subr.mxu0 0.0
    %2356 = vmatpush1.msra.mxu0 0.0
    %2357 = vmatprep.subr.mxu0 0.0
    %2358 = vmatpush1.msra.mxu0 0.0
    %2359 = vmatprep.subr.mxu0 0.0
    %2360 = vmatpush1.msra.mxu0 0.0
    %2361 = vmatprep.subr.mxu0 0.0
    %2362 = vmatpush1.msra.mxu0 0.0
    %2363 = vmatprep.subr.mxu0 0.0
    %2364 = vmatpush1.msra.mxu0 0.0
    %2365 = vmatprep.subr.mxu0 0.0
    %2366 = vmatpush1.msra.mxu0 0.0
    %2367 = vmatprep.subr.mxu0 0.0
    %2368 = vmatpush1.msra.mxu0 0.0
    %2369 = vmatprep.subr.mxu0 0.0
    %2370 = vmatpush1.msra.mxu0 0.0
    %2371 = vmatprep.mubr.f32.mxu0 0.0
    %2372 = vmatmul.mubr.f32.gmra.mrb[0].mxu0 %v2306
    %v2373 = vpop.f32.mrb[0].mxu0
    %v2374 = vadd.f32 %v220, %v2373
    %v2375 = vpop.f32.mrb[0].mxu0
    %2376 = vdwg.mxu0
    %v2377 = vmul.f32 %v2374, 0.5
    %v2378 = vmul.f32 %v2374, 0.044715
    %v2379 = vmul.f32 %v2378, %v2374
    %v2380 = vmul.f32 %v2379, %v2374
    %v2381 = vadd.f32 %v2374, %v2380
    %v2382 = vmul.f32 %v2381, 0.7978846
    %v2383 = vtanh.pop %v2382
    %v2384 = vadd.f32 %v2383, 1.0
    %v2385 = vmul.f32 %v2377, %v2384
    %v2386 = vmul.f32 %v2385, %v227
    %v2387 = vsel %vm751, %v2386, 0.0
    %2388 = vadd.xlane.f32.xlu0 %v2387
    %v2389 = vpop.xlane.xlu0 %2388
    %v2390 = vadd.f32 %v2389, %v234
    %v2391 = vmul.f32 %v2390, 0.5
    %v2392 = vtanh.pop %v2391
    %v2393 = vmul.f32 %v2392, 0.5
    %v2394 = vadd.f32 %v2393, 0.5
    %2396 = vrot.lane.b32.xlu0 %v2386, 80
    %v2397 = vpop.permute.xlu0 %2396
    %v2399 = vsel %vm751, %v2397, 0.0
    %2400 = vadd.xlane.f32.xlu0 %v2399
    %v2401 = vpop.xlane.xlu0 %2400
    %v2402 = vadd.f32 %v2401, %v234
    %v2403 = vmul.f32 %v2402, 0.5
    %v2404 = vtanh.pop %v2403
    %v2405 = vmul.f32 %v2404, 0.5
    %v2406 = vadd.f32 %v2405, 0.5
    %2408 = vrot.lane.b32.xlu0 %v2406, 127
    %v2409 = vpop.permute.xlu0 %2408
    %v2411 = vadd.f32 %v2394, %v2409
    %2413 = vset.pattern.permute.xlu0 0
    %2414 = vperm.xlu0 %2413, %v2411
    %v2415 = vpop.permute.xlu0 %2414
    %v2417 = vmul.f32 %v2415, %v2304
    %2419 = vrot.lane.b32.xlu0 %v2417, 64
    %v2420 = vpop.permute.xlu0 %2419
    %v2421 = vsel %vm86, %v2420, 0
    %2423 = vmatprep.subr.mxu0 0.0
    %2424 = vmatpush1.msra.mxu0 %v783
    %2425 = vmatprep.subr.mxu0 0.0
    %2426 = vmatpush1.msra.mxu0 %v784
    %2427 = vmatprep.subr.mxu0 0.0
    %2428 = vmatpush1.msra.mxu0 %v785
    %2429 = vmatprep.subr.mxu0 0.0
    %2430 = vmatpush1.msra.mxu0 %v786
    %2431 = vmatprep.subr.mxu0 0.0
    %2432 = vmatpush1.msra.mxu0 %v787
    %2433 = vmatprep.subr.mxu0 0.0
    %2434 = vmatpush1.msra.mxu0 %v788
    %2435 = vmatprep.subr.mxu0 0.0
    %2436 = vmatpush1.msra.mxu0 %v789
    %2437 = vmatprep.subr.mxu0 0.0
    %2438 = vmatpush1.msra.mxu0 %v790
    %2439 = vmatprep.subr.mxu0 0.0
    %2440 = vmatpush1.msra.mxu0 0.0
    %2441 = vmatprep.subr.mxu0 0.0
    %2442 = vmatpush1.msra.mxu0 0.0
    %2443 = vmatprep.subr.mxu0 0.0
    %2444 = vmatpush1.msra.mxu0 0.0
    %2445 = vmatprep.subr.mxu0 0.0
    %2446 = vmatpush1.msra.mxu0 0.0
    %2447 = vmatprep.subr.mxu0 0.0
    %2448 = vmatpush1.msra.mxu0 0.0
    %2449 = vmatprep.subr.mxu0 0.0
    %2450 = vmatpush1.msra.mxu0 0.0
    %2451 = vmatprep.subr.mxu0 0.0
    %2452 = vmatpush1.msra.mxu0 0.0
    %2453 = vmatprep.subr.mxu0 0.0
    %2454 = vmatpush1.msra.mxu0 0.0
    %2455 = vmatprep.subr.mxu0 0.0
    %2456 = vmatpush1.msra.mxu0 0.0
    %2457 = vmatprep.subr.mxu0 0.0
    %2458 = vmatpush1.msra.mxu0 0.0
    %2459 = vmatprep.subr.mxu0 0.0
    %2460 = vmatpush1.msra.mxu0 0.0
    %2461 = vmatprep.subr.mxu0 0.0
    %2462 = vmatpush1.msra.mxu0 0.0
    %2463 = vmatprep.subr.mxu0 0.0
    %2464 = vmatpush1.msra.mxu0 0.0
    %2465 = vmatprep.subr.mxu0 0.0
    %2466 = vmatpush1.msra.mxu0 0.0
    %2467 = vmatprep.subr.mxu0 0.0
    %2468 = vmatpush1.msra.mxu0 0.0
    %2469 = vmatprep.subr.mxu0 0.0
    %2470 = vmatpush1.msra.mxu0 0.0
    %2471 = vmatprep.subr.mxu0 0.0
    %2472 = vmatpush1.msra.mxu0 0.0
    %2473 = vmatprep.subr.mxu0 0.0
    %2474 = vmatpush1.msra.mxu0 0.0
    %2475 = vmatprep.subr.mxu0 0.0
    %2476 = vmatpush1.msra.mxu0 0.0
    %2477 = vmatprep.subr.mxu0 0.0
    %2478 = vmatpush1.msra.mxu0 0.0
    %2479 = vmatprep.subr.mxu0 0.0
    %2480 = vmatpush1.msra.mxu0 0.0
    %2481 = vmatprep.subr.mxu0 0.0
    %2482 = vmatpush1.msra.mxu0 0.0
    %2483 = vmatprep.subr.mxu0 0.0
    %2484 = vmatpush1.msra.mxu0 0.0
    %2485 = vmatprep.subr.mxu0 0.0
    %2486 = vmatpush1.msra.mxu0 0.0
    %2487 = vmatprep.mubr.f32.mxu0 0.0
    %2488 = vmatmul.mubr.f32.gmra.mrb[0].mxu0 %v2421
    %v2489 = vpop.f32.mrb[0].mxu0
    %v2490 = vadd.f32 %v241, %v2489
    %v2491 = vpop.f32.mrb[0].mxu0
    %2492 = vdwg.mxu0
    %v2493 = vmul.f32 %v2490, 0.5
    %v2494 = vtanh.pop %v2493
    %v2495 = vmul.f32 %v2494, 0.5
    %v2496 = vadd.f32 %v2495, 0.5
    %v2497 = vmul.f32 %v2490, %v2496
    %v2498 = vmul.f32 %v2497, %v248
    %v2499 = vsel %vm86, %v2498, 0.0
    %2500 = vadd.xlane.f32.xlu0 %v2499
    %v2501 = vpop.xlane.xlu0 %2500
    %v2502 = vadd.f32 %v2501, %v255
    %v2503 = vmax.f32 %v1953, %v2502
    %v2504 = vsub.f32 %v1953, %v2503
    %v2505 = vmul.f32 %v2504, 1.442695
    %v2506 = vpow.pop %v2505
    %v2507 = vsub.f32 %v2502, %v2503
    %v2508 = vmul.f32 %v2507, 1.442695
    %v2509 = vpow.pop %v2508
    %v2510 = vmul.f32 %v2506, %v1961
    %v2511 = vadd.f32 %v2510, %v2509
    %2513 = vset.pattern.permute.xlu0 0
    %2514 = vperm.xlu0 %2513, %v2506
    %v2515 = vpop.permute.xlu0 %2514
    %v2517 = vmul.f32 %v2515, %v1974
    %2519 = vset.pattern.permute.xlu0 0
    %2520 = vperm.xlu0 %2519, %v2509
    %v2521 = vpop.permute.xlu0 %2520
    %v2523 = vmul.f32 %v2521, %v2417
    %v2524 = vadd.f32 %v2517, %v2523
    %2525 = vrot.lane.b32.xlu0 %v170, 64
    %v2526 = vpop.permute.xlu0 %2525
    %v2527 = vsel %vm261, %v2526, 0
    %2529 = vmatprep.subr.mxu0 %v258
    %2530 = vmatpush1.msra.mxu0 %v257
    %2531 = vmatprep.subr.mxu0 %v260
    %2532 = vmatpush1.msra.mxu0 %v259
    %2533 = vmatprep.subr.mxu0 0.0
    %2534 = vmatpush1.msra.mxu0 0.0
    %2535 = vmatprep.subr.mxu0 0.0
    %2536 = vmatpush1.msra.mxu0 0.0
    %2537 = vmatprep.subr.mxu0 0.0
    %2538 = vmatpush1.msra.mxu0 0.0
    %2539 = vmatprep.subr.mxu0 0.0
    %2540 = vmatpush1.msra.mxu0 0.0
    %2541 = vmatprep.subr.mxu0 0.0
    %2542 = vmatpush1.msra.mxu0 0.0
    %2543 = vmatprep.subr.mxu0 0.0
    %2544 = vmatpush1.msra.mxu0 0.0
    %2545 = vmatprep.subr.mxu0 0.0
    %2546 = vmatpush1.msra.mxu0 0.0
    %2547 = vmatprep.subr.mxu0 0.0
    %2548 = vmatpush1.msra.mxu0 0.0
    %2549 = vmatprep.subr.mxu0 0.0
    %2550 = vmatpush1.msra.mxu0 0.0
    %2551 = vmatprep.subr.mxu0 0.0
    %2552 = vmatpush1.msra.mxu0 0.0
    %2553 = vmatprep.subr.mxu0 0.0
    %2554 = vmatpush1.msra.mxu0 0.0
    %2555 = vmatprep.subr.mxu0 0.0
    %2556 = vmatpush1.msra.mxu0 0.0
    %2557 = vmatprep.subr.mxu0 0.0
    %2558 = vmatpush1.msra.mxu0 0.0
    %2559 = vmatprep.subr.mxu0 0.0
    %2560 = vmatpush1.msra.mxu0 0.0
    %2561 = vmatprep.subr.mxu0 0.0
    %2562 = vmatpush1.msra.mxu0 0.0
    %2563 = vmatprep.subr.mxu0 0.0
    %2564 = vmatpush1.msra.mxu0 0.0
    %2565 = vmatprep.subr.mxu0 0.0
    %2566 = vmatpush1.msra.mxu0 0.0
    %2567 = vmatprep.subr.mxu0 0.0
    %2568 = vmatpush1.msra.mxu0 0.0
    %2569 = vmatprep.subr.mxu0 0.0
    %2570 = vmatpush1.msra.mxu0 0.0
    %2571 = vmatprep.subr.mxu0 0.0
    %2572 = vmatpush1.msra.mxu0 0.0
    %2573 = vmatprep.subr.mxu0 0.0
    %2574 = vmatpush1.msra.mxu0 0.0
    %2575 = vmatprep.subr.mxu0 0.0
    %2576 = vmatpush1.msra.mxu0 0.0
    %2577 = vmatprep.subr.mxu0 0.0
    %2578 = vmatpush1.msra.mxu0 0.0
    %2579 = vmatprep.subr.mxu0 0.0
    %2580 = vmatpush1.msra.mxu0 0.0
    %2581 = vmatprep.subr.mxu0 0.0
    %2582 = vmatpush1.msra.mxu0 0.0
    %2583 = vmatprep.subr.mxu0 0.0
    %2584 = vmatpush1.msra.mxu0 0.0
    %2585 = vmatprep.subr.mxu0 0.0
    %2586 = vmatpush1.msra.mxu0 0.0
    %2587 = vmatprep.subr.mxu0 0.0
    %2588 = vmatpush1.msra.mxu0 0.0
    %2589 = vmatprep.subr.mxu0 0.0
    %2590 = vmatpush1.msra.mxu0 0.0
    %2591 = vmatprep.subr.mxu0 0.0
    %2592 = vmatpush1.msra.mxu0 0.0
    %2593 = vmatprep.mubr.f32.mxu0 0.0
    %2594 = vmatmul.mubr.f32.gmra.mrb[0].mxu0 %v2527
    %v2595 = vpop.f32.mrb[0].mxu0
    %v2596 = vadd.f32 %v176, %v2595
    %v2597 = vpop.f32.mrb[0].mxu0
    %v2598 = vadd.f32 %v180, %v2597
    %2599 = vdwg.mxu0
    %2600 = vmatprep.subr.mxu0 %v337
    %2601 = vmatpush1.msra.mxu0 %v336
    %2602 = vmatprep.subr.mxu0 %v339
    %2603 = vmatpush1.msra.mxu0 %v338
    %2604 = vmatprep.subr.mxu0 %v341
    %2605 = vmatpush1.msra.mxu0 %v340
    %2606 = vmatprep.subr.mxu0 %v343
    %2607 = vmatpush1.msra.mxu0 %v342
    %2608 = vmatprep.subr.mxu0 %v345
    %2609 = vmatpush1.msra.mxu0 %v344
    %2610 = vmatprep.subr.mxu0 %v347
    %2611 = vmatpush1.msra.mxu0 %v346
    %2612 = vmatprep.subr.mxu0 %v349
    %2613 = vmatpush1.msra.mxu0 %v348
    %2614 = vmatprep.subr.mxu0 %v351
    %2615 = vmatpush1.msra.mxu0 %v350
    %2616 = vmatprep.subr.mxu0 0.0
    %2617 = vmatpush1.msra.mxu0 0.0
    %2618 = vmatprep.subr.mxu0 0.0
    %2619 = vmatpush1.msra.mxu0 0.0
    %2620 = vmatprep.subr.mxu0 0.0
    %2621 = vmatpush1.msra.mxu0 0.0
    %2622 = vmatprep.subr.mxu0 0.0
    %2623 = vmatpush1.msra.mxu0 0.0
    %2624 = vmatprep.subr.mxu0 0.0
    %2625 = vmatpush1.msra.mxu0 0.0
    %2626 = vmatprep.subr.mxu0 0.0
    %2627 = vmatpush1.msra.mxu0 0.0
    %2628 = vmatprep.subr.mxu0 0.0
    %2629 = vmatpush1.msra.mxu0 0.0
    %2630 = vmatprep.subr.mxu0 0.0
    %2631 = vmatpush1.msra.mxu0 0.0
    %2632 = vmatprep.subr.mxu0 0.0
    %2633 = vmatpush1.msra.mxu0 0.0
    %2634 = vmatprep.subr.mxu0 0.0
    %2635 = vmatpush1.msra.mxu0 0.0
    %2636 = vmatprep.subr.mxu0 0.0
    %2637 = vmatpush1.msra.mxu0 0.0
    %2638 = vmatprep.subr.mxu0 0.0
    %2639 = vmatpush1.msra.mxu0 0.0
    %2640 = vmatprep.subr.mxu0 0.0
    %2641 = vmatpush1.msra.mxu0 0.0
    %2642 = vmatprep.subr.mxu0 0.0
    %2643 = vmatpush1.msra.mxu0 0.0
    %2644 = vmatprep.subr.mxu0 0.0
    %2645 = vmatpush1.msra.mxu0 0.0
    %2646 = vmatprep.subr.mxu0 0.0
    %2647 = vmatpush1.msra.mxu0 0.0
    %2648 = vmatprep.subr.mxu0 0.0
    %2649 = vmatpush1.msra.mxu0 0.0
    %2650 = vmatprep.subr.mxu0 0.0
    %2651 = vmatpush1.msra.mxu0 0.0
    %2652 = vmatprep.subr.mxu0 0.0
    %2653 = vmatpush1.msra.mxu0 0.0
    %2654 = vmatprep.subr.mxu0 0.0
    %2655 = vmatpush1.msra.mxu0 0.0
    %2656 = vmatprep.subr.mxu0 0.0
    %2657 = vmatpush1.msra.mxu0 0.0
    %2658 = vmatprep.subr.mxu0 0.0
    %2659 = vmatpush1.msra.mxu0 0.0
    %2660 = vmatprep.subr.mxu0 0.0
    %2661 = vmatpush1.msra.mxu0 0.0
    %2662 = vmatprep.subr.mxu0 0.0
    %2663 = vmatpush1.msra.mxu0 0.0
    %2664 = vmatprep.mubr.f32.mxu0 0.0
    %2665 = vmatmul.mubr.f32.gmra.mrb[0].mxu0 %v2140
    %v2666 = vpop.f32.mrb[0].mxu0
    %v2667 = vadd.f32 %v198, %v2666
    %v2668 = vpop.f32.mrb[0].mxu0
    %v2669 = vadd.f32 %v202, %v2668
    %2670 = vdwg.mxu0
    %v2671 = vadd.f32 %v2596, %v2667
    %v2672 = vmul.f32 %v2671, 0.5
    %v2673 = vtanh.pop %v2672
    %v2674 = vmul.f32 %v2673, 0.5
    %v2675 = vadd.f32 %v2674, 0.5
    %v2676 = vmul.f32 %v2675, %v2669
    %v2677 = vadd.f32 %v2598, %v2676
    %v2678 = vtanh.pop %v2677
    %v2679 = vsub.f32 1.0, %v2675
    %2681 = vrot.lane.b32.xlu0 %v2678, 64
    %v2682 = vpop.permute.xlu0 %2681
    %v2684 = vmul.f32 %v2679, %v2682
    %v2685 = vmul.f32 %v2675, %v2136
    %v2686 = vadd.f32 %v2684, %v2685
    %2688 = vrot.lane.b32.xlu0 %v2686, 64
    %v2689 = vpop.permute.xlu0 %2688
    %v2690 = vsel %vm86, %v2689, 0
    %2692 = vmatprep.subr.mxu0 %v444
    %2693 = vmatpush1.msra.mxu0 %v443
    %2694 = vmatprep.subr.mxu0 %v446
    %2695 = vmatpush1.msra.mxu0 %v445
    %2696 = vmatprep.subr.mxu0 %v448
    %2697 = vmatpush1.msra.mxu0 %v447
    %2698 = vmatprep.subr.mxu0 %v450
    %2699 = vmatpush1.msra.mxu0 %v449
    %2700 = vmatprep.subr.mxu0 %v452
    %2701 = vmatpush1.msra.mxu0 %v451
    %2702 = vmatprep.subr.mxu0 %v454
    %2703 = vmatpush1.msra.mxu0 %v453
    %2704 = vmatprep.subr.mxu0 %v456
    %2705 = vmatpush1.msra.mxu0 %v455
    %2706 = vmatprep.subr.mxu0 %v458
    %2707 = vmatpush1.msra.mxu0 %v457
    %2708 = vmatprep.subr.mxu0 0.0
    %2709 = vmatpush1.msra.mxu0 0.0
    %2710 = vmatprep.subr.mxu0 0.0
    %2711 = vmatpush1.msra.mxu0 0.0
    %2712 = vmatprep.subr.mxu0 0.0
    %2713 = vmatpush1.msra.mxu0 0.0
    %2714 = vmatprep.subr.mxu0 0.0
    %2715 = vmatpush1.msra.mxu0 0.0
    %2716 = vmatprep.subr.mxu0 0.0
    %2717 = vmatpush1.msra.mxu0 0.0
    %2718 = vmatprep.subr.mxu0 0.0
    %2719 = vmatpush1.msra.mxu0 0.0
    %2720 = vmatprep.subr.mxu0 0.0
    %2721 = vmatpush1.msra.mxu0 0.0
    %2722 = vmatprep.subr.mxu0 0.0
    %2723 = vmatpush1.msra.mxu0 0.0
    %2724 = vmatprep.subr.mxu0 0.0
    %2725 = vmatpush1.msra.mxu0 0.0
    %2726 = vmatprep.subr.mxu0 0.0
    %2727 = vmatpush1.msra.mxu0 0.0
    %2728 = vmatprep.subr.mxu0 0.0
    %2729 = vmatpush1.msra.mxu0 0.0
    %2730 = vmatprep.subr.mxu0 0.0
    %2731 = vmatpush1.msra.mxu0 0.0
    %2732 = vmatprep.subr.mxu0 0.0
    %2733 = vmatpush1.msra.mxu0 0.0
    %2734 = vmatprep.subr.mxu0 0.0
    %2735 = vmatpush1.msra.mxu0 0.0
    %2736 = vmatprep.subr.mxu0 0.0
    %2737 = vmatpush1.msra.mxu0 0.0
    %2738 = vmatprep.subr.mxu0 0.0
    %2739 = vmatpush1.msra.mxu0 0.0
    %2740 = vmatprep.subr.mxu0 0.0
    %2741 = vmatpush1.msra.mxu0 0.0
    %2742 = vmatprep.subr.mxu0 0.0
    %2743 = vmatpush1.msra.mxu0 0.0
    %2744 = vmatprep.subr.mxu0 0.0
    %2745 = vmatpush1.msra.mxu0 0.0
    %2746 = vmatprep.subr.mxu0 0.0
    %2747 = vmatpush1.msra.mxu0 0.0
    %2748 = vmatprep.subr.mxu0 0.0
    %2749 = vmatpush1.msra.mxu0 0.0
    %2750 = vmatprep.subr.mxu0 0.0
    %2751 = vmatpush1.msra.mxu0 0.0
    %2752 = vmatprep.subr.mxu0 0.0
    %2753 = vmatpush1.msra.mxu0 0.0
    %2754 = vmatprep.subr.mxu0 0.0
    %2755 = vmatpush1.msra.mxu0 0.0
    %2756 = vmatprep.mubr.f32.mxu0 0.0
    %2757 = vmatmul.mubr.f32.gmra.mrb[0].mxu0 %v2690
    %v2758 = vpop.f32.mrb[0].mxu0
    %v2759 = vadd.f32 %v466, %v2758
    %v2760 = vpop.f32.mrb[0].mxu0
    %v2761 = vadd.f32 %v465, %v2760
    %2762 = vdwg.mxu0
    %2764 = vrot.lane.b32.xlu0 %v2304, 64
    %v2765 = vpop.permute.xlu0 %2764
    %v2766 = vsel %vm86, %v2765, 0
    %2768 = vmatprep.subr.mxu0 %v544
    %2769 = vmatpush1.msra.mxu0 %v543
    %2770 = vmatprep.subr.mxu0 %v546
    %2771 = vmatpush1.msra.mxu0 %v545
    %2772 = vmatprep.subr.mxu0 %v548
    %2773 = vmatpush1.msra.mxu0 %v547
    %2774 = vmatprep.subr.mxu0 %v550
    %2775 = vmatpush1.msra.mxu0 %v549
    %2776 = vmatprep.subr.mxu0 %v552
    %2777 = vmatpush1.msra.mxu0 %v551
    %2778 = vmatprep.subr.mxu0 %v554
    %2779 = vmatpush1.msra.mxu0 %v553
    %2780 = vmatprep.subr.mxu0 %v556
    %2781 = vmatpush1.msra.mxu0 %v555
    %2782 = vmatprep.subr.mxu0 %v558
    %2783 = vmatpush1.msra.mxu0 %v557
    %2784 = vmatprep.subr.mxu0 0.0
    %2785 = vmatpush1.msra.mxu0 0.0
    %2786 = vmatprep.subr.mxu0 0.0
    %2787 = vmatpush1.msra.mxu0 0.0
    %2788 = vmatprep.subr.mxu0 0.0
    %2789 = vmatpush1.msra.mxu0 0.0
    %2790 = vmatprep.subr.mxu0 0.0
    %2791 = vmatpush1.msra.mxu0 0.0
    %2792 = vmatprep.subr.mxu0 0.0
    %2793 = vmatpush1.msra.mxu0 0.0
    %2794 = vmatprep.subr.mxu0 0.0
    %2795 = vmatpush1.msra.mxu0 0.0
    %2796 = vmatprep.subr.mxu0 0.0
    %2797 = vmatpush1.msra.mxu0 0.0
    %2798 = vmatprep.subr.mxu0 0.0
    %2799 = vmatpush1.msra.mxu0 0.0
    %2800 = vmatprep.subr.mxu0 0.0
    %2801 = vmatpush1.msra.mxu0 0.0
    %2802 = vmatprep.subr.mxu0 0.0
    %2803 = vmatpush1.msra.mxu0 0.0
    %2804 = vmatprep.subr.mxu0 0.0
    %2805 = vmatpush1.msra.mxu0 0.0
    %2806 = vmatprep.subr.mxu0 0.0
    %2807 = vmatpush1.msra.mxu0 0.0
    %2808 = vmatprep.subr.mxu0 0.0
    %2809 = vmatpush1.msra.mxu0 0.0
    %2810 = vmatprep.subr.mxu0 0.0
    %2811 = vmatpush1.msra.mxu0 0.0
    %2812 = vmatprep.subr.mxu0 0.0
    %2813 = vmatpush1.msra.mxu0 0.0
    %2814 = vmatprep.subr.mxu0 0.0
    %2815 = vmatpush1.msra.mxu0 0.0
    %2816 = vmatprep.subr.mxu0 0.0
    %2817 = vmatpush1.msra.mxu0 0.0
    %2818 = vmatprep.subr.mxu0 0.0
    %2819 = vmatpush1.msra.mxu0 0.0
    %2820 = vmatprep.subr.mxu0 0.0
    %2821 = vmatpush1.msra.mxu0 0.0
    %2822 = vmatprep.subr.mxu0 0.0
    %2823 = vmatpush1.msra.mxu0 0.0
    %2824 = vmatprep.subr.mxu0 0.0
    %2825 = vmatpush1.msra.mxu0 0.0
    %2826 = vmatprep.subr.mxu0 0.0
    %2827 = vmatpush1.msra.mxu0 0.0
    %2828 = vmatprep.subr.mxu0 0.0
    %2829 = vmatpush1.msra.mxu0 0.0
    %2830 = vmatprep.subr.mxu0 0.0
    %2831 = vmatpush1.msra.mxu0 0.0
    %2832 = vmatprep.mubr.f32.mxu0 0.0
    %2833 = vmatmul.mubr.f32.gmra.mrb[0].mxu0 %v2766
    %v2834 = vpop.f32.mrb[0].mxu0
    %v2835 = vadd.f32 %v563, %v2834
    %v2836 = vpop.f32.mrb[0].mxu0
    %v2837 = vadd.f32 %v562, %v2836
    %2838 = vdwg.mxu0
    %v2839 = vadd.f32 %v2759, %v2835
    %v2840 = vmul.f32 %v2839, 0.5
    %v2841 = vtanh.pop %v2840
    %v2842 = vmul.f32 %v2841, 0.5
    %v2843 = vadd.f32 %v2842, 0.5
    %v2844 = vmul.f32 %v2843, %v2837
    %v2845 = vadd.f32 %v2761, %v2844
    %v2846 = vtanh.pop %v2845
    %v2847 = vsub.f32 1.0, %v2843
    %2849 = vrot.lane.b32.xlu0 %v2846, 64
    %v2850 = vpop.permute.xlu0 %2849
    %v2852 = vmul.f32 %v2847, %v2850
    %v2853 = vmul.f32 %v2843, %v2304
    %v2854 = vadd.f32 %v2852, %v2853
    %v2856 = vsel %vm86, %v2689, %v2854
    %2857 = vmatprep.subr.mxu0 0.0
    %2858 = vmatpush1.msra.mxu0 %v655
    %2859 = vmatprep.subr.mxu0 0.0
    %2860 = vmatpush1.msra.mxu0 %v656
    %2861 = vmatprep.subr.mxu0 0.0
    %2862 = vmatpush1.msra.mxu0 %v657
    %2863 = vmatprep.subr.mxu0 0.0
    %2864 = vmatpush1.msra.mxu0 %v658
    %2865 = vmatprep.subr.mxu0 0.0
    %2866 = vmatpush1.msra.mxu0 %v659
    %2867 = vmatprep.subr.mxu0 0.0
    %2868 = vmatpush1.msra.mxu0 %v660
    %2869 = vmatprep.subr.mxu0 0.0
    %2870 = vmatpush1.msra.mxu0 %v661
    %2871 = vmatprep.subr.mxu0 0.0
    %2872 = vmatpush1.msra.mxu0 %v662
    %2873 = vmatprep.subr.mxu0 0.0
    %2874 = vmatpush1.msra.mxu0 %v663
    %2875 = vmatprep.subr.mxu0 0.0
    %2876 = vmatpush1.msra.mxu0 %v664
    %2877 = vmatprep.subr.mxu0 0.0
    %2878 = vmatpush1.msra.mxu0 %v665
    %2879 = vmatprep.subr.mxu0 0.0
    %2880 = vmatpush1.msra.mxu0 %v666
    %2881 = vmatprep.subr.mxu0 0.0
    %2882 = vmatpush1.msra.mxu0 %v667
    %2883 = vmatprep.subr.mxu0 0.0
    %2884 = vmatpush1.msra.mxu0 %v668
    %2885 = vmatprep.subr.mxu0 0.0
    %2886 = vmatpush1.msra.mxu0 %v669
    %2887 = vmatprep.subr.mxu0 0.0
    %2888 = vmatpush1.msra.mxu0 %v670
    %2889 = vmatprep.subr.mxu0 0.0
    %2890 = vmatpush1.msra.mxu0 0.0
    %2891 = vmatprep.subr.mxu0 0.0
    %2892 = vmatpush1.msra.mxu0 0.0
    %2893 = vmatprep.subr.mxu0 0.0
    %2894 = vmatpush1.msra.mxu0 0.0
    %2895 = vmatprep.subr.mxu0 0.0
    %2896 = vmatpush1.msra.mxu0 0.0
    %2897 = vmatprep.subr.mxu0 0.0
    %2898 = vmatpush1.msra.mxu0 0.0
    %2899 = vmatprep.subr.mxu0 0.0
    %2900 = vmatpush1.msra.mxu0 0.0
    %2901 = vmatprep.subr.mxu0 0.0
    %2902 = vmatpush1.msra.mxu0 0.0
    %2903 = vmatprep.subr.mxu0 0.0
    %2904 = vmatpush1.msra.mxu0 0.0
    %2905 = vmatprep.subr.mxu0 0.0
    %2906 = vmatpush1.msra.mxu0 0.0
    %2907 = vmatprep.subr.mxu0 0.0
    %2908 = vmatpush1.msra.mxu0 0.0
    %2909 = vmatprep.subr.mxu0 0.0
    %2910 = vmatpush1.msra.mxu0 0.0
    %2911 = vmatprep.subr.mxu0 0.0
    %2912 = vmatpush1.msra.mxu0 0.0
    %2913 = vmatprep.subr.mxu0 0.0
    %2914 = vmatpush1.msra.mxu0 0.0
    %2915 = vmatprep.subr.mxu0 0.0
    %2916 = vmatpush1.msra.mxu0 0.0
    %2917 = vmatprep.subr.mxu0 0.0
    %2918 = vmatpush1.msra.mxu0 0.0
    %2919 = vmatprep.subr.mxu0 0.0
    %2920 = vmatpush1.msra.mxu0 0.0
    %2921 = vmatprep.mubr.f32.mxu0 0.0
    %2922 = vmatmul.mubr.f32.gmra.mrb[0].mxu0 %v2856
    %v2923 = vpop.f32.mrb[0].mxu0
    %v2924 = vadd.f32 %v220, %v2923
    %v2925 = vpop.f32.mrb[0].mxu0
    %2926 = vdwg.mxu0
    %v2927 = vmul.f32 %v2924, 0.5
    %v2928 = vmul.f32 %v2924, 0.044715
    %v2929 = vmul.f32 %v2928, %v2924
    %v2930 = vmul.f32 %v2929, %v2924
    %v2931 = vadd.f32 %v2924, %v2930
    %v2932 = vmul.f32 %v2931, 0.7978846
    %v2933 = vtanh.pop %v2932
    %v2934 = vadd.f32 %v2933, 1.0
    %v2935 = vmul.f32 %v2927, %v2934
    %v2936 = vmul.f32 %v2935, %v227
    %v2937 = vsel %vm751, %v2936, 0.0
    %2938 = vadd.xlane.f32.xlu0 %v2937
    %v2939 = vpop.xlane.xlu0 %2938
    %v2940 = vadd.f32 %v2939, %v234
    %v2941 = vmul.f32 %v2940, 0.5
    %v2942 = vtanh.pop %v2941
    %v2943 = vmul.f32 %v2942, 0.5
    %v2944 = vadd.f32 %v2943, 0.5
    %2946 = vrot.lane.b32.xlu0 %v2936, 80
    %v2947 = vpop.permute.xlu0 %2946
    %v2949 = vsel %vm751, %v2947, 0.0
    %2950 = vadd.xlane.f32.xlu0 %v2949
    %v2951 = vpop.xlane.xlu0 %2950
    %v2952 = vadd.f32 %v2951, %v234
    %v2953 = vmul.f32 %v2952, 0.5
    %v2954 = vtanh.pop %v2953
    %v2955 = vmul.f32 %v2954, 0.5
    %v2956 = vadd.f32 %v2955, 0.5
    %2958 = vrot.lane.b32.xlu0 %v2956, 127
    %v2959 = vpop.permute.xlu0 %2958
    %v2961 = vadd.f32 %v2944, %v2959
    %2963 = vset.pattern.permute.xlu0 0
    %2964 = vperm.xlu0 %2963, %v2961
    %v2965 = vpop.permute.xlu0 %2964
    %v2967 = vmul.f32 %v2965, %v2854
    %2969 = vrot.lane.b32.xlu0 %v2967, 64
    %v2970 = vpop.permute.xlu0 %2969
    %v2971 = vsel %vm86, %v2970, 0
    %2973 = vmatprep.subr.mxu0 0.0
    %2974 = vmatpush1.msra.mxu0 %v783
    %2975 = vmatprep.subr.mxu0 0.0
    %2976 = vmatpush1.msra.mxu0 %v784
    %2977 = vmatprep.subr.mxu0 0.0
    %2978 = vmatpush1.msra.mxu0 %v785
    %2979 = vmatprep.subr.mxu0 0.0
    %2980 = vmatpush1.msra.mxu0 %v786
    %2981 = vmatprep.subr.mxu0 0.0
    %2982 = vmatpush1.msra.mxu0 %v787
    %2983 = vmatprep.subr.mxu0 0.0
    %2984 = vmatpush1.msra.mxu0 %v788
    %2985 = vmatprep.subr.mxu0 0.0
    %2986 = vmatpush1.msra.mxu0 %v789
    %2987 = vmatprep.subr.mxu0 0.0
    %2988 = vmatpush1.msra.mxu0 %v790
    %2989 = vmatprep.subr.mxu0 0.0
    %2990 = vmatpush1.msra.mxu0 0.0
    %2991 = vmatprep.subr.mxu0 0.0
    %2992 = vmatpush1.msra.mxu0 0.0
    %2993 = vmatprep.subr.mxu0 0.0
    %2994 = vmatpush1.msra.mxu0 0.0
    %2995 = vmatprep.subr.mxu0 0.0
    %2996 = vmatpush1.msra.mxu0 0.0
    %2997 = vmatprep.subr.mxu0 0.0
    %2998 = vmatpush1.msra.mxu0 0.0
    %2999 = vmatprep.subr.mxu0 0.0
    %3000 = vmatpush1.msra.mxu0 0.0
    %3001 = vmatprep.subr.mxu0 0.0
    %3002 = vmatpush1.msra.mxu0 0.0
    %3003 = vmatprep.subr.mxu0 0.0
    %3004 = vmatpush1.msra.mxu0 0.0
    %3005 = vmatprep.subr.mxu0 0.0
    %3006 = vmatpush1.msra.mxu0 0.0
    %3007 = vmatprep.subr.mxu0 0.0
    %3008 = vmatpush1.msra.mxu0 0.0
    %3009 = vmatprep.subr.mxu0 0.0
    %3010 = vmatpush1.msra.mxu0 0.0
    %3011 = vmatprep.subr.mxu0 0.0
    %3012 = vmatpush1.msra.mxu0 0.0
    %3013 = vmatprep.subr.mxu0 0.0
    %3014 = vmatpush1.msra.mxu0 0.0
    %3015 = vmatprep.subr.mxu0 0.0
    %3016 = vmatpush1.msra.mxu0 0.0
    %3017 = vmatprep.subr.mxu0 0.0
    %3018 = vmatpush1.msra.mxu0 0.0
    %3019 = vmatprep.subr.mxu0 0.0
    %3020 = vmatpush1.msra.mxu0 0.0
    %3021 = vmatprep.subr.mxu0 0.0
    %3022 = vmatpush1.msra.mxu0 0.0
    %3023 = vmatprep.subr.mxu0 0.0
    %3024 = vmatpush1.msra.mxu0 0.0
    %3025 = vmatprep.subr.mxu0 0.0
    %3026 = vmatpush1.msra.mxu0 0.0
    %3027 = vmatprep.subr.mxu0 0.0
    %3028 = vmatpush1.msra.mxu0 0.0
    %3029 = vmatprep.subr.mxu0 0.0
    %3030 = vmatpush1.msra.mxu0 0.0
    %3031 = vmatprep.subr.mxu0 0.0
    %3032 = vmatpush1.msra.mxu0 0.0
    %3033 = vmatprep.subr.mxu0 0.0
    %3034 = vmatpush1.msra.mxu0 0.0
    %3035 = vmatprep.subr.mxu0 0.0
    %3036 = vmatpush1.msra.mxu0 0.0
    %3037 = vmatprep.mubr.f32.mxu0 0.0
    %3038 = vmatmul.mubr.f32.gmra.mrb[0].mxu0 %v2971
    %v3039 = vpop.f32.mrb[0].mxu0
    %v3040 = vadd.f32 %v241, %v3039
    %v3041 = vpop.f32.mrb[0].mxu0
    %3042 = vdwg.mxu0
    %v3043 = vmul.f32 %v3040, 0.5
    %v3044 = vtanh.pop %v3043
    %v3045 = vmul.f32 %v3044, 0.5
    %v3046 = vadd.f32 %v3045, 0.5
    %v3047 = vmul.f32 %v3040, %v3046
    %v3048 = vmul.f32 %v3047, %v248
    %v3049 = vsel %vm86, %v3048, 0.0
    %3050 = vadd.xlane.f32.xlu0 %v3049
    %v3051 = vpop.xlane.xlu0 %3050
    %v3052 = vadd.f32 %v3051, %v255
    %v3053 = vmax.f32 %v2503, %v3052
    %v3054 = vsub.f32 %v2503, %v3053
    %v3055 = vmul.f32 %v3054, 1.442695
    %v3056 = vpow.pop %v3055
    %v3057 = vsub.f32 %v3052, %v3053
    %v3058 = vmul.f32 %v3057, 1.442695
    %v3059 = vpow.pop %v3058
    %v3060 = vmul.f32 %v3056, %v2511
    %v3061 = vadd.f32 %v3060, %v3059
    %3063 = vset.pattern.permute.xlu0 0
    %3064 = vperm.xlu0 %3063, %v3056
    %v3065 = vpop.permute.xlu0 %3064
    %v3067 = vmul.f32 %v3065, %v2524
    %3069 = vset.pattern.permute.xlu0 0
    %3070 = vperm.xlu0 %3069, %v3059
    %v3071 = vpop.permute.xlu0 %3070
    %v3073 = vmul.f32 %v3071, %v2967
    %v3074 = vadd.f32 %v3067, %v3073
    %3075 = vrot.lane.b32.xlu0 %v170, 48
    %v3076 = vpop.permute.xlu0 %3075
    %v3077 = vsel %vm261, %v3076, 0
    %3079 = vmatprep.subr.mxu0 %v258
    %3080 = vmatpush1.msra.mxu0 %v257
    %3081 = vmatprep.subr.mxu0 %v260
    %3082 = vmatpush1.msra.mxu0 %v259
    %3083 = vmatprep.subr.mxu0 0.0
    %3084 = vmatpush1.msra.mxu0 0.0
    %3085 = vmatprep.subr.mxu0 0.0
    %3086 = vmatpush1.msra.mxu0 0.0
    %3087 = vmatprep.subr.mxu0 0.0
    %3088 = vmatpush1.msra.mxu0 0.0
    %3089 = vmatprep.subr.mxu0 0.0
    %3090 = vmatpush1.msra.mxu0 0.0
    %3091 = vmatprep.subr.mxu0 0.0
    %3092 = vmatpush1.msra.mxu0 0.0
    %3093 = vmatprep.subr.mxu0 0.0
    %3094 = vmatpush1.msra.mxu0 0.0
    %3095 = vmatprep.subr.mxu0 0.0
    %3096 = vmatpush1.msra.mxu0 0.0
    %3097 = vmatprep.subr.mxu0 0.0
    %3098 = vmatpush1.msra.mxu0 0.0
    %3099 = vmatprep.subr.mxu0 0.0
    %3100 = vmatpush1.msra.mxu0 0.0
    %3101 = vmatprep.subr.mxu0 0.0
    %3102 = vmatpush1.msra.mxu0 0.0
    %3103 = vmatprep.subr.mxu0 0.0
    %3104 = vmatpush1.msra.mxu0 0.0
    %3105 = vmatprep.subr.mxu0 0.0
    %3106 = vmatpush1.msra.mxu0 0.0
    %3107 = vmatprep.subr.mxu0 0.0
    %3108 = vmatpush1.msra.mxu0 0.0
    %3109 = vmatprep.subr.mxu0 0.0
    %3110 = vmatpush1.msra.mxu0 0.0
    %3111 = vmatprep.subr.mxu0 0.0
    %3112 = vmatpush1.msra.mxu0 0.0
    %3113 = vmatprep.subr.mxu0 0.0
    %3114 = vmatpush1.msra.mxu0 0.0
    %3115 = vmatprep.subr.mxu0 0.0
    %3116 = vmatpush1.msra.mxu0 0.0
    %3117 = vmatprep.subr.mxu0 0.0
    %3118 = vmatpush1.msra.mxu0 0.0
    %3119 = vmatprep.subr.mxu0 0.0
    %3120 = vmatpush1.msra.mxu0 0.0
    %3121 = vmatprep.subr.mxu0 0.0
    %3122 = vmatpush1.msra.mxu0 0.0
    %3123 = vmatprep.subr.mxu0 0.0
    %3124 = vmatpush1.msra.mxu0 0.0
    %3125 = vmatprep.subr.mxu0 0.0
    %3126 = vmatpush1.msra.mxu0 0.0
    %3127 = vmatprep.subr.mxu0 0.0
    %3128 = vmatpush1.msra.mxu0 0.0
    %3129 = vmatprep.subr.mxu0 0.0
    %3130 = vmatpush1.msra.mxu0 0.0
    %3131 = vmatprep.subr.mxu0 0.0
    %3132 = vmatpush1.msra.mxu0 0.0
    %3133 = vmatprep.subr.mxu0 0.0
    %3134 = vmatpush1.msra.mxu0 0.0
    %3135 = vmatprep.subr.mxu0 0.0
    %3136 = vmatpush1.msra.mxu0 0.0
    %3137 = vmatprep.subr.mxu0 0.0
    %3138 = vmatpush1.msra.mxu0 0.0
    %3139 = vmatprep.subr.mxu0 0.0
    %3140 = vmatpush1.msra.mxu0 0.0
    %3141 = vmatprep.subr.mxu0 0.0
    %3142 = vmatpush1.msra.mxu0 0.0
    %3143 = vmatprep.mubr.f32.mxu0 0.0
    %3144 = vmatmul.mubr.f32.gmra.mrb[0].mxu0 %v3077
    %v3145 = vpop.f32.mrb[0].mxu0
    %v3146 = vadd.f32 %v176, %v3145
    %v3147 = vpop.f32.mrb[0].mxu0
    %v3148 = vadd.f32 %v180, %v3147
    %3149 = vdwg.mxu0
    %3150 = vmatprep.subr.mxu0 %v337
    %3151 = vmatpush1.msra.mxu0 %v336
    %3152 = vmatprep.subr.mxu0 %v339
    %3153 = vmatpush1.msra.mxu0 %v338
    %3154 = vmatprep.subr.mxu0 %v341
    %3155 = vmatpush1.msra.mxu0 %v340
    %3156 = vmatprep.subr.mxu0 %v343
    %3157 = vmatpush1.msra.mxu0 %v342
    %3158 = vmatprep.subr.mxu0 %v345
    %3159 = vmatpush1.msra.mxu0 %v344
    %3160 = vmatprep.subr.mxu0 %v347
    %3161 = vmatpush1.msra.mxu0 %v346
    %3162 = vmatprep.subr.mxu0 %v349
    %3163 = vmatpush1.msra.mxu0 %v348
    %3164 = vmatprep.subr.mxu0 %v351
    %3165 = vmatpush1.msra.mxu0 %v350
    %3166 = vmatprep.subr.mxu0 0.0
    %3167 = vmatpush1.msra.mxu0 0.0
    %3168 = vmatprep.subr.mxu0 0.0
    %3169 = vmatpush1.msra.mxu0 0.0
    %3170 = vmatprep.subr.mxu0 0.0
    %3171 = vmatpush1.msra.mxu0 0.0
    %3172 = vmatprep.subr.mxu0 0.0
    %3173 = vmatpush1.msra.mxu0 0.0
    %3174 = vmatprep.subr.mxu0 0.0
    %3175 = vmatpush1.msra.mxu0 0.0
    %3176 = vmatprep.subr.mxu0 0.0
    %3177 = vmatpush1.msra.mxu0 0.0
    %3178 = vmatprep.subr.mxu0 0.0
    %3179 = vmatpush1.msra.mxu0 0.0
    %3180 = vmatprep.subr.mxu0 0.0
    %3181 = vmatpush1.msra.mxu0 0.0
    %3182 = vmatprep.subr.mxu0 0.0
    %3183 = vmatpush1.msra.mxu0 0.0
    %3184 = vmatprep.subr.mxu0 0.0
    %3185 = vmatpush1.msra.mxu0 0.0
    %3186 = vmatprep.subr.mxu0 0.0
    %3187 = vmatpush1.msra.mxu0 0.0
    %3188 = vmatprep.subr.mxu0 0.0
    %3189 = vmatpush1.msra.mxu0 0.0
    %3190 = vmatprep.subr.mxu0 0.0
    %3191 = vmatpush1.msra.mxu0 0.0
    %3192 = vmatprep.subr.mxu0 0.0
    %3193 = vmatpush1.msra.mxu0 0.0
    %3194 = vmatprep.subr.mxu0 0.0
    %3195 = vmatpush1.msra.mxu0 0.0
    %3196 = vmatprep.subr.mxu0 0.0
    %3197 = vmatpush1.msra.mxu0 0.0
    %3198 = vmatprep.subr.mxu0 0.0
    %3199 = vmatpush1.msra.mxu0 0.0
    %3200 = vmatprep.subr.mxu0 0.0
    %3201 = vmatpush1.msra.mxu0 0.0
    %3202 = vmatprep.subr.mxu0 0.0
    %3203 = vmatpush1.msra.mxu0 0.0
    %3204 = vmatprep.subr.mxu0 0.0
    %3205 = vmatpush1.msra.mxu0 0.0
    %3206 = vmatprep.subr.mxu0 0.0
    %3207 = vmatpush1.msra.mxu0 0.0
    %3208 = vmatprep.subr.mxu0 0.0
    %3209 = vmatpush1.msra.mxu0 0.0
    %3210 = vmatprep.subr.mxu0 0.0
    %3211 = vmatpush1.msra.mxu0 0.0
    %3212 = vmatprep.subr.mxu0 0.0
    %3213 = vmatpush1.msra.mxu0 0.0
    %3214 = vmatprep.mubr.f32.mxu0 0.0
    %3215 = vmatmul.mubr.f32.gmra.mrb[0].mxu0 %v2690
    %v3216 = vpop.f32.mrb[0].mxu0
    %v3217 = vadd.f32 %v198, %v3216
    %v3218 = vpop.f32.mrb[0].mxu0
    %v3219 = vadd.f32 %v202, %v3218
    %3220 = vdwg.mxu0
    %v3221 = vadd.f32 %v3146, %v3217
    %v3222 = vmul.f32 %v3221, 0.5
    %v3223 = vtanh.pop %v3222
    %v3224 = vmul.f32 %v3223, 0.5
    %v3225 = vadd.f32 %v3224, 0.5
    %v3226 = vmul.f32 %v3225, %v3219
    %v3227 = vadd.f32 %v3148, %v3226
    %v3228 = vtanh.pop %v3227
    %v3229 = vsub.f32 1.0, %v3225
    %3231 = vrot.lane.b32.xlu0 %v3228, 64
    %v3232 = vpop.permute.xlu0 %3231
    %v3234 = vmul.f32 %v3229, %v3232
    %v3235 = vmul.f32 %v3225, %v2686
    %v3236 = vadd.f32 %v3234, %v3235
    %3238 = vrot.lane.b32.xlu0 %v3236, 64
    %v3239 = vpop.permute.xlu0 %3238
    %v3240 = vsel %vm86, %v3239, 0
    %3242 = vmatprep.subr.mxu0 %v444
    %3243 = vmatpush1.msra.mxu0 %v443
    %3244 = vmatprep.subr.mxu0 %v446
    %3245 = vmatpush1.msra.mxu0 %v445
    %3246 = vmatprep.subr.mxu0 %v448
    %3247 = vmatpush1.msra.mxu0 %v447
    %3248 = vmatprep.subr.mxu0 %v450
    %3249 = vmatpush1.msra.mxu0 %v449
    %3250 = vmatprep.subr.mxu0 %v452
    %3251 = vmatpush1.msra.mxu0 %v451
    %3252 = vmatprep.subr.mxu0 %v454
    %3253 = vmatpush1.msra.mxu0 %v453
    %3254 = vmatprep.subr.mxu0 %v456
    %3255 = vmatpush1.msra.mxu0 %v455
    %3256 = vmatprep.subr.mxu0 %v458
    %3257 = vmatpush1.msra.mxu0 %v457
    %3258 = vmatprep.subr.mxu0 0.0
    %3259 = vmatpush1.msra.mxu0 0.0
    %3260 = vmatprep.subr.mxu0 0.0
    %3261 = vmatpush1.msra.mxu0 0.0
    %3262 = vmatprep.subr.mxu0 0.0
    %3263 = vmatpush1.msra.mxu0 0.0
    %3264 = vmatprep.subr.mxu0 0.0
    %3265 = vmatpush1.msra.mxu0 0.0
    %3266 = vmatprep.subr.mxu0 0.0
    %3267 = vmatpush1.msra.mxu0 0.0
    %3268 = vmatprep.subr.mxu0 0.0
    %3269 = vmatpush1.msra.mxu0 0.0
    %3270 = vmatprep.subr.mxu0 0.0
    %3271 = vmatpush1.msra.mxu0 0.0
    %3272 = vmatprep.subr.mxu0 0.0
    %3273 = vmatpush1.msra.mxu0 0.0
    %3274 = vmatprep.subr.mxu0 0.0
    %3275 = vmatpush1.msra.mxu0 0.0
    %3276 = vmatprep.subr.mxu0 0.0
    %3277 = vmatpush1.msra.mxu0 0.0
    %3278 = vmatprep.subr.mxu0 0.0
    %3279 = vmatpush1.msra.mxu0 0.0
    %3280 = vmatprep.subr.mxu0 0.0
    %3281 = vmatpush1.msra.mxu0 0.0
    %3282 = vmatprep.subr.mxu0 0.0
    %3283 = vmatpush1.msra.mxu0 0.0
    %3284 = vmatprep.subr.mxu0 0.0
    %3285 = vmatpush1.msra.mxu0 0.0
    %3286 = vmatprep.subr.mxu0 0.0
    %3287 = vmatpush1.msra.mxu0 0.0
    %3288 = vmatprep.subr.mxu0 0.0
    %3289 = vmatpush1.msra.mxu0 0.0
    %3290 = vmatprep.subr.mxu0 0.0
    %3291 = vmatpush1.msra.mxu0 0.0
    %3292 = vmatprep.subr.mxu0 0.0
    %3293 = vmatpush1.msra.mxu0 0.0
    %3294 = vmatprep.subr.mxu0 0.0
    %3295 = vmatpush1.msra.mxu0 0.0
    %3296 = vmatprep.subr.mxu0 0.0
    %3297 = vmatpush1.msra.mxu0 0.0
    %3298 = vmatprep.subr.mxu0 0.0
    %3299 = vmatpush1.msra.mxu0 0.0
    %3300 = vmatprep.subr.mxu0 0.0
    %3301 = vmatpush1.msra.mxu0 0.0
    %3302 = vmatprep.subr.mxu0 0.0
    %3303 = vmatpush1.msra.mxu0 0.0
    %3304 = vmatprep.subr.mxu0 0.0
    %3305 = vmatpush1.msra.mxu0 0.0
    %3306 = vmatprep.mubr.f32.mxu0 0.0
    %3307 = vmatmul.mubr.f32.gmra.mrb[0].mxu0 %v3240
    %v3308 = vpop.f32.mrb[0].mxu0
    %v3309 = vadd.f32 %v466, %v3308
    %v3310 = vpop.f32.mrb[0].mxu0
    %v3311 = vadd.f32 %v465, %v3310
    %3312 = vdwg.mxu0
    %3314 = vrot.lane.b32.xlu0 %v2854, 64
    %v3315 = vpop.permute.xlu0 %3314
    %v3316 = vsel %vm86, %v3315, 0
    %3318 = vmatprep.subr.mxu0 %v544
    %3319 = vmatpush1.msra.mxu0 %v543
    %3320 = vmatprep.subr.mxu0 %v546
    %3321 = vmatpush1.msra.mxu0 %v545
    %3322 = vmatprep.subr.mxu0 %v548
    %3323 = vmatpush1.msra.mxu0 %v547
    %3324 = vmatprep.subr.mxu0 %v550
    %3325 = vmatpush1.msra.mxu0 %v549
    %3326 = vmatprep.subr.mxu0 %v552
    %3327 = vmatpush1.msra.mxu0 %v551
    %3328 = vmatprep.subr.mxu0 %v554
    %3329 = vmatpush1.msra.mxu0 %v553
    %3330 = vmatprep.subr.mxu0 %v556
    %3331 = vmatpush1.msra.mxu0 %v555
    %3332 = vmatprep.subr.mxu0 %v558
    %3333 = vmatpush1.msra.mxu0 %v557
    %3334 = vmatprep.subr.mxu0 0.0
    %3335 = vmatpush1.msra.mxu0 0.0
    %3336 = vmatprep.subr.mxu0 0.0
    %3337 = vmatpush1.msra.mxu0 0.0
    %3338 = vmatprep.subr.mxu0 0.0
    %3339 = vmatpush1.msra.mxu0 0.0
    %3340 = vmatprep.subr.mxu0 0.0
    %3341 = vmatpush1.msra.mxu0 0.0
    %3342 = vmatprep.subr.mxu0 0.0
    %3343 = vmatpush1.msra.mxu0 0.0
    %3344 = vmatprep.subr.mxu0 0.0
    %3345 = vmatpush1.msra.mxu0 0.0
    %3346 = vmatprep.subr.mxu0 0.0
    %3347 = vmatpush1.msra.mxu0 0.0
    %3348 = vmatprep.subr.mxu0 0.0
    %3349 = vmatpush1.msra.mxu0 0.0
    %3350 = vmatprep.subr.mxu0 0.0
    %3351 = vmatpush1.msra.mxu0 0.0
    %3352 = vmatprep.subr.mxu0 0.0
    %3353 = vmatpush1.msra.mxu0 0.0
    %3354 = vmatprep.subr.mxu0 0.0
    %3355 = vmatpush1.msra.mxu0 0.0
    %3356 = vmatprep.subr.mxu0 0.0
    %3357 = vmatpush1.msra.mxu0 0.0
    %3358 = vmatprep.subr.mxu0 0.0
    %3359 = vmatpush1.msra.mxu0 0.0
    %3360 = vmatprep.subr.mxu0 0.0
    %3361 = vmatpush1.msra.mxu0 0.0
    %3362 = vmatprep.subr.mxu0 0.0
    %3363 = vmatpush1.msra.mxu0 0.0
    %3364 = vmatprep.subr.mxu0 0.0
    %3365 = vmatpush1.msra.mxu0 0.0
    %3366 = vmatprep.subr.mxu0 0.0
    %3367 = vmatpush1.msra.mxu0 0.0
    %3368 = vmatprep.subr.mxu0 0.0
    %3369 = vmatpush1.msra.mxu0 0.0
    %3370 = vmatprep.subr.mxu0 0.0
    %3371 = vmatpush1.msra.mxu0 0.0
    %3372 = vmatprep.subr.mxu0 0.0
    %3373 = vmatpush1.msra.mxu0 0.0
    %3374 = vmatprep.subr.mxu0 0.0
    %3375 = vmatpush1.msra.mxu0 0.0
    %3376 = vmatprep.subr.mxu0 0.0
    %3377 = vmatpush1.msra.mxu0 0.0
    %3378 = vmatprep.subr.mxu0 0.0
    %3379 = vmatpush1.msra.mxu0 0.0
    %3380 = vmatprep.subr.mxu0 0.0
    %3381 = vmatpush1.msra.mxu0 0.0
    %3382 = vmatprep.mubr.f32.mxu0 0.0
    %3383 = vmatmul.mubr.f32.gmra.mrb[0].mxu0 %v3316
    %v3384 = vpop.f32.mrb[0].mxu0
    %v3385 = vadd.f32 %v563, %v3384
    %v3386 = vpop.f32.mrb[0].mxu0
    %v3387 = vadd.f32 %v562, %v3386
    %3388 = vdwg.mxu0
    %v3389 = vadd.f32 %v3309, %v3385
    %v3390 = vmul.f32 %v3389, 0.5
    %v3391 = vtanh.pop %v3390
    %v3392 = vmul.f32 %v3391, 0.5
    %v3393 = vadd.f32 %v3392, 0.5
    %v3394 = vmul.f32 %v3393, %v3387
    %v3395 = vadd.f32 %v3311, %v3394
    %v3396 = vtanh.pop %v3395
    %v3397 = vsub.f32 1.0, %v3393
    %3399 = vrot.lane.b32.xlu0 %v3396, 64
    %v3400 = vpop.permute.xlu0 %3399
    %v3402 = vmul.f32 %v3397, %v3400
    %v3403 = vmul.f32 %v3393, %v2854
    %v3404 = vadd.f32 %v3402, %v3403
    %v3406 = vsel %vm86, %v3239, %v3404
    %3407 = vmatprep.subr.mxu0 0.0
    %3408 = vmatpush1.msra.mxu0 %v655
    %3409 = vmatprep.subr.mxu0 0.0
    %3410 = vmatpush1.msra.mxu0 %v656
    %3411 = vmatprep.subr.mxu0 0.0
    %3412 = vmatpush1.msra.mxu0 %v657
    %3413 = vmatprep.subr.mxu0 0.0
    %3414 = vmatpush1.msra.mxu0 %v658
    %3415 = vmatprep.subr.mxu0 0.0
    %3416 = vmatpush1.msra.mxu0 %v659
    %3417 = vmatprep.subr.mxu0 0.0
    %3418 = vmatpush1.msra.mxu0 %v660
    %3419 = vmatprep.subr.mxu0 0.0
    %3420 = vmatpush1.msra.mxu0 %v661
    %3421 = vmatprep.subr.mxu0 0.0
    %3422 = vmatpush1.msra.mxu0 %v662
    %3423 = vmatprep.subr.mxu0 0.0
    %3424 = vmatpush1.msra.mxu0 %v663
    %3425 = vmatprep.subr.mxu0 0.0
    %3426 = vmatpush1.msra.mxu0 %v664
    %3427 = vmatprep.subr.mxu0 0.0
    %3428 = vmatpush1.msra.mxu0 %v665
    %3429 = vmatprep.subr.mxu0 0.0
    %3430 = vmatpush1.msra.mxu0 %v666
    %3431 = vmatprep.subr.mxu0 0.0
    %3432 = vmatpush1.msra.mxu0 %v667
    %3433 = vmatprep.subr.mxu0 0.0
    %3434 = vmatpush1.msra.mxu0 %v668
    %3435 = vmatprep.subr.mxu0 0.0
    %3436 = vmatpush1.msra.mxu0 %v669
    %3437 = vmatprep.subr.mxu0 0.0
    %3438 = vmatpush1.msra.mxu0 %v670
    %3439 = vmatprep.subr.mxu0 0.0
    %3440 = vmatpush1.msra.mxu0 0.0
    %3441 = vmatprep.subr.mxu0 0.0
    %3442 = vmatpush1.msra.mxu0 0.0
    %3443 = vmatprep.subr.mxu0 0.0
    %3444 = vmatpush1.msra.mxu0 0.0
    %3445 = vmatprep.subr.mxu0 0.0
    %3446 = vmatpush1.msra.mxu0 0.0
    %3447 = vmatprep.subr.mxu0 0.0
    %3448 = vmatpush1.msra.mxu0 0.0
    %3449 = vmatprep.subr.mxu0 0.0
    %3450 = vmatpush1.msra.mxu0 0.0
    %3451 = vmatprep.subr.mxu0 0.0
    %3452 = vmatpush1.msra.mxu0 0.0
    %3453 = vmatprep.subr.mxu0 0.0
    %3454 = vmatpush1.msra.mxu0 0.0
    %3455 = vmatprep.subr.mxu0 0.0
    %3456 = vmatpush1.msra.mxu0 0.0
    %3457 = vmatprep.subr.mxu0 0.0
    %3458 = vmatpush1.msra.mxu0 0.0
    %3459 = vmatprep.subr.mxu0 0.0
    %3460 = vmatpush1.msra.mxu0 0.0
    %3461 = vmatprep.subr.mxu0 0.0
    %3462 = vmatpush1.msra.mxu0 0.0
    %3463 = vmatprep.subr.mxu0 0.0
    %3464 = vmatpush1.msra.mxu0 0.0
    %3465 = vmatprep.subr.mxu0 0.0
    %3466 = vmatpush1.msra.mxu0 0.0
    %3467 = vmatprep.subr.mxu0 0.0
    %3468 = vmatpush1.msra.mxu0 0.0
    %3469 = vmatprep.subr.mxu0 0.0
    %3470 = vmatpush1.msra.mxu0 0.0
    %3471 = vmatprep.mubr.f32.mxu0 0.0
    %3472 = vmatmul.mubr.f32.gmra.mrb[0].mxu0 %v3406
    %v3473 = vpop.f32.mrb[0].mxu0
    %v3474 = vadd.f32 %v220, %v3473
    %v3475 = vpop.f32.mrb[0].mxu0
    %3476 = vdwg.mxu0
    %v3477 = vmul.f32 %v3474, 0.5
    %v3478 = vmul.f32 %v3474, 0.044715
    %v3479 = vmul.f32 %v3478, %v3474
    %v3480 = vmul.f32 %v3479, %v3474
    %v3481 = vadd.f32 %v3474, %v3480
    %v3482 = vmul.f32 %v3481, 0.7978846
    %v3483 = vtanh.pop %v3482
    %v3484 = vadd.f32 %v3483, 1.0
    %v3485 = vmul.f32 %v3477, %v3484
    %v3486 = vmul.f32 %v3485, %v227
    %v3487 = vsel %vm751, %v3486, 0.0
    %3488 = vadd.xlane.f32.xlu0 %v3487
    %v3489 = vpop.xlane.xlu0 %3488
    %v3490 = vadd.f32 %v3489, %v234
    %v3491 = vmul.f32 %v3490, 0.5
    %v3492 = vtanh.pop %v3491
    %v3493 = vmul.f32 %v3492, 0.5
    %v3494 = vadd.f32 %v3493, 0.5
    %3496 = vrot.lane.b32.xlu0 %v3486, 80
    %v3497 = vpop.permute.xlu0 %3496
    %v3499 = vsel %vm751, %v3497, 0.0
    %3500 = vadd.xlane.f32.xlu0 %v3499
    %v3501 = vpop.xlane.xlu0 %3500
    %v3502 = vadd.f32 %v3501, %v234
    %v3503 = vmul.f32 %v3502, 0.5
    %v3504 = vtanh.pop %v3503
    %v3505 = vmul.f32 %v3504, 0.5
    %v3506 = vadd.f32 %v3505, 0.5
    %3508 = vrot.lane.b32.xlu0 %v3506, 127
    %v3509 = vpop.permute.xlu0 %3508
    %v3511 = vadd.f32 %v3494, %v3509
    %3513 = vset.pattern.permute.xlu0 0
    %3514 = vperm.xlu0 %3513, %v3511
    %v3515 = vpop.permute.xlu0 %3514
    %v3517 = vmul.f32 %v3515, %v3404
    %3519 = vrot.lane.b32.xlu0 %v3517, 64
    %v3520 = vpop.permute.xlu0 %3519
    %v3521 = vsel %vm86, %v3520, 0
    %3523 = vmatprep.subr.mxu0 0.0
    %3524 = vmatpush1.msra.mxu0 %v783
    %3525 = vmatprep.subr.mxu0 0.0
    %3526 = vmatpush1.msra.mxu0 %v784
    %3527 = vmatprep.subr.mxu0 0.0
    %3528 = vmatpush1.msra.mxu0 %v785
    %3529 = vmatprep.subr.mxu0 0.0
    %3530 = vmatpush1.msra.mxu0 %v786
    %3531 = vmatprep.subr.mxu0 0.0
    %3532 = vmatpush1.msra.mxu0 %v787
    %3533 = vmatprep.subr.mxu0 0.0
    %3534 = vmatpush1.msra.mxu0 %v788
    %3535 = vmatprep.subr.mxu0 0.0
    %3536 = vmatpush1.msra.mxu0 %v789
    %3537 = vmatprep.subr.mxu0 0.0
    %3538 = vmatpush1.msra.mxu0 %v790
    %3539 = vmatprep.subr.mxu0 0.0
    %3540 = vmatpush1.msra.mxu0 0.0
    %3541 = vmatprep.subr.mxu0 0.0
    %3542 = vmatpush1.msra.mxu0 0.0
    %3543 = vmatprep.subr.mxu0 0.0
    %3544 = vmatpush1.msra.mxu0 0.0
    %3545 = vmatprep.subr.mxu0 0.0
    %3546 = vmatpush1.msra.mxu0 0.0
    %3547 = vmatprep.subr.mxu0 0.0
    %3548 = vmatpush1.msra.mxu0 0.0
    %3549 = vmatprep.subr.mxu0 0.0
    %3550 = vmatpush1.msra.mxu0 0.0
    %3551 = vmatprep.subr.mxu0 0.0
    %3552 = vmatpush1.msra.mxu0 0.0
    %3553 = vmatprep.subr.mxu0 0.0
    %3554 = vmatpush1.msra.mxu0 0.0
    %3555 = vmatprep.subr.mxu0 0.0
    %3556 = vmatpush1.msra.mxu0 0.0
    %3557 = vmatprep.subr.mxu0 0.0
    %3558 = vmatpush1.msra.mxu0 0.0
    %3559 = vmatprep.subr.mxu0 0.0
    %3560 = vmatpush1.msra.mxu0 0.0
    %3561 = vmatprep.subr.mxu0 0.0
    %3562 = vmatpush1.msra.mxu0 0.0
    %3563 = vmatprep.subr.mxu0 0.0
    %3564 = vmatpush1.msra.mxu0 0.0
    %3565 = vmatprep.subr.mxu0 0.0
    %3566 = vmatpush1.msra.mxu0 0.0
    %3567 = vmatprep.subr.mxu0 0.0
    %3568 = vmatpush1.msra.mxu0 0.0
    %3569 = vmatprep.subr.mxu0 0.0
    %3570 = vmatpush1.msra.mxu0 0.0
    %3571 = vmatprep.subr.mxu0 0.0
    %3572 = vmatpush1.msra.mxu0 0.0
    %3573 = vmatprep.subr.mxu0 0.0
    %3574 = vmatpush1.msra.mxu0 0.0
    %3575 = vmatprep.subr.mxu0 0.0
    %3576 = vmatpush1.msra.mxu0 0.0
    %3577 = vmatprep.subr.mxu0 0.0
    %3578 = vmatpush1.msra.mxu0 0.0
    %3579 = vmatprep.subr.mxu0 0.0
    %3580 = vmatpush1.msra.mxu0 0.0
    %3581 = vmatprep.subr.mxu0 0.0
    %3582 = vmatpush1.msra.mxu0 0.0
    %3583 = vmatprep.subr.mxu0 0.0
    %3584 = vmatpush1.msra.mxu0 0.0
    %3585 = vmatprep.subr.mxu0 0.0
    %3586 = vmatpush1.msra.mxu0 0.0
    %3587 = vmatprep.mubr.f32.mxu0 0.0
    %3588 = vmatmul.mubr.f32.gmra.mrb[0].mxu0 %v3521
    %v3589 = vpop.f32.mrb[0].mxu0
    %v3590 = vadd.f32 %v241, %v3589
    %v3591 = vpop.f32.mrb[0].mxu0
    %3592 = vdwg.mxu0
    %v3593 = vmul.f32 %v3590, 0.5
    %v3594 = vtanh.pop %v3593
    %v3595 = vmul.f32 %v3594, 0.5
    %v3596 = vadd.f32 %v3595, 0.5
    %v3597 = vmul.f32 %v3590, %v3596
    %v3598 = vmul.f32 %v3597, %v248
    %v3599 = vsel %vm86, %v3598, 0.0
    %3600 = vadd.xlane.f32.xlu0 %v3599
    %v3601 = vpop.xlane.xlu0 %3600
    %v3602 = vadd.f32 %v3601, %v255
    %v3603 = vmax.f32 %v3053, %v3602
    %v3604 = vsub.f32 %v3053, %v3603
    %v3605 = vmul.f32 %v3604, 1.442695
    %v3606 = vpow.pop %v3605
    %v3607 = vsub.f32 %v3602, %v3603
    %v3608 = vmul.f32 %v3607, 1.442695
    %v3609 = vpow.pop %v3608
    %v3610 = vmul.f32 %v3606, %v3061
    %v3611 = vadd.f32 %v3610, %v3609
    %3613 = vset.pattern.permute.xlu0 0
    %3614 = vperm.xlu0 %3613, %v3606
    %v3615 = vpop.permute.xlu0 %3614
    %v3617 = vmul.f32 %v3615, %v3074
    %3619 = vset.pattern.permute.xlu0 0
    %3620 = vperm.xlu0 %3619, %v3609
    %v3621 = vpop.permute.xlu0 %3620
    %v3623 = vmul.f32 %v3621, %v3517
    %v3624 = vadd.f32 %v3617, %v3623
    %3625 = vrot.lane.b32.xlu0 %v170, 32
    %v3626 = vpop.permute.xlu0 %3625
    %v3627 = vsel %vm261, %v3626, 0
    %3629 = vmatprep.subr.mxu0 %v258
    %3630 = vmatpush1.msra.mxu0 %v257
    %3631 = vmatprep.subr.mxu0 %v260
    %3632 = vmatpush1.msra.mxu0 %v259
    %3633 = vmatprep.subr.mxu0 0.0
    %3634 = vmatpush1.msra.mxu0 0.0
    %3635 = vmatprep.subr.mxu0 0.0
    %3636 = vmatpush1.msra.mxu0 0.0
    %3637 = vmatprep.subr.mxu0 0.0
    %3638 = vmatpush1.msra.mxu0 0.0
    %3639 = vmatprep.subr.mxu0 0.0
    %3640 = vmatpush1.msra.mxu0 0.0
    %3641 = vmatprep.subr.mxu0 0.0
    %3642 = vmatpush1.msra.mxu0 0.0
    %3643 = vmatprep.subr.mxu0 0.0
    %3644 = vmatpush1.msra.mxu0 0.0
    %3645 = vmatprep.subr.mxu0 0.0
    %3646 = vmatpush1.msra.mxu0 0.0
    %3647 = vmatprep.subr.mxu0 0.0
    %3648 = vmatpush1.msra.mxu0 0.0
    %3649 = vmatprep.subr.mxu0 0.0
    %3650 = vmatpush1.msra.mxu0 0.0
    %3651 = vmatprep.subr.mxu0 0.0
    %3652 = vmatpush1.msra.mxu0 0.0
    %3653 = vmatprep.subr.mxu0 0.0
    %3654 = vmatpush1.msra.mxu0 0.0
    %3655 = vmatprep.subr.mxu0 0.0
    %3656 = vmatpush1.msra.mxu0 0.0
    %3657 = vmatprep.subr.mxu0 0.0
    %3658 = vmatpush1.msra.mxu0 0.0
    %3659 = vmatprep.subr.mxu0 0.0
    %3660 = vmatpush1.msra.mxu0 0.0
    %3661 = vmatprep.subr.mxu0 0.0
    %3662 = vmatpush1.msra.mxu0 0.0
    %3663 = vmatprep.subr.mxu0 0.0
    %3664 = vmatpush1.msra.mxu0 0.0
    %3665 = vmatprep.subr.mxu0 0.0
    %3666 = vmatpush1.msra.mxu0 0.0
    %3667 = vmatprep.subr.mxu0 0.0
    %3668 = vmatpush1.msra.mxu0 0.0
    %3669 = vmatprep.subr.mxu0 0.0
    %3670 = vmatpush1.msra.mxu0 0.0
    %3671 = vmatprep.subr.mxu0 0.0
    %3672 = vmatpush1.msra.mxu0 0.0
    %3673 = vmatprep.subr.mxu0 0.0
    %3674 = vmatpush1.msra.mxu0 0.0
    %3675 = vmatprep.subr.mxu0 0.0
    %3676 = vmatpush1.msra.mxu0 0.0
    %3677 = vmatprep.subr.mxu0 0.0
    %3678 = vmatpush1.msra.mxu0 0.0
    %3679 = vmatprep.subr.mxu0 0.0
    %3680 = vmatpush1.msra.mxu0 0.0
    %3681 = vmatprep.subr.mxu0 0.0
    %3682 = vmatpush1.msra.mxu0 0.0
    %3683 = vmatprep.subr.mxu0 0.0
    %3684 = vmatpush1.msra.mxu0 0.0
    %3685 = vmatprep.subr.mxu0 0.0
    %3686 = vmatpush1.msra.mxu0 0.0
    %3687 = vmatprep.subr.mxu0 0.0
    %3688 = vmatpush1.msra.mxu0 0.0
    %3689 = vmatprep.subr.mxu0 0.0
    %3690 = vmatpush1.msra.mxu0 0.0
    %3691 = vmatprep.subr.mxu0 0.0
    %3692 = vmatpush1.msra.mxu0 0.0
    %3693 = vmatprep.mubr.f32.mxu0 0.0
    %3694 = vmatmul.mubr.f32.gmra.mrb[0].mxu0 %v3627
    %v3695 = vpop.f32.mrb[0].mxu0
    %v3696 = vadd.f32 %v176, %v3695
    %v3697 = vpop.f32.mrb[0].mxu0
    %v3698 = vadd.f32 %v180, %v3697
    %3699 = vdwg.mxu0
    %3700 = vmatprep.subr.mxu0 %v337
    %3701 = vmatpush1.msra.mxu0 %v336
    %3702 = vmatprep.subr.mxu0 %v339
    %3703 = vmatpush1.msra.mxu0 %v338
    %3704 = vmatprep.subr.mxu0 %v341
    %3705 = vmatpush1.msra.mxu0 %v340
    %3706 = vmatprep.subr.mxu0 %v343
    %3707 = vmatpush1.msra.mxu0 %v342
    %3708 = vmatprep.subr.mxu0 %v345
    %3709 = vmatpush1.msra.mxu0 %v344
    %3710 = vmatprep.subr.mxu0 %v347
    %3711 = vmatpush1.msra.mxu0 %v346
    %3712 = vmatprep.subr.mxu0 %v349
    %3713 = vmatpush1.msra.mxu0 %v348
    %3714 = vmatprep.subr.mxu0 %v351
    %3715 = vmatpush1.msra.mxu0 %v350
    %3716 = vmatprep.subr.mxu0 0.0
    %3717 = vmatpush1.msra.mxu0 0.0
    %3718 = vmatprep.subr.mxu0 0.0
    %3719 = vmatpush1.msra.mxu0 0.0
    %3720 = vmatprep.subr.mxu0 0.0
    %3721 = vmatpush1.msra.mxu0 0.0
    %3722 = vmatprep.subr.mxu0 0.0
    %3723 = vmatpush1.msra.mxu0 0.0
    %3724 = vmatprep.subr.mxu0 0.0
    %3725 = vmatpush1.msra.mxu0 0.0
    %3726 = vmatprep.subr.mxu0 0.0
    %3727 = vmatpush1.msra.mxu0 0.0
    %3728 = vmatprep.subr.mxu0 0.0
    %3729 = vmatpush1.msra.mxu0 0.0
    %3730 = vmatprep.subr.mxu0 0.0
    %3731 = vmatpush1.msra.mxu0 0.0
    %3732 = vmatprep.subr.mxu0 0.0
    %3733 = vmatpush1.msra.mxu0 0.0
    %3734 = vmatprep.subr.mxu0 0.0
    %3735 = vmatpush1.msra.mxu0 0.0
    %3736 = vmatprep.subr.mxu0 0.0
    %3737 = vmatpush1.msra.mxu0 0.0
    %3738 = vmatprep.subr.mxu0 0.0
    %3739 = vmatpush1.msra.mxu0 0.0
    %3740 = vmatprep.subr.mxu0 0.0
    %3741 = vmatpush1.msra.mxu0 0.0
    %3742 = vmatprep.subr.mxu0 0.0
    %3743 = vmatpush1.msra.mxu0 0.0
    %3744 = vmatprep.subr.mxu0 0.0
    %3745 = vmatpush1.msra.mxu0 0.0
    %3746 = vmatprep.subr.mxu0 0.0
    %3747 = vmatpush1.msra.mxu0 0.0
    %3748 = vmatprep.subr.mxu0 0.0
    %3749 = vmatpush1.msra.mxu0 0.0
    %3750 = vmatprep.subr.mxu0 0.0
    %3751 = vmatpush1.msra.mxu0 0.0
    %3752 = vmatprep.subr.mxu0 0.0
    %3753 = vmatpush1.msra.mxu0 0.0
    %3754 = vmatprep.subr.mxu0 0.0
    %3755 = vmatpush1.msra.mxu0 0.0
    %3756 = vmatprep.subr.mxu0 0.0
    %3757 = vmatpush1.msra.mxu0 0.0
    %3758 = vmatprep.subr.mxu0 0.0
    %3759 = vmatpush1.msra.mxu0 0.0
    %3760 = vmatprep.subr.mxu0 0.0
    %3761 = vmatpush1.msra.mxu0 0.0
    %3762 = vmatprep.subr.mxu0 0.0
    %3763 = vmatpush1.msra.mxu0 0.0
    %3764 = vmatprep.mubr.f32.mxu0 0.0
    %3765 = vmatmul.mubr.f32.gmra.mrb[0].mxu0 %v3240
    %v3766 = vpop.f32.mrb[0].mxu0
    %v3767 = vadd.f32 %v198, %v3766
    %v3768 = vpop.f32.mrb[0].mxu0
    %v3769 = vadd.f32 %v202, %v3768
    %3770 = vdwg.mxu0
    %v3771 = vadd.f32 %v3696, %v3767
    %v3772 = vmul.f32 %v3771, 0.5
    %v3773 = vtanh.pop %v3772
    %v3774 = vmul.f32 %v3773, 0.5
    %v3775 = vadd.f32 %v3774, 0.5
    %v3776 = vmul.f32 %v3775, %v3769
    %v3777 = vadd.f32 %v3698, %v3776
    %v3778 = vtanh.pop %v3777
    %v3779 = vsub.f32 1.0, %v3775
    %3781 = vrot.lane.b32.xlu0 %v3778, 64
    %v3782 = vpop.permute.xlu0 %3781
    %v3784 = vmul.f32 %v3779, %v3782
    %v3785 = vmul.f32 %v3775, %v3236
    %v3786 = vadd.f32 %v3784, %v3785
    %3788 = vrot.lane.b32.xlu0 %v3786, 64
    %v3789 = vpop.permute.xlu0 %3788
    %v3790 = vsel %vm86, %v3789, 0
    %3792 = vmatprep.subr.mxu0 %v444
    %3793 = vmatpush1.msra.mxu0 %v443
    %3794 = vmatprep.subr.mxu0 %v446
    %3795 = vmatpush1.msra.mxu0 %v445
    %3796 = vmatprep.subr.mxu0 %v448
    %3797 = vmatpush1.msra.mxu0 %v447
    %3798 = vmatprep.subr.mxu0 %v450
    %3799 = vmatpush1.msra.mxu0 %v449
    %3800 = vmatprep.subr.mxu0 %v452
    %3801 = vmatpush1.msra.mxu0 %v451
    %3802 = vmatprep.subr.mxu0 %v454
    %3803 = vmatpush1.msra.mxu0 %v453
    %3804 = vmatprep.subr.mxu0 %v456
    %3805 = vmatpush1.msra.mxu0 %v455
    %3806 = vmatprep.subr.mxu0 %v458
    %3807 = vmatpush1.msra.mxu0 %v457
    %3808 = vmatprep.subr.mxu0 0.0
    %3809 = vmatpush1.msra.mxu0 0.0
    %3810 = vmatprep.subr.mxu0 0.0
    %3811 = vmatpush1.msra.mxu0 0.0
    %3812 = vmatprep.subr.mxu0 0.0
    %3813 = vmatpush1.msra.mxu0 0.0
    %3814 = vmatprep.subr.mxu0 0.0
    %3815 = vmatpush1.msra.mxu0 0.0
    %3816 = vmatprep.subr.mxu0 0.0
    %3817 = vmatpush1.msra.mxu0 0.0
    %3818 = vmatprep.subr.mxu0 0.0
    %3819 = vmatpush1.msra.mxu0 0.0
    %3820 = vmatprep.subr.mxu0 0.0
    %3821 = vmatpush1.msra.mxu0 0.0
    %3822 = vmatprep.subr.mxu0 0.0
    %3823 = vmatpush1.msra.mxu0 0.0
    %3824 = vmatprep.subr.mxu0 0.0
    %3825 = vmatpush1.msra.mxu0 0.0
    %3826 = vmatprep.subr.mxu0 0.0
    %3827 = vmatpush1.msra.mxu0 0.0
    %3828 = vmatprep.subr.mxu0 0.0
    %3829 = vmatpush1.msra.mxu0 0.0
    %3830 = vmatprep.subr.mxu0 0.0
    %3831 = vmatpush1.msra.mxu0 0.0
    %3832 = vmatprep.subr.mxu0 0.0
    %3833 = vmatpush1.msra.mxu0 0.0
    %3834 = vmatprep.subr.mxu0 0.0
    %3835 = vmatpush1.msra.mxu0 0.0
    %3836 = vmatprep.subr.mxu0 0.0
    %3837 = vmatpush1.msra.mxu0 0.0
    %3838 = vmatprep.subr.mxu0 0.0
    %3839 = vmatpush1.msra.mxu0 0.0
    %3840 = vmatprep.subr.mxu0 0.0
    %3841 = vmatpush1.msra.mxu0 0.0
    %3842 = vmatprep.subr.mxu0 0.0
    %3843 = vmatpush1.msra.mxu0 0.0
    %3844 = vmatprep.subr.mxu0 0.0
    %3845 = vmatpush1.msra.mxu0 0.0
    %3846 = vmatprep.subr.mxu0 0.0
    %3847 = vmatpush1.msra.mxu0 0.0
    %3848 = vmatprep.subr.mxu0 0.0
    %3849 = vmatpush1.msra.mxu0 0.0
    %3850 = vmatprep.subr.mxu0 0.0
    %3851 = vmatpush1.msra.mxu0 0.0
    %3852 = vmatprep.subr.mxu0 0.0
    %3853 = vmatpush1.msra.mxu0 0.0
    %3854 = vmatprep.subr.mxu0 0.0
    %3855 = vmatpush1.msra.mxu0 0.0
    %3856 = vmatprep.mubr.f32.mxu0 0.0
    %3857 = vmatmul.mubr.f32.gmra.mrb[0].mxu0 %v3790
    %v3858 = vpop.f32.mrb[0].mxu0
    %v3859 = vadd.f32 %v466, %v3858
    %v3860 = vpop.f32.mrb[0].mxu0
    %v3861 = vadd.f32 %v465, %v3860
    %3862 = vdwg.mxu0
    %3864 = vrot.lane.b32.xlu0 %v3404, 64
    %v3865 = vpop.permute.xlu0 %3864
    %v3866 = vsel %vm86, %v3865, 0
    %3868 = vmatprep.subr.mxu0 %v544
    %3869 = vmatpush1.msra.mxu0 %v543
    %3870 = vmatprep.subr.mxu0 %v546
    %3871 = vmatpush1.msra.mxu0 %v545
    %3872 = vmatprep.subr.mxu0 %v548
    %3873 = vmatpush1.msra.mxu0 %v547
    %3874 = vmatprep.subr.mxu0 %v550
    %3875 = vmatpush1.msra.mxu0 %v549
    %3876 = vmatprep.subr.mxu0 %v552
    %3877 = vmatpush1.msra.mxu0 %v551
    %3878 = vmatprep.subr.mxu0 %v554
    %3879 = vmatpush1.msra.mxu0 %v553
    %3880 = vmatprep.subr.mxu0 %v556
    %3881 = vmatpush1.msra.mxu0 %v555
    %3882 = vmatprep.subr.mxu0 %v558
    %3883 = vmatpush1.msra.mxu0 %v557
    %3884 = vmatprep.subr.mxu0 0.0
    %3885 = vmatpush1.msra.mxu0 0.0
    %3886 = vmatprep.subr.mxu0 0.0
    %3887 = vmatpush1.msra.mxu0 0.0
    %3888 = vmatprep.subr.mxu0 0.0
    %3889 = vmatpush1.msra.mxu0 0.0
    %3890 = vmatprep.subr.mxu0 0.0
    %3891 = vmatpush1.msra.mxu0 0.0
    %3892 = vmatprep.subr.mxu0 0.0
    %3893 = vmatpush1.msra.mxu0 0.0
    %3894 = vmatprep.subr.mxu0 0.0
    %3895 = vmatpush1.msra.mxu0 0.0
    %3896 = vmatprep.subr.mxu0 0.0
    %3897 = vmatpush1.msra.mxu0 0.0
    %3898 = vmatprep.subr.mxu0 0.0
    %3899 = vmatpush1.msra.mxu0 0.0
    %3900 = vmatprep.subr.mxu0 0.0
    %3901 = vmatpush1.msra.mxu0 0.0
    %3902 = vmatprep.subr.mxu0 0.0
    %3903 = vmatpush1.msra.mxu0 0.0
    %3904 = vmatprep.subr.mxu0 0.0
    %3905 = vmatpush1.msra.mxu0 0.0
    %3906 = vmatprep.subr.mxu0 0.0
    %3907 = vmatpush1.msra.mxu0 0.0
    %3908 = vmatprep.subr.mxu0 0.0
    %3909 = vmatpush1.msra.mxu0 0.0
    %3910 = vmatprep.subr.mxu0 0.0
    %3911 = vmatpush1.msra.mxu0 0.0
    %3912 = vmatprep.subr.mxu0 0.0
    %3913 = vmatpush1.msra.mxu0 0.0
    %3914 = vmatprep.subr.mxu0 0.0
    %3915 = vmatpush1.msra.mxu0 0.0
    %3916 = vmatprep.subr.mxu0 0.0
    %3917 = vmatpush1.msra.mxu0 0.0
    %3918 = vmatprep.subr.mxu0 0.0
    %3919 = vmatpush1.msra.mxu0 0.0
    %3920 = vmatprep.subr.mxu0 0.0
    %3921 = vmatpush1.msra.mxu0 0.0
    %3922 = vmatprep.subr.mxu0 0.0
    %3923 = vmatpush1.msra.mxu0 0.0
    %3924 = vmatprep.subr.mxu0 0.0
    %3925 = vmatpush1.msra.mxu0 0.0
    %3926 = vmatprep.subr.mxu0 0.0
    %3927 = vmatpush1.msra.mxu0 0.0
    %3928 = vmatprep.subr.mxu0 0.0
    %3929 = vmatpush1.msra.mxu0 0.0
    %3930 = vmatprep.subr.mxu0 0.0
    %3931 = vmatpush1.msra.mxu0 0.0
    %3932 = vmatprep.mubr.f32.mxu0 0.0
    %3933 = vmatmul.mubr.f32.gmra.mrb[0].mxu0 %v3866
    %v3934 = vpop.f32.mrb[0].mxu0
    %v3935 = vadd.f32 %v563, %v3934
    %v3936 = vpop.f32.mrb[0].mxu0
    %v3937 = vadd.f32 %v562, %v3936
    %3938 = vdwg.mxu0
    %v3939 = vadd.f32 %v3859, %v3935
    %v3940 = vmul.f32 %v3939, 0.5
    %v3941 = vtanh.pop %v3940
    %v3942 = vmul.f32 %v3941, 0.5
    %v3943 = vadd.f32 %v3942, 0.5
    %v3944 = vmul.f32 %v3943, %v3937
    %v3945 = vadd.f32 %v3861, %v3944
    %v3946 = vtanh.pop %v3945
    %v3947 = vsub.f32 1.0, %v3943
    %3949 = vrot.lane.b32.xlu0 %v3946, 64
    %v3950 = vpop.permute.xlu0 %3949
    %v3952 = vmul.f32 %v3947, %v3950
    %v3953 = vmul.f32 %v3943, %v3404
    %v3954 = vadd.f32 %v3952, %v3953
    %v3956 = vsel %vm86, %v3789, %v3954
    %3957 = vmatprep.subr.mxu0 0.0
    %3958 = vmatpush1.msra.mxu0 %v655
    %3959 = vmatprep.subr.mxu0 0.0
    %3960 = vmatpush1.msra.mxu0 %v656
    %3961 = vmatprep.subr.mxu0 0.0
    %3962 = vmatpush1.msra.mxu0 %v657
    %3963 = vmatprep.subr.mxu0 0.0
    %3964 = vmatpush1.msra.mxu0 %v658
    %3965 = vmatprep.subr.mxu0 0.0
    %3966 = vmatpush1.msra.mxu0 %v659
    %3967 = vmatprep.subr.mxu0 0.0
    %3968 = vmatpush1.msra.mxu0 %v660
    %3969 = vmatprep.subr.mxu0 0.0
    %3970 = vmatpush1.msra.mxu0 %v661
    %3971 = vmatprep.subr.mxu0 0.0
    %3972 = vmatpush1.msra.mxu0 %v662
    %3973 = vmatprep.subr.mxu0 0.0
    %3974 = vmatpush1.msra.mxu0 %v663
    %3975 = vmatprep.subr.mxu0 0.0
    %3976 = vmatpush1.msra.mxu0 %v664
    %3977 = vmatprep.subr.mxu0 0.0
    %3978 = vmatpush1.msra.mxu0 %v665
    %3979 = vmatprep.subr.mxu0 0.0
    %3980 = vmatpush1.msra.mxu0 %v666
    %3981 = vmatprep.subr.mxu0 0.0
    %3982 = vmatpush1.msra.mxu0 %v667
    %3983 = vmatprep.subr.mxu0 0.0
    %3984 = vmatpush1.msra.mxu0 %v668
    %3985 = vmatprep.subr.mxu0 0.0
    %3986 = vmatpush1.msra.mxu0 %v669
    %3987 = vmatprep.subr.mxu0 0.0
    %3988 = vmatpush1.msra.mxu0 %v670
    %3989 = vmatprep.subr.mxu0 0.0
    %3990 = vmatpush1.msra.mxu0 0.0
    %3991 = vmatprep.subr.mxu0 0.0
    %3992 = vmatpush1.msra.mxu0 0.0
    %3993 = vmatprep.subr.mxu0 0.0
    %3994 = vmatpush1.msra.mxu0 0.0
    %3995 = vmatprep.subr.mxu0 0.0
    %3996 = vmatpush1.msra.mxu0 0.0
    %3997 = vmatprep.subr.mxu0 0.0
    %3998 = vmatpush1.msra.mxu0 0.0
    %3999 = vmatprep.subr.mxu0 0.0
    %4000 = vmatpush1.msra.mxu0 0.0
    %4001 = vmatprep.subr.mxu0 0.0
    %4002 = vmatpush1.msra.mxu0 0.0
    %4003 = vmatprep.subr.mxu0 0.0
    %4004 = vmatpush1.msra.mxu0 0.0
    %4005 = vmatprep.subr.mxu0 0.0
    %4006 = vmatpush1.msra.mxu0 0.0
    %4007 = vmatprep.subr.mxu0 0.0
    %4008 = vmatpush1.msra.mxu0 0.0
    %4009 = vmatprep.subr.mxu0 0.0
    %4010 = vmatpush1.msra.mxu0 0.0
    %4011 = vmatprep.subr.mxu0 0.0
    %4012 = vmatpush1.msra.mxu0 0.0
    %4013 = vmatprep.subr.mxu0 0.0
    %4014 = vmatpush1.msra.mxu0 0.0
    %4015 = vmatprep.subr.mxu0 0.0
    %4016 = vmatpush1.msra.mxu0 0.0
    %4017 = vmatprep.subr.mxu0 0.0
    %4018 = vmatpush1.msra.mxu0 0.0
    %4019 = vmatprep.subr.mxu0 0.0
    %4020 = vmatpush1.msra.mxu0 0.0
    %4021 = vmatprep.mubr.f32.mxu0 0.0
    %4022 = vmatmul.mubr.f32.gmra.mrb[0].mxu0 %v3956
    %v4023 = vpop.f32.mrb[0].mxu0
    %v4024 = vadd.f32 %v220, %v4023
    %v4025 = vpop.f32.mrb[0].mxu0
    %4026 = vdwg.mxu0
    %v4027 = vmul.f32 %v4024, 0.5
    %v4028 = vmul.f32 %v4024, 0.044715
    %v4029 = vmul.f32 %v4028, %v4024
    %v4030 = vmul.f32 %v4029, %v4024
    %v4031 = vadd.f32 %v4024, %v4030
    %v4032 = vmul.f32 %v4031, 0.7978846
    %v4033 = vtanh.pop %v4032
    %v4034 = vadd.f32 %v4033, 1.0
    %v4035 = vmul.f32 %v4027, %v4034
    %v4036 = vmul.f32 %v4035, %v227
    %v4037 = vsel %vm751, %v4036, 0.0
    %4038 = vadd.xlane.f32.xlu0 %v4037
    %v4039 = vpop.xlane.xlu0 %4038
    %v4040 = vadd.f32 %v4039, %v234
    %v4041 = vmul.f32 %v4040, 0.5
    %v4042 = vtanh.pop %v4041
    %v4043 = vmul.f32 %v4042, 0.5
    %v4044 = vadd.f32 %v4043, 0.5
    %4046 = vrot.lane.b32.xlu0 %v4036, 80
    %v4047 = vpop.permute.xlu0 %4046
    %v4049 = vsel %vm751, %v4047, 0.0
    %4050 = vadd.xlane.f32.xlu0 %v4049
    %v4051 = vpop.xlane.xlu0 %4050
    %v4052 = vadd.f32 %v4051, %v234
    %v4053 = vmul.f32 %v4052, 0.5
    %v4054 = vtanh.pop %v4053
    %v4055 = vmul.f32 %v4054, 0.5
    %v4056 = vadd.f32 %v4055, 0.5
    %4058 = vrot.lane.b32.xlu0 %v4056, 127
    %v4059 = vpop.permute.xlu0 %4058
    %v4061 = vadd.f32 %v4044, %v4059
    %4063 = vset.pattern.permute.xlu0 0
    %4064 = vperm.xlu0 %4063, %v4061
    %v4065 = vpop.permute.xlu0 %4064
    %v4067 = vmul.f32 %v4065, %v3954
    %4069 = vrot.lane.b32.xlu0 %v4067, 64
    %v4070 = vpop.permute.xlu0 %4069
    %v4071 = vsel %vm86, %v4070, 0
    %4073 = vmatprep.subr.mxu0 0.0
    %4074 = vmatpush1.msra.mxu0 %v783
    %4075 = vmatprep.subr.mxu0 0.0
    %4076 = vmatpush1.msra.mxu0 %v784
    %4077 = vmatprep.subr.mxu0 0.0
    %4078 = vmatpush1.msra.mxu0 %v785
    %4079 = vmatprep.subr.mxu0 0.0
    %4080 = vmatpush1.msra.mxu0 %v786
    %4081 = vmatprep.subr.mxu0 0.0
    %4082 = vmatpush1.msra.mxu0 %v787
    %4083 = vmatprep.subr.mxu0 0.0
    %4084 = vmatpush1.msra.mxu0 %v788
    %4085 = vmatprep.subr.mxu0 0.0
    %4086 = vmatpush1.msra.mxu0 %v789
    %4087 = vmatprep.subr.mxu0 0.0
    %4088 = vmatpush1.msra.mxu0 %v790
    %4089 = vmatprep.subr.mxu0 0.0
    %4090 = vmatpush1.msra.mxu0 0.0
    %4091 = vmatprep.subr.mxu0 0.0
    %4092 = vmatpush1.msra.mxu0 0.0
    %4093 = vmatprep.subr.mxu0 0.0
    %4094 = vmatpush1.msra.mxu0 0.0
    %4095 = vmatprep.subr.mxu0 0.0
    %4096 = vmatpush1.msra.mxu0 0.0
    %4097 = vmatprep.subr.mxu0 0.0
    %4098 = vmatpush1.msra.mxu0 0.0
    %4099 = vmatprep.subr.mxu0 0.0
    %4100 = vmatpush1.msra.mxu0 0.0
    %4101 = vmatprep.subr.mxu0 0.0
    %4102 = vmatpush1.msra.mxu0 0.0
    %4103 = vmatprep.subr.mxu0 0.0
    %4104 = vmatpush1.msra.mxu0 0.0
    %4105 = vmatprep.subr.mxu0 0.0
    %4106 = vmatpush1.msra.mxu0 0.0
    %4107 = vmatprep.subr.mxu0 0.0
    %4108 = vmatpush1.msra.mxu0 0.0
    %4109 = vmatprep.subr.mxu0 0.0
    %4110 = vmatpush1.msra.mxu0 0.0
    %4111 = vmatprep.subr.mxu0 0.0
    %4112 = vmatpush1.msra.mxu0 0.0
    %4113 = vmatprep.subr.mxu0 0.0
    %4114 = vmatpush1.msra.mxu0 0.0
    %4115 = vmatprep.subr.mxu0 0.0
    %4116 = vmatpush1.msra.mxu0 0.0
    %4117 = vmatprep.subr.mxu0 0.0
    %4118 = vmatpush1.msra.mxu0 0.0
    %4119 = vmatprep.subr.mxu0 0.0
    %4120 = vmatpush1.msra.mxu0 0.0
    %4121 = vmatprep.subr.mxu0 0.0
    %4122 = vmatpush1.msra.mxu0 0.0
    %4123 = vmatprep.subr.mxu0 0.0
    %4124 = vmatpush1.msra.mxu0 0.0
    %4125 = vmatprep.subr.mxu0 0.0
    %4126 = vmatpush1.msra.mxu0 0.0
    %4127 = vmatprep.subr.mxu0 0.0
    %4128 = vmatpush1.msra.mxu0 0.0
    %4129 = vmatprep.subr.mxu0 0.0
    %4130 = vmatpush1.msra.mxu0 0.0
    %4131 = vmatprep.subr.mxu0 0.0
    %4132 = vmatpush1.msra.mxu0 0.0
    %4133 = vmatprep.subr.mxu0 0.0
    %4134 = vmatpush1.msra.mxu0 0.0
    %4135 = vmatprep.subr.mxu0 0.0
    %4136 = vmatpush1.msra.mxu0 0.0
    %4137 = vmatprep.mubr.f32.mxu0 0.0
    %4138 = vmatmul.mubr.f32.gmra.mrb[0].mxu0 %v4071
    %v4139 = vpop.f32.mrb[0].mxu0
    %v4140 = vadd.f32 %v241, %v4139
    %v4141 = vpop.f32.mrb[0].mxu0
    %4142 = vdwg.mxu0
    %v4143 = vmul.f32 %v4140, 0.5
    %v4144 = vtanh.pop %v4143
    %v4145 = vmul.f32 %v4144, 0.5
    %v4146 = vadd.f32 %v4145, 0.5
    %v4147 = vmul.f32 %v4140, %v4146
    %v4148 = vmul.f32 %v4147, %v248
    %v4149 = vsel %vm86, %v4148, 0.0
    %4150 = vadd.xlane.f32.xlu0 %v4149
    %v4151 = vpop.xlane.xlu0 %4150
    %v4152 = vadd.f32 %v4151, %v255
    %v4153 = vmax.f32 %v3603, %v4152
    %v4154 = vsub.f32 %v3603, %v4153
    %v4155 = vmul.f32 %v4154, 1.442695
    %v4156 = vpow.pop %v4155
    %v4157 = vsub.f32 %v4152, %v4153
    %v4158 = vmul.f32 %v4157, 1.442695
    %v4159 = vpow.pop %v4158
    %v4160 = vmul.f32 %v4156, %v3611
    %v4161 = vadd.f32 %v4160, %v4159
    %4163 = vset.pattern.permute.xlu0 0
    %4164 = vperm.xlu0 %4163, %v4156
    %v4165 = vpop.permute.xlu0 %4164
    %v4167 = vmul.f32 %v4165, %v3624
    %4169 = vset.pattern.permute.xlu0 0
    %4170 = vperm.xlu0 %4169, %v4159
    %v4171 = vpop.permute.xlu0 %4170
    %v4173 = vmul.f32 %v4171, %v4067
    %v4174 = vadd.f32 %v4167, %v4173
    %4175 = vrot.lane.b32.xlu0 %v170, 16
    %v4176 = vpop.permute.xlu0 %4175
    %v4177 = vsel %vm261, %v4176, 0
    %4179 = vmatprep.subr.mxu0 %v258
    %4180 = vmatpush1.msra.mxu0 %v257
    %4181 = vmatprep.subr.mxu0 %v260
    %4182 = vmatpush1.msra.mxu0 %v259
    %4183 = vmatprep.subr.mxu0 0.0
    %4184 = vmatpush1.msra.mxu0 0.0
    %4185 = vmatprep.subr.mxu0 0.0
    %4186 = vmatpush1.msra.mxu0 0.0
    %4187 = vmatprep.subr.mxu0 0.0
    %4188 = vmatpush1.msra.mxu0 0.0
    %4189 = vmatprep.subr.mxu0 0.0
    %4190 = vmatpush1.msra.mxu0 0.0
    %4191 = vmatprep.subr.mxu0 0.0
    %4192 = vmatpush1.msra.mxu0 0.0
    %4193 = vmatprep.subr.mxu0 0.0
    %4194 = vmatpush1.msra.mxu0 0.0
    %4195 = vmatprep.subr.mxu0 0.0
    %4196 = vmatpush1.msra.mxu0 0.0
    %4197 = vmatprep.subr.mxu0 0.0
    %4198 = vmatpush1.msra.mxu0 0.0
    %4199 = vmatprep.subr.mxu0 0.0
    %4200 = vmatpush1.msra.mxu0 0.0
    %4201 = vmatprep.subr.mxu0 0.0
    %4202 = vmatpush1.msra.mxu0 0.0
    %4203 = vmatprep.subr.mxu0 0.0
    %4204 = vmatpush1.msra.mxu0 0.0
    %4205 = vmatprep.subr.mxu0 0.0
    %4206 = vmatpush1.msra.mxu0 0.0
    %4207 = vmatprep.subr.mxu0 0.0
    %4208 = vmatpush1.msra.mxu0 0.0
    %4209 = vmatprep.subr.mxu0 0.0
    %4210 = vmatpush1.msra.mxu0 0.0
    %4211 = vmatprep.subr.mxu0 0.0
    %4212 = vmatpush1.msra.mxu0 0.0
    %4213 = vmatprep.subr.mxu0 0.0
    %4214 = vmatpush1.msra.mxu0 0.0
    %4215 = vmatprep.subr.mxu0 0.0
    %4216 = vmatpush1.msra.mxu0 0.0
    %4217 = vmatprep.subr.mxu0 0.0
    %4218 = vmatpush1.msra.mxu0 0.0
    %4219 = vmatprep.subr.mxu0 0.0
    %4220 = vmatpush1.msra.mxu0 0.0
    %4221 = vmatprep.subr.mxu0 0.0
    %4222 = vmatpush1.msra.mxu0 0.0
    %4223 = vmatprep.subr.mxu0 0.0
    %4224 = vmatpush1.msra.mxu0 0.0
    %4225 = vmatprep.subr.mxu0 0.0
    %4226 = vmatpush1.msra.mxu0 0.0
    %4227 = vmatprep.subr.mxu0 0.0
    %4228 = vmatpush1.msra.mxu0 0.0
    %4229 = vmatprep.subr.mxu0 0.0
    %4230 = vmatpush1.msra.mxu0 0.0
    %4231 = vmatprep.subr.mxu0 0.0
    %4232 = vmatpush1.msra.mxu0 0.0
    %4233 = vmatprep.subr.mxu0 0.0
    %4234 = vmatpush1.msra.mxu0 0.0
    %4235 = vmatprep.subr.mxu0 0.0
    %4236 = vmatpush1.msra.mxu0 0.0
    %4237 = vmatprep.subr.mxu0 0.0
    %4238 = vmatpush1.msra.mxu0 0.0
    %4239 = vmatprep.subr.mxu0 0.0
    %4240 = vmatpush1.msra.mxu0 0.0
    %4241 = vmatprep.subr.mxu0 0.0
    %4242 = vmatpush1.msra.mxu0 0.0
    %4243 = vmatprep.mubr.f32.mxu0 0.0
    %4244 = vmatmul.mubr.f32.gmra.mrb[0].mxu0 %v4177
    %v4245 = vpop.f32.mrb[0].mxu0
    %v4246 = vadd.f32 %v176, %v4245
    %v4247 = vpop.f32.mrb[0].mxu0
    %v4248 = vadd.f32 %v180, %v4247
    %4249 = vdwg.mxu0
    %4250 = vmatprep.subr.mxu0 %v337
    %4251 = vmatpush1.msra.mxu0 %v336
    %4252 = vmatprep.subr.mxu0 %v339
    %4253 = vmatpush1.msra.mxu0 %v338
    %4254 = vmatprep.subr.mxu0 %v341
    %4255 = vmatpush1.msra.mxu0 %v340
    %4256 = vmatprep.subr.mxu0 %v343
    %4257 = vmatpush1.msra.mxu0 %v342
    %4258 = vmatprep.subr.mxu0 %v345
    %4259 = vmatpush1.msra.mxu0 %v344
    %4260 = vmatprep.subr.mxu0 %v347
    %4261 = vmatpush1.msra.mxu0 %v346
    %4262 = vmatprep.subr.mxu0 %v349
    %4263 = vmatpush1.msra.mxu0 %v348
    %4264 = vmatprep.subr.mxu0 %v351
    %4265 = vmatpush1.msra.mxu0 %v350
    %4266 = vmatprep.subr.mxu0 0.0
    %4267 = vmatpush1.msra.mxu0 0.0
    %4268 = vmatprep.subr.mxu0 0.0
    %4269 = vmatpush1.msra.mxu0 0.0
    %4270 = vmatprep.subr.mxu0 0.0
    %4271 = vmatpush1.msra.mxu0 0.0
    %4272 = vmatprep.subr.mxu0 0.0
    %4273 = vmatpush1.msra.mxu0 0.0
    %4274 = vmatprep.subr.mxu0 0.0
    %4275 = vmatpush1.msra.mxu0 0.0
    %4276 = vmatprep.subr.mxu0 0.0
    %4277 = vmatpush1.msra.mxu0 0.0
    %4278 = vmatprep.subr.mxu0 0.0
    %4279 = vmatpush1.msra.mxu0 0.0
    %4280 = vmatprep.subr.mxu0 0.0
    %4281 = vmatpush1.msra.mxu0 0.0
    %4282 = vmatprep.subr.mxu0 0.0
    %4283 = vmatpush1.msra.mxu0 0.0
    %4284 = vmatprep.subr.mxu0 0.0
    %4285 = vmatpush1.msra.mxu0 0.0
    %4286 = vmatprep.subr.mxu0 0.0
    %4287 = vmatpush1.msra.mxu0 0.0
    %4288 = vmatprep.subr.mxu0 0.0
    %4289 = vmatpush1.msra.mxu0 0.0
    %4290 = vmatprep.subr.mxu0 0.0
    %4291 = vmatpush1.msra.mxu0 0.0
    %4292 = vmatprep.subr.mxu0 0.0
    %4293 = vmatpush1.msra.mxu0 0.0
    %4294 = vmatprep.subr.mxu0 0.0
    %4295 = vmatpush1.msra.mxu0 0.0
    %4296 = vmatprep.subr.mxu0 0.0
    %4297 = vmatpush1.msra.mxu0 0.0
    %4298 = vmatprep.subr.mxu0 0.0
    %4299 = vmatpush1.msra.mxu0 0.0
    %4300 = vmatprep.subr.mxu0 0.0
    %4301 = vmatpush1.msra.mxu0 0.0
    %4302 = vmatprep.subr.mxu0 0.0
    %4303 = vmatpush1.msra.mxu0 0.0
    %4304 = vmatprep.subr.mxu0 0.0
    %4305 = vmatpush1.msra.mxu0 0.0
    %4306 = vmatprep.subr.mxu0 0.0
    %4307 = vmatpush1.msra.mxu0 0.0
    %4308 = vmatprep.subr.mxu0 0.0
    %4309 = vmatpush1.msra.mxu0 0.0
    %4310 = vmatprep.subr.mxu0 0.0
    %4311 = vmatpush1.msra.mxu0 0.0
    %4312 = vmatprep.subr.mxu0 0.0
    %4313 = vmatpush1.msra.mxu0 0.0
    %4314 = vmatprep.mubr.f32.mxu0 0.0
    %4315 = vmatmul.mubr.f32.gmra.mrb[0].mxu0 %v3790
    %v4316 = vpop.f32.mrb[0].mxu0
    %v4317 = vadd.f32 %v198, %v4316
    %v4318 = vpop.f32.mrb[0].mxu0
    %v4319 = vadd.f32 %v202, %v4318
    %4320 = vdwg.mxu0
    %v4321 = vadd.f32 %v4246, %v4317
    %v4322 = vmul.f32 %v4321, 0.5
    %v4323 = vtanh.pop %v4322
    %v4324 = vmul.f32 %v4323, 0.5
    %v4325 = vadd.f32 %v4324, 0.5
    %v4326 = vmul.f32 %v4325, %v4319
    %v4327 = vadd.f32 %v4248, %v4326
    %v4328 = vtanh.pop %v4327
    %v4329 = vsub.f32 1.0, %v4325
    %4331 = vrot.lane.b32.xlu0 %v4328, 64
    %v4332 = vpop.permute.xlu0 %4331
    %v4334 = vmul.f32 %v4329, %v4332
    %v4335 = vmul.f32 %v4325, %v3786
    %v4336 = vadd.f32 %v4334, %v4335
    %4338 = vrot.lane.b32.xlu0 %v4336, 64
    %v4339 = vpop.permute.xlu0 %4338
    %v4340 = vsel %vm86, %v4339, 0
    %4342 = vmatprep.subr.mxu0 %v444
    %4343 = vmatpush1.msra.mxu0 %v443
    %4344 = vmatprep.subr.mxu0 %v446
    %4345 = vmatpush1.msra.mxu0 %v445
    %4346 = vmatprep.subr.mxu0 %v448
    %4347 = vmatpush1.msra.mxu0 %v447
    %4348 = vmatprep.subr.mxu0 %v450
    %4349 = vmatpush1.msra.mxu0 %v449
    %4350 = vmatprep.subr.mxu0 %v452
    %4351 = vmatpush1.msra.mxu0 %v451
    %4352 = vmatprep.subr.mxu0 %v454
    %4353 = vmatpush1.msra.mxu0 %v453
    %4354 = vmatprep.subr.mxu0 %v456
    %4355 = vmatpush1.msra.mxu0 %v455
    %4356 = vmatprep.subr.mxu0 %v458
    %4357 = vmatpush1.msra.mxu0 %v457
    %4358 = vmatprep.subr.mxu0 0.0
    %4359 = vmatpush1.msra.mxu0 0.0
    %4360 = vmatprep.subr.mxu0 0.0
    %4361 = vmatpush1.msra.mxu0 0.0
    %4362 = vmatprep.subr.mxu0 0.0
    %4363 = vmatpush1.msra.mxu0 0.0
    %4364 = vmatprep.subr.mxu0 0.0
    %4365 = vmatpush1.msra.mxu0 0.0
    %4366 = vmatprep.subr.mxu0 0.0
    %4367 = vmatpush1.msra.mxu0 0.0
    %4368 = vmatprep.subr.mxu0 0.0
    %4369 = vmatpush1.msra.mxu0 0.0
    %4370 = vmatprep.subr.mxu0 0.0
    %4371 = vmatpush1.msra.mxu0 0.0
    %4372 = vmatprep.subr.mxu0 0.0
    %4373 = vmatpush1.msra.mxu0 0.0
    %4374 = vmatprep.subr.mxu0 0.0
    %4375 = vmatpush1.msra.mxu0 0.0
    %4376 = vmatprep.subr.mxu0 0.0
    %4377 = vmatpush1.msra.mxu0 0.0
    %4378 = vmatprep.subr.mxu0 0.0
    %4379 = vmatpush1.msra.mxu0 0.0
    %4380 = vmatprep.subr.mxu0 0.0
    %4381 = vmatpush1.msra.mxu0 0.0
    %4382 = vmatprep.subr.mxu0 0.0
    %4383 = vmatpush1.msra.mxu0 0.0
    %4384 = vmatprep.subr.mxu0 0.0
    %4385 = vmatpush1.msra.mxu0 0.0
    %4386 = vmatprep.subr.mxu0 0.0
    %4387 = vmatpush1.msra.mxu0 0.0
    %4388 = vmatprep.subr.mxu0 0.0
    %4389 = vmatpush1.msra.mxu0 0.0
    %4390 = vmatprep.subr.mxu0 0.0
    %4391 = vmatpush1.msra.mxu0 0.0
    %4392 = vmatprep.subr.mxu0 0.0
    %4393 = vmatpush1.msra.mxu0 0.0
    %4394 = vmatprep.subr.mxu0 0.0
    %4395 = vmatpush1.msra.mxu0 0.0
    %4396 = vmatprep.subr.mxu0 0.0
    %4397 = vmatpush1.msra.mxu0 0.0
    %4398 = vmatprep.subr.mxu0 0.0
    %4399 = vmatpush1.msra.mxu0 0.0
    %4400 = vmatprep.subr.mxu0 0.0
    %4401 = vmatpush1.msra.mxu0 0.0
    %4402 = vmatprep.subr.mxu0 0.0
    %4403 = vmatpush1.msra.mxu0 0.0
    %4404 = vmatprep.subr.mxu0 0.0
    %4405 = vmatpush1.msra.mxu0 0.0
    %4406 = vmatprep.mubr.f32.mxu0 0.0
    %4407 = vmatmul.mubr.f32.gmra.mrb[0].mxu0 %v4340
    %v4408 = vpop.f32.mrb[0].mxu0
    %v4409 = vadd.f32 %v466, %v4408
    %v4410 = vpop.f32.mrb[0].mxu0
    %v4411 = vadd.f32 %v465, %v4410
    %4412 = vdwg.mxu0
    %4414 = vrot.lane.b32.xlu0 %v3954, 64
    %v4415 = vpop.permute.xlu0 %4414
    %v4416 = vsel %vm86, %v4415, 0
    %4418 = vmatprep.subr.mxu0 %v544
    %4419 = vmatpush1.msra.mxu0 %v543
    %4420 = vmatprep.subr.mxu0 %v546
    %4421 = vmatpush1.msra.mxu0 %v545
    %4422 = vmatprep.subr.mxu0 %v548
    %4423 = vmatpush1.msra.mxu0 %v547
    %4424 = vmatprep.subr.mxu0 %v550
    %4425 = vmatpush1.msra.mxu0 %v549
    %4426 = vmatprep.subr.mxu0 %v552
    %4427 = vmatpush1.msra.mxu0 %v551
    %4428 = vmatprep.subr.mxu0 %v554
    %4429 = vmatpush1.msra.mxu0 %v553
    %4430 = vmatprep.subr.mxu0 %v556
    %4431 = vmatpush1.msra.mxu0 %v555
    %4432 = vmatprep.subr.mxu0 %v558
    %4433 = vmatpush1.msra.mxu0 %v557
    %4434 = vmatprep.subr.mxu0 0.0
    %4435 = vmatpush1.msra.mxu0 0.0
    %4436 = vmatprep.subr.mxu0 0.0
    %4437 = vmatpush1.msra.mxu0 0.0
    %4438 = vmatprep.subr.mxu0 0.0
    %4439 = vmatpush1.msra.mxu0 0.0
    %4440 = vmatprep.subr.mxu0 0.0
    %4441 = vmatpush1.msra.mxu0 0.0
    %4442 = vmatprep.subr.mxu0 0.0
    %4443 = vmatpush1.msra.mxu0 0.0
    %4444 = vmatprep.subr.mxu0 0.0
    %4445 = vmatpush1.msra.mxu0 0.0
    %4446 = vmatprep.subr.mxu0 0.0
    %4447 = vmatpush1.msra.mxu0 0.0
    %4448 = vmatprep.subr.mxu0 0.0
    %4449 = vmatpush1.msra.mxu0 0.0
    %4450 = vmatprep.subr.mxu0 0.0
    %4451 = vmatpush1.msra.mxu0 0.0
    %4452 = vmatprep.subr.mxu0 0.0
    %4453 = vmatpush1.msra.mxu0 0.0
    %4454 = vmatprep.subr.mxu0 0.0
    %4455 = vmatpush1.msra.mxu0 0.0
    %4456 = vmatprep.subr.mxu0 0.0
    %4457 = vmatpush1.msra.mxu0 0.0
    %4458 = vmatprep.subr.mxu0 0.0
    %4459 = vmatpush1.msra.mxu0 0.0
    %4460 = vmatprep.subr.mxu0 0.0
    %4461 = vmatpush1.msra.mxu0 0.0
    %4462 = vmatprep.subr.mxu0 0.0
    %4463 = vmatpush1.msra.mxu0 0.0
    %4464 = vmatprep.subr.mxu0 0.0
    %4465 = vmatpush1.msra.mxu0 0.0
    %4466 = vmatprep.subr.mxu0 0.0
    %4467 = vmatpush1.msra.mxu0 0.0
    %4468 = vmatprep.subr.mxu0 0.0
    %4469 = vmatpush1.msra.mxu0 0.0
    %4470 = vmatprep.subr.mxu0 0.0
    %4471 = vmatpush1.msra.mxu0 0.0
    %4472 = vmatprep.subr.mxu0 0.0
    %4473 = vmatpush1.msra.mxu0 0.0
    %4474 = vmatprep.subr.mxu0 0.0
    %4475 = vmatpush1.msra.mxu0 0.0
    %4476 = vmatprep.subr.mxu0 0.0
    %4477 = vmatpush1.msra.mxu0 0.0
    %4478 = vmatprep.subr.mxu0 0.0
    %4479 = vmatpush1.msra.mxu0 0.0
    %4480 = vmatprep.subr.mxu0 0.0
    %4481 = vmatpush1.msra.mxu0 0.0
    %4482 = vmatprep.mubr.f32.mxu0 0.0
    %4483 = vmatmul.mubr.f32.gmra.mrb[0].mxu0 %v4416
    %v4484 = vpop.f32.mrb[0].mxu0
    %v4485 = vadd.f32 %v563, %v4484
    %v4486 = vpop.f32.mrb[0].mxu0
    %v4487 = vadd.f32 %v562, %v4486
    %4488 = vdwg.mxu0
    %v4489 = vadd.f32 %v4409, %v4485
    %v4490 = vmul.f32 %v4489, 0.5
    %v4491 = vtanh.pop %v4490
    %v4492 = vmul.f32 %v4491, 0.5
    %v4493 = vadd.f32 %v4492, 0.5
    %v4494 = vmul.f32 %v4493, %v4487
    %v4495 = vadd.f32 %v4411, %v4494
    %v4496 = vtanh.pop %v4495
    %v4497 = vsub.f32 1.0, %v4493
    %4499 = vrot.lane.b32.xlu0 %v4496, 64
    %v4500 = vpop.permute.xlu0 %4499
    %v4502 = vmul.f32 %v4497, %v4500
    %v4503 = vmul.f32 %v4493, %v3954
    %v4504 = vadd.f32 %v4502, %v4503
    %v4506 = vsel %vm86, %v4339, %v4504
    %4507 = vmatprep.subr.mxu0 0.0
    %4508 = vmatpush1.msra.mxu0 %v655
    %4509 = vmatprep.subr.mxu0 0.0
    %4510 = vmatpush1.msra.mxu0 %v656
    %4511 = vmatprep.subr.mxu0 0.0
    %4512 = vmatpush1.msra.mxu0 %v657
    %4513 = vmatprep.subr.mxu0 0.0
    %4514 = vmatpush1.msra.mxu0 %v658
    %4515 = vmatprep.subr.mxu0 0.0
    %4516 = vmatpush1.msra.mxu0 %v659
    %4517 = vmatprep.subr.mxu0 0.0
    %4518 = vmatpush1.msra.mxu0 %v660
    %4519 = vmatprep.subr.mxu0 0.0
    %4520 = vmatpush1.msra.mxu0 %v661
    %4521 = vmatprep.subr.mxu0 0.0
    %4522 = vmatpush1.msra.mxu0 %v662
    %4523 = vmatprep.subr.mxu0 0.0
    %4524 = vmatpush1.msra.mxu0 %v663
    %4525 = vmatprep.subr.mxu0 0.0
    %4526 = vmatpush1.msra.mxu0 %v664
    %4527 = vmatprep.subr.mxu0 0.0
    %4528 = vmatpush1.msra.mxu0 %v665
    %4529 = vmatprep.subr.mxu0 0.0
    %4530 = vmatpush1.msra.mxu0 %v666
    %4531 = vmatprep.subr.mxu0 0.0
    %4532 = vmatpush1.msra.mxu0 %v667
    %4533 = vmatprep.subr.mxu0 0.0
    %4534 = vmatpush1.msra.mxu0 %v668
    %4535 = vmatprep.subr.mxu0 0.0
    %4536 = vmatpush1.msra.mxu0 %v669
    %4537 = vmatprep.subr.mxu0 0.0
    %4538 = vmatpush1.msra.mxu0 %v670
    %4539 = vmatprep.subr.mxu0 0.0
    %4540 = vmatpush1.msra.mxu0 0.0
    %4541 = vmatprep.subr.mxu0 0.0
    %4542 = vmatpush1.msra.mxu0 0.0
    %4543 = vmatprep.subr.mxu0 0.0
    %4544 = vmatpush1.msra.mxu0 0.0
    %4545 = vmatprep.subr.mxu0 0.0
    %4546 = vmatpush1.msra.mxu0 0.0
    %4547 = vmatprep.subr.mxu0 0.0
    %4548 = vmatpush1.msra.mxu0 0.0
    %4549 = vmatprep.subr.mxu0 0.0
    %4550 = vmatpush1.msra.mxu0 0.0
    %4551 = vmatprep.subr.mxu0 0.0
    %4552 = vmatpush1.msra.mxu0 0.0
    %4553 = vmatprep.subr.mxu0 0.0
    %4554 = vmatpush1.msra.mxu0 0.0
    %4555 = vmatprep.subr.mxu0 0.0
    %4556 = vmatpush1.msra.mxu0 0.0
    %4557 = vmatprep.subr.mxu0 0.0
    %4558 = vmatpush1.msra.mxu0 0.0
    %4559 = vmatprep.subr.mxu0 0.0
    %4560 = vmatpush1.msra.mxu0 0.0
    %4561 = vmatprep.subr.mxu0 0.0
    %4562 = vmatpush1.msra.mxu0 0.0
    %4563 = vmatprep.subr.mxu0 0.0
    %4564 = vmatpush1.msra.mxu0 0.0
    %4565 = vmatprep.subr.mxu0 0.0
    %4566 = vmatpush1.msra.mxu0 0.0
    %4567 = vmatprep.subr.mxu0 0.0
    %4568 = vmatpush1.msra.mxu0 0.0
    %4569 = vmatprep.subr.mxu0 0.0
    %4570 = vmatpush1.msra.mxu0 0.0
    %4571 = vmatprep.mubr.f32.mxu0 0.0
    %4572 = vmatmul.mubr.f32.gmra.mrb[0].mxu0 %v4506
    %v4573 = vpop.f32.mrb[0].mxu0
    %v4574 = vadd.f32 %v220, %v4573
    %v4575 = vpop.f32.mrb[0].mxu0
    %4576 = vdwg.mxu0
    %v4577 = vmul.f32 %v4574, 0.5
    %v4578 = vmul.f32 %v4574, 0.044715
    %v4579 = vmul.f32 %v4578, %v4574
    %v4580 = vmul.f32 %v4579, %v4574
    %v4581 = vadd.f32 %v4574, %v4580
    %v4582 = vmul.f32 %v4581, 0.7978846
    %v4583 = vtanh.pop %v4582
    %v4584 = vadd.f32 %v4583, 1.0
    %v4585 = vmul.f32 %v4577, %v4584
    %v4586 = vmul.f32 %v4585, %v227
    %v4587 = vsel %vm751, %v4586, 0.0
    %4588 = vadd.xlane.f32.xlu0 %v4587
    %v4589 = vpop.xlane.xlu0 %4588
    %v4590 = vadd.f32 %v4589, %v234
    %v4591 = vmul.f32 %v4590, 0.5
    %v4592 = vtanh.pop %v4591
    %v4593 = vmul.f32 %v4592, 0.5
    %v4594 = vadd.f32 %v4593, 0.5
    %4596 = vrot.lane.b32.xlu0 %v4586, 80
    %v4597 = vpop.permute.xlu0 %4596
    %v4599 = vsel %vm751, %v4597, 0.0
    %4600 = vadd.xlane.f32.xlu0 %v4599
    %v4601 = vpop.xlane.xlu0 %4600
    %v4602 = vadd.f32 %v4601, %v234
    %v4603 = vmul.f32 %v4602, 0.5
    %v4604 = vtanh.pop %v4603
    %v4605 = vmul.f32 %v4604, 0.5
    %v4606 = vadd.f32 %v4605, 0.5
    %4608 = vrot.lane.b32.xlu0 %v4606, 127
    %v4609 = vpop.permute.xlu0 %4608
    %v4611 = vadd.f32 %v4594, %v4609
    %4613 = vset.pattern.permute.xlu0 0
    %4614 = vperm.xlu0 %4613, %v4611
    %v4615 = vpop.permute.xlu0 %4614
    %v4617 = vmul.f32 %v4615, %v4504
    %4619 = vrot.lane.b32.xlu0 %v4617, 64
    %v4620 = vpop.permute.xlu0 %4619
    %v4621 = vsel %vm86, %v4620, 0
    %4623 = vmatprep.subr.mxu0 0.0
    %4624 = vmatpush1.msra.mxu0 %v783
    %4625 = vmatprep.subr.mxu0 0.0
    %4626 = vmatpush1.msra.mxu0 %v784
    %4627 = vmatprep.subr.mxu0 0.0
    %4628 = vmatpush1.msra.mxu0 %v785
    %4629 = vmatprep.subr.mxu0 0.0
    %4630 = vmatpush1.msra.mxu0 %v786
    %4631 = vmatprep.subr.mxu0 0.0
    %4632 = vmatpush1.msra.mxu0 %v787
    %4633 = vmatprep.subr.mxu0 0.0
    %4634 = vmatpush1.msra.mxu0 %v788
    %4635 = vmatprep.subr.mxu0 0.0
    %4636 = vmatpush1.msra.mxu0 %v789
    %4637 = vmatprep.subr.mxu0 0.0
    %4638 = vmatpush1.msra.mxu0 %v790
    %4639 = vmatprep.subr.mxu0 0.0
    %4640 = vmatpush1.msra.mxu0 0.0
    %4641 = vmatprep.subr.mxu0 0.0
    %4642 = vmatpush1.msra.mxu0 0.0
    %4643 = vmatprep.subr.mxu0 0.0
    %4644 = vmatpush1.msra.mxu0 0.0
    %4645 = vmatprep.subr.mxu0 0.0
    %4646 = vmatpush1.msra.mxu0 0.0
    %4647 = vmatprep.subr.mxu0 0.0
    %4648 = vmatpush1.msra.mxu0 0.0
    %4649 = vmatprep.subr.mxu0 0.0
    %4650 = vmatpush1.msra.mxu0 0.0
    %4651 = vmatprep.subr.mxu0 0.0
    %4652 = vmatpush1.msra.mxu0 0.0
    %4653 = vmatprep.subr.mxu0 0.0
    %4654 = vmatpush1.msra.mxu0 0.0
    %4655 = vmatprep.subr.mxu0 0.0
    %4656 = vmatpush1.msra.mxu0 0.0
    %4657 = vmatprep.subr.mxu0 0.0
    %4658 = vmatpush1.msra.mxu0 0.0
    %4659 = vmatprep.subr.mxu0 0.0
    %4660 = vmatpush1.msra.mxu0 0.0
    %4661 = vmatprep.subr.mxu0 0.0
    %4662 = vmatpush1.msra.mxu0 0.0
    %4663 = vmatprep.subr.mxu0 0.0
    %4664 = vmatpush1.msra.mxu0 0.0
    %4665 = vmatprep.subr.mxu0 0.0
    %4666 = vmatpush1.msra.mxu0 0.0
    %4667 = vmatprep.subr.mxu0 0.0
    %4668 = vmatpush1.msra.mxu0 0.0
    %4669 = vmatprep.subr.mxu0 0.0
    %4670 = vmatpush1.msra.mxu0 0.0
    %4671 = vmatprep.subr.mxu0 0.0
    %4672 = vmatpush1.msra.mxu0 0.0
    %4673 = vmatprep.subr.mxu0 0.0
    %4674 = vmatpush1.msra.mxu0 0.0
    %4675 = vmatprep.subr.mxu0 0.0
    %4676 = vmatpush1.msra.mxu0 0.0
    %4677 = vmatprep.subr.mxu0 0.0
    %4678 = vmatpush1.msra.mxu0 0.0
    %4679 = vmatprep.subr.mxu0 0.0
    %4680 = vmatpush1.msra.mxu0 0.0
    %4681 = vmatprep.subr.mxu0 0.0
    %4682 = vmatpush1.msra.mxu0 0.0
    %4683 = vmatprep.subr.mxu0 0.0
    %4684 = vmatpush1.msra.mxu0 0.0
    %4685 = vmatprep.subr.mxu0 0.0
    %4686 = vmatpush1.msra.mxu0 0.0
    %4687 = vmatprep.mubr.f32.mxu0 0.0
    %4688 = vmatmul.mubr.f32.gmra.mrb[0].mxu0 %v4621
    %v4689 = vpop.f32.mrb[0].mxu0
    %v4690 = vadd.f32 %v241, %v4689
    %v4691 = vpop.f32.mrb[0].mxu0
    %4692 = vdwg.mxu0
    %v4693 = vmul.f32 %v4690, 0.5
    %v4694 = vtanh.pop %v4693
    %v4695 = vmul.f32 %v4694, 0.5
    %v4696 = vadd.f32 %v4695, 0.5
    %v4697 = vmul.f32 %v4690, %v4696
    %v4698 = vmul.f32 %v4697, %v248
    %v4699 = vsel %vm86, %v4698, 0.0
    %4700 = vadd.xlane.f32.xlu0 %v4699
    %v4701 = vpop.xlane.xlu0 %4700
    %v4702 = vadd.f32 %v4701, %v255
    %v4703 = vmax.f32 %v4153, %v4702
    %v4704 = vsub.f32 %v4153, %v4703
    %v4705 = vmul.f32 %v4704, 1.442695
    %v4706 = vpow.pop %v4705
    %v4707 = vsub.f32 %v4702, %v4703
    %v4708 = vmul.f32 %v4707, 1.442695
    %v4709 = vpow.pop %v4708
    %v4710 = vmul.f32 %v4706, %v4161
    %v4711 = vadd.f32 %v4710, %v4709
    %4713 = vset.pattern.permute.xlu0 0
    %4714 = vperm.xlu0 %4713, %v4706
    %v4715 = vpop.permute.xlu0 %4714
    %v4717 = vmul.f32 %v4715, %v4174
    %4719 = vset.pattern.permute.xlu0 0
    %4720 = vperm.xlu0 %4719, %v4709
    %v4721 = vpop.permute.xlu0 %4720
    %v4723 = vmul.f32 %v4721, %v4617
    %v4724 = vadd.f32 %v4717, %v4723
    %v4725 = vrcp.pop %v4711
    %4727 = vset.pattern.permute.xlu0 0
    %4728 = vperm.xlu0 %4727, %v4725
    %v4729 = vpop.permute.xlu0 %4728
    %v4731 = vmul.f32 %v4724, %v4729
    %4733 = vrot.lane.b32.xlu0 %v4731, 64
    %v4734 = vpop.permute.xlu0 %4733
    %v4736 = vsel %vm86, %v4734, 0.0
    %4737 = vadd.xlane.f32.xlu0 %v4736
    %v4738 = vpop.xlane.xlu0 %4737
    %v4739 = vmul.f32 %v4738, 0.015625
    %v4740 = vsub.f32 %v4731, %v4739
    %v4741 = vmul.f32 %v4740, %v4740
    %4743 = vrot.lane.b32.xlu0 %v4741, 64
    %v4744 = vpop.permute.xlu0 %4743
    %v4746 = vsel %vm86, %v4744, 0.0
    %4747 = vadd.xlane.f32.xlu0 %v4746
    %v4748 = vpop.xlane.xlu0 %4747
    %v4749 = vmul.f32 %v4748, 0.015625
    %v4750 = vadd.f32 %v4749, 1e-05
    %v4751 = vrsqrt.pop %v4750
    %v4752 = vmul.f32 %v4740, %v4751
    %v4753 = vld [vmem:[%s7 + $0xd] sm:$0x1]
    %v4755 = vlaneseq
    %v4756 = vshrl.u32 %v4755, 7
    %v4757 = vsub.s32 0, %v4756
    %v4758 = vrot.slane %v4753, %v4757
    %4759 = vrot.lane.b32.xlu0 %v4758, 64
    %v4760 = vpop.permute.xlu0 %4759
    %v4762 = vmul.f32 %v4752, %v4760
    %v4763 = vld [vmem:[%s7 + $0xe] sm:$0x1]
    %v4765 = vlaneseq
    %v4766 = vshrl.u32 %v4765, 7
    %v4767 = vsub.s32 0, %v4766
    %v4768 = vrot.slane %v4763, %v4767
    %4769 = vrot.lane.b32.xlu0 %v4768, 64
    %v4770 = vpop.permute.xlu0 %4769
    %v4772 = vadd.f32 %v4762, %v4770
    %v4773 = vld [vmem:[%s6] sm:$0xff]
    %v4774 = vld [vmem:[%s6 + $0x8] sm:$0xff]
    %v4775 = vld [vmem:[%s6 + $0x10] sm:$0xff]
    %v4776 = vld [vmem:[%s6 + $0x18] sm:$0xff]
    %v4777 = vld [vmem:[%s6 + $0x20] sm:$0xff]
    %v4778 = vld [vmem:[%s6 + $0x28] sm:$0xff]
    %v4779 = vld [vmem:[%s6 + $0x30] sm:$0xff]
    %v4780 = vld [vmem:[%s6 + $0x38] sm:$0xff]
    %v4781 = vld [vmem:[%s7 + $0xf] sm:$0x1]
    %v4783 = vlaneseq
    %v4784 = vshrl.u32 %v4783, 7
    %v4785 = vsub.s32 0, %v4784
    %v4786 = vrot.slane %v4781, %v4785
    %4789 = vrot.lane.b32.xlu0 %v4772, 64
    %v4790 = vpop.permute.xlu0 %4789
    %v4791 = vsel %vm86, %v4790, 0
    %4793 = vmatprep.subr.mxu0 0.0
    %4794 = vmatpush1.msra.mxu0 %v4773
    %4795 = vmatprep.subr.mxu0 0.0
    %4796 = vmatpush1.msra.mxu0 %v4774
    %4797 = vmatprep.subr.mxu0 0.0
    %4798 = vmatpush1.msra.mxu0 %v4775
    %4799 = vmatprep.subr.mxu0 0.0
    %4800 = vmatpush1.msra.mxu0 %v4776
    %4801 = vmatprep.subr.mxu0 0.0
    %4802 = vmatpush1.msra.mxu0 %v4777
    %4803 = vmatprep.subr.mxu0 0.0
    %4804 = vmatpush1.msra.mxu0 %v4778
    %4805 = vmatprep.subr.mxu0 0.0
    %4806 = vmatpush1.msra.mxu0 %v4779
    %4807 = vmatprep.subr.mxu0 0.0
    %4808 = vmatpush1.msra.mxu0 %v4780
    %4809 = vmatprep.subr.mxu0 0.0
    %4810 = vmatpush1.msra.mxu0 0.0
    %4811 = vmatprep.subr.mxu0 0.0
    %4812 = vmatpush1.msra.mxu0 0.0
    %4813 = vmatprep.subr.mxu0 0.0
    %4814 = vmatpush1.msra.mxu0 0.0
    %4815 = vmatprep.subr.mxu0 0.0
    %4816 = vmatpush1.msra.mxu0 0.0
    %4817 = vmatprep.subr.mxu0 0.0
    %4818 = vmatpush1.msra.mxu0 0.0
    %4819 = vmatprep.subr.mxu0 0.0
    %4820 = vmatpush1.msra.mxu0 0.0
    %4821 = vmatprep.subr.mxu0 0.0
    %4822 = vmatpush1.msra.mxu0 0.0
    %4823 = vmatprep.subr.mxu0 0.0
    %4824 = vmatpush1.msra.mxu0 0.0
    %4825 = vmatprep.subr.mxu0 0.0
    %4826 = vmatpush1.msra.mxu0 0.0
    %4827 = vmatprep.subr.mxu0 0.0
    %4828 = vmatpush1.msra.mxu0 0.0
    %4829 = vmatprep.subr.mxu0 0.0
    %4830 = vmatpush1.msra.mxu0 0.0
    %4831 = vmatprep.subr.mxu0 0.0
    %4832 = vmatpush1.msra.mxu0 0.0
    %4833 = vmatprep.subr.mxu0 0.0
    %4834 = vmatpush1.msra.mxu0 0.0
    %4835 = vmatprep.subr.mxu0 0.0
    %4836 = vmatpush1.msra.mxu0 0.0
    %4837 = vmatprep.subr.mxu0 0.0
    %4838 = vmatpush1.msra.mxu0 0.0
    %4839 = vmatprep.subr.mxu0 0.0
    %4840 = vmatpush1.msra.mxu0 0.0
    %4841 = vmatprep.subr.mxu0 0.0
    %4842 = vmatpush1.msra.mxu0 0.0
    %4843 = vmatprep.subr.mxu0 0.0
    %4844 = vmatpush1.msra.mxu0 0.0
    %4845 = vmatprep.subr.mxu0 0.0
    %4846 = vmatpush1.msra.mxu0 0.0
    %4847 = vmatprep.subr.mxu0 0.0
    %4848 = vmatpush1.msra.mxu0 0.0
    %4849 = vmatprep.subr.mxu0 0.0
    %4850 = vmatpush1.msra.mxu0 0.0
    %4851 = vmatprep.subr.mxu0 0.0
    %4852 = vmatpush1.msra.mxu0 0.0
    %4853 = vmatprep.subr.mxu0 0.0
    %4854 = vmatpush1.msra.mxu0 0.0
    %4855 = vmatprep.subr.mxu0 0.0
    %4856 = vmatpush1.msra.mxu0 0.0
    %4857 = vmatprep.mubr.f32.mxu0 0.0
    %4858 = vmatmul.mubr.f32.gmra.mrb[0].mxu0 %v4791
    %v4859 = vpop.f32.mrb[0].mxu0
    %v4860 = vadd.f32 %v4786, %v4859
    %v4861 = vpop.f32.mrb[0].mxu0
    %4862 = vdwg.mxu0
    %vm4863 = vcmask 15360
    %4864 = vst.msk [vmem:[%s8] sm:$0xff] %vm4863, %v4860
    // Predicated region
    $region46: #{gru_classifier_forward.1} parent=1 // pred_check
      _
    $region47: #{gru_classifier_forward.1} parent=1 // pred_check_branch
      %4866 = sbr.rel (0) target = $region49
    $region48: #{gru_classifier_forward.1} parent=1 // pred_region
      _
    $region49: #{gru_classifier_forward.1} parent=1 // pred_fallthru
      _
    // Predicated region
    $region50: #{gru_classifier_forward.1} parent=1 // pred_check
      _
    $region51: #{gru_classifier_forward.1} parent=1 // pred_check_branch
      %4868 = sbr.rel (0) target = $region53
    $region52: #{gru_classifier_forward.1} parent=1 // pred_region
      _
    $region53: #{gru_classifier_forward.1} parent=1 // pred_fallthru
      _
    %4869 = vsyncpa [#allocation3], 1
    %4870 = vsyncpa [#allocation5], 1

</llo_original>
